<compile_context>
chip_gen: v7x
topology: tpu7x:2x2x1
jax: 0.10.0
libtpu: 0.0.40
codegen_flags: <defaults>
</compile_context>

<pallas_src>
import functools

import numpy as np

import jax
import jax.numpy as jnp
from jax.experimental import pallas as pl
from jax.experimental.pallas import tpu as pltpu


def _sk_kernel(x_ref, w_ref, w1_ref, w2_ref, mask_ref, o_ref, y_scr,
               *, H, W, Wp, Cin, Cout, mid, nb, pad):
    """One batch element per grid step.

    x_ref   : (1, Nflat, Cin)    bf16  zero-padded input, spatial flattened (row = h*Wp+w)
    w_ref   : (nb*9, Cin, Cout)  bf16  per-branch, per-tap dense conv weights (tap-major)
    w1_ref  : (Cout, mid)        f32   fc1 (1x1 conv) weight, transposed
    w2_ref  : (mid, nb*Cout)     f32   fc2 (1x1 conv) weight, transposed
    mask_ref: (1, nb*Mrows)      bf16  1/(H*W) on valid width columns, 0 on pad columns
    o_ref   : (1, Mrows, Cout)   bf16  flat NHWC output (width still padded to Wp)
    y_scr   : (nb*Mrows, Cout)   bf16  per-branch ReLU'd conv outputs (branch-major rows)
    """
    Mrows = H * Wp

    # ---- branch convs: 9 accumulating MXU matmuls per branch on row-shifted views ----
    for bi in range(nb):
        d = 1 + bi            # dilation == padding of this branch
        o0 = pad - d          # offset of this branch's window inside the max-padded input
        acc = None
        for kh in range(3):
            for kw in range(3):
                off = (o0 + kh * d) * Wp + (o0 + kw * d)      # static flat row shift
                part = jnp.dot(x_ref[0, off:off + Mrows, :],
                               w_ref[bi * 9 + kh * 3 + kw],
                               preferred_element_type=jnp.float32)
                acc = part if acc is None else acc + part
        y_scr[bi * Mrows:(bi + 1) * Mrows, :] = jnp.maximum(acc, 0.0).astype(jnp.bfloat16)

    # ---- global average pool of u = sum_b y_b : ONE masked matmul over nb*Mrows rows ----
    s = jnp.dot(mask_ref[...], y_scr[...], preferred_element_type=jnp.float32)   # (1, Cout)

    # ---- fc1 (1x1 + ReLU), fc2 (1x1), softmax over the branch dimension ----
    z = jnp.maximum(jnp.dot(s, w1_ref[...], preferred_element_type=jnp.float32), 0.0)
    logits = jnp.dot(z, w2_ref[...], preferred_element_type=jnp.float32)         # (1, nb*Cout)
    rows = [logits[:, bi * Cout:(bi + 1) * Cout] for bi in range(nb)]
    m = rows[0]
    for bi in range(1, nb):
        m = jnp.maximum(m, rows[bi])
    exps = [jnp.exp(r - m) for r in rows]
    den = exps[0]
    for bi in range(1, nb):
        den = den + exps[bi]
    inv = pl.reciprocal(den, approx=True)          # EUP slot
    scales = [e * inv for e in exps]                                             # (1, Cout) f32

    # ---- weighted merge over branches (f32 math, bf16 store) ----
    out = y_scr[0:Mrows, :].astype(jnp.float32) * scales[0]
    for bi in range(1, nb):
        out = out + y_scr[bi * Mrows:(bi + 1) * Mrows, :].astype(jnp.float32) * scales[bi]
    o_ref[0, :, :] = out.astype(jnp.bfloat16)


def _grouped_to_dense(wg, cin, groups):
    """PyTorch grouped OIHW (Cout, Cin/groups, 3, 3) -> dense block-diag (3, 3, Cin, Cout)."""
    cout = wg.shape[0]
    cig, cog = cin // groups, cout // groups
    dense = jnp.zeros((3, 3, cin, cout), jnp.float32)
    for g in range(groups):
        blk = jnp.transpose(wg[g * cog:(g + 1) * cog], (2, 3, 1, 0))  # (3,3,Cig,Cog)
        dense = dense.at[:, :, g * cig:(g + 1) * cig, g * cog:(g + 1) * cog].set(blk)
    return dense


def prepare_sk_params(branch_ws, fc1_w, fc2_w, *, in_channels, groups):
    """One-time parameter repack (kept out of the per-call path)."""
    nb = len(branch_ws)
    Cout = branch_ws[0].shape[0]
    mid = fc1_w.shape[0]
    # Per-branch, per-tap dense (Cin, Cout) weights; taps row-major (kh*3 + kw).
    wtap = jnp.concatenate([
        _grouped_to_dense(w, in_channels, Cout and groups).reshape(9, in_channels, Cout)
        for w in branch_ws
    ], axis=0).astype(jnp.bfloat16)                             # (nb*9, Cin, Cout)
    w1 = fc1_w.reshape(mid, Cout).T.astype(jnp.float32)         # (Cout, mid)
    w2 = fc2_w.reshape(nb * Cout, mid).T.astype(jnp.float32)    # (mid, nb*Cout)
    return wtap, w1, w2


@jax.jit
def sk_conv_block(x_nchw, wtap, w1, w2):
    """SKConvBlock forward. x: (B, Cin, H, W) f32 NCHW; (wtap, w1, w2) from prepare_sk_params."""
    B, Cin, H, W = x_nchw.shape
    nb9, _, Cout = wtap.shape
    nb = nb9 // 9
    mid = w1.shape[1]

    P = nb                        # pad with the max dilation; per-branch offsets in-kernel
    Wp = W + 2 * P
    Hp = H + 2 * P + 1            # +1 bottom row keeps the largest tap's flat slice in bounds
    Nflat = Hp * Wp
    Mrows = H * Wp

    # Input prep (one fused XLA pass): NCHW -> NHWC, zero-pad, flatten spatial, cast bf16.
    x_nhwc = jnp.transpose(x_nchw, (0, 2, 3, 1))
    xpad = jnp.pad(x_nhwc, ((0, 0), (P, P + 1), (P, P), (0, 0)))
    x_flat = xpad.reshape(B, Nflat, Cin).astype(jnp.bfloat16)

    # Pooling mask (compile-time constant): 1/(H*W) on valid width columns, 0 on pad
    # columns, tiled nb times so pool(u = sum_b y_b) is a single matmul over y_scr.
    col = np.arange(Mrows) % Wp
    mask_row = (col < W).astype(np.float32) / float(H * W)
    mask = jnp.asarray(np.tile(mask_row, nb).reshape(1, nb * Mrows), jnp.bfloat16)

    kernel = functools.partial(_sk_kernel, H=H, W=W, Wp=Wp, Cin=Cin, Cout=Cout,
                               mid=mid, nb=nb, pad=P)

    # Explicit scoped-VMEM budget: double-buffered residency + f32 accumulator
    # temporaries + headroom (default 16 MiB v5e / 32 MiB v6e,v7x limits are too
    # tight at production shapes).  Lane dims count as >=128 (layout padding).
    lane_co = max(Cout, 128)
    lane_ci = max(Cin, 128)
    est = (2 * Nflat * lane_ci * 2            # input, bf16, double-buffered
           + 2 * nb * 9 * Cin * lane_co * 2   # conv weights, bf16, double-buffered
           + 2 * Mrows * lane_co * 2          # output, bf16, double-buffered
           + nb * Mrows * lane_co * 2         # y_scr scratch, bf16
           + 4 * Mrows * lane_co * 4)         # f32 matmul/accumulator temporaries
    vmem_limit = int(max(32 * 1024 * 1024, min(est + (8 << 20), 100 * 1024 * 1024)))

    out_flat = pl.pallas_call(
        kernel,
        out_shape=jax.ShapeDtypeStruct((B, Mrows, Cout), jnp.bfloat16),
        grid_spec=pltpu.PrefetchScalarGridSpec(
            num_scalar_prefetch=0,
            grid=(B,),
            in_specs=[
                pl.BlockSpec((1, Nflat, Cin), lambda b: (b, 0, 0)),
                pl.BlockSpec((nb * 9, Cin, Cout), lambda b: (0, 0, 0)),
                pl.BlockSpec((Cout, mid), lambda b: (0, 0)),
                pl.BlockSpec((mid, nb * Cout), lambda b: (0, 0)),
                pl.BlockSpec((1, nb * Mrows), lambda b: (0, 0)),
            ],
            out_specs=pl.BlockSpec((1, Mrows, Cout), lambda b: (b, 0, 0)),
            scratch_shapes=[
                pltpu.VMEM((nb * Mrows, Cout), jnp.bfloat16),   # per-branch conv outputs
            ],
        ),
        compiler_params=pltpu.CompilerParams(
            dimension_semantics=("parallel",),                  # v7x: shard batch over TCs
            vmem_limit_bytes=vmem_limit),
    )(x_flat, wtap, w1, w2, mask)

    # Epilogue: drop the width padding, back to NCHW, upcast (fused in one XLA pass on bf16).
    out = out_flat.reshape(B, H, Wp, Cout)[:, :, :W, :]
    return jnp.transpose(out, (0, 3, 1, 2)).astype(jnp.float32)


def _reference(x, branch_ws, fc1_w, fc2_w, *, groups, num_branches):
    """Pure-JAX f32 reference of the PyTorch forward (NCHW)."""
    nb = num_branches
    Cout = branch_ws[0].shape[0]
    mid = fc1_w.shape[0]
    ys = []
    for i in range(nb):
        d = 1 + i
        y = jax.lax.conv_general_dilated(
            x, branch_ws[i], window_strides=(1, 1),
            padding=[(d, d), (d, d)], rhs_dilation=(d, d),
            dimension_numbers=('NCHW', 'OIHW', 'NCHW'),
            feature_group_count=groups)
        ys.append(jax.nn.relu(y))
    y = jnp.stack(ys, axis=1)                       # (B, nb, Cout, H, W)
    u = jnp.sum(y, axis=1)
    s = jnp.mean(u, axis=(2, 3))                    # (B, Cout)
    z = jax.nn.relu(s @ fc1_w.reshape(mid, Cout).T)
    w = z @ fc2_w.reshape(nb * Cout, mid).T
    w = jax.nn.softmax(w.reshape(-1, nb, Cout), axis=1)
    return jnp.sum(y * w[:, :, :, None, None], axis=1)


if __name__ == "__main__":
    # Small shapes consistent with the module (groups must divide channels).
    B, Cin, H, W = 2, 32, 16, 16
    Cout = 32
    groups = 4
    num_branches = 2
    reduction, min_channels = 16, 32
    mid = max(Cin // reduction, min_channels)

    key = jax.random.PRNGKey(0)
    kx, k0, k1, kf1, kf2 = jax.random.split(key, 5)
    x = jax.random.normal(kx, (B, Cin, H, W), jnp.float32)
    branch_ws = [
        0.1 * jax.random.normal(k0, (Cout, Cin // groups, 3, 3), jnp.float32),
        0.1 * jax.random.normal(k1, (Cout, Cin // groups, 3, 3), jnp.float32),
    ]
    fc1_w = 0.1 * jax.random.normal(kf1, (mid, Cout, 1, 1), jnp.float32)
    fc2_w = 0.1 * jax.random.normal(kf2, (num_branches * Cout, mid, 1, 1), jnp.float32)

    wtap, w1, w2 = prepare_sk_params(branch_ws, fc1_w, fc2_w,
                                     in_channels=Cin, groups=groups)
    out = sk_conv_block(x, wtap, w1, w2)
    out = jax.block_until_ready(out)

    ref = _reference(x, branch_ws, fc1_w, fc2_w,
                     groups=groups, num_branches=num_branches)
    assert out.shape == (B, Cout, H, W)
    max_err = float(jnp.max(jnp.abs(out - ref)))
    # bf16 MXU inputs/weights + bf16 branch activations + bf16 output + approx
    # reciprocal -> compare against the f32 reference with a relaxed tolerance.
    assert jnp.allclose(out, ref, atol=4e-2, rtol=4e-2), max_err
    print("KERNEL_OK")
</pallas_src>

<mosaic_0001>
module attributes {stable_mosaic.version = 11 : i64} {
  func.func @_sk_kernel(%arg0: i32, %arg1: memref<1x420x32xbf16, #tpu.memory_space<vmem>>, %arg2: memref<18x32x32xbf16, #tpu.memory_space<vmem>>, %arg3: memref<32x32xf32, #tpu.memory_space<vmem>>, %arg4: memref<32x64xf32, #tpu.memory_space<vmem>>, %arg5: memref<1x640xbf16, #tpu.memory_space<vmem>>, %arg6: memref<1x320x32xbf16, #tpu.memory_space<vmem>>, %arg7: memref<640x32xbf16, #tpu.memory_space<vmem>>) attributes {dimension_semantics = [#tpu.dimension_semantics<parallel>], iteration_bounds = array<i64: 2>, scalar_prefetch = 0 : i64, scratch_operands = 1 : i64, tpu.core_type = #tpu.core_type<tc>, window_params = [{transform_indices = @transform_0, window_bounds = array<i64: 1, 420, 32>}, {pipeline_mode = #tpu.pipeline_mode<synchronous>, transform_indices = @transform_1, window_bounds = array<i64: 18, 32, 32>}, {pipeline_mode = #tpu.pipeline_mode<synchronous>, transform_indices = @transform_2, window_bounds = array<i64: 32, 32>}, {pipeline_mode = #tpu.pipeline_mode<synchronous>, transform_indices = @transform_3, window_bounds = array<i64: 32, 64>}, {pipeline_mode = #tpu.pipeline_mode<synchronous>, transform_indices = @transform_4, window_bounds = array<i64: 1, 640>}, {transform_indices = @transform_5, window_bounds = array<i64: 1, 320, 32>}]} {
    %c0 = arith.constant 0 : index
    %c21 = arith.constant 21 : index
    %c0_0 = arith.constant 0 : index
    %0 = vector.load %arg1[%c0, %c21, %c0_0] : memref<1x420x32xbf16, #tpu.memory_space<vmem>>, vector<1x320x32xbf16>
    %1 = vector.shape_cast %0 : vector<1x320x32xbf16> to vector<320x32xbf16>
    %c0_1 = arith.constant 0 : index
    %c0_2 = arith.constant 0 : index
    %c0_3 = arith.constant 0 : index
    %2 = vector.load %arg2[%c0_1, %c0_2, %c0_3] : memref<18x32x32xbf16, #tpu.memory_space<vmem>>, vector<1x32x32xbf16>
    %3 = vector.shape_cast %2 : vector<1x32x32xbf16> to vector<32x32xbf16>
    %cst = arith.constant dense<0.000000e+00> : vector<320x32xf32>
    %4 = tpu.matmul %1, %3, %cst {dimension_numbers = #tpu.dot_dimension_numbers<[1], [0], [0], [1], [0, 0, 1, 1], [], []>} : vector<320x32xbf16>, vector<32x32xbf16>, vector<320x32xf32> -> vector<320x32xf32>
    %c0_4 = arith.constant 0 : index
    %c22 = arith.constant 22 : index
    %c0_5 = arith.constant 0 : index
    %5 = vector.load %arg1[%c0_4, %c22, %c0_5] : memref<1x420x32xbf16, #tpu.memory_space<vmem>>, vector<1x320x32xbf16>
    %6 = vector.shape_cast %5 : vector<1x320x32xbf16> to vector<320x32xbf16>
    %c1 = arith.constant 1 : index
    %c0_6 = arith.constant 0 : index
    %c0_7 = arith.constant 0 : index
    %7 = vector.load %arg2[%c1, %c0_6, %c0_7] : memref<18x32x32xbf16, #tpu.memory_space<vmem>>, vector<1x32x32xbf16>
    %8 = vector.shape_cast %7 : vector<1x32x32xbf16> to vector<32x32xbf16>
    %cst_8 = arith.constant dense<0.000000e+00> : vector<320x32xf32>
    %9 = tpu.matmul %6, %8, %cst_8 {dimension_numbers = #tpu.dot_dimension_numbers<[1], [0], [0], [1], [0, 0, 1, 1], [], []>} : vector<320x32xbf16>, vector<32x32xbf16>, vector<320x32xf32> -> vector<320x32xf32>
    %10 = arith.addf %4, %9 : vector<320x32xf32>
    %c0_9 = arith.constant 0 : index
    %c23 = arith.constant 23 : index
    %c0_10 = arith.constant 0 : index
    %11 = vector.load %arg1[%c0_9, %c23, %c0_10] : memref<1x420x32xbf16, #tpu.memory_space<vmem>>, vector<1x320x32xbf16>
    %12 = vector.shape_cast %11 : vector<1x320x32xbf16> to vector<320x32xbf16>
    %c2 = arith.constant 2 : index
    %c0_11 = arith.constant 0 : index
    %c0_12 = arith.constant 0 : index
    %13 = vector.load %arg2[%c2, %c0_11, %c0_12] : memref<18x32x32xbf16, #tpu.memory_space<vmem>>, vector<1x32x32xbf16>
    %14 = vector.shape_cast %13 : vector<1x32x32xbf16> to vector<32x32xbf16>
    %cst_13 = arith.constant dense<0.000000e+00> : vector<320x32xf32>
    %15 = tpu.matmul %12, %14, %cst_13 {dimension_numbers = #tpu.dot_dimension_numbers<[1], [0], [0], [1], [0, 0, 1, 1], [], []>} : vector<320x32xbf16>, vector<32x32xbf16>, vector<320x32xf32> -> vector<320x32xf32>
    %16 = arith.addf %10, %15 : vector<320x32xf32>
    %c0_14 = arith.constant 0 : index
    %c41 = arith.constant 41 : index
    %c0_15 = arith.constant 0 : index
    %17 = vector.load %arg1[%c0_14, %c41, %c0_15] : memref<1x420x32xbf16, #tpu.memory_space<vmem>>, vector<1x320x32xbf16>
    %18 = vector.shape_cast %17 : vector<1x320x32xbf16> to vector<320x32xbf16>
    %c3 = arith.constant 3 : index
    %c0_16 = arith.constant 0 : index
    %c0_17 = arith.constant 0 : index
    %19 = vector.load %arg2[%c3, %c0_16, %c0_17] : memref<18x32x32xbf16, #tpu.memory_space<vmem>>, vector<1x32x32xbf16>
    %20 = vector.shape_cast %19 : vector<1x32x32xbf16> to vector<32x32xbf16>
    %cst_18 = arith.constant dense<0.000000e+00> : vector<320x32xf32>
    %21 = tpu.matmul %18, %20, %cst_18 {dimension_numbers = #tpu.dot_dimension_numbers<[1], [0], [0], [1], [0, 0, 1, 1], [], []>} : vector<320x32xbf16>, vector<32x32xbf16>, vector<320x32xf32> -> vector<320x32xf32>
    %22 = arith.addf %16, %21 : vector<320x32xf32>
    %c0_19 = arith.constant 0 : index
    %c42 = arith.constant 42 : index
    %c0_20 = arith.constant 0 : index
    %23 = vector.load %arg1[%c0_19, %c42, %c0_20] : memref<1x420x32xbf16, #tpu.memory_space<vmem>>, vector<1x320x32xbf16>
    %24 = vector.shape_cast %23 : vector<1x320x32xbf16> to vector<320x32xbf16>
    %c4 = arith.constant 4 : index
    %c0_21 = arith.constant 0 : index
    %c0_22 = arith.constant 0 : index
    %25 = vector.load %arg2[%c4, %c0_21, %c0_22] : memref<18x32x32xbf16, #tpu.memory_space<vmem>>, vector<1x32x32xbf16>
    %26 = vector.shape_cast %25 : vector<1x32x32xbf16> to vector<32x32xbf16>
    %cst_23 = arith.constant dense<0.000000e+00> : vector<320x32xf32>
    %27 = tpu.matmul %24, %26, %cst_23 {dimension_numbers = #tpu.dot_dimension_numbers<[1], [0], [0], [1], [0, 0, 1, 1], [], []>} : vector<320x32xbf16>, vector<32x32xbf16>, vector<320x32xf32> -> vector<320x32xf32>
    %28 = arith.addf %22, %27 : vector<320x32xf32>
    %c0_24 = arith.constant 0 : index
    %c43 = arith.constant 43 : index
    %c0_25 = arith.constant 0 : index
    %29 = vector.load %arg1[%c0_24, %c43, %c0_25] : memref<1x420x32xbf16, #tpu.memory_space<vmem>>, vector<1x320x32xbf16>
    %30 = vector.shape_cast %29 : vector<1x320x32xbf16> to vector<320x32xbf16>
    %c5 = arith.constant 5 : index
    %c0_26 = arith.constant 0 : index
    %c0_27 = arith.constant 0 : index
    %31 = vector.load %arg2[%c5, %c0_26, %c0_27] : memref<18x32x32xbf16, #tpu.memory_space<vmem>>, vector<1x32x32xbf16>
    %32 = vector.shape_cast %31 : vector<1x32x32xbf16> to vector<32x32xbf16>
    %cst_28 = arith.constant dense<0.000000e+00> : vector<320x32xf32>
    %33 = tpu.matmul %30, %32, %cst_28 {dimension_numbers = #tpu.dot_dimension_numbers<[1], [0], [0], [1], [0, 0, 1, 1], [], []>} : vector<320x32xbf16>, vector<32x32xbf16>, vector<320x32xf32> -> vector<320x32xf32>
    %34 = arith.addf %28, %33 : vector<320x32xf32>
    %c0_29 = arith.constant 0 : index
    %c61 = arith.constant 61 : index
    %c0_30 = arith.constant 0 : index
    %35 = vector.load %arg1[%c0_29, %c61, %c0_30] : memref<1x420x32xbf16, #tpu.memory_space<vmem>>, vector<1x320x32xbf16>
    %36 = vector.shape_cast %35 : vector<1x320x32xbf16> to vector<320x32xbf16>
    %c6 = arith.constant 6 : index
    %c0_31 = arith.constant 0 : index
    %c0_32 = arith.constant 0 : index
    %37 = vector.load %arg2[%c6, %c0_31, %c0_32] : memref<18x32x32xbf16, #tpu.memory_space<vmem>>, vector<1x32x32xbf16>
    %38 = vector.shape_cast %37 : vector<1x32x32xbf16> to vector<32x32xbf16>
    %cst_33 = arith.constant dense<0.000000e+00> : vector<320x32xf32>
    %39 = tpu.matmul %36, %38, %cst_33 {dimension_numbers = #tpu.dot_dimension_numbers<[1], [0], [0], [1], [0, 0, 1, 1], [], []>} : vector<320x32xbf16>, vector<32x32xbf16>, vector<320x32xf32> -> vector<320x32xf32>
    %40 = arith.addf %34, %39 : vector<320x32xf32>
    %c0_34 = arith.constant 0 : index
    %c62 = arith.constant 62 : index
    %c0_35 = arith.constant 0 : index
    %41 = vector.load %arg1[%c0_34, %c62, %c0_35] : memref<1x420x32xbf16, #tpu.memory_space<vmem>>, vector<1x320x32xbf16>
    %42 = vector.shape_cast %41 : vector<1x320x32xbf16> to vector<320x32xbf16>
    %c7 = arith.constant 7 : index
    %c0_36 = arith.constant 0 : index
    %c0_37 = arith.constant 0 : index
    %43 = vector.load %arg2[%c7, %c0_36, %c0_37] : memref<18x32x32xbf16, #tpu.memory_space<vmem>>, vector<1x32x32xbf16>
    %44 = vector.shape_cast %43 : vector<1x32x32xbf16> to vector<32x32xbf16>
    %cst_38 = arith.constant dense<0.000000e+00> : vector<320x32xf32>
    %45 = tpu.matmul %42, %44, %cst_38 {dimension_numbers = #tpu.dot_dimension_numbers<[1], [0], [0], [1], [0, 0, 1, 1], [], []>} : vector<320x32xbf16>, vector<32x32xbf16>, vector<320x32xf32> -> vector<320x32xf32>
    %46 = arith.addf %40, %45 : vector<320x32xf32>
    %c0_39 = arith.constant 0 : index
    %c63 = arith.constant 63 : index
    %c0_40 = arith.constant 0 : index
    %47 = vector.load %arg1[%c0_39, %c63, %c0_40] : memref<1x420x32xbf16, #tpu.memory_space<vmem>>, vector<1x320x32xbf16>
    %48 = vector.shape_cast %47 : vector<1x320x32xbf16> to vector<320x32xbf16>
    %c8 = arith.constant 8 : index
    %c0_41 = arith.constant 0 : index
    %c0_42 = arith.constant 0 : index
    %49 = vector.load %arg2[%c8, %c0_41, %c0_42] : memref<18x32x32xbf16, #tpu.memory_space<vmem>>, vector<1x32x32xbf16>
    %50 = vector.shape_cast %49 : vector<1x32x32xbf16> to vector<32x32xbf16>
    %cst_43 = arith.constant dense<0.000000e+00> : vector<320x32xf32>
    %51 = tpu.matmul %48, %50, %cst_43 {dimension_numbers = #tpu.dot_dimension_numbers<[1], [0], [0], [1], [0, 0, 1, 1], [], []>} : vector<320x32xbf16>, vector<32x32xbf16>, vector<320x32xf32> -> vector<320x32xf32>
    %52 = arith.addf %46, %51 : vector<320x32xf32>
    %cst_44 = arith.constant 0.000000e+00 : f32
    %53 = vector.broadcast %cst_44 : f32 to vector<320x32xf32>
    %54 = arith.maximumf %52, %53 : vector<320x32xf32>
    %55 = arith.truncf %54 : vector<320x32xf32> to vector<320x32xbf16>
    %c0_45 = arith.constant 0 : index
    %c0_46 = arith.constant 0 : index
    %56 = vector.load %arg7[%c0_45, %c0_46] : memref<640x32xbf16, #tpu.memory_space<vmem>>, vector<320x32xbf16>
    tpu.vector_store %arg7[%c0_45, %c0_46], %55 {strides = array<i32>} : memref<640x32xbf16, #tpu.memory_space<vmem>>, vector<320x32xbf16>,
    %c0_47 = arith.constant 0 : index
    %c0_48 = arith.constant 0 : index
    %c0_49 = arith.constant 0 : index
    %57 = vector.load %arg1[%c0_47, %c0_48, %c0_49] : memref<1x420x32xbf16, #tpu.memory_space<vmem>>, vector<1x320x32xbf16>
    %58 = vector.shape_cast %57 : vector<1x320x32xbf16> to vector<320x32xbf16>
    %c9 = arith.constant 9 : index
    %c0_50 = arith.constant 0 : index
    %c0_51 = arith.constant 0 : index
    %59 = vector.load %arg2[%c9, %c0_50, %c0_51] : memref<18x32x32xbf16, #tpu.memory_space<vmem>>, vector<1x32x32xbf16>
    %60 = vector.shape_cast %59 : vector<1x32x32xbf16> to vector<32x32xbf16>
    %cst_52 = arith.constant dense<0.000000e+00> : vector<320x32xf32>
    %61 = tpu.matmul %58, %60, %cst_52 {dimension_numbers = #tpu.dot_dimension_numbers<[1], [0], [0], [1], [0, 0, 1, 1], [], []>} : vector<320x32xbf16>, vector<32x32xbf16>, vector<320x32xf32> -> vector<320x32xf32>
    %c0_53 = arith.constant 0 : index
    %c2_54 = arith.constant 2 : index
    %c0_55 = arith.constant 0 : index
    %62 = vector.load %arg1[%c0_53, %c2_54, %c0_55] : memref<1x420x32xbf16, #tpu.memory_space<vmem>>, vector<1x320x32xbf16>
    %63 = vector.shape_cast %62 : vector<1x320x32xbf16> to vector<320x32xbf16>
    %c10 = arith.constant 10 : index
    %c0_56 = arith.constant 0 : index
    %c0_57 = arith.constant 0 : index
    %64 = vector.load %arg2[%c10, %c0_56, %c0_57] : memref<18x32x32xbf16, #tpu.memory_space<vmem>>, vector<1x32x32xbf16>
    %65 = vector.shape_cast %64 : vector<1x32x32xbf16> to vector<32x32xbf16>
    %cst_58 = arith.constant dense<0.000000e+00> : vector<320x32xf32>
    %66 = tpu.matmul %63, %65, %cst_58 {dimension_numbers = #tpu.dot_dimension_numbers<[1], [0], [0], [1], [0, 0, 1, 1], [], []>} : vector<320x32xbf16>, vector<32x32xbf16>, vector<320x32xf32> -> vector<320x32xf32>
    %67 = arith.addf %61, %66 : vector<320x32xf32>
    %c0_59 = arith.constant 0 : index
    %c4_60 = arith.constant 4 : index
    %c0_61 = arith.constant 0 : index
    %68 = vector.load %arg1[%c0_59, %c4_60, %c0_61] : memref<1x420x32xbf16, #tpu.memory_space<vmem>>, vector<1x320x32xbf16>
    %69 = vector.shape_cast %68 : vector<1x320x32xbf16> to vector<320x32xbf16>
    %c11 = arith.constant 11 : index
    %c0_62 = arith.constant 0 : index
    %c0_63 = arith.constant 0 : index
    %70 = vector.load %arg2[%c11, %c0_62, %c0_63] : memref<18x32x32xbf16, #tpu.memory_space<vmem>>, vector<1x32x32xbf16>
    %71 = vector.shape_cast %70 : vector<1x32x32xbf16> to vector<32x32xbf16>
    %cst_64 = arith.constant dense<0.000000e+00> : vector<320x32xf32>
    %72 = tpu.matmul %69, %71, %cst_64 {dimension_numbers = #tpu.dot_dimension_numbers<[1], [0], [0], [1], [0, 0, 1, 1], [], []>} : vector<320x32xbf16>, vector<32x32xbf16>, vector<320x32xf32> -> vector<320x32xf32>
    %73 = arith.addf %67, %72 : vector<320x32xf32>
    %c0_65 = arith.constant 0 : index
    %c40 = arith.constant 40 : index
    %c0_66 = arith.constant 0 : index
    %74 = vector.load %arg1[%c0_65, %c40, %c0_66] : memref<1x420x32xbf16, #tpu.memory_space<vmem>>, vector<1x320x32xbf16>
    %75 = vector.shape_cast %74 : vector<1x320x32xbf16> to vector<320x32xbf16>
    %c12 = arith.constant 12 : index
    %c0_67 = arith.constant 0 : index
    %c0_68 = arith.constant 0 : index
    %76 = vector.load %arg2[%c12, %c0_67, %c0_68] : memref<18x32x32xbf16, #tpu.memory_space<vmem>>, vector<1x32x32xbf16>
    %77 = vector.shape_cast %76 : vector<1x32x32xbf16> to vector<32x32xbf16>
    %cst_69 = arith.constant dense<0.000000e+00> : vector<320x32xf32>
    %78 = tpu.matmul %75, %77, %cst_69 {dimension_numbers = #tpu.dot_dimension_numbers<[1], [0], [0], [1], [0, 0, 1, 1], [], []>} : vector<320x32xbf16>, vector<32x32xbf16>, vector<320x32xf32> -> vector<320x32xf32>
    %79 = arith.addf %73, %78 : vector<320x32xf32>
    %c0_70 = arith.constant 0 : index
    %c42_71 = arith.constant 42 : index
    %c0_72 = arith.constant 0 : index
    %80 = vector.load %arg1[%c0_70, %c42_71, %c0_72] : memref<1x420x32xbf16, #tpu.memory_space<vmem>>, vector<1x320x32xbf16>
    %81 = vector.shape_cast %80 : vector<1x320x32xbf16> to vector<320x32xbf16>
    %c13 = arith.constant 13 : index
    %c0_73 = arith.constant 0 : index
    %c0_74 = arith.constant 0 : index
    %82 = vector.load %arg2[%c13, %c0_73, %c0_74] : memref<18x32x32xbf16, #tpu.memory_space<vmem>>, vector<1x32x32xbf16>
    %83 = vector.shape_cast %82 : vector<1x32x32xbf16> to vector<32x32xbf16>
    %cst_75 = arith.constant dense<0.000000e+00> : vector<320x32xf32>
    %84 = tpu.matmul %81, %83, %cst_75 {dimension_numbers = #tpu.dot_dimension_numbers<[1], [0], [0], [1], [0, 0, 1, 1], [], []>} : vector<320x32xbf16>, vector<32x32xbf16>, vector<320x32xf32> -> vector<320x32xf32>
    %85 = arith.addf %79, %84 : vector<320x32xf32>
    %c0_76 = arith.constant 0 : index
    %c44 = arith.constant 44 : index
    %c0_77 = arith.constant 0 : index
    %86 = vector.load %arg1[%c0_76, %c44, %c0_77] : memref<1x420x32xbf16, #tpu.memory_space<vmem>>, vector<1x320x32xbf16>
    %87 = vector.shape_cast %86 : vector<1x320x32xbf16> to vector<320x32xbf16>
    %c14 = arith.constant 14 : index
    %c0_78 = arith.constant 0 : index
    %c0_79 = arith.constant 0 : index
    %88 = vector.load %arg2[%c14, %c0_78, %c0_79] : memref<18x32x32xbf16, #tpu.memory_space<vmem>>, vector<1x32x32xbf16>
    %89 = vector.shape_cast %88 : vector<1x32x32xbf16> to vector<32x32xbf16>
    %cst_80 = arith.constant dense<0.000000e+00> : vector<320x32xf32>
    %90 = tpu.matmul %87, %89, %cst_80 {dimension_numbers = #tpu.dot_dimension_numbers<[1], [0], [0], [1], [0, 0, 1, 1], [], []>} : vector<320x32xbf16>, vector<32x32xbf16>, vector<320x32xf32> -> vector<320x32xf32>
    %91 = arith.addf %85, %90 : vector<320x32xf32>
    %c0_81 = arith.constant 0 : index
    %c80 = arith.constant 80 : index
    %c0_82 = arith.constant 0 : index
    %92 = vector.load %arg1[%c0_81, %c80, %c0_82] : memref<1x420x32xbf16, #tpu.memory_space<vmem>>, vector<1x320x32xbf16>
    %93 = vector.shape_cast %92 : vector<1x320x32xbf16> to vector<320x32xbf16>
    %c15 = arith.constant 15 : index
    %c0_83 = arith.constant 0 : index
    %c0_84 = arith.constant 0 : index
    %94 = vector.load %arg2[%c15, %c0_83, %c0_84] : memref<18x32x32xbf16, #tpu.memory_space<vmem>>, vector<1x32x32xbf16>
    %95 = vector.shape_cast %94 : vector<1x32x32xbf16> to vector<32x32xbf16>
    %cst_85 = arith.constant dense<0.000000e+00> : vector<320x32xf32>
    %96 = tpu.matmul %93, %95, %cst_85 {dimension_numbers = #tpu.dot_dimension_numbers<[1], [0], [0], [1], [0, 0, 1, 1], [], []>} : vector<320x32xbf16>, vector<32x32xbf16>, vector<320x32xf32> -> vector<320x32xf32>
    %97 = arith.addf %91, %96 : vector<320x32xf32>
    %c0_86 = arith.constant 0 : index
    %c82 = arith.constant 82 : index
    %c0_87 = arith.constant 0 : index
    %98 = vector.load %arg1[%c0_86, %c82, %c0_87] : memref<1x420x32xbf16, #tpu.memory_space<vmem>>, vector<1x320x32xbf16>
    %99 = vector.shape_cast %98 : vector<1x320x32xbf16> to vector<320x32xbf16>
    %c16 = arith.constant 16 : index
    %c0_88 = arith.constant 0 : index
    %c0_89 = arith.constant 0 : index
    %100 = vector.load %arg2[%c16, %c0_88, %c0_89] : memref<18x32x32xbf16, #tpu.memory_space<vmem>>, vector<1x32x32xbf16>
    %101 = vector.shape_cast %100 : vector<1x32x32xbf16> to vector<32x32xbf16>
    %cst_90 = arith.constant dense<0.000000e+00> : vector<320x32xf32>
    %102 = tpu.matmul %99, %101, %cst_90 {dimension_numbers = #tpu.dot_dimension_numbers<[1], [0], [0], [1], [0, 0, 1, 1], [], []>} : vector<320x32xbf16>, vector<32x32xbf16>, vector<320x32xf32> -> vector<320x32xf32>
    %103 = arith.addf %97, %102 : vector<320x32xf32>
    %c0_91 = arith.constant 0 : index
    %c84 = arith.constant 84 : index
    %c0_92 = arith.constant 0 : index
    %104 = vector.load %arg1[%c0_91, %c84, %c0_92] : memref<1x420x32xbf16, #tpu.memory_space<vmem>>, vector<1x320x32xbf16>
    %105 = vector.shape_cast %104 : vector<1x320x32xbf16> to vector<320x32xbf16>
    %c17 = arith.constant 17 : index
    %c0_93 = arith.constant 0 : index
    %c0_94 = arith.constant 0 : index
    %106 = vector.load %arg2[%c17, %c0_93, %c0_94] : memref<18x32x32xbf16, #tpu.memory_space<vmem>>, vector<1x32x32xbf16>
    %107 = vector.shape_cast %106 : vector<1x32x32xbf16> to vector<32x32xbf16>
    %cst_95 = arith.constant dense<0.000000e+00> : vector<320x32xf32>
    %108 = tpu.matmul %105, %107, %cst_95 {dimension_numbers = #tpu.dot_dimension_numbers<[1], [0], [0], [1], [0, 0, 1, 1], [], []>} : vector<320x32xbf16>, vector<32x32xbf16>, vector<320x32xf32> -> vector<320x32xf32>
    %109 = arith.addf %103, %108 : vector<320x32xf32>
    %cst_96 = arith.constant 0.000000e+00 : f32
    %110 = vector.broadcast %cst_96 : f32 to vector<320x32xf32>
    %111 = arith.maximumf %109, %110 : vector<320x32xf32>
    %112 = arith.truncf %111 : vector<320x32xf32> to vector<320x32xbf16>
    %c320 = arith.constant 320 : index
    %c0_97 = arith.constant 0 : index
    %113 = vector.load %arg7[%c320, %c0_97] : memref<640x32xbf16, #tpu.memory_space<vmem>>, vector<320x32xbf16>
    tpu.vector_store %arg7[%c320, %c0_97], %112 {strides = array<i32>} : memref<640x32xbf16, #tpu.memory_space<vmem>>, vector<320x32xbf16>,
    %c0_98 = arith.constant 0 : index
    %c0_99 = arith.constant 0 : index
    %114 = vector.load %arg5[%c0_98, %c0_99] : memref<1x640xbf16, #tpu.memory_space<vmem>>, vector<1x640xbf16>
    %c0_100 = arith.constant 0 : index
    %c0_101 = arith.constant 0 : index
    %115 = vector.load %arg7[%c0_100, %c0_101] : memref<640x32xbf16, #tpu.memory_space<vmem>>, vector<640x32xbf16>
    %cst_102 = arith.constant dense<0.000000e+00> : vector<1x32xf32>
    %116 = tpu.matmul %114, %115, %cst_102 {dimension_numbers = #tpu.dot_dimension_numbers<[1], [0], [0], [1], [0, 0, 1, 1], [], []>} : vector<1x640xbf16>, vector<640x32xbf16>, vector<1x32xf32> -> vector<1x32xf32>
    %c0_103 = arith.constant 0 : index
    %c0_104 = arith.constant 0 : index
    %117 = vector.load %arg3[%c0_103, %c0_104] : memref<32x32xf32, #tpu.memory_space<vmem>>, vector<32x32xf32>
    %cst_105 = arith.constant dense<0.000000e+00> : vector<1x32xf32>
    %118 = tpu.matmul %116, %117, %cst_105 {dimension_numbers = #tpu.dot_dimension_numbers<[1], [0], [0], [1], [0, 0, 1, 1], [], []>} : vector<1x32xf32>, vector<32x32xf32>, vector<1x32xf32> -> vector<1x32xf32>
    %cst_106 = arith.constant 0.000000e+00 : f32
    %119 = vector.broadcast %cst_106 : f32 to vector<1x32xf32>
    %120 = arith.maximumf %118, %119 : vector<1x32xf32>
    %c0_107 = arith.constant 0 : index
    %c0_108 = arith.constant 0 : index
    %121 = vector.load %arg4[%c0_107, %c0_108] : memref<32x64xf32, #tpu.memory_space<vmem>>, vector<32x64xf32>
    %cst_109 = arith.constant dense<0.000000e+00> : vector<1x64xf32>
    %122 = tpu.matmul %120, %121, %cst_109 {dimension_numbers = #tpu.dot_dimension_numbers<[1], [0], [0], [1], [0, 0, 1, 1], [], []>} : vector<1x32xf32>, vector<32x64xf32>, vector<1x64xf32> -> vector<1x64xf32>
    %123 = vector.extract_strided_slice %122 {offsets = [0, 0], sizes = [1, 32], strides = [1, 1]} : vector<1x64xf32> to vector<1x32xf32>
    %124 = vector.extract_strided_slice %122 {offsets = [0, 32], sizes = [1, 32], strides = [1, 1]} : vector<1x64xf32> to vector<1x32xf32>
    %125 = arith.maximumf %123, %124 : vector<1x32xf32>
    %126 = arith.subf %123, %125 : vector<1x32xf32>
    %127 = math.exp %126 : vector<1x32xf32>
    %128 = arith.subf %124, %125 : vector<1x32xf32>
    %129 = math.exp %128 : vector<1x32xf32>
    %130 = arith.addf %127, %129 : vector<1x32xf32>
    %131 = tpu.reciprocal %130 {approx = true} : vector<1x32xf32> -> vector<1x32xf32>
    %132 = arith.mulf %127, %131 : vector<1x32xf32>
    %133 = arith.mulf %129, %131 : vector<1x32xf32>
    %c0_110 = arith.constant 0 : index
    %c0_111 = arith.constant 0 : index
    %134 = vector.load %arg7[%c0_110, %c0_111] : memref<640x32xbf16, #tpu.memory_space<vmem>>, vector<320x32xbf16>
    %135 = arith.extf %134 : vector<320x32xbf16> to vector<320x32xf32>
    %136 = vector.broadcast %132 : vector<1x32xf32> to vector<320x32xf32>
    %137 = arith.mulf %135, %136 : vector<320x32xf32>
    %c320_112 = arith.constant 320 : index
    %c0_113 = arith.constant 0 : index
    %138 = vector.load %arg7[%c320_112, %c0_113] : memref<640x32xbf16, #tpu.memory_space<vmem>>, vector<320x32xbf16>
    %139 = arith.extf %138 : vector<320x32xbf16> to vector<320x32xf32>
    %140 = vector.broadcast %133 : vector<1x32xf32> to vector<320x32xf32>
    %141 = arith.mulf %139, %140 : vector<320x32xf32>
    %142 = arith.addf %137, %141 : vector<320x32xf32>
    %143 = arith.truncf %142 : vector<320x32xf32> to vector<320x32xbf16>
    %c0_114 = arith.constant 0 : index
    %c0_115 = arith.constant 0 : index
    %c0_116 = arith.constant 0 : index
    %144 = vector.load %arg6[%c0_114, %c0_115, %c0_116] : memref<1x320x32xbf16, #tpu.memory_space<vmem>>, vector<1x320x32xbf16>
    %145 = vector.shape_cast %144 : vector<1x320x32xbf16> to vector<320x32xbf16>
    %146 = vector.shape_cast %143 : vector<320x32xbf16> to vector<1x320x32xbf16>
    tpu.vector_store %arg6[%c0_114, %c0_115, %c0_116], %146 {strides = array<i32>} : memref<1x320x32xbf16, #tpu.memory_space<vmem>>, vector<1x320x32xbf16>,
    return
  }
  func.func @transform_0(%arg0: i32) -> (i32, i32, i32) {
    %c0_i32 = arith.constant 0 : i32
    %c0_i32_0 = arith.constant 0 : i32
    %c0_i32_1 = arith.constant 0 : i32
    return %arg0, %c0_i32, %c0_i32_0 : i32, i32, i32
  }
  func.func @transform_1(%arg0: i32) -> (i32, i32, i32) {
    %c0_i32 = arith.constant 0 : i32
    %c0_i32_0 = arith.constant 0 : i32
    %c0_i32_1 = arith.constant 0 : i32
    %c0_i32_2 = arith.constant 0 : i32
    return %c0_i32, %c0_i32_0, %c0_i32_1 : i32, i32, i32
  }
  func.func @transform_2(%arg0: i32) -> (i32, i32) {
    %c0_i32 = arith.constant 0 : i32
    %c0_i32_0 = arith.constant 0 : i32
    %c0_i32_1 = arith.constant 0 : i32
    return %c0_i32, %c0_i32_0 : i32, i32
  }
  func.func @transform_3(%arg0: i32) -> (i32, i32) {
    %c0_i32 = arith.constant 0 : i32
    %c0_i32_0 = arith.constant 0 : i32
    %c0_i32_1 = arith.constant 0 : i32
    return %c0_i32, %c0_i32_0 : i32, i32
  }
  func.func @transform_4(%arg0: i32) -> (i32, i32) {
    %c0_i32 = arith.constant 0 : i32
    %c0_i32_0 = arith.constant 0 : i32
    %c0_i32_1 = arith.constant 0 : i32
    return %c0_i32, %c0_i32_0 : i32, i32
  }
  func.func @transform_5(%arg0: i32) -> (i32, i32, i32) {
    %c0_i32 = arith.constant 0 : i32
    %c0_i32_0 = arith.constant 0 : i32
    %c0_i32_1 = arith.constant 0 : i32
    return %arg0, %c0_i32, %c0_i32_0 : i32, i32, i32
  }
}

</mosaic_0001>

<llo_original>
// kernel: sk_conv_block.1
$region0: #{sk_conv_block.1}
  #allocation0 [shape = 'u32[]', space=smem, size = 0x4, offset = 0x4, fixed_abs, tag = 'smem constant byte address 0x4 - core index']
  #allocation1 [shape = 'u32[144,128]{1,0:T(1,128)}', space=vmem, size = 0x12000, scoped, tag = 'internal scratch']
  #allocation2 [shape = 'bf16[640,32]{1,0:T(16,128)(2,1)}', space=vmem, size = 0x28000, scoped, tag = 'scratch operand']
  %s0 = inlined_call_operand.vmem [shape: bf16[2,420,32], index: 0, kind: input, shape index: {}]
  %s1 = inlined_call_operand.vmem [shape: bf16[18,32,32], index: 1, kind: input, shape index: {}]
  %s2 = inlined_call_operand.vmem [shape: f32[32,32], index: 2, kind: input, shape index: {}]
  %s3 = inlined_call_operand.vmem [shape: f32[32,64], index: 3, kind: input, shape index: {}]
  %s4 = inlined_call_operand.vmem [shape: bf16[1,640], index: 4, kind: input, shape index: {}]
  %s5 = inlined_call_operand.vmem [shape: bf16[2,320,32], index: 5, kind: output, shape index: {}]
  %s6 = sld [smem:[#allocation0]]
  $region53: #{sk_conv_block.1} parent=0
    _
  %s8 = ssub.s32 1, %s6
  %s9 = scalar_select 0, %s8, %s6
  loop: start=0, step=1, limit=4
  $region2: #{sk_conv_block.1} parent=0 // loop_pre_header
    _
  $region3: #{sk_conv_block.1} parent=0 // loop_header
    %s11 = sphi 0, %s15
    %p12 = scmp.ge.s32.totalorder %s11, 4
    %s21 = sphi 0, %s23
    %s24 = sphi 0, %s21
    %s25 = sphi 0, %s24
    %s41 = sphi 0, %s25
    %s45 = sphi 0, %s45
    %s47 = sphi 0, %s45
    %s48 = sphi 0, %s47
    %s62 = sphi 0, %s48
    %s66 = sphi 0, %s66
    %s68 = sphi 0, %s66
    %s69 = sphi 0, %s68
    %s83 = sphi 0, %s69
    %s87 = sphi 0, %s87
    %s89 = sphi 0, %s87
    %s90 = sphi 0, %s89
    %s104 = sphi 0, %s90
    %s108 = sphi 0, %s108
    %s110 = sphi 0, %s108
    %s111 = sphi 0, %s110
    %s125 = sphi 0, %s111
    %s131 = sphi 0, %s133
    %s134 = sphi 0, %s131
    %s135 = sphi 0, %s134
    %s151 = sphi 0, %s135
  $region4: #{sk_conv_block.1} parent=0 // loop_header_branch
    %14 = sbr.rel (%p12) target = $region8
  $region5: #{sk_conv_block.1} parent=0 // loop_body
    %s16 = ssub.s32 %s11, 1
    %s17 = ssub.s32 %s11, 2
    %s18 = sadd.s32 %s11, 1
    %s19 = ssub.s32 %s11, %s18
    %p20 = scmp.eq.s32.totalorder %s19, 0
    %s22 = sadd.s32 %s21, 1
    %s23 = scalar_select %p20, %s21, %s22
    %p26 = pneg %p20
    %p27 = scmp.eq.s32.totalorder %s11, 1
    %p28 = por %p26, %p27
    %p29 = scmp.ne.s32.totalorder %s21, %s24
    %p30 = scmp.eq.s32.totalorder %s11, 0
    %p31 = por %p29, %p30
    %p32 = scmp.ne.s32.totalorder %s21, %s24
    %p33 = scmp.eq.s32.totalorder %s16, 1
    %p34 = por %p32, %p33
    %p35 = scmp.ne.s32.totalorder %s24, %s25
    %p36 = scmp.eq.s32.totalorder %s16, 0
    %p37 = por %p35, %p36
    %p38 = scmp.ne.s32.totalorder %s24, %s25
    %p39 = scmp.eq.s32.totalorder %s17, 1
    %p40 = por %p38, %p39
    %p42 = scmp.ne.s32.totalorder %s25, %s41
    %p43 = scmp.eq.s32.totalorder %s17, 0
    %p44 = por %p42, %p43
    %s46 = sadd.s32 %s45, 1
    %p49 = scmp.eq.s32.totalorder %s11, 1
    %p50 = scmp.ne.s32.totalorder %s45, %s47
    %p51 = scmp.eq.s32.totalorder %s11, 0
    %p52 = por %p50, %p51
    %p53 = scmp.ne.s32.totalorder %s45, %s47
    %p54 = scmp.eq.s32.totalorder %s16, 1
    %p55 = por %p53, %p54
    %p56 = scmp.ne.s32.totalorder %s47, %s48
    %p57 = scmp.eq.s32.totalorder %s16, 0
    %p58 = por %p56, %p57
    %p59 = scmp.ne.s32.totalorder %s47, %s48
    %p60 = scmp.eq.s32.totalorder %s17, 1
    %p61 = por %p59, %p60
    %p63 = scmp.ne.s32.totalorder %s48, %s62
    %p64 = scmp.eq.s32.totalorder %s17, 0
    %p65 = por %p63, %p64
    %s67 = sadd.s32 %s66, 1
    %p70 = scmp.eq.s32.totalorder %s11, 1
    %p71 = scmp.ne.s32.totalorder %s66, %s68
    %p72 = scmp.eq.s32.totalorder %s11, 0
    %p73 = por %p71, %p72
    %p74 = scmp.ne.s32.totalorder %s66, %s68
    %p75 = scmp.eq.s32.totalorder %s16, 1
    %p76 = por %p74, %p75
    %p77 = scmp.ne.s32.totalorder %s68, %s69
    %p78 = scmp.eq.s32.totalorder %s16, 0
    %p79 = por %p77, %p78
    %p80 = scmp.ne.s32.totalorder %s68, %s69
    %p81 = scmp.eq.s32.totalorder %s17, 1
    %p82 = por %p80, %p81
    %p84 = scmp.ne.s32.totalorder %s69, %s83
    %p85 = scmp.eq.s32.totalorder %s17, 0
    %p86 = por %p84, %p85
    %s88 = sadd.s32 %s87, 1
    %p91 = scmp.eq.s32.totalorder %s11, 1
    %p92 = scmp.ne.s32.totalorder %s87, %s89
    %p93 = scmp.eq.s32.totalorder %s11, 0
    %p94 = por %p92, %p93
    %p95 = scmp.ne.s32.totalorder %s87, %s89
    %p96 = scmp.eq.s32.totalorder %s16, 1
    %p97 = por %p95, %p96
    %p98 = scmp.ne.s32.totalorder %s89, %s90
    %p99 = scmp.eq.s32.totalorder %s16, 0
    %p100 = por %p98, %p99
    %p101 = scmp.ne.s32.totalorder %s89, %s90
    %p102 = scmp.eq.s32.totalorder %s17, 1
    %p103 = por %p101, %p102
    %p105 = scmp.ne.s32.totalorder %s90, %s104
    %p106 = scmp.eq.s32.totalorder %s17, 0
    %p107 = por %p105, %p106
    %s109 = sadd.s32 %s108, 1
    %p112 = scmp.eq.s32.totalorder %s11, 1
    %p113 = scmp.ne.s32.totalorder %s108, %s110
    %p114 = scmp.eq.s32.totalorder %s11, 0
    %p115 = por %p113, %p114
    %p116 = scmp.ne.s32.totalorder %s108, %s110
    %p117 = scmp.eq.s32.totalorder %s16, 1
    %p118 = por %p116, %p117
    %p119 = scmp.ne.s32.totalorder %s110, %s111
    %p120 = scmp.eq.s32.totalorder %s16, 0
    %p121 = por %p119, %p120
    %p122 = scmp.ne.s32.totalorder %s110, %s111
    %p123 = scmp.eq.s32.totalorder %s17, 1
    %p124 = por %p122, %p123
    %p126 = scmp.ne.s32.totalorder %s111, %s125
    %p127 = scmp.eq.s32.totalorder %s17, 0
    %p128 = por %p126, %p127
    %s129 = ssub.s32 %s11, %s18
    %p130 = scmp.eq.s32.totalorder %s129, 0
    %s132 = sadd.s32 %s131, 1
    %s133 = scalar_select %p130, %s131, %s132
    %p136 = pneg %p130
    %p137 = scmp.eq.s32.totalorder %s11, 1
    %p138 = por %p136, %p137
    %p139 = scmp.ne.s32.totalorder %s131, %s134
    %p140 = scmp.eq.s32.totalorder %s11, 0
    %p141 = por %p139, %p140
    %p142 = scmp.ne.s32.totalorder %s131, %s134
    %p143 = scmp.eq.s32.totalorder %s16, 1
    %p144 = por %p142, %p143
    %p145 = scmp.ne.s32.totalorder %s134, %s135
    %p146 = scmp.eq.s32.totalorder %s16, 0
    %p147 = por %p145, %p146
    %p148 = scmp.ne.s32.totalorder %s134, %s135
    %p149 = scmp.eq.s32.totalorder %s17, 1
    %p150 = por %p148, %p149
    %p152 = scmp.ne.s32.totalorder %s135, %s151
    %p153 = scmp.eq.s32.totalorder %s17, 0
    %p154 = por %p152, %p153
    %p155 = scmp.le.s32.totalorder 1, %s11
    %p156 = scmp.lt.s32.totalorder %s11, 3
    %p157 = pnand %p155, %p156
    %p158 = pneg %p157
    // Predicated region
    $region9: #{sk_conv_block.1} parent=5 // pred_check
      _
    $region10: #{sk_conv_block.1} parent=5 // pred_check_branch
      %160 = sbr.rel (%p157) target = $region12
    $region11: #{sk_conv_block.1} parent=5 // pred_region
      %s161 = ssub.s32 %s11, 1
      // Predicated region
      $region13: #{sk_conv_block.1} parent=11 // pred_check
        %p162 = pneg %p58
      $region14: #{sk_conv_block.1} parent=11 // pred_check_branch
        %164 = sbr.rel (%p162) target = $region16
      $region15: #{sk_conv_block.1} parent=11 // pred_region
        _
      $region16: #{sk_conv_block.1} parent=11 // pred_fallthru
        _
      // Predicated region
      $region17: #{sk_conv_block.1} parent=11 // pred_check
        %p165 = pneg %p79
      $region18: #{sk_conv_block.1} parent=11 // pred_check_branch
        %167 = sbr.rel (%p165) target = $region20
      $region19: #{sk_conv_block.1} parent=11 // pred_region
        _
      $region20: #{sk_conv_block.1} parent=11 // pred_fallthru
        _
      // Predicated region
      $region21: #{sk_conv_block.1} parent=11 // pred_check
        %p168 = pneg %p100
      $region22: #{sk_conv_block.1} parent=11 // pred_check_branch
        %170 = sbr.rel (%p168) target = $region24
      $region23: #{sk_conv_block.1} parent=11 // pred_region
        _
      $region24: #{sk_conv_block.1} parent=11 // pred_fallthru
        _
      // Predicated region
      $region25: #{sk_conv_block.1} parent=11 // pred_check
        %p171 = pneg %p121
      $region26: #{sk_conv_block.1} parent=11 // pred_check_branch
        %173 = sbr.rel (%p171) target = $region28
      $region27: #{sk_conv_block.1} parent=11 // pred_region
        _
      $region28: #{sk_conv_block.1} parent=11 // pred_fallthru
        _
    $region12: #{sk_conv_block.1} parent=5 // pred_fallthru
      _
    %p174 = scmp.lt.s32.totalorder %s11, 2
    // Predicated region
    $region29: #{sk_conv_block.1} parent=5 // pred_check
      %p175 = pneg %p174
    $region30: #{sk_conv_block.1} parent=5 // pred_check_branch
      %177 = sbr.rel (%p175) target = $region32
    $region31: #{sk_conv_block.1} parent=5 // pred_region
      // Predicated region
      $region33: #{sk_conv_block.1} parent=31 // pred_check
        %p178 = pneg %p31
      $region34: #{sk_conv_block.1} parent=31 // pred_check_branch
        %180 = sbr.rel (%p178) target = $region36
      $region35: #{sk_conv_block.1} parent=31 // pred_region
        %p181 = scmp.lt.s32.totalorder %s11, 1
        %s182 = scalar_select %p181, %s11, 1
        %s183 = smul.addr %s182, 53
        %s184 = smul.addr %s183, 4
        %s185 = scalar_lea.vmem %s0, %s184
      $region36: #{sk_conv_block.1} parent=31 // pred_fallthru
        _
    $region32: #{sk_conv_block.1} parent=5 // pred_fallthru
      _
    %p186 = scmp.le.s32.totalorder 1, %s11
    %p187 = scmp.lt.s32.totalorder %s11, 3
    %p188 = pnand %p186, %p187
    %p189 = pneg %p188
    // Predicated region
    $region37: #{sk_conv_block.1} parent=5 // pred_check
      _
    $region38: #{sk_conv_block.1} parent=5 // pred_check_branch
      %191 = sbr.rel (%p188) target = $region40
    $region39: #{sk_conv_block.1} parent=5 // pred_region
      %s192 = ssub.s32 %s11, 1
      %p193 = scmp.lt.s32.totalorder %s16, 1
      %s194 = scalar_select %p193, %s16, 1
      %s195 = smul.addr %s194, 53
      %s196 = smul.addr %s195, 4
      %s197 = scalar_lea.vmem %s0, %s196
      %p198 = pneg %p37
      %p199 = pneg %p34
      %p200 = pneg %p58
      %p201 = pneg %p55
      %p202 = pneg %p79
      %p203 = pneg %p76
      %p204 = pneg %p100
      %p205 = pneg %p97
      %p206 = pneg %p121
      %p207 = pneg %p118
      %p208 = pneg %p147
      %p209 = pneg %p144
      %p210 = scmp.lt.s32.totalorder %s16, 1
      %s211 = scalar_select %p210, %s16, 1
      %s212 = smul.addr %s211, 40
      %s213 = smul.addr %s212, 4
      %s214 = scalar_lea.vmem %s5, %s213
      %p215 = scmp.lt.s32.totalorder %s16, 1
      %s216 = scalar_select %p215, %s16, 1
      %s217 = smul.addr %s216, 53
      %s218 = smul.addr %s217, 4
      %s219 = scalar_lea.vmem %s0, %s218
      %p220 = scmp.lt.s32.totalorder %s16, 1
      %s221 = scalar_select %p220, %s16, 1
      %s222 = smul.addr %s221, 40
      %s223 = smul.addr %s222, 4
      %s224 = scalar_lea.vmem %s5, %s223
      %v226 = vld [vmem:[%s219 + $0x8] sm:$0xc]
      %v227 = vld [vmem:[%s219 + $0xc] sm:$0xf]
      %v228 = vld [vmem:[%s219 + $0x10] sm:$0xf]
      %v229 = vld [vmem:[%s219 + $0x14] sm:$0xf]
      %v230 = vld [vmem:[%s219 + $0x18] sm:$0xf]
      %v231 = vld [vmem:[%s219 + $0x1c] sm:$0xf]
      %v232 = vld [vmem:[%s219 + $0x20] sm:$0xf]
      %v233 = vld [vmem:[%s219 + $0x24] sm:$0xf]
      %v234 = vld [vmem:[%s219 + $0x28] sm:$0xf]
      %v235 = vld [vmem:[%s219 + $0x2c] sm:$0xf]
      %v236 = vld [vmem:[%s219 + $0x30] sm:$0xf]
      %v237 = vld [vmem:[%s219 + $0x34] sm:$0xf]
      %v238 = vld [vmem:[%s219 + $0x38] sm:$0xf]
      %v239 = vld [vmem:[%s219 + $0x3c] sm:$0xf]
      %v240 = vld [vmem:[%s219 + $0x40] sm:$0xf]
      %v241 = vld [vmem:[%s219 + $0x44] sm:$0xf]
      %v242 = vld [vmem:[%s219 + $0x48] sm:$0xf]
      %v243 = vld [vmem:[%s219 + $0x4c] sm:$0xf]
      %v244 = vld [vmem:[%s219 + $0x50] sm:$0xf]
      %v245 = vld [vmem:[%s219 + $0x54] sm:$0xf]
      %v246 = vld [vmem:[%s219 + $0x58] sm:$0xf]
      %v247 = vld [vmem:[%s219 + $0x5c] sm:$0xf]
      %v248 = vld [vmem:[%s219 + $0x60] sm:$0xf]
      %v249 = vld [vmem:[%s219 + $0x64] sm:$0xf]
      %v250 = vld [vmem:[%s219 + $0x68] sm:$0xf]
      %v251 = vld [vmem:[%s219 + $0x6c] sm:$0xf]
      %v252 = vld [vmem:[%s219 + $0x70] sm:$0xf]
      %v253 = vld [vmem:[%s219 + $0x74] sm:$0xf]
      %v254 = vld [vmem:[%s219 + $0x78] sm:$0xf]
      %v255 = vld [vmem:[%s219 + $0x7c] sm:$0xf]
      %v256 = vld [vmem:[%s219 + $0x80] sm:$0xf]
      %v257 = vld [vmem:[%s219 + $0x84] sm:$0xf]
      %v258 = vld [vmem:[%s219 + $0x88] sm:$0xf]
      %v259 = vld [vmem:[%s219 + $0x8c] sm:$0xf]
      %v260 = vld [vmem:[%s219 + $0x90] sm:$0xf]
      %v261 = vld [vmem:[%s219 + $0x94] sm:$0xf]
      %v262 = vld [vmem:[%s219 + $0x98] sm:$0xf]
      %v263 = vld [vmem:[%s219 + $0x9c] sm:$0xf]
      %v264 = vld [vmem:[%s219 + $0xa0] sm:$0xf]
      %v265 = vld [vmem:[%s219 + $0xa4] sm:$0xf]
      %v266 = vld [vmem:[%s219 + $0xa8] sm:$0x7]
      %v267 = vld [vmem:[%s1] sm:$0xf]
      %v268 = vld [vmem:[%s1 + $0x4] sm:$0xf]
      %v269 = vld [vmem:[%s1 + $0x8] sm:$0xf]
      %v270 = vld [vmem:[%s1 + $0xc] sm:$0xf]
      %v271 = vld [vmem:[%s219 + $0x8] sm:$0x8]
      %s272 = scalar_lea.vmem %s1, 16
      %v273 = vld [vmem:[%s272] sm:$0xf]
      %v274 = vld [vmem:[%s272 + $0x4] sm:$0xf]
      %v275 = vld [vmem:[%s272 + $0x8] sm:$0xf]
      %v276 = vld [vmem:[%s272 + $0xc] sm:$0xf]
      %v318 = vunpack.c.l.b16 %v271
      %v319 = vunpack.c.l.b16 %v227
      %v320 = vunpack.c.l.b16 %v228
      %v321 = vunpack.c.l.b16 %v229
      %v322 = vunpack.c.l.b16 %v230
      %v323 = vunpack.c.l.b16 %v231
      %v324 = vunpack.c.l.b16 %v232
      %v325 = vunpack.c.l.b16 %v233
      %v326 = vunpack.c.l.b16 %v234
      %v327 = vunpack.c.l.b16 %v235
      %v328 = vunpack.c.l.b16 %v236
      %v329 = vunpack.c.l.b16 %v237
      %v330 = vunpack.c.l.b16 %v238
      %v331 = vunpack.c.l.b16 %v239
      %v332 = vunpack.c.l.b16 %v240
      %v333 = vunpack.c.l.b16 %v241
      %v334 = vunpack.c.l.b16 %v242
      %v335 = vunpack.c.l.b16 %v243
      %v336 = vunpack.c.l.b16 %v244
      %v337 = vunpack.c.l.b16 %v245
      %v338 = vunpack.c.l.b16 %v246
      %v339 = vunpack.c.l.b16 %v247
      %v340 = vunpack.c.l.b16 %v248
      %v341 = vunpack.c.l.b16 %v249
      %v342 = vunpack.c.l.b16 %v250
      %v343 = vunpack.c.l.b16 %v251
      %v344 = vunpack.c.l.b16 %v252
      %v345 = vunpack.c.l.b16 %v253
      %v346 = vunpack.c.l.b16 %v254
      %v347 = vunpack.c.l.b16 %v255
      %v348 = vunpack.c.l.b16 %v256
      %v349 = vunpack.c.l.b16 %v257
      %v350 = vunpack.c.l.b16 %v258
      %v351 = vunpack.c.l.b16 %v259
      %v352 = vunpack.c.l.b16 %v260
      %v353 = vunpack.c.l.b16 %v261
      %v354 = vunpack.c.l.b16 %v262
      %v355 = vunpack.c.l.b16 %v263
      %v356 = vunpack.c.l.b16 %v264
      %v357 = vunpack.c.l.b16 %v265
      %v358 = vunpack.c.l.b16 %v266
      %v359 = vpack.c.b16 %v319, %v318
      %v360 = vpack.c.b16 %v321, %v320
      %v361 = vpack.c.b16 %v323, %v322
      %v362 = vpack.c.b16 %v325, %v324
      %v363 = vpack.c.b16 %v327, %v326
      %v364 = vpack.c.b16 %v329, %v328
      %v365 = vpack.c.b16 %v331, %v330
      %v366 = vpack.c.b16 %v333, %v332
      %v367 = vpack.c.b16 %v335, %v334
      %v368 = vpack.c.b16 %v337, %v336
      %v369 = vpack.c.b16 %v339, %v338
      %v370 = vpack.c.b16 %v341, %v340
      %v371 = vpack.c.b16 %v343, %v342
      %v372 = vpack.c.b16 %v345, %v344
      %v373 = vpack.c.b16 %v347, %v346
      %v374 = vpack.c.b16 %v349, %v348
      %v375 = vpack.c.b16 %v351, %v350
      %v376 = vpack.c.b16 %v353, %v352
      %v377 = vpack.c.b16 %v355, %v354
      %v378 = vpack.c.b16 %v357, %v356
      %v379 = vpack.c.b16 %v358, %v358
      %vm380 = vcmask 1044480
      %v381 = vrot.slane %v359, 3
      %v382 = vrot.slane %v360, 3
      %v383 = vsel %vm380, %v381, %v382
      %v384 = vrot.slane %v361, 3
      %v385 = vsel %vm380, %v382, %v384
      %v386 = vrot.slane %v362, 3
      %v387 = vsel %vm380, %v384, %v386
      %v388 = vrot.slane %v363, 3
      %v389 = vsel %vm380, %v386, %v388
      %v390 = vrot.slane %v364, 3
      %v391 = vsel %vm380, %v388, %v390
      %v392 = vrot.slane %v365, 3
      %v393 = vsel %vm380, %v390, %v392
      %v394 = vrot.slane %v366, 3
      %v395 = vsel %vm380, %v392, %v394
      %v396 = vrot.slane %v367, 3
      %v397 = vsel %vm380, %v394, %v396
      %v398 = vrot.slane %v368, 3
      %v399 = vsel %vm380, %v396, %v398
      %v400 = vrot.slane %v369, 3
      %v401 = vsel %vm380, %v398, %v400
      %v402 = vrot.slane %v370, 3
      %v403 = vsel %vm380, %v400, %v402
      %v404 = vrot.slane %v371, 3
      %v405 = vsel %vm380, %v402, %v404
      %v406 = vrot.slane %v372, 3
      %v407 = vsel %vm380, %v404, %v406
      %v408 = vrot.slane %v373, 3
      %v409 = vsel %vm380, %v406, %v408
      %v410 = vrot.slane %v374, 3
      %v411 = vsel %vm380, %v408, %v410
      %v412 = vrot.slane %v375, 3
      %v413 = vsel %vm380, %v410, %v412
      %v414 = vrot.slane %v376, 3
      %v415 = vsel %vm380, %v412, %v414
      %v416 = vrot.slane %v377, 3
      %v417 = vsel %vm380, %v414, %v416
      %v418 = vrot.slane %v378, 3
      %v419 = vsel %vm380, %v416, %v418
      %v420 = vrot.slane %v379, 3
      %v421 = vsel %vm380, %v418, %v420
      %v426 = vunpack.c.l.b16 %v273
      %v427 = vunpack.c.l.b16 %v274
      %v428 = vunpack.c.l.b16 %v275
      %v429 = vunpack.c.l.b16 %v276
      %v430 = vpack.c.b16 %v427, %v426
      %v431 = vpack.c.b16 %v429, %v428
      %vm434 = vcmask 261120
      %v436 = vsel %vm434, %v383, 0
      %v439 = vsel %vm434, %v385, 0
      %v442 = vsel %vm434, %v387, 0
      %v445 = vsel %vm434, %v389, 0
      %v448 = vsel %vm434, %v391, 0
      %v451 = vsel %vm434, %v393, 0
      %v454 = vsel %vm434, %v395, 0
      %v457 = vsel %vm434, %v397, 0
      %v460 = vsel %vm434, %v399, 0
      %v463 = vsel %vm434, %v401, 0
      %v466 = vsel %vm434, %v403, 0
      %v469 = vsel %vm434, %v405, 0
      %v472 = vsel %vm434, %v407, 0
      %v475 = vsel %vm434, %v409, 0
      %v478 = vsel %vm434, %v411, 0
      %v481 = vsel %vm434, %v413, 0
      %v484 = vsel %vm434, %v415, 0
      %v487 = vsel %vm434, %v417, 0
      %v490 = vsel %vm434, %v419, 0
      %v493 = vsel %vm434, %v421, 0
      %495 = vmatprep.subr.bf16.mxu0 0
      %496 = vmatpush1.bf16.msra.mxu0 %v430
      %497 = vmatprep.subr.bf16.mxu0 0
      %498 = vmatpush1.bf16.msra.mxu0 %v431
      %499 = vmatprep.subr.bf16.mxu0 0
      %500 = vmatpush1.bf16.msra.mxu0 0
      %501 = vmatprep.subr.bf16.mxu0 0
      %502 = vmatpush1.bf16.msra.mxu0 0
      %503 = vmatprep.subr.bf16.mxu0 0
      %504 = vmatpush1.bf16.msra.mxu0 0
      %505 = vmatprep.subr.bf16.mxu0 0
      %506 = vmatpush1.bf16.msra.mxu0 0
      %507 = vmatprep.subr.bf16.mxu0 0
      %508 = vmatpush1.bf16.msra.mxu0 0
      %509 = vmatprep.subr.bf16.mxu0 0
      %510 = vmatpush1.bf16.msra.mxu0 0
      %511 = vmatprep.subr.bf16.mxu0 0
      %512 = vmatpush1.bf16.msra.mxu0 0
      %513 = vmatprep.subr.bf16.mxu0 0
      %514 = vmatpush1.bf16.msra.mxu0 0
      %515 = vmatprep.subr.bf16.mxu0 0
      %516 = vmatpush1.bf16.msra.mxu0 0
      %517 = vmatprep.subr.bf16.mxu0 0
      %518 = vmatpush1.bf16.msra.mxu0 0
      %519 = vmatprep.subr.bf16.mxu0 0
      %520 = vmatpush1.bf16.msra.mxu0 0
      %521 = vmatprep.subr.bf16.mxu0 0
      %522 = vmatpush1.bf16.msra.mxu0 0
      %523 = vmatprep.subr.bf16.mxu0 0
      %524 = vmatpush1.bf16.msra.mxu0 0
      %525 = vmatprep.subr.bf16.mxu0 0
      %526 = vmatpush1.bf16.msra.mxu0 0
      %527 = vmatprep.mubr.bf16.mxu0 0
      %528 = vmatmul.mubr.bf16.gmra.mrb[0].mxu0 %v436
      %v529 = vpop.f32.mrb[0].mxu0
      %v530 = vadd.f32 0.0, %v529
      %v531 = vpop.f32.mrb[0].mxu0
      %v532 = vpop.f32.mrb[0].mxu0
      %v533 = vadd.f32 0.0, %v532
      %v534 = vpop.f32.mrb[0].mxu0
      %535 = vmatprep.mubr.bf16.mxu0 0
      %536 = vmatmul.mubr.bf16.gmra.mrb[0].mxu0 %v439
      %v537 = vpop.f32.mrb[0].mxu0
      %v538 = vadd.f32 0.0, %v537
      %v539 = vpop.f32.mrb[0].mxu0
      %v540 = vpop.f32.mrb[0].mxu0
      %v541 = vadd.f32 0.0, %v540
      %v542 = vpop.f32.mrb[0].mxu0
      %543 = vmatprep.mubr.bf16.mxu0 0
      %544 = vmatmul.mubr.bf16.gmra.mrb[0].mxu0 %v442
      %v545 = vpop.f32.mrb[0].mxu0
      %v546 = vadd.f32 0.0, %v545
      %v547 = vpop.f32.mrb[0].mxu0
      %v548 = vpop.f32.mrb[0].mxu0
      %v549 = vadd.f32 0.0, %v548
      %v550 = vpop.f32.mrb[0].mxu0
      %551 = vmatprep.mubr.bf16.mxu0 0
      %552 = vmatmul.mubr.bf16.gmra.mrb[0].mxu0 %v445
      %v553 = vpop.f32.mrb[0].mxu0
      %v554 = vadd.f32 0.0, %v553
      %v555 = vpop.f32.mrb[0].mxu0
      %v556 = vpop.f32.mrb[0].mxu0
      %v557 = vadd.f32 0.0, %v556
      %v558 = vpop.f32.mrb[0].mxu0
      %559 = vmatprep.mubr.bf16.mxu0 0
      %560 = vmatmul.mubr.bf16.gmra.mrb[0].mxu0 %v448
      %v561 = vpop.f32.mrb[0].mxu0
      %v562 = vadd.f32 0.0, %v561
      %v563 = vpop.f32.mrb[0].mxu0
      %v564 = vpop.f32.mrb[0].mxu0
      %v565 = vadd.f32 0.0, %v564
      %v566 = vpop.f32.mrb[0].mxu0
      %567 = vmatprep.mubr.bf16.mxu0 0
      %568 = vmatmul.mubr.bf16.gmra.mrb[0].mxu0 %v451
      %v569 = vpop.f32.mrb[0].mxu0
      %v570 = vadd.f32 0.0, %v569
      %v571 = vpop.f32.mrb[0].mxu0
      %v572 = vpop.f32.mrb[0].mxu0
      %v573 = vadd.f32 0.0, %v572
      %v574 = vpop.f32.mrb[0].mxu0
      %575 = vmatprep.mubr.bf16.mxu0 0
      %576 = vmatmul.mubr.bf16.gmra.mrb[0].mxu0 %v454
      %v577 = vpop.f32.mrb[0].mxu0
      %v578 = vadd.f32 0.0, %v577
      %v579 = vpop.f32.mrb[0].mxu0
      %v580 = vpop.f32.mrb[0].mxu0
      %v581 = vadd.f32 0.0, %v580
      %v582 = vpop.f32.mrb[0].mxu0
      %583 = vmatprep.mubr.bf16.mxu0 0
      %584 = vmatmul.mubr.bf16.gmra.mrb[0].mxu0 %v457
      %v585 = vpop.f32.mrb[0].mxu0
      %v586 = vadd.f32 0.0, %v585
      %v587 = vpop.f32.mrb[0].mxu0
      %v588 = vpop.f32.mrb[0].mxu0
      %v589 = vadd.f32 0.0, %v588
      %v590 = vpop.f32.mrb[0].mxu0
      %591 = vmatprep.mubr.bf16.mxu0 0
      %592 = vmatmul.mubr.bf16.gmra.mrb[0].mxu0 %v460
      %v593 = vpop.f32.mrb[0].mxu0
      %v594 = vadd.f32 0.0, %v593
      %v595 = vpop.f32.mrb[0].mxu0
      %v596 = vpop.f32.mrb[0].mxu0
      %v597 = vadd.f32 0.0, %v596
      %v598 = vpop.f32.mrb[0].mxu0
      %599 = vmatprep.mubr.bf16.mxu0 0
      %600 = vmatmul.mubr.bf16.gmra.mrb[0].mxu0 %v463
      %v601 = vpop.f32.mrb[0].mxu0
      %v602 = vadd.f32 0.0, %v601
      %v603 = vpop.f32.mrb[0].mxu0
      %v604 = vpop.f32.mrb[0].mxu0
      %v605 = vadd.f32 0.0, %v604
      %v606 = vpop.f32.mrb[0].mxu0
      %607 = vmatprep.mubr.bf16.mxu0 0
      %608 = vmatmul.mubr.bf16.gmra.mrb[0].mxu0 %v466
      %v609 = vpop.f32.mrb[0].mxu0
      %v610 = vadd.f32 0.0, %v609
      %v611 = vpop.f32.mrb[0].mxu0
      %v612 = vpop.f32.mrb[0].mxu0
      %v613 = vadd.f32 0.0, %v612
      %v614 = vpop.f32.mrb[0].mxu0
      %615 = vmatprep.mubr.bf16.mxu0 0
      %616 = vmatmul.mubr.bf16.gmra.mrb[0].mxu0 %v469
      %v617 = vpop.f32.mrb[0].mxu0
      %v618 = vadd.f32 0.0, %v617
      %v619 = vpop.f32.mrb[0].mxu0
      %v620 = vpop.f32.mrb[0].mxu0
      %v621 = vadd.f32 0.0, %v620
      %v622 = vpop.f32.mrb[0].mxu0
      %623 = vmatprep.mubr.bf16.mxu0 0
      %624 = vmatmul.mubr.bf16.gmra.mrb[0].mxu0 %v472
      %v625 = vpop.f32.mrb[0].mxu0
      %v626 = vadd.f32 0.0, %v625
      %v627 = vpop.f32.mrb[0].mxu0
      %v628 = vpop.f32.mrb[0].mxu0
      %v629 = vadd.f32 0.0, %v628
      %v630 = vpop.f32.mrb[0].mxu0
      %631 = vmatprep.mubr.bf16.mxu0 0
      %632 = vmatmul.mubr.bf16.gmra.mrb[0].mxu0 %v475
      %v633 = vpop.f32.mrb[0].mxu0
      %v634 = vadd.f32 0.0, %v633
      %v635 = vpop.f32.mrb[0].mxu0
      %v636 = vpop.f32.mrb[0].mxu0
      %v637 = vadd.f32 0.0, %v636
      %v638 = vpop.f32.mrb[0].mxu0
      %639 = vmatprep.mubr.bf16.mxu0 0
      %640 = vmatmul.mubr.bf16.gmra.mrb[0].mxu0 %v478
      %v641 = vpop.f32.mrb[0].mxu0
      %v642 = vadd.f32 0.0, %v641
      %v643 = vpop.f32.mrb[0].mxu0
      %v644 = vpop.f32.mrb[0].mxu0
      %v645 = vadd.f32 0.0, %v644
      %v646 = vpop.f32.mrb[0].mxu0
      %647 = vmatprep.mubr.bf16.mxu0 0
      %648 = vmatmul.mubr.bf16.gmra.mrb[0].mxu0 %v481
      %v649 = vpop.f32.mrb[0].mxu0
      %v650 = vadd.f32 0.0, %v649
      %v651 = vpop.f32.mrb[0].mxu0
      %v652 = vpop.f32.mrb[0].mxu0
      %v653 = vadd.f32 0.0, %v652
      %v654 = vpop.f32.mrb[0].mxu0
      %655 = vmatprep.mubr.bf16.mxu0 0
      %656 = vmatmul.mubr.bf16.gmra.mrb[0].mxu0 %v484
      %v657 = vpop.f32.mrb[0].mxu0
      %v658 = vadd.f32 0.0, %v657
      %v659 = vpop.f32.mrb[0].mxu0
      %v660 = vpop.f32.mrb[0].mxu0
      %v661 = vadd.f32 0.0, %v660
      %v662 = vpop.f32.mrb[0].mxu0
      %663 = vmatprep.mubr.bf16.mxu0 0
      %664 = vmatmul.mubr.bf16.gmra.mrb[0].mxu0 %v487
      %v665 = vpop.f32.mrb[0].mxu0
      %v666 = vadd.f32 0.0, %v665
      %v667 = vpop.f32.mrb[0].mxu0
      %v668 = vpop.f32.mrb[0].mxu0
      %v669 = vadd.f32 0.0, %v668
      %v670 = vpop.f32.mrb[0].mxu0
      %671 = vmatprep.mubr.bf16.mxu0 0
      %672 = vmatmul.mubr.bf16.gmra.mrb[0].mxu0 %v490
      %v673 = vpop.f32.mrb[0].mxu0
      %v674 = vadd.f32 0.0, %v673
      %v675 = vpop.f32.mrb[0].mxu0
      %v676 = vpop.f32.mrb[0].mxu0
      %v677 = vadd.f32 0.0, %v676
      %v678 = vpop.f32.mrb[0].mxu0
      %679 = vmatprep.mubr.bf16.mxu0 0
      %680 = vmatmul.mubr.bf16.gmra.mrb[0].mxu0 %v493
      %v681 = vpop.f32.mrb[0].mxu0
      %v682 = vadd.f32 0.0, %v681
      %v683 = vpop.f32.mrb[0].mxu0
      %v684 = vpop.f32.mrb[0].mxu0
      %v685 = vadd.f32 0.0, %v684
      %v686 = vpop.f32.mrb[0].mxu0
      %687 = vdwg.mxu0
      %v689 = vunpack.c.l.b16 %v226
      %v690 = vpack.c.b16 %v319, %v689
      %vm691 = vsmask.f32 5376
      %v693 = vshrl.u32 %v690, 16
      %v695 = vrot.slane %v693, 2
      %v696 = vshll.u32 %v690, 16
      %v698 = vrot.slane %v696, 3
      %v699 = vor.u32 %v695, %v698
      %v701 = vshrl.u32 %v360, 16
      %v703 = vrot.slane %v701, 2
      %v704 = vshll.u32 %v360, 16
      %v706 = vrot.slane %v704, 3
      %v707 = vor.u32 %v703, %v706
      %v708 = vsel %vm691, %v699, %v707
      %v710 = vshrl.u32 %v361, 16
      %v712 = vrot.slane %v710, 2
      %v713 = vshll.u32 %v361, 16
      %v715 = vrot.slane %v713, 3
      %v716 = vor.u32 %v712, %v715
      %v717 = vsel %vm691, %v707, %v716
      %v719 = vshrl.u32 %v362, 16
      %v721 = vrot.slane %v719, 2
      %v722 = vshll.u32 %v362, 16
      %v724 = vrot.slane %v722, 3
      %v725 = vor.u32 %v721, %v724
      %v726 = vsel %vm691, %v716, %v725
      %v728 = vshrl.u32 %v363, 16
      %v730 = vrot.slane %v728, 2
      %v731 = vshll.u32 %v363, 16
      %v733 = vrot.slane %v731, 3
      %v734 = vor.u32 %v730, %v733
      %v735 = vsel %vm691, %v725, %v734
      %v737 = vshrl.u32 %v364, 16
      %v739 = vrot.slane %v737, 2
      %v740 = vshll.u32 %v364, 16
      %v742 = vrot.slane %v740, 3
      %v743 = vor.u32 %v739, %v742
      %v744 = vsel %vm691, %v734, %v743
      %v746 = vshrl.u32 %v365, 16
      %v748 = vrot.slane %v746, 2
      %v749 = vshll.u32 %v365, 16
      %v751 = vrot.slane %v749, 3
      %v752 = vor.u32 %v748, %v751
      %v753 = vsel %vm691, %v743, %v752
      %v755 = vshrl.u32 %v366, 16
      %v757 = vrot.slane %v755, 2
      %v758 = vshll.u32 %v366, 16
      %v760 = vrot.slane %v758, 3
      %v761 = vor.u32 %v757, %v760
      %v762 = vsel %vm691, %v752, %v761
      %v764 = vshrl.u32 %v367, 16
      %v766 = vrot.slane %v764, 2
      %v767 = vshll.u32 %v367, 16
      %v769 = vrot.slane %v767, 3
      %v770 = vor.u32 %v766, %v769
      %v771 = vsel %vm691, %v761, %v770
      %v773 = vshrl.u32 %v368, 16
      %v775 = vrot.slane %v773, 2
      %v776 = vshll.u32 %v368, 16
      %v778 = vrot.slane %v776, 3
      %v779 = vor.u32 %v775, %v778
      %v780 = vsel %vm691, %v770, %v779
      %v782 = vshrl.u32 %v369, 16
      %v784 = vrot.slane %v782, 2
      %v785 = vshll.u32 %v369, 16
      %v787 = vrot.slane %v785, 3
      %v788 = vor.u32 %v784, %v787
      %v789 = vsel %vm691, %v779, %v788
      %v791 = vshrl.u32 %v370, 16
      %v793 = vrot.slane %v791, 2
      %v794 = vshll.u32 %v370, 16
      %v796 = vrot.slane %v794, 3
      %v797 = vor.u32 %v793, %v796
      %v798 = vsel %vm691, %v788, %v797
      %v800 = vshrl.u32 %v371, 16
      %v802 = vrot.slane %v800, 2
      %v803 = vshll.u32 %v371, 16
      %v805 = vrot.slane %v803, 3
      %v806 = vor.u32 %v802, %v805
      %v807 = vsel %vm691, %v797, %v806
      %v809 = vshrl.u32 %v372, 16
      %v811 = vrot.slane %v809, 2
      %v812 = vshll.u32 %v372, 16
      %v814 = vrot.slane %v812, 3
      %v815 = vor.u32 %v811, %v814
      %v816 = vsel %vm691, %v806, %v815
      %v818 = vshrl.u32 %v373, 16
      %v820 = vrot.slane %v818, 2
      %v821 = vshll.u32 %v373, 16
      %v823 = vrot.slane %v821, 3
      %v824 = vor.u32 %v820, %v823
      %v825 = vsel %vm691, %v815, %v824
      %v827 = vshrl.u32 %v374, 16
      %v829 = vrot.slane %v827, 2
      %v830 = vshll.u32 %v374, 16
      %v832 = vrot.slane %v830, 3
      %v833 = vor.u32 %v829, %v832
      %v834 = vsel %vm691, %v824, %v833
      %v836 = vshrl.u32 %v375, 16
      %v838 = vrot.slane %v836, 2
      %v839 = vshll.u32 %v375, 16
      %v841 = vrot.slane %v839, 3
      %v842 = vor.u32 %v838, %v841
      %v843 = vsel %vm691, %v833, %v842
      %v845 = vshrl.u32 %v376, 16
      %v847 = vrot.slane %v845, 2
      %v848 = vshll.u32 %v376, 16
      %v850 = vrot.slane %v848, 3
      %v851 = vor.u32 %v847, %v850
      %v852 = vsel %vm691, %v842, %v851
      %v854 = vshrl.u32 %v377, 16
      %v856 = vrot.slane %v854, 2
      %v857 = vshll.u32 %v377, 16
      %v859 = vrot.slane %v857, 3
      %v860 = vor.u32 %v856, %v859
      %v861 = vsel %vm691, %v851, %v860
      %v863 = vshrl.u32 %v378, 16
      %v865 = vrot.slane %v863, 2
      %v866 = vshll.u32 %v378, 16
      %v868 = vrot.slane %v866, 3
      %v869 = vor.u32 %v865, %v868
      %v870 = vsel %vm691, %v860, %v869
      %v872 = vshrl.u32 %v379, 16
      %v874 = vrot.slane %v872, 2
      %v875 = vshll.u32 %v379, 16
      %v877 = vrot.slane %v875, 3
      %v878 = vor.u32 %v874, %v877
      %v879 = vsel %vm691, %v869, %v878
      %v884 = vunpack.c.l.b16 %v267
      %v885 = vunpack.c.l.b16 %v268
      %v886 = vunpack.c.l.b16 %v269
      %v887 = vunpack.c.l.b16 %v270
      %v888 = vpack.c.b16 %v885, %v884
      %v889 = vpack.c.b16 %v887, %v886
      %v893 = vsel %vm434, %v708, 0
      %v896 = vsel %vm434, %v717, 0
      %v899 = vsel %vm434, %v726, 0
      %v902 = vsel %vm434, %v735, 0
      %v905 = vsel %vm434, %v744, 0
      %v908 = vsel %vm434, %v753, 0
      %v911 = vsel %vm434, %v762, 0
      %v914 = vsel %vm434, %v771, 0
      %v917 = vsel %vm434, %v780, 0
      %v920 = vsel %vm434, %v789, 0
      %v923 = vsel %vm434, %v798, 0
      %v926 = vsel %vm434, %v807, 0
      %v929 = vsel %vm434, %v816, 0
      %v932 = vsel %vm434, %v825, 0
      %v935 = vsel %vm434, %v834, 0
      %v938 = vsel %vm434, %v843, 0
      %v941 = vsel %vm434, %v852, 0
      %v944 = vsel %vm434, %v861, 0
      %v947 = vsel %vm434, %v870, 0
      %v950 = vsel %vm434, %v879, 0
      %952 = vmatprep.subr.bf16.mxu0 0
      %953 = vmatpush1.bf16.msra.mxu0 %v888
      %954 = vmatprep.subr.bf16.mxu0 0
      %955 = vmatpush1.bf16.msra.mxu0 %v889
      %956 = vmatprep.subr.bf16.mxu0 0
      %957 = vmatpush1.bf16.msra.mxu0 0
      %958 = vmatprep.subr.bf16.mxu0 0
      %959 = vmatpush1.bf16.msra.mxu0 0
      %960 = vmatprep.subr.bf16.mxu0 0
      %961 = vmatpush1.bf16.msra.mxu0 0
      %962 = vmatprep.subr.bf16.mxu0 0
      %963 = vmatpush1.bf16.msra.mxu0 0
      %964 = vmatprep.subr.bf16.mxu0 0
      %965 = vmatpush1.bf16.msra.mxu0 0
      %966 = vmatprep.subr.bf16.mxu0 0
      %967 = vmatpush1.bf16.msra.mxu0 0
      %968 = vmatprep.subr.bf16.mxu0 0
      %969 = vmatpush1.bf16.msra.mxu0 0
      %970 = vmatprep.subr.bf16.mxu0 0
      %971 = vmatpush1.bf16.msra.mxu0 0
      %972 = vmatprep.subr.bf16.mxu0 0
      %973 = vmatpush1.bf16.msra.mxu0 0
      %974 = vmatprep.subr.bf16.mxu0 0
      %975 = vmatpush1.bf16.msra.mxu0 0
      %976 = vmatprep.subr.bf16.mxu0 0
      %977 = vmatpush1.bf16.msra.mxu0 0
      %978 = vmatprep.subr.bf16.mxu0 0
      %979 = vmatpush1.bf16.msra.mxu0 0
      %980 = vmatprep.subr.bf16.mxu0 0
      %981 = vmatpush1.bf16.msra.mxu0 0
      %982 = vmatprep.subr.bf16.mxu0 0
      %983 = vmatpush1.bf16.msra.mxu0 0
      %984 = vmatprep.mubr.bf16.mxu0 0
      %985 = vmatmul.mubr.bf16.gmra.mrb[0].mxu0 %v893
      %v986 = vpop.f32.mrb[0].mxu0
      %v987 = vadd.f32 %v530, %v986
      %v988 = vpop.f32.mrb[0].mxu0
      %v989 = vpop.f32.mrb[0].mxu0
      %v990 = vadd.f32 %v533, %v989
      %v991 = vpop.f32.mrb[0].mxu0
      %992 = vmatprep.mubr.bf16.mxu0 0
      %993 = vmatmul.mubr.bf16.gmra.mrb[0].mxu0 %v896
      %v994 = vpop.f32.mrb[0].mxu0
      %v995 = vadd.f32 %v538, %v994
      %v996 = vpop.f32.mrb[0].mxu0
      %v997 = vpop.f32.mrb[0].mxu0
      %v998 = vadd.f32 %v541, %v997
      %v999 = vpop.f32.mrb[0].mxu0
      %1000 = vmatprep.mubr.bf16.mxu0 0
      %1001 = vmatmul.mubr.bf16.gmra.mrb[0].mxu0 %v899
      %v1002 = vpop.f32.mrb[0].mxu0
      %v1003 = vadd.f32 %v546, %v1002
      %v1004 = vpop.f32.mrb[0].mxu0
      %v1005 = vpop.f32.mrb[0].mxu0
      %v1006 = vadd.f32 %v549, %v1005
      %v1007 = vpop.f32.mrb[0].mxu0
      %1008 = vmatprep.mubr.bf16.mxu0 0
      %1009 = vmatmul.mubr.bf16.gmra.mrb[0].mxu0 %v902
      %v1010 = vpop.f32.mrb[0].mxu0
      %v1011 = vadd.f32 %v554, %v1010
      %v1012 = vpop.f32.mrb[0].mxu0
      %v1013 = vpop.f32.mrb[0].mxu0
      %v1014 = vadd.f32 %v557, %v1013
      %v1015 = vpop.f32.mrb[0].mxu0
      %1016 = vmatprep.mubr.bf16.mxu0 0
      %1017 = vmatmul.mubr.bf16.gmra.mrb[0].mxu0 %v905
      %v1018 = vpop.f32.mrb[0].mxu0
      %v1019 = vadd.f32 %v562, %v1018
      %v1020 = vpop.f32.mrb[0].mxu0
      %v1021 = vpop.f32.mrb[0].mxu0
      %v1022 = vadd.f32 %v565, %v1021
      %v1023 = vpop.f32.mrb[0].mxu0
      %1024 = vmatprep.mubr.bf16.mxu0 0
      %1025 = vmatmul.mubr.bf16.gmra.mrb[0].mxu0 %v908
      %v1026 = vpop.f32.mrb[0].mxu0
      %v1027 = vadd.f32 %v570, %v1026
      %v1028 = vpop.f32.mrb[0].mxu0
      %v1029 = vpop.f32.mrb[0].mxu0
      %v1030 = vadd.f32 %v573, %v1029
      %v1031 = vpop.f32.mrb[0].mxu0
      %1032 = vmatprep.mubr.bf16.mxu0 0
      %1033 = vmatmul.mubr.bf16.gmra.mrb[0].mxu0 %v911
      %v1034 = vpop.f32.mrb[0].mxu0
      %v1035 = vadd.f32 %v578, %v1034
      %v1036 = vpop.f32.mrb[0].mxu0
      %v1037 = vpop.f32.mrb[0].mxu0
      %v1038 = vadd.f32 %v581, %v1037
      %v1039 = vpop.f32.mrb[0].mxu0
      %1040 = vmatprep.mubr.bf16.mxu0 0
      %1041 = vmatmul.mubr.bf16.gmra.mrb[0].mxu0 %v914
      %v1042 = vpop.f32.mrb[0].mxu0
      %v1043 = vadd.f32 %v586, %v1042
      %v1044 = vpop.f32.mrb[0].mxu0
      %v1045 = vpop.f32.mrb[0].mxu0
      %v1046 = vadd.f32 %v589, %v1045
      %v1047 = vpop.f32.mrb[0].mxu0
      %1048 = vmatprep.mubr.bf16.mxu0 0
      %1049 = vmatmul.mubr.bf16.gmra.mrb[0].mxu0 %v917
      %v1050 = vpop.f32.mrb[0].mxu0
      %v1051 = vadd.f32 %v594, %v1050
      %v1052 = vpop.f32.mrb[0].mxu0
      %v1053 = vpop.f32.mrb[0].mxu0
      %v1054 = vadd.f32 %v597, %v1053
      %v1055 = vpop.f32.mrb[0].mxu0
      %1056 = vmatprep.mubr.bf16.mxu0 0
      %1057 = vmatmul.mubr.bf16.gmra.mrb[0].mxu0 %v920
      %v1058 = vpop.f32.mrb[0].mxu0
      %v1059 = vadd.f32 %v602, %v1058
      %v1060 = vpop.f32.mrb[0].mxu0
      %v1061 = vpop.f32.mrb[0].mxu0
      %v1062 = vadd.f32 %v605, %v1061
      %v1063 = vpop.f32.mrb[0].mxu0
      %1064 = vmatprep.mubr.bf16.mxu0 0
      %1065 = vmatmul.mubr.bf16.gmra.mrb[0].mxu0 %v923
      %v1066 = vpop.f32.mrb[0].mxu0
      %v1067 = vadd.f32 %v610, %v1066
      %v1068 = vpop.f32.mrb[0].mxu0
      %v1069 = vpop.f32.mrb[0].mxu0
      %v1070 = vadd.f32 %v613, %v1069
      %v1071 = vpop.f32.mrb[0].mxu0
      %1072 = vmatprep.mubr.bf16.mxu0 0
      %1073 = vmatmul.mubr.bf16.gmra.mrb[0].mxu0 %v926
      %v1074 = vpop.f32.mrb[0].mxu0
      %v1075 = vadd.f32 %v618, %v1074
      %v1076 = vpop.f32.mrb[0].mxu0
      %v1077 = vpop.f32.mrb[0].mxu0
      %v1078 = vadd.f32 %v621, %v1077
      %v1079 = vpop.f32.mrb[0].mxu0
      %1080 = vmatprep.mubr.bf16.mxu0 0
      %1081 = vmatmul.mubr.bf16.gmra.mrb[0].mxu0 %v929
      %v1082 = vpop.f32.mrb[0].mxu0
      %v1083 = vadd.f32 %v626, %v1082
      %v1084 = vpop.f32.mrb[0].mxu0
      %v1085 = vpop.f32.mrb[0].mxu0
      %v1086 = vadd.f32 %v629, %v1085
      %v1087 = vpop.f32.mrb[0].mxu0
      %1088 = vmatprep.mubr.bf16.mxu0 0
      %1089 = vmatmul.mubr.bf16.gmra.mrb[0].mxu0 %v932
      %v1090 = vpop.f32.mrb[0].mxu0
      %v1091 = vadd.f32 %v634, %v1090
      %v1092 = vpop.f32.mrb[0].mxu0
      %v1093 = vpop.f32.mrb[0].mxu0
      %v1094 = vadd.f32 %v637, %v1093
      %v1095 = vpop.f32.mrb[0].mxu0
      %1096 = vmatprep.mubr.bf16.mxu0 0
      %1097 = vmatmul.mubr.bf16.gmra.mrb[0].mxu0 %v935
      %v1098 = vpop.f32.mrb[0].mxu0
      %v1099 = vadd.f32 %v642, %v1098
      %v1100 = vpop.f32.mrb[0].mxu0
      %v1101 = vpop.f32.mrb[0].mxu0
      %v1102 = vadd.f32 %v645, %v1101
      %v1103 = vpop.f32.mrb[0].mxu0
      %1104 = vmatprep.mubr.bf16.mxu0 0
      %1105 = vmatmul.mubr.bf16.gmra.mrb[0].mxu0 %v938
      %v1106 = vpop.f32.mrb[0].mxu0
      %v1107 = vadd.f32 %v650, %v1106
      %v1108 = vpop.f32.mrb[0].mxu0
      %v1109 = vpop.f32.mrb[0].mxu0
      %v1110 = vadd.f32 %v653, %v1109
      %v1111 = vpop.f32.mrb[0].mxu0
      %1112 = vmatprep.mubr.bf16.mxu0 0
      %1113 = vmatmul.mubr.bf16.gmra.mrb[0].mxu0 %v941
      %v1114 = vpop.f32.mrb[0].mxu0
      %v1115 = vadd.f32 %v658, %v1114
      %v1116 = vpop.f32.mrb[0].mxu0
      %v1117 = vpop.f32.mrb[0].mxu0
      %v1118 = vadd.f32 %v661, %v1117
      %v1119 = vpop.f32.mrb[0].mxu0
      %1120 = vmatprep.mubr.bf16.mxu0 0
      %1121 = vmatmul.mubr.bf16.gmra.mrb[0].mxu0 %v944
      %v1122 = vpop.f32.mrb[0].mxu0
      %v1123 = vadd.f32 %v666, %v1122
      %v1124 = vpop.f32.mrb[0].mxu0
      %v1125 = vpop.f32.mrb[0].mxu0
      %v1126 = vadd.f32 %v669, %v1125
      %v1127 = vpop.f32.mrb[0].mxu0
      %1128 = vmatprep.mubr.bf16.mxu0 0
      %1129 = vmatmul.mubr.bf16.gmra.mrb[0].mxu0 %v947
      %v1130 = vpop.f32.mrb[0].mxu0
      %v1131 = vadd.f32 %v674, %v1130
      %v1132 = vpop.f32.mrb[0].mxu0
      %v1133 = vpop.f32.mrb[0].mxu0
      %v1134 = vadd.f32 %v677, %v1133
      %v1135 = vpop.f32.mrb[0].mxu0
      %1136 = vmatprep.mubr.bf16.mxu0 0
      %1137 = vmatmul.mubr.bf16.gmra.mrb[0].mxu0 %v950
      %v1138 = vpop.f32.mrb[0].mxu0
      %v1139 = vadd.f32 %v682, %v1138
      %v1140 = vpop.f32.mrb[0].mxu0
      %v1141 = vpop.f32.mrb[0].mxu0
      %v1142 = vadd.f32 %v685, %v1141
      %v1143 = vpop.f32.mrb[0].mxu0
      %1144 = vdwg.mxu0
      %v1145 = vld [vmem:[%s219 + $0xa8] sm:$0xf]
      %s1146 = scalar_lea.vmem %s1, 32
      %v1147 = vld [vmem:[%s1146] sm:$0xf]
      %v1148 = vld [vmem:[%s1146 + $0x4] sm:$0xf]
      %v1149 = vld [vmem:[%s1146 + $0x8] sm:$0xf]
      %v1150 = vld [vmem:[%s1146 + $0xc] sm:$0xf]
      %v1152 = vunpack.c.l.b16 %v1145
      %v1153 = vpack.c.b16 %v1152, %v1152
      %vm1154 = vsmask.f32 4352
      %v1156 = vshrl.u32 %v359, 16
      %v1158 = vrot.slane %v1156, 3
      %v1159 = vshll.u32 %v359, 16
      %v1161 = vrot.slane %v1159, 4
      %v1162 = vor.u32 %v1158, %v1161
      %v1163 = vrot.slane %v701, 3
      %v1164 = vrot.slane %v704, 4
      %v1165 = vor.u32 %v1163, %v1164
      %v1166 = vsel %vm1154, %v1162, %v1165
      %v1167 = vrot.slane %v710, 3
      %v1168 = vrot.slane %v713, 4
      %v1169 = vor.u32 %v1167, %v1168
      %v1170 = vsel %vm1154, %v1165, %v1169
      %v1171 = vrot.slane %v719, 3
      %v1172 = vrot.slane %v722, 4
      %v1173 = vor.u32 %v1171, %v1172
      %v1174 = vsel %vm1154, %v1169, %v1173
      %v1175 = vrot.slane %v728, 3
      %v1176 = vrot.slane %v731, 4
      %v1177 = vor.u32 %v1175, %v1176
      %v1178 = vsel %vm1154, %v1173, %v1177
      %v1179 = vrot.slane %v737, 3
      %v1180 = vrot.slane %v740, 4
      %v1181 = vor.u32 %v1179, %v1180
      %v1182 = vsel %vm1154, %v1177, %v1181
      %v1183 = vrot.slane %v746, 3
      %v1184 = vrot.slane %v749, 4
      %v1185 = vor.u32 %v1183, %v1184
      %v1186 = vsel %vm1154, %v1181, %v1185
      %v1187 = vrot.slane %v755, 3
      %v1188 = vrot.slane %v758, 4
      %v1189 = vor.u32 %v1187, %v1188
      %v1190 = vsel %vm1154, %v1185, %v1189
      %v1191 = vrot.slane %v764, 3
      %v1192 = vrot.slane %v767, 4
      %v1193 = vor.u32 %v1191, %v1192
      %v1194 = vsel %vm1154, %v1189, %v1193
      %v1195 = vrot.slane %v773, 3
      %v1196 = vrot.slane %v776, 4
      %v1197 = vor.u32 %v1195, %v1196
      %v1198 = vsel %vm1154, %v1193, %v1197
      %v1199 = vrot.slane %v782, 3
      %v1200 = vrot.slane %v785, 4
      %v1201 = vor.u32 %v1199, %v1200
      %v1202 = vsel %vm1154, %v1197, %v1201
      %v1203 = vrot.slane %v791, 3
      %v1204 = vrot.slane %v794, 4
      %v1205 = vor.u32 %v1203, %v1204
      %v1206 = vsel %vm1154, %v1201, %v1205
      %v1207 = vrot.slane %v800, 3
      %v1208 = vrot.slane %v803, 4
      %v1209 = vor.u32 %v1207, %v1208
      %v1210 = vsel %vm1154, %v1205, %v1209
      %v1211 = vrot.slane %v809, 3
      %v1212 = vrot.slane %v812, 4
      %v1213 = vor.u32 %v1211, %v1212
      %v1214 = vsel %vm1154, %v1209, %v1213
      %v1215 = vrot.slane %v818, 3
      %v1216 = vrot.slane %v821, 4
      %v1217 = vor.u32 %v1215, %v1216
      %v1218 = vsel %vm1154, %v1213, %v1217
      %v1219 = vrot.slane %v827, 3
      %v1220 = vrot.slane %v830, 4
      %v1221 = vor.u32 %v1219, %v1220
      %v1222 = vsel %vm1154, %v1217, %v1221
      %v1223 = vrot.slane %v836, 3
      %v1224 = vrot.slane %v839, 4
      %v1225 = vor.u32 %v1223, %v1224
      %v1226 = vsel %vm1154, %v1221, %v1225
      %v1227 = vrot.slane %v845, 3
      %v1228 = vrot.slane %v848, 4
      %v1229 = vor.u32 %v1227, %v1228
      %v1230 = vsel %vm1154, %v1225, %v1229
      %v1231 = vrot.slane %v854, 3
      %v1232 = vrot.slane %v857, 4
      %v1233 = vor.u32 %v1231, %v1232
      %v1234 = vsel %vm1154, %v1229, %v1233
      %v1235 = vrot.slane %v863, 3
      %v1236 = vrot.slane %v866, 4
      %v1237 = vor.u32 %v1235, %v1236
      %v1238 = vsel %vm1154, %v1233, %v1237
      %v1240 = vshrl.u32 %v1153, 16
      %v1242 = vrot.slane %v1240, 3
      %v1243 = vshll.u32 %v1153, 16
      %v1245 = vrot.slane %v1243, 4
      %v1246 = vor.u32 %v1242, %v1245
      %v1247 = vsel %vm1154, %v1237, %v1246
      %v1252 = vunpack.c.l.b16 %v1147
      %v1253 = vunpack.c.l.b16 %v1148
      %v1254 = vunpack.c.l.b16 %v1149
      %v1255 = vunpack.c.l.b16 %v1150
      %v1256 = vpack.c.b16 %v1253, %v1252
      %v1257 = vpack.c.b16 %v1255, %v1254
      %v1261 = vsel %vm434, %v1166, 0
      %v1264 = vsel %vm434, %v1170, 0
      %v1267 = vsel %vm434, %v1174, 0
      %v1270 = vsel %vm434, %v1178, 0
      %v1273 = vsel %vm434, %v1182, 0
      %v1276 = vsel %vm434, %v1186, 0
      %v1279 = vsel %vm434, %v1190, 0
      %v1282 = vsel %vm434, %v1194, 0
      %v1285 = vsel %vm434, %v1198, 0
      %v1288 = vsel %vm434, %v1202, 0
      %v1291 = vsel %vm434, %v1206, 0
      %v1294 = vsel %vm434, %v1210, 0
      %v1297 = vsel %vm434, %v1214, 0
      %v1300 = vsel %vm434, %v1218, 0
      %v1303 = vsel %vm434, %v1222, 0
      %v1306 = vsel %vm434, %v1226, 0
      %v1309 = vsel %vm434, %v1230, 0
      %v1312 = vsel %vm434, %v1234, 0
      %v1315 = vsel %vm434, %v1238, 0
      %v1318 = vsel %vm434, %v1247, 0
      %1320 = vmatprep.subr.bf16.mxu0 0
      %1321 = vmatpush1.bf16.msra.mxu0 %v1256
      %1322 = vmatprep.subr.bf16.mxu0 0
      %1323 = vmatpush1.bf16.msra.mxu0 %v1257
      %1324 = vmatprep.subr.bf16.mxu0 0
      %1325 = vmatpush1.bf16.msra.mxu0 0
      %1326 = vmatprep.subr.bf16.mxu0 0
      %1327 = vmatpush1.bf16.msra.mxu0 0
      %1328 = vmatprep.subr.bf16.mxu0 0
      %1329 = vmatpush1.bf16.msra.mxu0 0
      %1330 = vmatprep.subr.bf16.mxu0 0
      %1331 = vmatpush1.bf16.msra.mxu0 0
      %1332 = vmatprep.subr.bf16.mxu0 0
      %1333 = vmatpush1.bf16.msra.mxu0 0
      %1334 = vmatprep.subr.bf16.mxu0 0
      %1335 = vmatpush1.bf16.msra.mxu0 0
      %1336 = vmatprep.subr.bf16.mxu0 0
      %1337 = vmatpush1.bf16.msra.mxu0 0
      %1338 = vmatprep.subr.bf16.mxu0 0
      %1339 = vmatpush1.bf16.msra.mxu0 0
      %1340 = vmatprep.subr.bf16.mxu0 0
      %1341 = vmatpush1.bf16.msra.mxu0 0
      %1342 = vmatprep.subr.bf16.mxu0 0
      %1343 = vmatpush1.bf16.msra.mxu0 0
      %1344 = vmatprep.subr.bf16.mxu0 0
      %1345 = vmatpush1.bf16.msra.mxu0 0
      %1346 = vmatprep.subr.bf16.mxu0 0
      %1347 = vmatpush1.bf16.msra.mxu0 0
      %1348 = vmatprep.subr.bf16.mxu0 0
      %1349 = vmatpush1.bf16.msra.mxu0 0
      %1350 = vmatprep.subr.bf16.mxu0 0
      %1351 = vmatpush1.bf16.msra.mxu0 0
      %1352 = vmatprep.mubr.bf16.mxu0 0
      %1353 = vmatmul.mubr.bf16.gmra.mrb[0].mxu0 %v1261
      %v1354 = vpop.f32.mrb[0].mxu0
      %v1355 = vadd.f32 0.0, %v1354
      %v1356 = vpop.f32.mrb[0].mxu0
      %v1357 = vpop.f32.mrb[0].mxu0
      %v1358 = vadd.f32 0.0, %v1357
      %v1359 = vpop.f32.mrb[0].mxu0
      %1360 = vmatprep.mubr.bf16.mxu0 0
      %1361 = vmatmul.mubr.bf16.gmra.mrb[0].mxu0 %v1264
      %v1362 = vpop.f32.mrb[0].mxu0
      %v1363 = vadd.f32 0.0, %v1362
      %v1364 = vpop.f32.mrb[0].mxu0
      %v1365 = vpop.f32.mrb[0].mxu0
      %v1366 = vadd.f32 0.0, %v1365
      %v1367 = vpop.f32.mrb[0].mxu0
      %1368 = vmatprep.mubr.bf16.mxu0 0
      %1369 = vmatmul.mubr.bf16.gmra.mrb[0].mxu0 %v1267
      %v1370 = vpop.f32.mrb[0].mxu0
      %v1371 = vadd.f32 0.0, %v1370
      %v1372 = vpop.f32.mrb[0].mxu0
      %v1373 = vpop.f32.mrb[0].mxu0
      %v1374 = vadd.f32 0.0, %v1373
      %v1375 = vpop.f32.mrb[0].mxu0
      %1376 = vmatprep.mubr.bf16.mxu0 0
      %1377 = vmatmul.mubr.bf16.gmra.mrb[0].mxu0 %v1270
      %v1378 = vpop.f32.mrb[0].mxu0
      %v1379 = vadd.f32 0.0, %v1378
      %v1380 = vpop.f32.mrb[0].mxu0
      %v1381 = vpop.f32.mrb[0].mxu0
      %v1382 = vadd.f32 0.0, %v1381
      %v1383 = vpop.f32.mrb[0].mxu0
      %1384 = vmatprep.mubr.bf16.mxu0 0
      %1385 = vmatmul.mubr.bf16.gmra.mrb[0].mxu0 %v1273
      %v1386 = vpop.f32.mrb[0].mxu0
      %v1387 = vadd.f32 0.0, %v1386
      %v1388 = vpop.f32.mrb[0].mxu0
      %v1389 = vpop.f32.mrb[0].mxu0
      %v1390 = vadd.f32 0.0, %v1389
      %v1391 = vpop.f32.mrb[0].mxu0
      %1392 = vmatprep.mubr.bf16.mxu0 0
      %1393 = vmatmul.mubr.bf16.gmra.mrb[0].mxu0 %v1276
      %v1394 = vpop.f32.mrb[0].mxu0
      %v1395 = vadd.f32 0.0, %v1394
      %v1396 = vpop.f32.mrb[0].mxu0
      %v1397 = vpop.f32.mrb[0].mxu0
      %v1398 = vadd.f32 0.0, %v1397
      %v1399 = vpop.f32.mrb[0].mxu0
      %1400 = vmatprep.mubr.bf16.mxu0 0
      %1401 = vmatmul.mubr.bf16.gmra.mrb[0].mxu0 %v1279
      %v1402 = vpop.f32.mrb[0].mxu0
      %v1403 = vadd.f32 0.0, %v1402
      %v1404 = vpop.f32.mrb[0].mxu0
      %v1405 = vpop.f32.mrb[0].mxu0
      %v1406 = vadd.f32 0.0, %v1405
      %v1407 = vpop.f32.mrb[0].mxu0
      %1408 = vmatprep.mubr.bf16.mxu0 0
      %1409 = vmatmul.mubr.bf16.gmra.mrb[0].mxu0 %v1282
      %v1410 = vpop.f32.mrb[0].mxu0
      %v1411 = vadd.f32 0.0, %v1410
      %v1412 = vpop.f32.mrb[0].mxu0
      %v1413 = vpop.f32.mrb[0].mxu0
      %v1414 = vadd.f32 0.0, %v1413
      %v1415 = vpop.f32.mrb[0].mxu0
      %1416 = vmatprep.mubr.bf16.mxu0 0
      %1417 = vmatmul.mubr.bf16.gmra.mrb[0].mxu0 %v1285
      %v1418 = vpop.f32.mrb[0].mxu0
      %v1419 = vadd.f32 0.0, %v1418
      %v1420 = vpop.f32.mrb[0].mxu0
      %v1421 = vpop.f32.mrb[0].mxu0
      %v1422 = vadd.f32 0.0, %v1421
      %v1423 = vpop.f32.mrb[0].mxu0
      %1424 = vmatprep.mubr.bf16.mxu0 0
      %1425 = vmatmul.mubr.bf16.gmra.mrb[0].mxu0 %v1288
      %v1426 = vpop.f32.mrb[0].mxu0
      %v1427 = vadd.f32 0.0, %v1426
      %v1428 = vpop.f32.mrb[0].mxu0
      %v1429 = vpop.f32.mrb[0].mxu0
      %v1430 = vadd.f32 0.0, %v1429
      %v1431 = vpop.f32.mrb[0].mxu0
      %1432 = vmatprep.mubr.bf16.mxu0 0
      %1433 = vmatmul.mubr.bf16.gmra.mrb[0].mxu0 %v1291
      %v1434 = vpop.f32.mrb[0].mxu0
      %v1435 = vadd.f32 0.0, %v1434
      %v1436 = vpop.f32.mrb[0].mxu0
      %v1437 = vpop.f32.mrb[0].mxu0
      %v1438 = vadd.f32 0.0, %v1437
      %v1439 = vpop.f32.mrb[0].mxu0
      %1440 = vmatprep.mubr.bf16.mxu0 0
      %1441 = vmatmul.mubr.bf16.gmra.mrb[0].mxu0 %v1294
      %v1442 = vpop.f32.mrb[0].mxu0
      %v1443 = vadd.f32 0.0, %v1442
      %v1444 = vpop.f32.mrb[0].mxu0
      %v1445 = vpop.f32.mrb[0].mxu0
      %v1446 = vadd.f32 0.0, %v1445
      %v1447 = vpop.f32.mrb[0].mxu0
      %1448 = vmatprep.mubr.bf16.mxu0 0
      %1449 = vmatmul.mubr.bf16.gmra.mrb[0].mxu0 %v1297
      %v1450 = vpop.f32.mrb[0].mxu0
      %v1451 = vadd.f32 0.0, %v1450
      %v1452 = vpop.f32.mrb[0].mxu0
      %v1453 = vpop.f32.mrb[0].mxu0
      %v1454 = vadd.f32 0.0, %v1453
      %v1455 = vpop.f32.mrb[0].mxu0
      %1456 = vmatprep.mubr.bf16.mxu0 0
      %1457 = vmatmul.mubr.bf16.gmra.mrb[0].mxu0 %v1300
      %v1458 = vpop.f32.mrb[0].mxu0
      %v1459 = vadd.f32 0.0, %v1458
      %v1460 = vpop.f32.mrb[0].mxu0
      %v1461 = vpop.f32.mrb[0].mxu0
      %v1462 = vadd.f32 0.0, %v1461
      %v1463 = vpop.f32.mrb[0].mxu0
      %1464 = vmatprep.mubr.bf16.mxu0 0
      %1465 = vmatmul.mubr.bf16.gmra.mrb[0].mxu0 %v1303
      %v1466 = vpop.f32.mrb[0].mxu0
      %v1467 = vadd.f32 0.0, %v1466
      %v1468 = vpop.f32.mrb[0].mxu0
      %v1469 = vpop.f32.mrb[0].mxu0
      %v1470 = vadd.f32 0.0, %v1469
      %v1471 = vpop.f32.mrb[0].mxu0
      %1472 = vmatprep.mubr.bf16.mxu0 0
      %1473 = vmatmul.mubr.bf16.gmra.mrb[0].mxu0 %v1306
      %v1474 = vpop.f32.mrb[0].mxu0
      %v1475 = vadd.f32 0.0, %v1474
      %v1476 = vpop.f32.mrb[0].mxu0
      %v1477 = vpop.f32.mrb[0].mxu0
      %v1478 = vadd.f32 0.0, %v1477
      %v1479 = vpop.f32.mrb[0].mxu0
      %1480 = vmatprep.mubr.bf16.mxu0 0
      %1481 = vmatmul.mubr.bf16.gmra.mrb[0].mxu0 %v1309
      %v1482 = vpop.f32.mrb[0].mxu0
      %v1483 = vadd.f32 0.0, %v1482
      %v1484 = vpop.f32.mrb[0].mxu0
      %v1485 = vpop.f32.mrb[0].mxu0
      %v1486 = vadd.f32 0.0, %v1485
      %v1487 = vpop.f32.mrb[0].mxu0
      %1488 = vmatprep.mubr.bf16.mxu0 0
      %1489 = vmatmul.mubr.bf16.gmra.mrb[0].mxu0 %v1312
      %v1490 = vpop.f32.mrb[0].mxu0
      %v1491 = vadd.f32 0.0, %v1490
      %v1492 = vpop.f32.mrb[0].mxu0
      %v1493 = vpop.f32.mrb[0].mxu0
      %v1494 = vadd.f32 0.0, %v1493
      %v1495 = vpop.f32.mrb[0].mxu0
      %1496 = vmatprep.mubr.bf16.mxu0 0
      %1497 = vmatmul.mubr.bf16.gmra.mrb[0].mxu0 %v1315
      %v1498 = vpop.f32.mrb[0].mxu0
      %v1499 = vadd.f32 0.0, %v1498
      %v1500 = vpop.f32.mrb[0].mxu0
      %v1501 = vpop.f32.mrb[0].mxu0
      %v1502 = vadd.f32 0.0, %v1501
      %v1503 = vpop.f32.mrb[0].mxu0
      %1504 = vmatprep.mubr.bf16.mxu0 0
      %1505 = vmatmul.mubr.bf16.gmra.mrb[0].mxu0 %v1318
      %v1506 = vpop.f32.mrb[0].mxu0
      %v1507 = vadd.f32 0.0, %v1506
      %v1508 = vpop.f32.mrb[0].mxu0
      %v1509 = vpop.f32.mrb[0].mxu0
      %v1510 = vadd.f32 0.0, %v1509
      %v1511 = vpop.f32.mrb[0].mxu0
      %1512 = vdwg.mxu0
      %v1513 = vadd.f32 %v987, %v1355
      %v1514 = vadd.f32 %v990, %v1358
      %v1515 = vadd.f32 %v995, %v1363
      %v1516 = vadd.f32 %v998, %v1366
      %v1517 = vadd.f32 %v1003, %v1371
      %v1518 = vadd.f32 %v1006, %v1374
      %v1519 = vadd.f32 %v1011, %v1379
      %v1520 = vadd.f32 %v1014, %v1382
      %v1521 = vadd.f32 %v1019, %v1387
      %v1522 = vadd.f32 %v1022, %v1390
      %v1523 = vadd.f32 %v1027, %v1395
      %v1524 = vadd.f32 %v1030, %v1398
      %v1525 = vadd.f32 %v1035, %v1403
      %v1526 = vadd.f32 %v1038, %v1406
      %v1527 = vadd.f32 %v1043, %v1411
      %v1528 = vadd.f32 %v1046, %v1414
      %v1529 = vadd.f32 %v1051, %v1419
      %v1530 = vadd.f32 %v1054, %v1422
      %v1531 = vadd.f32 %v1059, %v1427
      %v1532 = vadd.f32 %v1062, %v1430
      %v1533 = vadd.f32 %v1067, %v1435
      %v1534 = vadd.f32 %v1070, %v1438
      %v1535 = vadd.f32 %v1075, %v1443
      %v1536 = vadd.f32 %v1078, %v1446
      %v1537 = vadd.f32 %v1083, %v1451
      %v1538 = vadd.f32 %v1086, %v1454
      %v1539 = vadd.f32 %v1091, %v1459
      %v1540 = vadd.f32 %v1094, %v1462
      %v1541 = vadd.f32 %v1099, %v1467
      %v1542 = vadd.f32 %v1102, %v1470
      %v1543 = vadd.f32 %v1107, %v1475
      %v1544 = vadd.f32 %v1110, %v1478
      %v1545 = vadd.f32 %v1115, %v1483
      %v1546 = vadd.f32 %v1118, %v1486
      %v1547 = vadd.f32 %v1123, %v1491
      %v1548 = vadd.f32 %v1126, %v1494
      %v1549 = vadd.f32 %v1131, %v1499
      %v1550 = vadd.f32 %v1134, %v1502
      %v1551 = vadd.f32 %v1139, %v1507
      %v1552 = vadd.f32 %v1142, %v1510
      %v1553 = vld [vmem:[%s219 + $0x14] sm:$0xf]
      %v1554 = vld [vmem:[%s219 + $0x18] sm:$0xf]
      %v1555 = vld [vmem:[%s219 + $0x1c] sm:$0xf]
      %v1556 = vld [vmem:[%s219 + $0x20] sm:$0xf]
      %v1557 = vld [vmem:[%s219 + $0x24] sm:$0xf]
      %v1558 = vld [vmem:[%s219 + $0x28] sm:$0xf]
      %v1559 = vld [vmem:[%s219 + $0x2c] sm:$0xf]
      %v1560 = vld [vmem:[%s219 + $0x30] sm:$0xf]
      %v1561 = vld [vmem:[%s219 + $0x34] sm:$0xf]
      %v1562 = vld [vmem:[%s219 + $0x38] sm:$0xf]
      %v1563 = vld [vmem:[%s219 + $0x3c] sm:$0xf]
      %v1564 = vld [vmem:[%s219 + $0x40] sm:$0xf]
      %v1565 = vld [vmem:[%s219 + $0x44] sm:$0xf]
      %v1566 = vld [vmem:[%s219 + $0x48] sm:$0xf]
      %v1567 = vld [vmem:[%s219 + $0x4c] sm:$0xf]
      %v1568 = vld [vmem:[%s219 + $0x50] sm:$0xf]
      %v1569 = vld [vmem:[%s219 + $0x54] sm:$0xf]
      %v1570 = vld [vmem:[%s219 + $0x58] sm:$0xf]
      %v1571 = vld [vmem:[%s219 + $0x5c] sm:$0xf]
      %v1572 = vld [vmem:[%s219 + $0x60] sm:$0xf]
      %v1573 = vld [vmem:[%s219 + $0x64] sm:$0xf]
      %v1574 = vld [vmem:[%s219 + $0x68] sm:$0xf]
      %v1575 = vld [vmem:[%s219 + $0x6c] sm:$0xf]
      %v1576 = vld [vmem:[%s219 + $0x70] sm:$0xf]
      %v1577 = vld [vmem:[%s219 + $0x74] sm:$0xf]
      %v1578 = vld [vmem:[%s219 + $0x78] sm:$0xf]
      %v1579 = vld [vmem:[%s219 + $0x7c] sm:$0xf]
      %v1580 = vld [vmem:[%s219 + $0x80] sm:$0xf]
      %v1581 = vld [vmem:[%s219 + $0x84] sm:$0xf]
      %v1582 = vld [vmem:[%s219 + $0x88] sm:$0xf]
      %v1583 = vld [vmem:[%s219 + $0x8c] sm:$0xf]
      %v1584 = vld [vmem:[%s219 + $0x90] sm:$0xf]
      %v1585 = vld [vmem:[%s219 + $0x94] sm:$0xf]
      %v1586 = vld [vmem:[%s219 + $0x98] sm:$0xf]
      %v1587 = vld [vmem:[%s219 + $0x9c] sm:$0xf]
      %v1588 = vld [vmem:[%s219 + $0xa0] sm:$0xf]
      %v1589 = vld [vmem:[%s219 + $0xa4] sm:$0xf]
      %v1590 = vld [vmem:[%s219 + $0xa8] sm:$0xf]
      %v1591 = vld [vmem:[%s219 + $0xac] sm:$0xf]
      %v1592 = vld [vmem:[%s219 + $0xb0] sm:$0xf]
      %v1593 = vld [vmem:[%s219 + $0xb4] sm:$0x1]
      %s1594 = scalar_lea.vmem %s1, 48
      %v1595 = vld [vmem:[%s1594] sm:$0xf]
      %v1596 = vld [vmem:[%s1594 + $0x4] sm:$0xf]
      %v1597 = vld [vmem:[%s1594 + $0x8] sm:$0xf]
      %v1598 = vld [vmem:[%s1594 + $0xc] sm:$0xf]
      %v1640 = vunpack.c.l.b16 %v1553
      %v1641 = vunpack.c.l.b16 %v1554
      %v1642 = vunpack.c.l.b16 %v1555
      %v1643 = vunpack.c.l.b16 %v1556
      %v1644 = vunpack.c.l.b16 %v1557
      %v1645 = vunpack.c.l.b16 %v1558
      %v1646 = vunpack.c.l.b16 %v1559
      %v1647 = vunpack.c.l.b16 %v1560
      %v1648 = vunpack.c.l.b16 %v1561
      %v1649 = vunpack.c.l.b16 %v1562
      %v1650 = vunpack.c.l.b16 %v1563
      %v1651 = vunpack.c.l.b16 %v1564
      %v1652 = vunpack.c.l.b16 %v1565
      %v1653 = vunpack.c.l.b16 %v1566
      %v1654 = vunpack.c.l.b16 %v1567
      %v1655 = vunpack.c.l.b16 %v1568
      %v1656 = vunpack.c.l.b16 %v1569
      %v1657 = vunpack.c.l.b16 %v1570
      %v1658 = vunpack.c.l.b16 %v1571
      %v1659 = vunpack.c.l.b16 %v1572
      %v1660 = vunpack.c.l.b16 %v1573
      %v1661 = vunpack.c.l.b16 %v1574
      %v1662 = vunpack.c.l.b16 %v1575
      %v1663 = vunpack.c.l.b16 %v1576
      %v1664 = vunpack.c.l.b16 %v1577
      %v1665 = vunpack.c.l.b16 %v1578
      %v1666 = vunpack.c.l.b16 %v1579
      %v1667 = vunpack.c.l.b16 %v1580
      %v1668 = vunpack.c.l.b16 %v1581
      %v1669 = vunpack.c.l.b16 %v1582
      %v1670 = vunpack.c.l.b16 %v1583
      %v1671 = vunpack.c.l.b16 %v1584
      %v1672 = vunpack.c.l.b16 %v1585
      %v1673 = vunpack.c.l.b16 %v1586
      %v1674 = vunpack.c.l.b16 %v1587
      %v1675 = vunpack.c.l.b16 %v1588
      %v1676 = vunpack.c.l.b16 %v1589
      %v1677 = vunpack.c.l.b16 %v1590
      %v1678 = vunpack.c.l.b16 %v1591
      %v1679 = vunpack.c.l.b16 %v1592
      %v1680 = vunpack.c.l.b16 %v1593
      %v1681 = vpack.c.b16 %v1641, %v1640
      %v1682 = vpack.c.b16 %v1643, %v1642
      %v1683 = vpack.c.b16 %v1645, %v1644
      %v1684 = vpack.c.b16 %v1647, %v1646
      %v1685 = vpack.c.b16 %v1649, %v1648
      %v1686 = vpack.c.b16 %v1651, %v1650
      %v1687 = vpack.c.b16 %v1653, %v1652
      %v1688 = vpack.c.b16 %v1655, %v1654
      %v1689 = vpack.c.b16 %v1657, %v1656
      %v1690 = vpack.c.b16 %v1659, %v1658
      %v1691 = vpack.c.b16 %v1661, %v1660
      %v1692 = vpack.c.b16 %v1663, %v1662
      %v1693 = vpack.c.b16 %v1665, %v1664
      %v1694 = vpack.c.b16 %v1667, %v1666
      %v1695 = vpack.c.b16 %v1669, %v1668
      %v1696 = vpack.c.b16 %v1671, %v1670
      %v1697 = vpack.c.b16 %v1673, %v1672
      %v1698 = vpack.c.b16 %v1675, %v1674
      %v1699 = vpack.c.b16 %v1677, %v1676
      %v1700 = vpack.c.b16 %v1679, %v1678
      %v1701 = vpack.c.b16 %v1680, %v1680
      %vm1702 = vsmask.f32 7424
      %v1704 = vshrl.u32 %v1681, 16
      %v1706 = vshll.u32 %v1681, 16
      %v1708 = vrot.slane %v1706, 1
      %v1709 = vor.u32 %v1704, %v1708
      %v1711 = vshll.u32 %v1682, 16
      %v1713 = vrot.slane %v1711, 1
      %v1714 = vsel %vm1702, %v1709, %v1713
      %v1715 = vshrl.u32 %v1682, 16
      %v1717 = vor.u32 %v1715, %v1713
      %v1719 = vshll.u32 %v1683, 16
      %v1721 = vrot.slane %v1719, 1
      %v1722 = vsel %vm1702, %v1717, %v1721
      %v1723 = vshrl.u32 %v1683, 16
      %v1725 = vor.u32 %v1723, %v1721
      %v1727 = vshll.u32 %v1684, 16
      %v1729 = vrot.slane %v1727, 1
      %v1730 = vsel %vm1702, %v1725, %v1729
      %v1731 = vshrl.u32 %v1684, 16
      %v1733 = vor.u32 %v1731, %v1729
      %v1735 = vshll.u32 %v1685, 16
      %v1737 = vrot.slane %v1735, 1
      %v1738 = vsel %vm1702, %v1733, %v1737
      %v1739 = vshrl.u32 %v1685, 16
      %v1741 = vor.u32 %v1739, %v1737
      %v1743 = vshll.u32 %v1686, 16
      %v1745 = vrot.slane %v1743, 1
      %v1746 = vsel %vm1702, %v1741, %v1745
      %v1747 = vshrl.u32 %v1686, 16
      %v1749 = vor.u32 %v1747, %v1745
      %v1751 = vshll.u32 %v1687, 16
      %v1753 = vrot.slane %v1751, 1
      %v1754 = vsel %vm1702, %v1749, %v1753
      %v1755 = vshrl.u32 %v1687, 16
      %v1757 = vor.u32 %v1755, %v1753
      %v1759 = vshll.u32 %v1688, 16
      %v1761 = vrot.slane %v1759, 1
      %v1762 = vsel %vm1702, %v1757, %v1761
      %v1763 = vshrl.u32 %v1688, 16
      %v1765 = vor.u32 %v1763, %v1761
      %v1767 = vshll.u32 %v1689, 16
      %v1769 = vrot.slane %v1767, 1
      %v1770 = vsel %vm1702, %v1765, %v1769
      %v1771 = vshrl.u32 %v1689, 16
      %v1773 = vor.u32 %v1771, %v1769
      %v1775 = vshll.u32 %v1690, 16
      %v1777 = vrot.slane %v1775, 1
      %v1778 = vsel %vm1702, %v1773, %v1777
      %v1779 = vshrl.u32 %v1690, 16
      %v1781 = vor.u32 %v1779, %v1777
      %v1783 = vshll.u32 %v1691, 16
      %v1785 = vrot.slane %v1783, 1
      %v1786 = vsel %vm1702, %v1781, %v1785
      %v1787 = vshrl.u32 %v1691, 16
      %v1789 = vor.u32 %v1787, %v1785
      %v1791 = vshll.u32 %v1692, 16
      %v1793 = vrot.slane %v1791, 1
      %v1794 = vsel %vm1702, %v1789, %v1793
      %v1795 = vshrl.u32 %v1692, 16
      %v1797 = vor.u32 %v1795, %v1793
      %v1799 = vshll.u32 %v1693, 16
      %v1801 = vrot.slane %v1799, 1
      %v1802 = vsel %vm1702, %v1797, %v1801
      %v1803 = vshrl.u32 %v1693, 16
      %v1805 = vor.u32 %v1803, %v1801
      %v1807 = vshll.u32 %v1694, 16
      %v1809 = vrot.slane %v1807, 1
      %v1810 = vsel %vm1702, %v1805, %v1809
      %v1811 = vshrl.u32 %v1694, 16
      %v1813 = vor.u32 %v1811, %v1809
      %v1815 = vshll.u32 %v1695, 16
      %v1817 = vrot.slane %v1815, 1
      %v1818 = vsel %vm1702, %v1813, %v1817
      %v1819 = vshrl.u32 %v1695, 16
      %v1821 = vor.u32 %v1819, %v1817
      %v1823 = vshll.u32 %v1696, 16
      %v1825 = vrot.slane %v1823, 1
      %v1826 = vsel %vm1702, %v1821, %v1825
      %v1827 = vshrl.u32 %v1696, 16
      %v1829 = vor.u32 %v1827, %v1825
      %v1831 = vshll.u32 %v1697, 16
      %v1833 = vrot.slane %v1831, 1
      %v1834 = vsel %vm1702, %v1829, %v1833
      %v1835 = vshrl.u32 %v1697, 16
      %v1837 = vor.u32 %v1835, %v1833
      %v1839 = vshll.u32 %v1698, 16
      %v1841 = vrot.slane %v1839, 1
      %v1842 = vsel %vm1702, %v1837, %v1841
      %v1843 = vshrl.u32 %v1698, 16
      %v1845 = vor.u32 %v1843, %v1841
      %v1847 = vshll.u32 %v1699, 16
      %v1849 = vrot.slane %v1847, 1
      %v1850 = vsel %vm1702, %v1845, %v1849
      %v1851 = vshrl.u32 %v1699, 16
      %v1853 = vor.u32 %v1851, %v1849
      %v1855 = vshll.u32 %v1700, 16
      %v1857 = vrot.slane %v1855, 1
      %v1858 = vsel %vm1702, %v1853, %v1857
      %v1859 = vshrl.u32 %v1700, 16
      %v1861 = vor.u32 %v1859, %v1857
      %v1863 = vshll.u32 %v1701, 16
      %v1865 = vrot.slane %v1863, 1
      %v1866 = vsel %vm1702, %v1861, %v1865
      %v1871 = vunpack.c.l.b16 %v1595
      %v1872 = vunpack.c.l.b16 %v1596
      %v1873 = vunpack.c.l.b16 %v1597
      %v1874 = vunpack.c.l.b16 %v1598
      %v1875 = vpack.c.b16 %v1872, %v1871
      %v1876 = vpack.c.b16 %v1874, %v1873
      %v1880 = vsel %vm434, %v1714, 0
      %v1883 = vsel %vm434, %v1722, 0
      %v1886 = vsel %vm434, %v1730, 0
      %v1889 = vsel %vm434, %v1738, 0
      %v1892 = vsel %vm434, %v1746, 0
      %v1895 = vsel %vm434, %v1754, 0
      %v1898 = vsel %vm434, %v1762, 0
      %v1901 = vsel %vm434, %v1770, 0
      %v1904 = vsel %vm434, %v1778, 0
      %v1907 = vsel %vm434, %v1786, 0
      %v1910 = vsel %vm434, %v1794, 0
      %v1913 = vsel %vm434, %v1802, 0
      %v1916 = vsel %vm434, %v1810, 0
      %v1919 = vsel %vm434, %v1818, 0
      %v1922 = vsel %vm434, %v1826, 0
      %v1925 = vsel %vm434, %v1834, 0
      %v1928 = vsel %vm434, %v1842, 0
      %v1931 = vsel %vm434, %v1850, 0
      %v1934 = vsel %vm434, %v1858, 0
      %v1937 = vsel %vm434, %v1866, 0
      %1939 = vmatprep.subr.bf16.mxu0 0
      %1940 = vmatpush1.bf16.msra.mxu0 %v1875
      %1941 = vmatprep.subr.bf16.mxu0 0
      %1942 = vmatpush1.bf16.msra.mxu0 %v1876
      %1943 = vmatprep.subr.bf16.mxu0 0
      %1944 = vmatpush1.bf16.msra.mxu0 0
      %1945 = vmatprep.subr.bf16.mxu0 0
      %1946 = vmatpush1.bf16.msra.mxu0 0
      %1947 = vmatprep.subr.bf16.mxu0 0
      %1948 = vmatpush1.bf16.msra.mxu0 0
      %1949 = vmatprep.subr.bf16.mxu0 0
      %1950 = vmatpush1.bf16.msra.mxu0 0
      %1951 = vmatprep.subr.bf16.mxu0 0
      %1952 = vmatpush1.bf16.msra.mxu0 0
      %1953 = vmatprep.subr.bf16.mxu0 0
      %1954 = vmatpush1.bf16.msra.mxu0 0
      %1955 = vmatprep.subr.bf16.mxu0 0
      %1956 = vmatpush1.bf16.msra.mxu0 0
      %1957 = vmatprep.subr.bf16.mxu0 0
      %1958 = vmatpush1.bf16.msra.mxu0 0
      %1959 = vmatprep.subr.bf16.mxu0 0
      %1960 = vmatpush1.bf16.msra.mxu0 0
      %1961 = vmatprep.subr.bf16.mxu0 0
      %1962 = vmatpush1.bf16.msra.mxu0 0
      %1963 = vmatprep.subr.bf16.mxu0 0
      %1964 = vmatpush1.bf16.msra.mxu0 0
      %1965 = vmatprep.subr.bf16.mxu0 0
      %1966 = vmatpush1.bf16.msra.mxu0 0
      %1967 = vmatprep.subr.bf16.mxu0 0
      %1968 = vmatpush1.bf16.msra.mxu0 0
      %1969 = vmatprep.subr.bf16.mxu0 0
      %1970 = vmatpush1.bf16.msra.mxu0 0
      %1971 = vmatprep.mubr.bf16.mxu0 0
      %1972 = vmatmul.mubr.bf16.gmra.mrb[0].mxu0 %v1880
      %v1973 = vpop.f32.mrb[0].mxu0
      %v1974 = vadd.f32 0.0, %v1973
      %v1975 = vpop.f32.mrb[0].mxu0
      %v1976 = vpop.f32.mrb[0].mxu0
      %v1977 = vadd.f32 0.0, %v1976
      %v1978 = vpop.f32.mrb[0].mxu0
      %1979 = vmatprep.mubr.bf16.mxu0 0
      %1980 = vmatmul.mubr.bf16.gmra.mrb[0].mxu0 %v1883
      %v1981 = vpop.f32.mrb[0].mxu0
      %v1982 = vadd.f32 0.0, %v1981
      %v1983 = vpop.f32.mrb[0].mxu0
      %v1984 = vpop.f32.mrb[0].mxu0
      %v1985 = vadd.f32 0.0, %v1984
      %v1986 = vpop.f32.mrb[0].mxu0
      %1987 = vmatprep.mubr.bf16.mxu0 0
      %1988 = vmatmul.mubr.bf16.gmra.mrb[0].mxu0 %v1886
      %v1989 = vpop.f32.mrb[0].mxu0
      %v1990 = vadd.f32 0.0, %v1989
      %v1991 = vpop.f32.mrb[0].mxu0
      %v1992 = vpop.f32.mrb[0].mxu0
      %v1993 = vadd.f32 0.0, %v1992
      %v1994 = vpop.f32.mrb[0].mxu0
      %1995 = vmatprep.mubr.bf16.mxu0 0
      %1996 = vmatmul.mubr.bf16.gmra.mrb[0].mxu0 %v1889
      %v1997 = vpop.f32.mrb[0].mxu0
      %v1998 = vadd.f32 0.0, %v1997
      %v1999 = vpop.f32.mrb[0].mxu0
      %v2000 = vpop.f32.mrb[0].mxu0
      %v2001 = vadd.f32 0.0, %v2000
      %v2002 = vpop.f32.mrb[0].mxu0
      %2003 = vmatprep.mubr.bf16.mxu0 0
      %2004 = vmatmul.mubr.bf16.gmra.mrb[0].mxu0 %v1892
      %v2005 = vpop.f32.mrb[0].mxu0
      %v2006 = vadd.f32 0.0, %v2005
      %v2007 = vpop.f32.mrb[0].mxu0
      %v2008 = vpop.f32.mrb[0].mxu0
      %v2009 = vadd.f32 0.0, %v2008
      %v2010 = vpop.f32.mrb[0].mxu0
      %2011 = vmatprep.mubr.bf16.mxu0 0
      %2012 = vmatmul.mubr.bf16.gmra.mrb[0].mxu0 %v1895
      %v2013 = vpop.f32.mrb[0].mxu0
      %v2014 = vadd.f32 0.0, %v2013
      %v2015 = vpop.f32.mrb[0].mxu0
      %v2016 = vpop.f32.mrb[0].mxu0
      %v2017 = vadd.f32 0.0, %v2016
      %v2018 = vpop.f32.mrb[0].mxu0
      %2019 = vmatprep.mubr.bf16.mxu0 0
      %2020 = vmatmul.mubr.bf16.gmra.mrb[0].mxu0 %v1898
      %v2021 = vpop.f32.mrb[0].mxu0
      %v2022 = vadd.f32 0.0, %v2021
      %v2023 = vpop.f32.mrb[0].mxu0
      %v2024 = vpop.f32.mrb[0].mxu0
      %v2025 = vadd.f32 0.0, %v2024
      %v2026 = vpop.f32.mrb[0].mxu0
      %2027 = vmatprep.mubr.bf16.mxu0 0
      %2028 = vmatmul.mubr.bf16.gmra.mrb[0].mxu0 %v1901
      %v2029 = vpop.f32.mrb[0].mxu0
      %v2030 = vadd.f32 0.0, %v2029
      %v2031 = vpop.f32.mrb[0].mxu0
      %v2032 = vpop.f32.mrb[0].mxu0
      %v2033 = vadd.f32 0.0, %v2032
      %v2034 = vpop.f32.mrb[0].mxu0
      %2035 = vmatprep.mubr.bf16.mxu0 0
      %2036 = vmatmul.mubr.bf16.gmra.mrb[0].mxu0 %v1904
      %v2037 = vpop.f32.mrb[0].mxu0
      %v2038 = vadd.f32 0.0, %v2037
      %v2039 = vpop.f32.mrb[0].mxu0
      %v2040 = vpop.f32.mrb[0].mxu0
      %v2041 = vadd.f32 0.0, %v2040
      %v2042 = vpop.f32.mrb[0].mxu0
      %2043 = vmatprep.mubr.bf16.mxu0 0
      %2044 = vmatmul.mubr.bf16.gmra.mrb[0].mxu0 %v1907
      %v2045 = vpop.f32.mrb[0].mxu0
      %v2046 = vadd.f32 0.0, %v2045
      %v2047 = vpop.f32.mrb[0].mxu0
      %v2048 = vpop.f32.mrb[0].mxu0
      %v2049 = vadd.f32 0.0, %v2048
      %v2050 = vpop.f32.mrb[0].mxu0
      %2051 = vmatprep.mubr.bf16.mxu0 0
      %2052 = vmatmul.mubr.bf16.gmra.mrb[0].mxu0 %v1910
      %v2053 = vpop.f32.mrb[0].mxu0
      %v2054 = vadd.f32 0.0, %v2053
      %v2055 = vpop.f32.mrb[0].mxu0
      %v2056 = vpop.f32.mrb[0].mxu0
      %v2057 = vadd.f32 0.0, %v2056
      %v2058 = vpop.f32.mrb[0].mxu0
      %2059 = vmatprep.mubr.bf16.mxu0 0
      %2060 = vmatmul.mubr.bf16.gmra.mrb[0].mxu0 %v1913
      %v2061 = vpop.f32.mrb[0].mxu0
      %v2062 = vadd.f32 0.0, %v2061
      %v2063 = vpop.f32.mrb[0].mxu0
      %v2064 = vpop.f32.mrb[0].mxu0
      %v2065 = vadd.f32 0.0, %v2064
      %v2066 = vpop.f32.mrb[0].mxu0
      %2067 = vmatprep.mubr.bf16.mxu0 0
      %2068 = vmatmul.mubr.bf16.gmra.mrb[0].mxu0 %v1916
      %v2069 = vpop.f32.mrb[0].mxu0
      %v2070 = vadd.f32 0.0, %v2069
      %v2071 = vpop.f32.mrb[0].mxu0
      %v2072 = vpop.f32.mrb[0].mxu0
      %v2073 = vadd.f32 0.0, %v2072
      %v2074 = vpop.f32.mrb[0].mxu0
      %2075 = vmatprep.mubr.bf16.mxu0 0
      %2076 = vmatmul.mubr.bf16.gmra.mrb[0].mxu0 %v1919
      %v2077 = vpop.f32.mrb[0].mxu0
      %v2078 = vadd.f32 0.0, %v2077
      %v2079 = vpop.f32.mrb[0].mxu0
      %v2080 = vpop.f32.mrb[0].mxu0
      %v2081 = vadd.f32 0.0, %v2080
      %v2082 = vpop.f32.mrb[0].mxu0
      %2083 = vmatprep.mubr.bf16.mxu0 0
      %2084 = vmatmul.mubr.bf16.gmra.mrb[0].mxu0 %v1922
      %v2085 = vpop.f32.mrb[0].mxu0
      %v2086 = vadd.f32 0.0, %v2085
      %v2087 = vpop.f32.mrb[0].mxu0
      %v2088 = vpop.f32.mrb[0].mxu0
      %v2089 = vadd.f32 0.0, %v2088
      %v2090 = vpop.f32.mrb[0].mxu0
      %2091 = vmatprep.mubr.bf16.mxu0 0
      %2092 = vmatmul.mubr.bf16.gmra.mrb[0].mxu0 %v1925
      %v2093 = vpop.f32.mrb[0].mxu0
      %v2094 = vadd.f32 0.0, %v2093
      %v2095 = vpop.f32.mrb[0].mxu0
      %v2096 = vpop.f32.mrb[0].mxu0
      %v2097 = vadd.f32 0.0, %v2096
      %v2098 = vpop.f32.mrb[0].mxu0
      %2099 = vmatprep.mubr.bf16.mxu0 0
      %2100 = vmatmul.mubr.bf16.gmra.mrb[0].mxu0 %v1928
      %v2101 = vpop.f32.mrb[0].mxu0
      %v2102 = vadd.f32 0.0, %v2101
      %v2103 = vpop.f32.mrb[0].mxu0
      %v2104 = vpop.f32.mrb[0].mxu0
      %v2105 = vadd.f32 0.0, %v2104
      %v2106 = vpop.f32.mrb[0].mxu0
      %2107 = vmatprep.mubr.bf16.mxu0 0
      %2108 = vmatmul.mubr.bf16.gmra.mrb[0].mxu0 %v1931
      %v2109 = vpop.f32.mrb[0].mxu0
      %v2110 = vadd.f32 0.0, %v2109
      %v2111 = vpop.f32.mrb[0].mxu0
      %v2112 = vpop.f32.mrb[0].mxu0
      %v2113 = vadd.f32 0.0, %v2112
      %v2114 = vpop.f32.mrb[0].mxu0
      %2115 = vmatprep.mubr.bf16.mxu0 0
      %2116 = vmatmul.mubr.bf16.gmra.mrb[0].mxu0 %v1934
      %v2117 = vpop.f32.mrb[0].mxu0
      %v2118 = vadd.f32 0.0, %v2117
      %v2119 = vpop.f32.mrb[0].mxu0
      %v2120 = vpop.f32.mrb[0].mxu0
      %v2121 = vadd.f32 0.0, %v2120
      %v2122 = vpop.f32.mrb[0].mxu0
      %2123 = vmatprep.mubr.bf16.mxu0 0
      %2124 = vmatmul.mubr.bf16.gmra.mrb[0].mxu0 %v1937
      %v2125 = vpop.f32.mrb[0].mxu0
      %v2126 = vadd.f32 0.0, %v2125
      %v2127 = vpop.f32.mrb[0].mxu0
      %v2128 = vpop.f32.mrb[0].mxu0
      %v2129 = vadd.f32 0.0, %v2128
      %v2130 = vpop.f32.mrb[0].mxu0
      %2131 = vdwg.mxu0
      %v2132 = vadd.f32 %v1513, %v1974
      %v2133 = vadd.f32 %v1514, %v1977
      %v2134 = vadd.f32 %v1515, %v1982
      %v2135 = vadd.f32 %v1516, %v1985
      %v2136 = vadd.f32 %v1517, %v1990
      %v2137 = vadd.f32 %v1518, %v1993
      %v2138 = vadd.f32 %v1519, %v1998
      %v2139 = vadd.f32 %v1520, %v2001
      %v2140 = vadd.f32 %v1521, %v2006
      %v2141 = vadd.f32 %v1522, %v2009
      %v2142 = vadd.f32 %v1523, %v2014
      %v2143 = vadd.f32 %v1524, %v2017
      %v2144 = vadd.f32 %v1525, %v2022
      %v2145 = vadd.f32 %v1526, %v2025
      %v2146 = vadd.f32 %v1527, %v2030
      %v2147 = vadd.f32 %v1528, %v2033
      %v2148 = vadd.f32 %v1529, %v2038
      %v2149 = vadd.f32 %v1530, %v2041
      %v2150 = vadd.f32 %v1531, %v2046
      %v2151 = vadd.f32 %v1532, %v2049
      %v2152 = vadd.f32 %v1533, %v2054
      %v2153 = vadd.f32 %v1534, %v2057
      %v2154 = vadd.f32 %v1535, %v2062
      %v2155 = vadd.f32 %v1536, %v2065
      %v2156 = vadd.f32 %v1537, %v2070
      %v2157 = vadd.f32 %v1538, %v2073
      %v2158 = vadd.f32 %v1539, %v2078
      %v2159 = vadd.f32 %v1540, %v2081
      %v2160 = vadd.f32 %v1541, %v2086
      %v2161 = vadd.f32 %v1542, %v2089
      %v2162 = vadd.f32 %v1543, %v2094
      %v2163 = vadd.f32 %v1544, %v2097
      %v2164 = vadd.f32 %v1545, %v2102
      %v2165 = vadd.f32 %v1546, %v2105
      %v2166 = vadd.f32 %v1547, %v2110
      %v2167 = vadd.f32 %v1548, %v2113
      %v2168 = vadd.f32 %v1549, %v2118
      %v2169 = vadd.f32 %v1550, %v2121
      %v2170 = vadd.f32 %v1551, %v2126
      %v2171 = vadd.f32 %v1552, %v2129
      %v2172 = vld [vmem:[%s219 + $0x14] sm:$0xe]
      %s2173 = scalar_lea.vmem %s1, 64
      %v2174 = vld [vmem:[%s2173] sm:$0xf]
      %v2175 = vld [vmem:[%s2173 + $0x4] sm:$0xf]
      %v2176 = vld [vmem:[%s2173 + $0x8] sm:$0xf]
      %v2177 = vld [vmem:[%s2173 + $0xc] sm:$0xf]
      %v2179 = vunpack.c.l.b16 %v2172
      %v2180 = vpack.c.b16 %v1641, %v2179
      %vm2181 = vcmask 1046528
      %v2182 = vrot.slane %v2180, 1
      %v2183 = vrot.slane %v1682, 1
      %v2184 = vsel %vm2181, %v2182, %v2183
      %v2185 = vrot.slane %v1683, 1
      %v2186 = vsel %vm2181, %v2183, %v2185
      %v2187 = vrot.slane %v1684, 1
      %v2188 = vsel %vm2181, %v2185, %v2187
      %v2189 = vrot.slane %v1685, 1
      %v2190 = vsel %vm2181, %v2187, %v2189
      %v2191 = vrot.slane %v1686, 1
      %v2192 = vsel %vm2181, %v2189, %v2191
      %v2193 = vrot.slane %v1687, 1
      %v2194 = vsel %vm2181, %v2191, %v2193
      %v2195 = vrot.slane %v1688, 1
      %v2196 = vsel %vm2181, %v2193, %v2195
      %v2197 = vrot.slane %v1689, 1
      %v2198 = vsel %vm2181, %v2195, %v2197
      %v2199 = vrot.slane %v1690, 1
      %v2200 = vsel %vm2181, %v2197, %v2199
      %v2201 = vrot.slane %v1691, 1
      %v2202 = vsel %vm2181, %v2199, %v2201
      %v2203 = vrot.slane %v1692, 1
      %v2204 = vsel %vm2181, %v2201, %v2203
      %v2205 = vrot.slane %v1693, 1
      %v2206 = vsel %vm2181, %v2203, %v2205
      %v2207 = vrot.slane %v1694, 1
      %v2208 = vsel %vm2181, %v2205, %v2207
      %v2209 = vrot.slane %v1695, 1
      %v2210 = vsel %vm2181, %v2207, %v2209
      %v2211 = vrot.slane %v1696, 1
      %v2212 = vsel %vm2181, %v2209, %v2211
      %v2213 = vrot.slane %v1697, 1
      %v2214 = vsel %vm2181, %v2211, %v2213
      %v2215 = vrot.slane %v1698, 1
      %v2216 = vsel %vm2181, %v2213, %v2215
      %v2217 = vrot.slane %v1699, 1
      %v2218 = vsel %vm2181, %v2215, %v2217
      %v2219 = vrot.slane %v1700, 1
      %v2220 = vsel %vm2181, %v2217, %v2219
      %v2221 = vrot.slane %v1701, 1
      %v2222 = vsel %vm2181, %v2219, %v2221
      %v2227 = vunpack.c.l.b16 %v2174
      %v2228 = vunpack.c.l.b16 %v2175
      %v2229 = vunpack.c.l.b16 %v2176
      %v2230 = vunpack.c.l.b16 %v2177
      %v2231 = vpack.c.b16 %v2228, %v2227
      %v2232 = vpack.c.b16 %v2230, %v2229
      %v2236 = vsel %vm434, %v2184, 0
      %v2239 = vsel %vm434, %v2186, 0
      %v2242 = vsel %vm434, %v2188, 0
      %v2245 = vsel %vm434, %v2190, 0
      %v2248 = vsel %vm434, %v2192, 0
      %v2251 = vsel %vm434, %v2194, 0
      %v2254 = vsel %vm434, %v2196, 0
      %v2257 = vsel %vm434, %v2198, 0
      %v2260 = vsel %vm434, %v2200, 0
      %v2263 = vsel %vm434, %v2202, 0
      %v2266 = vsel %vm434, %v2204, 0
      %v2269 = vsel %vm434, %v2206, 0
      %v2272 = vsel %vm434, %v2208, 0
      %v2275 = vsel %vm434, %v2210, 0
      %v2278 = vsel %vm434, %v2212, 0
      %v2281 = vsel %vm434, %v2214, 0
      %v2284 = vsel %vm434, %v2216, 0
      %v2287 = vsel %vm434, %v2218, 0
      %v2290 = vsel %vm434, %v2220, 0
      %v2293 = vsel %vm434, %v2222, 0
      %2295 = vmatprep.subr.bf16.mxu0 0
      %2296 = vmatpush1.bf16.msra.mxu0 %v2231
      %2297 = vmatprep.subr.bf16.mxu0 0
      %2298 = vmatpush1.bf16.msra.mxu0 %v2232
      %2299 = vmatprep.subr.bf16.mxu0 0
      %2300 = vmatpush1.bf16.msra.mxu0 0
      %2301 = vmatprep.subr.bf16.mxu0 0
      %2302 = vmatpush1.bf16.msra.mxu0 0
      %2303 = vmatprep.subr.bf16.mxu0 0
      %2304 = vmatpush1.bf16.msra.mxu0 0
      %2305 = vmatprep.subr.bf16.mxu0 0
      %2306 = vmatpush1.bf16.msra.mxu0 0
      %2307 = vmatprep.subr.bf16.mxu0 0
      %2308 = vmatpush1.bf16.msra.mxu0 0
      %2309 = vmatprep.subr.bf16.mxu0 0
      %2310 = vmatpush1.bf16.msra.mxu0 0
      %2311 = vmatprep.subr.bf16.mxu0 0
      %2312 = vmatpush1.bf16.msra.mxu0 0
      %2313 = vmatprep.subr.bf16.mxu0 0
      %2314 = vmatpush1.bf16.msra.mxu0 0
      %2315 = vmatprep.subr.bf16.mxu0 0
      %2316 = vmatpush1.bf16.msra.mxu0 0
      %2317 = vmatprep.subr.bf16.mxu0 0
      %2318 = vmatpush1.bf16.msra.mxu0 0
      %2319 = vmatprep.subr.bf16.mxu0 0
      %2320 = vmatpush1.bf16.msra.mxu0 0
      %2321 = vmatprep.subr.bf16.mxu0 0
      %2322 = vmatpush1.bf16.msra.mxu0 0
      %2323 = vmatprep.subr.bf16.mxu0 0
      %2324 = vmatpush1.bf16.msra.mxu0 0
      %2325 = vmatprep.subr.bf16.mxu0 0
      %2326 = vmatpush1.bf16.msra.mxu0 0
      %2327 = vmatprep.mubr.bf16.mxu0 0
      %2328 = vmatmul.mubr.bf16.gmra.mrb[0].mxu0 %v2236
      %v2329 = vpop.f32.mrb[0].mxu0
      %v2330 = vadd.f32 0.0, %v2329
      %v2331 = vpop.f32.mrb[0].mxu0
      %v2332 = vpop.f32.mrb[0].mxu0
      %v2333 = vadd.f32 0.0, %v2332
      %v2334 = vpop.f32.mrb[0].mxu0
      %2335 = vmatprep.mubr.bf16.mxu0 0
      %2336 = vmatmul.mubr.bf16.gmra.mrb[0].mxu0 %v2239
      %v2337 = vpop.f32.mrb[0].mxu0
      %v2338 = vadd.f32 0.0, %v2337
      %v2339 = vpop.f32.mrb[0].mxu0
      %v2340 = vpop.f32.mrb[0].mxu0
      %v2341 = vadd.f32 0.0, %v2340
      %v2342 = vpop.f32.mrb[0].mxu0
      %2343 = vmatprep.mubr.bf16.mxu0 0
      %2344 = vmatmul.mubr.bf16.gmra.mrb[0].mxu0 %v2242
      %v2345 = vpop.f32.mrb[0].mxu0
      %v2346 = vadd.f32 0.0, %v2345
      %v2347 = vpop.f32.mrb[0].mxu0
      %v2348 = vpop.f32.mrb[0].mxu0
      %v2349 = vadd.f32 0.0, %v2348
      %v2350 = vpop.f32.mrb[0].mxu0
      %2351 = vmatprep.mubr.bf16.mxu0 0
      %2352 = vmatmul.mubr.bf16.gmra.mrb[0].mxu0 %v2245
      %v2353 = vpop.f32.mrb[0].mxu0
      %v2354 = vadd.f32 0.0, %v2353
      %v2355 = vpop.f32.mrb[0].mxu0
      %v2356 = vpop.f32.mrb[0].mxu0
      %v2357 = vadd.f32 0.0, %v2356
      %v2358 = vpop.f32.mrb[0].mxu0
      %2359 = vmatprep.mubr.bf16.mxu0 0
      %2360 = vmatmul.mubr.bf16.gmra.mrb[0].mxu0 %v2248
      %v2361 = vpop.f32.mrb[0].mxu0
      %v2362 = vadd.f32 0.0, %v2361
      %v2363 = vpop.f32.mrb[0].mxu0
      %v2364 = vpop.f32.mrb[0].mxu0
      %v2365 = vadd.f32 0.0, %v2364
      %v2366 = vpop.f32.mrb[0].mxu0
      %2367 = vmatprep.mubr.bf16.mxu0 0
      %2368 = vmatmul.mubr.bf16.gmra.mrb[0].mxu0 %v2251
      %v2369 = vpop.f32.mrb[0].mxu0
      %v2370 = vadd.f32 0.0, %v2369
      %v2371 = vpop.f32.mrb[0].mxu0
      %v2372 = vpop.f32.mrb[0].mxu0
      %v2373 = vadd.f32 0.0, %v2372
      %v2374 = vpop.f32.mrb[0].mxu0
      %2375 = vmatprep.mubr.bf16.mxu0 0
      %2376 = vmatmul.mubr.bf16.gmra.mrb[0].mxu0 %v2254
      %v2377 = vpop.f32.mrb[0].mxu0
      %v2378 = vadd.f32 0.0, %v2377
      %v2379 = vpop.f32.mrb[0].mxu0
      %v2380 = vpop.f32.mrb[0].mxu0
      %v2381 = vadd.f32 0.0, %v2380
      %v2382 = vpop.f32.mrb[0].mxu0
      %2383 = vmatprep.mubr.bf16.mxu0 0
      %2384 = vmatmul.mubr.bf16.gmra.mrb[0].mxu0 %v2257
      %v2385 = vpop.f32.mrb[0].mxu0
      %v2386 = vadd.f32 0.0, %v2385
      %v2387 = vpop.f32.mrb[0].mxu0
      %v2388 = vpop.f32.mrb[0].mxu0
      %v2389 = vadd.f32 0.0, %v2388
      %v2390 = vpop.f32.mrb[0].mxu0
      %2391 = vmatprep.mubr.bf16.mxu0 0
      %2392 = vmatmul.mubr.bf16.gmra.mrb[0].mxu0 %v2260
      %v2393 = vpop.f32.mrb[0].mxu0
      %v2394 = vadd.f32 0.0, %v2393
      %v2395 = vpop.f32.mrb[0].mxu0
      %v2396 = vpop.f32.mrb[0].mxu0
      %v2397 = vadd.f32 0.0, %v2396
      %v2398 = vpop.f32.mrb[0].mxu0
      %2399 = vmatprep.mubr.bf16.mxu0 0
      %2400 = vmatmul.mubr.bf16.gmra.mrb[0].mxu0 %v2263
      %v2401 = vpop.f32.mrb[0].mxu0
      %v2402 = vadd.f32 0.0, %v2401
      %v2403 = vpop.f32.mrb[0].mxu0
      %v2404 = vpop.f32.mrb[0].mxu0
      %v2405 = vadd.f32 0.0, %v2404
      %v2406 = vpop.f32.mrb[0].mxu0
      %2407 = vmatprep.mubr.bf16.mxu0 0
      %2408 = vmatmul.mubr.bf16.gmra.mrb[0].mxu0 %v2266
      %v2409 = vpop.f32.mrb[0].mxu0
      %v2410 = vadd.f32 0.0, %v2409
      %v2411 = vpop.f32.mrb[0].mxu0
      %v2412 = vpop.f32.mrb[0].mxu0
      %v2413 = vadd.f32 0.0, %v2412
      %v2414 = vpop.f32.mrb[0].mxu0
      %2415 = vmatprep.mubr.bf16.mxu0 0
      %2416 = vmatmul.mubr.bf16.gmra.mrb[0].mxu0 %v2269
      %v2417 = vpop.f32.mrb[0].mxu0
      %v2418 = vadd.f32 0.0, %v2417
      %v2419 = vpop.f32.mrb[0].mxu0
      %v2420 = vpop.f32.mrb[0].mxu0
      %v2421 = vadd.f32 0.0, %v2420
      %v2422 = vpop.f32.mrb[0].mxu0
      %2423 = vmatprep.mubr.bf16.mxu0 0
      %2424 = vmatmul.mubr.bf16.gmra.mrb[0].mxu0 %v2272
      %v2425 = vpop.f32.mrb[0].mxu0
      %v2426 = vadd.f32 0.0, %v2425
      %v2427 = vpop.f32.mrb[0].mxu0
      %v2428 = vpop.f32.mrb[0].mxu0
      %v2429 = vadd.f32 0.0, %v2428
      %v2430 = vpop.f32.mrb[0].mxu0
      %2431 = vmatprep.mubr.bf16.mxu0 0
      %2432 = vmatmul.mubr.bf16.gmra.mrb[0].mxu0 %v2275
      %v2433 = vpop.f32.mrb[0].mxu0
      %v2434 = vadd.f32 0.0, %v2433
      %v2435 = vpop.f32.mrb[0].mxu0
      %v2436 = vpop.f32.mrb[0].mxu0
      %v2437 = vadd.f32 0.0, %v2436
      %v2438 = vpop.f32.mrb[0].mxu0
      %2439 = vmatprep.mubr.bf16.mxu0 0
      %2440 = vmatmul.mubr.bf16.gmra.mrb[0].mxu0 %v2278
      %v2441 = vpop.f32.mrb[0].mxu0
      %v2442 = vadd.f32 0.0, %v2441
      %v2443 = vpop.f32.mrb[0].mxu0
      %v2444 = vpop.f32.mrb[0].mxu0
      %v2445 = vadd.f32 0.0, %v2444
      %v2446 = vpop.f32.mrb[0].mxu0
      %2447 = vmatprep.mubr.bf16.mxu0 0
      %2448 = vmatmul.mubr.bf16.gmra.mrb[0].mxu0 %v2281
      %v2449 = vpop.f32.mrb[0].mxu0
      %v2450 = vadd.f32 0.0, %v2449
      %v2451 = vpop.f32.mrb[0].mxu0
      %v2452 = vpop.f32.mrb[0].mxu0
      %v2453 = vadd.f32 0.0, %v2452
      %v2454 = vpop.f32.mrb[0].mxu0
      %2455 = vmatprep.mubr.bf16.mxu0 0
      %2456 = vmatmul.mubr.bf16.gmra.mrb[0].mxu0 %v2284
      %v2457 = vpop.f32.mrb[0].mxu0
      %v2458 = vadd.f32 0.0, %v2457
      %v2459 = vpop.f32.mrb[0].mxu0
      %v2460 = vpop.f32.mrb[0].mxu0
      %v2461 = vadd.f32 0.0, %v2460
      %v2462 = vpop.f32.mrb[0].mxu0
      %2463 = vmatprep.mubr.bf16.mxu0 0
      %2464 = vmatmul.mubr.bf16.gmra.mrb[0].mxu0 %v2287
      %v2465 = vpop.f32.mrb[0].mxu0
      %v2466 = vadd.f32 0.0, %v2465
      %v2467 = vpop.f32.mrb[0].mxu0
      %v2468 = vpop.f32.mrb[0].mxu0
      %v2469 = vadd.f32 0.0, %v2468
      %v2470 = vpop.f32.mrb[0].mxu0
      %2471 = vmatprep.mubr.bf16.mxu0 0
      %2472 = vmatmul.mubr.bf16.gmra.mrb[0].mxu0 %v2290
      %v2473 = vpop.f32.mrb[0].mxu0
      %v2474 = vadd.f32 0.0, %v2473
      %v2475 = vpop.f32.mrb[0].mxu0
      %v2476 = vpop.f32.mrb[0].mxu0
      %v2477 = vadd.f32 0.0, %v2476
      %v2478 = vpop.f32.mrb[0].mxu0
      %2479 = vmatprep.mubr.bf16.mxu0 0
      %2480 = vmatmul.mubr.bf16.gmra.mrb[0].mxu0 %v2293
      %v2481 = vpop.f32.mrb[0].mxu0
      %v2482 = vadd.f32 0.0, %v2481
      %v2483 = vpop.f32.mrb[0].mxu0
      %v2484 = vpop.f32.mrb[0].mxu0
      %v2485 = vadd.f32 0.0, %v2484
      %v2486 = vpop.f32.mrb[0].mxu0
      %2487 = vdwg.mxu0
      %v2488 = vadd.f32 %v2132, %v2330
      %v2489 = vadd.f32 %v2133, %v2333
      %v2490 = vadd.f32 %v2134, %v2338
      %v2491 = vadd.f32 %v2135, %v2341
      %v2492 = vadd.f32 %v2136, %v2346
      %v2493 = vadd.f32 %v2137, %v2349
      %v2494 = vadd.f32 %v2138, %v2354
      %v2495 = vadd.f32 %v2139, %v2357
      %v2496 = vadd.f32 %v2140, %v2362
      %v2497 = vadd.f32 %v2141, %v2365
      %v2498 = vadd.f32 %v2142, %v2370
      %v2499 = vadd.f32 %v2143, %v2373
      %v2500 = vadd.f32 %v2144, %v2378
      %v2501 = vadd.f32 %v2145, %v2381
      %v2502 = vadd.f32 %v2146, %v2386
      %v2503 = vadd.f32 %v2147, %v2389
      %v2504 = vadd.f32 %v2148, %v2394
      %v2505 = vadd.f32 %v2149, %v2397
      %v2506 = vadd.f32 %v2150, %v2402
      %v2507 = vadd.f32 %v2151, %v2405
      %v2508 = vadd.f32 %v2152, %v2410
      %v2509 = vadd.f32 %v2153, %v2413
      %v2510 = vadd.f32 %v2154, %v2418
      %v2511 = vadd.f32 %v2155, %v2421
      %v2512 = vadd.f32 %v2156, %v2426
      %v2513 = vadd.f32 %v2157, %v2429
      %v2514 = vadd.f32 %v2158, %v2434
      %v2515 = vadd.f32 %v2159, %v2437
      %v2516 = vadd.f32 %v2160, %v2442
      %v2517 = vadd.f32 %v2161, %v2445
      %v2518 = vadd.f32 %v2162, %v2450
      %v2519 = vadd.f32 %v2163, %v2453
      %v2520 = vadd.f32 %v2164, %v2458
      %v2521 = vadd.f32 %v2165, %v2461
      %v2522 = vadd.f32 %v2166, %v2466
      %v2523 = vadd.f32 %v2167, %v2469
      %v2524 = vadd.f32 %v2168, %v2474
      %v2525 = vadd.f32 %v2169, %v2477
      %v2526 = vadd.f32 %v2170, %v2482
      %v2527 = vadd.f32 %v2171, %v2485
      %v2528 = vld [vmem:[%s219 + $0xb4] sm:$0x3]
      %s2529 = scalar_lea.vmem %s1, 80
      %v2530 = vld [vmem:[%s2529] sm:$0xf]
      %v2531 = vld [vmem:[%s2529 + $0x4] sm:$0xf]
      %v2532 = vld [vmem:[%s2529 + $0x8] sm:$0xf]
      %v2533 = vld [vmem:[%s2529 + $0xc] sm:$0xf]
      %v2535 = vunpack.c.l.b16 %v2528
      %v2536 = vpack.c.b16 %v2535, %v2535
      %vm2537 = vsmask.f32 6400
      %v2539 = vshrl.u32 %v2180, 16
      %v2541 = vrot.slane %v2539, 1
      %v2542 = vshll.u32 %v2180, 16
      %v2544 = vrot.slane %v2542, 2
      %v2545 = vor.u32 %v2541, %v2544
      %v2546 = vrot.slane %v1715, 1
      %v2547 = vrot.slane %v1711, 2
      %v2548 = vor.u32 %v2546, %v2547
      %v2549 = vsel %vm2537, %v2545, %v2548
      %v2550 = vrot.slane %v1723, 1
      %v2551 = vrot.slane %v1719, 2
      %v2552 = vor.u32 %v2550, %v2551
      %v2553 = vsel %vm2537, %v2548, %v2552
      %v2554 = vrot.slane %v1731, 1
      %v2555 = vrot.slane %v1727, 2
      %v2556 = vor.u32 %v2554, %v2555
      %v2557 = vsel %vm2537, %v2552, %v2556
      %v2558 = vrot.slane %v1739, 1
      %v2559 = vrot.slane %v1735, 2
      %v2560 = vor.u32 %v2558, %v2559
      %v2561 = vsel %vm2537, %v2556, %v2560
      %v2562 = vrot.slane %v1747, 1
      %v2563 = vrot.slane %v1743, 2
      %v2564 = vor.u32 %v2562, %v2563
      %v2565 = vsel %vm2537, %v2560, %v2564
      %v2566 = vrot.slane %v1755, 1
      %v2567 = vrot.slane %v1751, 2
      %v2568 = vor.u32 %v2566, %v2567
      %v2569 = vsel %vm2537, %v2564, %v2568
      %v2570 = vrot.slane %v1763, 1
      %v2571 = vrot.slane %v1759, 2
      %v2572 = vor.u32 %v2570, %v2571
      %v2573 = vsel %vm2537, %v2568, %v2572
      %v2574 = vrot.slane %v1771, 1
      %v2575 = vrot.slane %v1767, 2
      %v2576 = vor.u32 %v2574, %v2575
      %v2577 = vsel %vm2537, %v2572, %v2576
      %v2578 = vrot.slane %v1779, 1
      %v2579 = vrot.slane %v1775, 2
      %v2580 = vor.u32 %v2578, %v2579
      %v2581 = vsel %vm2537, %v2576, %v2580
      %v2582 = vrot.slane %v1787, 1
      %v2583 = vrot.slane %v1783, 2
      %v2584 = vor.u32 %v2582, %v2583
      %v2585 = vsel %vm2537, %v2580, %v2584
      %v2586 = vrot.slane %v1795, 1
      %v2587 = vrot.slane %v1791, 2
      %v2588 = vor.u32 %v2586, %v2587
      %v2589 = vsel %vm2537, %v2584, %v2588
      %v2590 = vrot.slane %v1803, 1
      %v2591 = vrot.slane %v1799, 2
      %v2592 = vor.u32 %v2590, %v2591
      %v2593 = vsel %vm2537, %v2588, %v2592
      %v2594 = vrot.slane %v1811, 1
      %v2595 = vrot.slane %v1807, 2
      %v2596 = vor.u32 %v2594, %v2595
      %v2597 = vsel %vm2537, %v2592, %v2596
      %v2598 = vrot.slane %v1819, 1
      %v2599 = vrot.slane %v1815, 2
      %v2600 = vor.u32 %v2598, %v2599
      %v2601 = vsel %vm2537, %v2596, %v2600
      %v2602 = vrot.slane %v1827, 1
      %v2603 = vrot.slane %v1823, 2
      %v2604 = vor.u32 %v2602, %v2603
      %v2605 = vsel %vm2537, %v2600, %v2604
      %v2606 = vrot.slane %v1835, 1
      %v2607 = vrot.slane %v1831, 2
      %v2608 = vor.u32 %v2606, %v2607
      %v2609 = vsel %vm2537, %v2604, %v2608
      %v2610 = vrot.slane %v1843, 1
      %v2611 = vrot.slane %v1839, 2
      %v2612 = vor.u32 %v2610, %v2611
      %v2613 = vsel %vm2537, %v2608, %v2612
      %v2614 = vrot.slane %v1851, 1
      %v2615 = vrot.slane %v1847, 2
      %v2616 = vor.u32 %v2614, %v2615
      %v2617 = vsel %vm2537, %v2612, %v2616
      %v2618 = vrot.slane %v1859, 1
      %v2619 = vrot.slane %v1855, 2
      %v2620 = vor.u32 %v2618, %v2619
      %v2621 = vsel %vm2537, %v2616, %v2620
      %v2623 = vshrl.u32 %v2536, 16
      %v2625 = vrot.slane %v2623, 1
      %v2626 = vshll.u32 %v2536, 16
      %v2628 = vrot.slane %v2626, 2
      %v2629 = vor.u32 %v2625, %v2628
      %v2630 = vsel %vm2537, %v2620, %v2629
      %v2635 = vunpack.c.l.b16 %v2530
      %v2636 = vunpack.c.l.b16 %v2531
      %v2637 = vunpack.c.l.b16 %v2532
      %v2638 = vunpack.c.l.b16 %v2533
      %v2639 = vpack.c.b16 %v2636, %v2635
      %v2640 = vpack.c.b16 %v2638, %v2637
      %v2644 = vsel %vm434, %v2549, 0
      %v2647 = vsel %vm434, %v2553, 0
      %v2650 = vsel %vm434, %v2557, 0
      %v2653 = vsel %vm434, %v2561, 0
      %v2656 = vsel %vm434, %v2565, 0
      %v2659 = vsel %vm434, %v2569, 0
      %v2662 = vsel %vm434, %v2573, 0
      %v2665 = vsel %vm434, %v2577, 0
      %v2668 = vsel %vm434, %v2581, 0
      %v2671 = vsel %vm434, %v2585, 0
      %v2674 = vsel %vm434, %v2589, 0
      %v2677 = vsel %vm434, %v2593, 0
      %v2680 = vsel %vm434, %v2597, 0
      %v2683 = vsel %vm434, %v2601, 0
      %v2686 = vsel %vm434, %v2605, 0
      %v2689 = vsel %vm434, %v2609, 0
      %v2692 = vsel %vm434, %v2613, 0
      %v2695 = vsel %vm434, %v2617, 0
      %v2698 = vsel %vm434, %v2621, 0
      %v2701 = vsel %vm434, %v2630, 0
      %2703 = vmatprep.subr.bf16.mxu0 0
      %2704 = vmatpush1.bf16.msra.mxu0 %v2639
      %2705 = vmatprep.subr.bf16.mxu0 0
      %2706 = vmatpush1.bf16.msra.mxu0 %v2640
      %2707 = vmatprep.subr.bf16.mxu0 0
      %2708 = vmatpush1.bf16.msra.mxu0 0
      %2709 = vmatprep.subr.bf16.mxu0 0
      %2710 = vmatpush1.bf16.msra.mxu0 0
      %2711 = vmatprep.subr.bf16.mxu0 0
      %2712 = vmatpush1.bf16.msra.mxu0 0
      %2713 = vmatprep.subr.bf16.mxu0 0
      %2714 = vmatpush1.bf16.msra.mxu0 0
      %2715 = vmatprep.subr.bf16.mxu0 0
      %2716 = vmatpush1.bf16.msra.mxu0 0
      %2717 = vmatprep.subr.bf16.mxu0 0
      %2718 = vmatpush1.bf16.msra.mxu0 0
      %2719 = vmatprep.subr.bf16.mxu0 0
      %2720 = vmatpush1.bf16.msra.mxu0 0
      %2721 = vmatprep.subr.bf16.mxu0 0
      %2722 = vmatpush1.bf16.msra.mxu0 0
      %2723 = vmatprep.subr.bf16.mxu0 0
      %2724 = vmatpush1.bf16.msra.mxu0 0
      %2725 = vmatprep.subr.bf16.mxu0 0
      %2726 = vmatpush1.bf16.msra.mxu0 0
      %2727 = vmatprep.subr.bf16.mxu0 0
      %2728 = vmatpush1.bf16.msra.mxu0 0
      %2729 = vmatprep.subr.bf16.mxu0 0
      %2730 = vmatpush1.bf16.msra.mxu0 0
      %2731 = vmatprep.subr.bf16.mxu0 0
      %2732 = vmatpush1.bf16.msra.mxu0 0
      %2733 = vmatprep.subr.bf16.mxu0 0
      %2734 = vmatpush1.bf16.msra.mxu0 0
      %2735 = vmatprep.mubr.bf16.mxu0 0
      %2736 = vmatmul.mubr.bf16.gmra.mrb[0].mxu0 %v2644
      %v2737 = vpop.f32.mrb[0].mxu0
      %v2738 = vadd.f32 0.0, %v2737
      %v2739 = vpop.f32.mrb[0].mxu0
      %v2740 = vpop.f32.mrb[0].mxu0
      %v2741 = vadd.f32 0.0, %v2740
      %v2742 = vpop.f32.mrb[0].mxu0
      %2743 = vmatprep.mubr.bf16.mxu0 0
      %2744 = vmatmul.mubr.bf16.gmra.mrb[0].mxu0 %v2647
      %v2745 = vpop.f32.mrb[0].mxu0
      %v2746 = vadd.f32 0.0, %v2745
      %v2747 = vpop.f32.mrb[0].mxu0
      %v2748 = vpop.f32.mrb[0].mxu0
      %v2749 = vadd.f32 0.0, %v2748
      %v2750 = vpop.f32.mrb[0].mxu0
      %2751 = vmatprep.mubr.bf16.mxu0 0
      %2752 = vmatmul.mubr.bf16.gmra.mrb[0].mxu0 %v2650
      %v2753 = vpop.f32.mrb[0].mxu0
      %v2754 = vadd.f32 0.0, %v2753
      %v2755 = vpop.f32.mrb[0].mxu0
      %v2756 = vpop.f32.mrb[0].mxu0
      %v2757 = vadd.f32 0.0, %v2756
      %v2758 = vpop.f32.mrb[0].mxu0
      %2759 = vmatprep.mubr.bf16.mxu0 0
      %2760 = vmatmul.mubr.bf16.gmra.mrb[0].mxu0 %v2653
      %v2761 = vpop.f32.mrb[0].mxu0
      %v2762 = vadd.f32 0.0, %v2761
      %v2763 = vpop.f32.mrb[0].mxu0
      %v2764 = vpop.f32.mrb[0].mxu0
      %v2765 = vadd.f32 0.0, %v2764
      %v2766 = vpop.f32.mrb[0].mxu0
      %2767 = vmatprep.mubr.bf16.mxu0 0
      %2768 = vmatmul.mubr.bf16.gmra.mrb[0].mxu0 %v2656
      %v2769 = vpop.f32.mrb[0].mxu0
      %v2770 = vadd.f32 0.0, %v2769
      %v2771 = vpop.f32.mrb[0].mxu0
      %v2772 = vpop.f32.mrb[0].mxu0
      %v2773 = vadd.f32 0.0, %v2772
      %v2774 = vpop.f32.mrb[0].mxu0
      %2775 = vmatprep.mubr.bf16.mxu0 0
      %2776 = vmatmul.mubr.bf16.gmra.mrb[0].mxu0 %v2659
      %v2777 = vpop.f32.mrb[0].mxu0
      %v2778 = vadd.f32 0.0, %v2777
      %v2779 = vpop.f32.mrb[0].mxu0
      %v2780 = vpop.f32.mrb[0].mxu0
      %v2781 = vadd.f32 0.0, %v2780
      %v2782 = vpop.f32.mrb[0].mxu0
      %2783 = vmatprep.mubr.bf16.mxu0 0
      %2784 = vmatmul.mubr.bf16.gmra.mrb[0].mxu0 %v2662
      %v2785 = vpop.f32.mrb[0].mxu0
      %v2786 = vadd.f32 0.0, %v2785
      %v2787 = vpop.f32.mrb[0].mxu0
      %v2788 = vpop.f32.mrb[0].mxu0
      %v2789 = vadd.f32 0.0, %v2788
      %v2790 = vpop.f32.mrb[0].mxu0
      %2791 = vmatprep.mubr.bf16.mxu0 0
      %2792 = vmatmul.mubr.bf16.gmra.mrb[0].mxu0 %v2665
      %v2793 = vpop.f32.mrb[0].mxu0
      %v2794 = vadd.f32 0.0, %v2793
      %v2795 = vpop.f32.mrb[0].mxu0
      %v2796 = vpop.f32.mrb[0].mxu0
      %v2797 = vadd.f32 0.0, %v2796
      %v2798 = vpop.f32.mrb[0].mxu0
      %2799 = vmatprep.mubr.bf16.mxu0 0
      %2800 = vmatmul.mubr.bf16.gmra.mrb[0].mxu0 %v2668
      %v2801 = vpop.f32.mrb[0].mxu0
      %v2802 = vadd.f32 0.0, %v2801
      %v2803 = vpop.f32.mrb[0].mxu0
      %v2804 = vpop.f32.mrb[0].mxu0
      %v2805 = vadd.f32 0.0, %v2804
      %v2806 = vpop.f32.mrb[0].mxu0
      %2807 = vmatprep.mubr.bf16.mxu0 0
      %2808 = vmatmul.mubr.bf16.gmra.mrb[0].mxu0 %v2671
      %v2809 = vpop.f32.mrb[0].mxu0
      %v2810 = vadd.f32 0.0, %v2809
      %v2811 = vpop.f32.mrb[0].mxu0
      %v2812 = vpop.f32.mrb[0].mxu0
      %v2813 = vadd.f32 0.0, %v2812
      %v2814 = vpop.f32.mrb[0].mxu0
      %2815 = vmatprep.mubr.bf16.mxu0 0
      %2816 = vmatmul.mubr.bf16.gmra.mrb[0].mxu0 %v2674
      %v2817 = vpop.f32.mrb[0].mxu0
      %v2818 = vadd.f32 0.0, %v2817
      %v2819 = vpop.f32.mrb[0].mxu0
      %v2820 = vpop.f32.mrb[0].mxu0
      %v2821 = vadd.f32 0.0, %v2820
      %v2822 = vpop.f32.mrb[0].mxu0
      %2823 = vmatprep.mubr.bf16.mxu0 0
      %2824 = vmatmul.mubr.bf16.gmra.mrb[0].mxu0 %v2677
      %v2825 = vpop.f32.mrb[0].mxu0
      %v2826 = vadd.f32 0.0, %v2825
      %v2827 = vpop.f32.mrb[0].mxu0
      %v2828 = vpop.f32.mrb[0].mxu0
      %v2829 = vadd.f32 0.0, %v2828
      %v2830 = vpop.f32.mrb[0].mxu0
      %2831 = vmatprep.mubr.bf16.mxu0 0
      %2832 = vmatmul.mubr.bf16.gmra.mrb[0].mxu0 %v2680
      %v2833 = vpop.f32.mrb[0].mxu0
      %v2834 = vadd.f32 0.0, %v2833
      %v2835 = vpop.f32.mrb[0].mxu0
      %v2836 = vpop.f32.mrb[0].mxu0
      %v2837 = vadd.f32 0.0, %v2836
      %v2838 = vpop.f32.mrb[0].mxu0
      %2839 = vmatprep.mubr.bf16.mxu0 0
      %2840 = vmatmul.mubr.bf16.gmra.mrb[0].mxu0 %v2683
      %v2841 = vpop.f32.mrb[0].mxu0
      %v2842 = vadd.f32 0.0, %v2841
      %v2843 = vpop.f32.mrb[0].mxu0
      %v2844 = vpop.f32.mrb[0].mxu0
      %v2845 = vadd.f32 0.0, %v2844
      %v2846 = vpop.f32.mrb[0].mxu0
      %2847 = vmatprep.mubr.bf16.mxu0 0
      %2848 = vmatmul.mubr.bf16.gmra.mrb[0].mxu0 %v2686
      %v2849 = vpop.f32.mrb[0].mxu0
      %v2850 = vadd.f32 0.0, %v2849
      %v2851 = vpop.f32.mrb[0].mxu0
      %v2852 = vpop.f32.mrb[0].mxu0
      %v2853 = vadd.f32 0.0, %v2852
      %v2854 = vpop.f32.mrb[0].mxu0
      %2855 = vmatprep.mubr.bf16.mxu0 0
      %2856 = vmatmul.mubr.bf16.gmra.mrb[0].mxu0 %v2689
      %v2857 = vpop.f32.mrb[0].mxu0
      %v2858 = vadd.f32 0.0, %v2857
      %v2859 = vpop.f32.mrb[0].mxu0
      %v2860 = vpop.f32.mrb[0].mxu0
      %v2861 = vadd.f32 0.0, %v2860
      %v2862 = vpop.f32.mrb[0].mxu0
      %2863 = vmatprep.mubr.bf16.mxu0 0
      %2864 = vmatmul.mubr.bf16.gmra.mrb[0].mxu0 %v2692
      %v2865 = vpop.f32.mrb[0].mxu0
      %v2866 = vadd.f32 0.0, %v2865
      %v2867 = vpop.f32.mrb[0].mxu0
      %v2868 = vpop.f32.mrb[0].mxu0
      %v2869 = vadd.f32 0.0, %v2868
      %v2870 = vpop.f32.mrb[0].mxu0
      %2871 = vmatprep.mubr.bf16.mxu0 0
      %2872 = vmatmul.mubr.bf16.gmra.mrb[0].mxu0 %v2695
      %v2873 = vpop.f32.mrb[0].mxu0
      %v2874 = vadd.f32 0.0, %v2873
      %v2875 = vpop.f32.mrb[0].mxu0
      %v2876 = vpop.f32.mrb[0].mxu0
      %v2877 = vadd.f32 0.0, %v2876
      %v2878 = vpop.f32.mrb[0].mxu0
      %2879 = vmatprep.mubr.bf16.mxu0 0
      %2880 = vmatmul.mubr.bf16.gmra.mrb[0].mxu0 %v2698
      %v2881 = vpop.f32.mrb[0].mxu0
      %v2882 = vadd.f32 0.0, %v2881
      %v2883 = vpop.f32.mrb[0].mxu0
      %v2884 = vpop.f32.mrb[0].mxu0
      %v2885 = vadd.f32 0.0, %v2884
      %v2886 = vpop.f32.mrb[0].mxu0
      %2887 = vmatprep.mubr.bf16.mxu0 0
      %2888 = vmatmul.mubr.bf16.gmra.mrb[0].mxu0 %v2701
      %v2889 = vpop.f32.mrb[0].mxu0
      %v2890 = vadd.f32 0.0, %v2889
      %v2891 = vpop.f32.mrb[0].mxu0
      %v2892 = vpop.f32.mrb[0].mxu0
      %v2893 = vadd.f32 0.0, %v2892
      %v2894 = vpop.f32.mrb[0].mxu0
      %2895 = vdwg.mxu0
      %v2896 = vadd.f32 %v2488, %v2738
      %v2897 = vadd.f32 %v2489, %v2741
      %v2898 = vadd.f32 %v2490, %v2746
      %v2899 = vadd.f32 %v2491, %v2749
      %v2900 = vadd.f32 %v2492, %v2754
      %v2901 = vadd.f32 %v2493, %v2757
      %v2902 = vadd.f32 %v2494, %v2762
      %v2903 = vadd.f32 %v2495, %v2765
      %v2904 = vadd.f32 %v2496, %v2770
      %v2905 = vadd.f32 %v2497, %v2773
      %v2906 = vadd.f32 %v2498, %v2778
      %v2907 = vadd.f32 %v2499, %v2781
      %v2908 = vadd.f32 %v2500, %v2786
      %v2909 = vadd.f32 %v2501, %v2789
      %v2910 = vadd.f32 %v2502, %v2794
      %v2911 = vadd.f32 %v2503, %v2797
      %v2912 = vadd.f32 %v2504, %v2802
      %v2913 = vadd.f32 %v2505, %v2805
      %v2914 = vadd.f32 %v2506, %v2810
      %v2915 = vadd.f32 %v2507, %v2813
      %v2916 = vadd.f32 %v2508, %v2818
      %v2917 = vadd.f32 %v2509, %v2821
      %v2918 = vadd.f32 %v2510, %v2826
      %v2919 = vadd.f32 %v2511, %v2829
      %v2920 = vadd.f32 %v2512, %v2834
      %v2921 = vadd.f32 %v2513, %v2837
      %v2922 = vadd.f32 %v2514, %v2842
      %v2923 = vadd.f32 %v2515, %v2845
      %v2924 = vadd.f32 %v2516, %v2850
      %v2925 = vadd.f32 %v2517, %v2853
      %v2926 = vadd.f32 %v2518, %v2858
      %v2927 = vadd.f32 %v2519, %v2861
      %v2928 = vadd.f32 %v2520, %v2866
      %v2929 = vadd.f32 %v2521, %v2869
      %v2930 = vadd.f32 %v2522, %v2874
      %v2931 = vadd.f32 %v2523, %v2877
      %v2932 = vadd.f32 %v2524, %v2882
      %v2933 = vadd.f32 %v2525, %v2885
      %v2934 = vadd.f32 %v2526, %v2890
      %v2935 = vadd.f32 %v2527, %v2893
      %v2936 = vld [vmem:[%s219 + $0x1c] sm:$0xc]
      %v2937 = vld [vmem:[%s219 + $0x20] sm:$0xf]
      %v2938 = vld [vmem:[%s219 + $0x24] sm:$0xf]
      %v2939 = vld [vmem:[%s219 + $0x28] sm:$0xf]
      %v2940 = vld [vmem:[%s219 + $0x2c] sm:$0xf]
      %v2941 = vld [vmem:[%s219 + $0x30] sm:$0xf]
      %v2942 = vld [vmem:[%s219 + $0x34] sm:$0xf]
      %v2943 = vld [vmem:[%s219 + $0x38] sm:$0xf]
      %v2944 = vld [vmem:[%s219 + $0x3c] sm:$0xf]
      %v2945 = vld [vmem:[%s219 + $0x40] sm:$0xf]
      %v2946 = vld [vmem:[%s219 + $0x44] sm:$0xf]
      %v2947 = vld [vmem:[%s219 + $0x48] sm:$0xf]
      %v2948 = vld [vmem:[%s219 + $0x4c] sm:$0xf]
      %v2949 = vld [vmem:[%s219 + $0x50] sm:$0xf]
      %v2950 = vld [vmem:[%s219 + $0x54] sm:$0xf]
      %v2951 = vld [vmem:[%s219 + $0x58] sm:$0xf]
      %v2952 = vld [vmem:[%s219 + $0x5c] sm:$0xf]
      %v2953 = vld [vmem:[%s219 + $0x60] sm:$0xf]
      %v2954 = vld [vmem:[%s219 + $0x64] sm:$0xf]
      %v2955 = vld [vmem:[%s219 + $0x68] sm:$0xf]
      %v2956 = vld [vmem:[%s219 + $0x6c] sm:$0xf]
      %v2957 = vld [vmem:[%s219 + $0x70] sm:$0xf]
      %v2958 = vld [vmem:[%s219 + $0x74] sm:$0xf]
      %v2959 = vld [vmem:[%s219 + $0x78] sm:$0xf]
      %v2960 = vld [vmem:[%s219 + $0x7c] sm:$0xf]
      %v2961 = vld [vmem:[%s219 + $0x80] sm:$0xf]
      %v2962 = vld [vmem:[%s219 + $0x84] sm:$0xf]
      %v2963 = vld [vmem:[%s219 + $0x88] sm:$0xf]
      %v2964 = vld [vmem:[%s219 + $0x8c] sm:$0xf]
      %v2965 = vld [vmem:[%s219 + $0x90] sm:$0xf]
      %v2966 = vld [vmem:[%s219 + $0x94] sm:$0xf]
      %v2967 = vld [vmem:[%s219 + $0x98] sm:$0xf]
      %v2968 = vld [vmem:[%s219 + $0x9c] sm:$0xf]
      %v2969 = vld [vmem:[%s219 + $0xa0] sm:$0xf]
      %v2970 = vld [vmem:[%s219 + $0xa4] sm:$0xf]
      %v2971 = vld [vmem:[%s219 + $0xa8] sm:$0xf]
      %v2972 = vld [vmem:[%s219 + $0xac] sm:$0xf]
      %v2973 = vld [vmem:[%s219 + $0xb0] sm:$0xf]
      %v2974 = vld [vmem:[%s219 + $0xb4] sm:$0xf]
      %v2975 = vld [vmem:[%s219 + $0xb8] sm:$0xf]
      %v2976 = vld [vmem:[%s219 + $0xbc] sm:$0x7]
      %s2977 = scalar_lea.vmem %s1, 96
      %v2978 = vld [vmem:[%s2977] sm:$0xf]
      %v2979 = vld [vmem:[%s2977 + $0x4] sm:$0xf]
      %v2980 = vld [vmem:[%s2977 + $0x8] sm:$0xf]
      %v2981 = vld [vmem:[%s2977 + $0xc] sm:$0xf]
      %v3023 = vunpack.c.l.b16 %v2936
      %v3024 = vunpack.c.l.b16 %v2937
      %v3025 = vunpack.c.l.b16 %v2938
      %v3026 = vunpack.c.l.b16 %v2939
      %v3027 = vunpack.c.l.b16 %v2940
      %v3028 = vunpack.c.l.b16 %v2941
      %v3029 = vunpack.c.l.b16 %v2942
      %v3030 = vunpack.c.l.b16 %v2943
      %v3031 = vunpack.c.l.b16 %v2944
      %v3032 = vunpack.c.l.b16 %v2945
      %v3033 = vunpack.c.l.b16 %v2946
      %v3034 = vunpack.c.l.b16 %v2947
      %v3035 = vunpack.c.l.b16 %v2948
      %v3036 = vunpack.c.l.b16 %v2949
      %v3037 = vunpack.c.l.b16 %v2950
      %v3038 = vunpack.c.l.b16 %v2951
      %v3039 = vunpack.c.l.b16 %v2952
      %v3040 = vunpack.c.l.b16 %v2953
      %v3041 = vunpack.c.l.b16 %v2954
      %v3042 = vunpack.c.l.b16 %v2955
      %v3043 = vunpack.c.l.b16 %v2956
      %v3044 = vunpack.c.l.b16 %v2957
      %v3045 = vunpack.c.l.b16 %v2958
      %v3046 = vunpack.c.l.b16 %v2959
      %v3047 = vunpack.c.l.b16 %v2960
      %v3048 = vunpack.c.l.b16 %v2961
      %v3049 = vunpack.c.l.b16 %v2962
      %v3050 = vunpack.c.l.b16 %v2963
      %v3051 = vunpack.c.l.b16 %v2964
      %v3052 = vunpack.c.l.b16 %v2965
      %v3053 = vunpack.c.l.b16 %v2966
      %v3054 = vunpack.c.l.b16 %v2967
      %v3055 = vunpack.c.l.b16 %v2968
      %v3056 = vunpack.c.l.b16 %v2969
      %v3057 = vunpack.c.l.b16 %v2970
      %v3058 = vunpack.c.l.b16 %v2971
      %v3059 = vunpack.c.l.b16 %v2972
      %v3060 = vunpack.c.l.b16 %v2973
      %v3061 = vunpack.c.l.b16 %v2974
      %v3062 = vunpack.c.l.b16 %v2975
      %v3063 = vunpack.c.l.b16 %v2976
      %v3064 = vpack.c.b16 %v3024, %v3023
      %v3065 = vpack.c.b16 %v3026, %v3025
      %v3066 = vpack.c.b16 %v3028, %v3027
      %v3067 = vpack.c.b16 %v3030, %v3029
      %v3068 = vpack.c.b16 %v3032, %v3031
      %v3069 = vpack.c.b16 %v3034, %v3033
      %v3070 = vpack.c.b16 %v3036, %v3035
      %v3071 = vpack.c.b16 %v3038, %v3037
      %v3072 = vpack.c.b16 %v3040, %v3039
      %v3073 = vpack.c.b16 %v3042, %v3041
      %v3074 = vpack.c.b16 %v3044, %v3043
      %v3075 = vpack.c.b16 %v3046, %v3045
      %v3076 = vpack.c.b16 %v3048, %v3047
      %v3077 = vpack.c.b16 %v3050, %v3049
      %v3078 = vpack.c.b16 %v3052, %v3051
      %v3079 = vpack.c.b16 %v3054, %v3053
      %v3080 = vpack.c.b16 %v3056, %v3055
      %v3081 = vpack.c.b16 %v3058, %v3057
      %v3082 = vpack.c.b16 %v3060, %v3059
      %v3083 = vpack.c.b16 %v3062, %v3061
      %v3084 = vpack.c.b16 %v3063, %v3063
      %v3086 = vshrl.u32 %v3064, 16
      %v3088 = vrot.slane %v3086, 2
      %v3089 = vshll.u32 %v3064, 16
      %v3091 = vrot.slane %v3089, 3
      %v3092 = vor.u32 %v3088, %v3091
      %v3094 = vshrl.u32 %v3065, 16
      %v3096 = vrot.slane %v3094, 2
      %v3097 = vshll.u32 %v3065, 16
      %v3099 = vrot.slane %v3097, 3
      %v3100 = vor.u32 %v3096, %v3099
      %v3101 = vsel %vm691, %v3092, %v3100
      %v3103 = vshrl.u32 %v3066, 16
      %v3105 = vrot.slane %v3103, 2
      %v3106 = vshll.u32 %v3066, 16
      %v3108 = vrot.slane %v3106, 3
      %v3109 = vor.u32 %v3105, %v3108
      %v3110 = vsel %vm691, %v3100, %v3109
      %v3112 = vshrl.u32 %v3067, 16
      %v3114 = vrot.slane %v3112, 2
      %v3115 = vshll.u32 %v3067, 16
      %v3117 = vrot.slane %v3115, 3
      %v3118 = vor.u32 %v3114, %v3117
      %v3119 = vsel %vm691, %v3109, %v3118
      %v3121 = vshrl.u32 %v3068, 16
      %v3123 = vrot.slane %v3121, 2
      %v3124 = vshll.u32 %v3068, 16
      %v3126 = vrot.slane %v3124, 3
      %v3127 = vor.u32 %v3123, %v3126
      %v3128 = vsel %vm691, %v3118, %v3127
      %v3130 = vshrl.u32 %v3069, 16
      %v3132 = vrot.slane %v3130, 2
      %v3133 = vshll.u32 %v3069, 16
      %v3135 = vrot.slane %v3133, 3
      %v3136 = vor.u32 %v3132, %v3135
      %v3137 = vsel %vm691, %v3127, %v3136
      %v3139 = vshrl.u32 %v3070, 16
      %v3141 = vrot.slane %v3139, 2
      %v3142 = vshll.u32 %v3070, 16
      %v3144 = vrot.slane %v3142, 3
      %v3145 = vor.u32 %v3141, %v3144
      %v3146 = vsel %vm691, %v3136, %v3145
      %v3148 = vshrl.u32 %v3071, 16
      %v3150 = vrot.slane %v3148, 2
      %v3151 = vshll.u32 %v3071, 16
      %v3153 = vrot.slane %v3151, 3
      %v3154 = vor.u32 %v3150, %v3153
      %v3155 = vsel %vm691, %v3145, %v3154
      %v3157 = vshrl.u32 %v3072, 16
      %v3159 = vrot.slane %v3157, 2
      %v3160 = vshll.u32 %v3072, 16
      %v3162 = vrot.slane %v3160, 3
      %v3163 = vor.u32 %v3159, %v3162
      %v3164 = vsel %vm691, %v3154, %v3163
      %v3166 = vshrl.u32 %v3073, 16
      %v3168 = vrot.slane %v3166, 2
      %v3169 = vshll.u32 %v3073, 16
      %v3171 = vrot.slane %v3169, 3
      %v3172 = vor.u32 %v3168, %v3171
      %v3173 = vsel %vm691, %v3163, %v3172
      %v3175 = vshrl.u32 %v3074, 16
      %v3177 = vrot.slane %v3175, 2
      %v3178 = vshll.u32 %v3074, 16
      %v3180 = vrot.slane %v3178, 3
      %v3181 = vor.u32 %v3177, %v3180
      %v3182 = vsel %vm691, %v3172, %v3181
      %v3184 = vshrl.u32 %v3075, 16
      %v3186 = vrot.slane %v3184, 2
      %v3187 = vshll.u32 %v3075, 16
      %v3189 = vrot.slane %v3187, 3
      %v3190 = vor.u32 %v3186, %v3189
      %v3191 = vsel %vm691, %v3181, %v3190
      %v3193 = vshrl.u32 %v3076, 16
      %v3195 = vrot.slane %v3193, 2
      %v3196 = vshll.u32 %v3076, 16
      %v3198 = vrot.slane %v3196, 3
      %v3199 = vor.u32 %v3195, %v3198
      %v3200 = vsel %vm691, %v3190, %v3199
      %v3202 = vshrl.u32 %v3077, 16
      %v3204 = vrot.slane %v3202, 2
      %v3205 = vshll.u32 %v3077, 16
      %v3207 = vrot.slane %v3205, 3
      %v3208 = vor.u32 %v3204, %v3207
      %v3209 = vsel %vm691, %v3199, %v3208
      %v3211 = vshrl.u32 %v3078, 16
      %v3213 = vrot.slane %v3211, 2
      %v3214 = vshll.u32 %v3078, 16
      %v3216 = vrot.slane %v3214, 3
      %v3217 = vor.u32 %v3213, %v3216
      %v3218 = vsel %vm691, %v3208, %v3217
      %v3220 = vshrl.u32 %v3079, 16
      %v3222 = vrot.slane %v3220, 2
      %v3223 = vshll.u32 %v3079, 16
      %v3225 = vrot.slane %v3223, 3
      %v3226 = vor.u32 %v3222, %v3225
      %v3227 = vsel %vm691, %v3217, %v3226
      %v3229 = vshrl.u32 %v3080, 16
      %v3231 = vrot.slane %v3229, 2
      %v3232 = vshll.u32 %v3080, 16
      %v3234 = vrot.slane %v3232, 3
      %v3235 = vor.u32 %v3231, %v3234
      %v3236 = vsel %vm691, %v3226, %v3235
      %v3238 = vshrl.u32 %v3081, 16
      %v3240 = vrot.slane %v3238, 2
      %v3241 = vshll.u32 %v3081, 16
      %v3243 = vrot.slane %v3241, 3
      %v3244 = vor.u32 %v3240, %v3243
      %v3245 = vsel %vm691, %v3235, %v3244
      %v3247 = vshrl.u32 %v3082, 16
      %v3249 = vrot.slane %v3247, 2
      %v3250 = vshll.u32 %v3082, 16
      %v3252 = vrot.slane %v3250, 3
      %v3253 = vor.u32 %v3249, %v3252
      %v3254 = vsel %vm691, %v3244, %v3253
      %v3256 = vshrl.u32 %v3083, 16
      %v3258 = vrot.slane %v3256, 2
      %v3259 = vshll.u32 %v3083, 16
      %v3261 = vrot.slane %v3259, 3
      %v3262 = vor.u32 %v3258, %v3261
      %v3263 = vsel %vm691, %v3253, %v3262
      %v3265 = vshrl.u32 %v3084, 16
      %v3267 = vrot.slane %v3265, 2
      %v3268 = vshll.u32 %v3084, 16
      %v3270 = vrot.slane %v3268, 3
      %v3271 = vor.u32 %v3267, %v3270
      %v3272 = vsel %vm691, %v3262, %v3271
      %v3277 = vunpack.c.l.b16 %v2978
      %v3278 = vunpack.c.l.b16 %v2979
      %v3279 = vunpack.c.l.b16 %v2980
      %v3280 = vunpack.c.l.b16 %v2981
      %v3281 = vpack.c.b16 %v3278, %v3277
      %v3282 = vpack.c.b16 %v3280, %v3279
      %v3286 = vsel %vm434, %v3101, 0
      %v3289 = vsel %vm434, %v3110, 0
      %v3292 = vsel %vm434, %v3119, 0
      %v3295 = vsel %vm434, %v3128, 0
      %v3298 = vsel %vm434, %v3137, 0
      %v3301 = vsel %vm434, %v3146, 0
      %v3304 = vsel %vm434, %v3155, 0
      %v3307 = vsel %vm434, %v3164, 0
      %v3310 = vsel %vm434, %v3173, 0
      %v3313 = vsel %vm434, %v3182, 0
      %v3316 = vsel %vm434, %v3191, 0
      %v3319 = vsel %vm434, %v3200, 0
      %v3322 = vsel %vm434, %v3209, 0
      %v3325 = vsel %vm434, %v3218, 0
      %v3328 = vsel %vm434, %v3227, 0
      %v3331 = vsel %vm434, %v3236, 0
      %v3334 = vsel %vm434, %v3245, 0
      %v3337 = vsel %vm434, %v3254, 0
      %v3340 = vsel %vm434, %v3263, 0
      %v3343 = vsel %vm434, %v3272, 0
      %3345 = vmatprep.subr.bf16.mxu0 0
      %3346 = vmatpush1.bf16.msra.mxu0 %v3281
      %3347 = vmatprep.subr.bf16.mxu0 0
      %3348 = vmatpush1.bf16.msra.mxu0 %v3282
      %3349 = vmatprep.subr.bf16.mxu0 0
      %3350 = vmatpush1.bf16.msra.mxu0 0
      %3351 = vmatprep.subr.bf16.mxu0 0
      %3352 = vmatpush1.bf16.msra.mxu0 0
      %3353 = vmatprep.subr.bf16.mxu0 0
      %3354 = vmatpush1.bf16.msra.mxu0 0
      %3355 = vmatprep.subr.bf16.mxu0 0
      %3356 = vmatpush1.bf16.msra.mxu0 0
      %3357 = vmatprep.subr.bf16.mxu0 0
      %3358 = vmatpush1.bf16.msra.mxu0 0
      %3359 = vmatprep.subr.bf16.mxu0 0
      %3360 = vmatpush1.bf16.msra.mxu0 0
      %3361 = vmatprep.subr.bf16.mxu0 0
      %3362 = vmatpush1.bf16.msra.mxu0 0
      %3363 = vmatprep.subr.bf16.mxu0 0
      %3364 = vmatpush1.bf16.msra.mxu0 0
      %3365 = vmatprep.subr.bf16.mxu0 0
      %3366 = vmatpush1.bf16.msra.mxu0 0
      %3367 = vmatprep.subr.bf16.mxu0 0
      %3368 = vmatpush1.bf16.msra.mxu0 0
      %3369 = vmatprep.subr.bf16.mxu0 0
      %3370 = vmatpush1.bf16.msra.mxu0 0
      %3371 = vmatprep.subr.bf16.mxu0 0
      %3372 = vmatpush1.bf16.msra.mxu0 0
      %3373 = vmatprep.subr.bf16.mxu0 0
      %3374 = vmatpush1.bf16.msra.mxu0 0
      %3375 = vmatprep.subr.bf16.mxu0 0
      %3376 = vmatpush1.bf16.msra.mxu0 0
      %3377 = vmatprep.mubr.bf16.mxu0 0
      %3378 = vmatmul.mubr.bf16.gmra.mrb[0].mxu0 %v3286
      %v3379 = vpop.f32.mrb[0].mxu0
      %v3380 = vadd.f32 0.0, %v3379
      %v3381 = vpop.f32.mrb[0].mxu0
      %v3382 = vpop.f32.mrb[0].mxu0
      %v3383 = vadd.f32 0.0, %v3382
      %v3384 = vpop.f32.mrb[0].mxu0
      %3385 = vmatprep.mubr.bf16.mxu0 0
      %3386 = vmatmul.mubr.bf16.gmra.mrb[0].mxu0 %v3289
      %v3387 = vpop.f32.mrb[0].mxu0
      %v3388 = vadd.f32 0.0, %v3387
      %v3389 = vpop.f32.mrb[0].mxu0
      %v3390 = vpop.f32.mrb[0].mxu0
      %v3391 = vadd.f32 0.0, %v3390
      %v3392 = vpop.f32.mrb[0].mxu0
      %3393 = vmatprep.mubr.bf16.mxu0 0
      %3394 = vmatmul.mubr.bf16.gmra.mrb[0].mxu0 %v3292
      %v3395 = vpop.f32.mrb[0].mxu0
      %v3396 = vadd.f32 0.0, %v3395
      %v3397 = vpop.f32.mrb[0].mxu0
      %v3398 = vpop.f32.mrb[0].mxu0
      %v3399 = vadd.f32 0.0, %v3398
      %v3400 = vpop.f32.mrb[0].mxu0
      %3401 = vmatprep.mubr.bf16.mxu0 0
      %3402 = vmatmul.mubr.bf16.gmra.mrb[0].mxu0 %v3295
      %v3403 = vpop.f32.mrb[0].mxu0
      %v3404 = vadd.f32 0.0, %v3403
      %v3405 = vpop.f32.mrb[0].mxu0
      %v3406 = vpop.f32.mrb[0].mxu0
      %v3407 = vadd.f32 0.0, %v3406
      %v3408 = vpop.f32.mrb[0].mxu0
      %3409 = vmatprep.mubr.bf16.mxu0 0
      %3410 = vmatmul.mubr.bf16.gmra.mrb[0].mxu0 %v3298
      %v3411 = vpop.f32.mrb[0].mxu0
      %v3412 = vadd.f32 0.0, %v3411
      %v3413 = vpop.f32.mrb[0].mxu0
      %v3414 = vpop.f32.mrb[0].mxu0
      %v3415 = vadd.f32 0.0, %v3414
      %v3416 = vpop.f32.mrb[0].mxu0
      %3417 = vmatprep.mubr.bf16.mxu0 0
      %3418 = vmatmul.mubr.bf16.gmra.mrb[0].mxu0 %v3301
      %v3419 = vpop.f32.mrb[0].mxu0
      %v3420 = vadd.f32 0.0, %v3419
      %v3421 = vpop.f32.mrb[0].mxu0
      %v3422 = vpop.f32.mrb[0].mxu0
      %v3423 = vadd.f32 0.0, %v3422
      %v3424 = vpop.f32.mrb[0].mxu0
      %3425 = vmatprep.mubr.bf16.mxu0 0
      %3426 = vmatmul.mubr.bf16.gmra.mrb[0].mxu0 %v3304
      %v3427 = vpop.f32.mrb[0].mxu0
      %v3428 = vadd.f32 0.0, %v3427
      %v3429 = vpop.f32.mrb[0].mxu0
      %v3430 = vpop.f32.mrb[0].mxu0
      %v3431 = vadd.f32 0.0, %v3430
      %v3432 = vpop.f32.mrb[0].mxu0
      %3433 = vmatprep.mubr.bf16.mxu0 0
      %3434 = vmatmul.mubr.bf16.gmra.mrb[0].mxu0 %v3307
      %v3435 = vpop.f32.mrb[0].mxu0
      %v3436 = vadd.f32 0.0, %v3435
      %v3437 = vpop.f32.mrb[0].mxu0
      %v3438 = vpop.f32.mrb[0].mxu0
      %v3439 = vadd.f32 0.0, %v3438
      %v3440 = vpop.f32.mrb[0].mxu0
      %3441 = vmatprep.mubr.bf16.mxu0 0
      %3442 = vmatmul.mubr.bf16.gmra.mrb[0].mxu0 %v3310
      %v3443 = vpop.f32.mrb[0].mxu0
      %v3444 = vadd.f32 0.0, %v3443
      %v3445 = vpop.f32.mrb[0].mxu0
      %v3446 = vpop.f32.mrb[0].mxu0
      %v3447 = vadd.f32 0.0, %v3446
      %v3448 = vpop.f32.mrb[0].mxu0
      %3449 = vmatprep.mubr.bf16.mxu0 0
      %3450 = vmatmul.mubr.bf16.gmra.mrb[0].mxu0 %v3313
      %v3451 = vpop.f32.mrb[0].mxu0
      %v3452 = vadd.f32 0.0, %v3451
      %v3453 = vpop.f32.mrb[0].mxu0
      %v3454 = vpop.f32.mrb[0].mxu0
      %v3455 = vadd.f32 0.0, %v3454
      %v3456 = vpop.f32.mrb[0].mxu0
      %3457 = vmatprep.mubr.bf16.mxu0 0
      %3458 = vmatmul.mubr.bf16.gmra.mrb[0].mxu0 %v3316
      %v3459 = vpop.f32.mrb[0].mxu0
      %v3460 = vadd.f32 0.0, %v3459
      %v3461 = vpop.f32.mrb[0].mxu0
      %v3462 = vpop.f32.mrb[0].mxu0
      %v3463 = vadd.f32 0.0, %v3462
      %v3464 = vpop.f32.mrb[0].mxu0
      %3465 = vmatprep.mubr.bf16.mxu0 0
      %3466 = vmatmul.mubr.bf16.gmra.mrb[0].mxu0 %v3319
      %v3467 = vpop.f32.mrb[0].mxu0
      %v3468 = vadd.f32 0.0, %v3467
      %v3469 = vpop.f32.mrb[0].mxu0
      %v3470 = vpop.f32.mrb[0].mxu0
      %v3471 = vadd.f32 0.0, %v3470
      %v3472 = vpop.f32.mrb[0].mxu0
      %3473 = vmatprep.mubr.bf16.mxu0 0
      %3474 = vmatmul.mubr.bf16.gmra.mrb[0].mxu0 %v3322
      %v3475 = vpop.f32.mrb[0].mxu0
      %v3476 = vadd.f32 0.0, %v3475
      %v3477 = vpop.f32.mrb[0].mxu0
      %v3478 = vpop.f32.mrb[0].mxu0
      %v3479 = vadd.f32 0.0, %v3478
      %v3480 = vpop.f32.mrb[0].mxu0
      %3481 = vmatprep.mubr.bf16.mxu0 0
      %3482 = vmatmul.mubr.bf16.gmra.mrb[0].mxu0 %v3325
      %v3483 = vpop.f32.mrb[0].mxu0
      %v3484 = vadd.f32 0.0, %v3483
      %v3485 = vpop.f32.mrb[0].mxu0
      %v3486 = vpop.f32.mrb[0].mxu0
      %v3487 = vadd.f32 0.0, %v3486
      %v3488 = vpop.f32.mrb[0].mxu0
      %3489 = vmatprep.mubr.bf16.mxu0 0
      %3490 = vmatmul.mubr.bf16.gmra.mrb[0].mxu0 %v3328
      %v3491 = vpop.f32.mrb[0].mxu0
      %v3492 = vadd.f32 0.0, %v3491
      %v3493 = vpop.f32.mrb[0].mxu0
      %v3494 = vpop.f32.mrb[0].mxu0
      %v3495 = vadd.f32 0.0, %v3494
      %v3496 = vpop.f32.mrb[0].mxu0
      %3497 = vmatprep.mubr.bf16.mxu0 0
      %3498 = vmatmul.mubr.bf16.gmra.mrb[0].mxu0 %v3331
      %v3499 = vpop.f32.mrb[0].mxu0
      %v3500 = vadd.f32 0.0, %v3499
      %v3501 = vpop.f32.mrb[0].mxu0
      %v3502 = vpop.f32.mrb[0].mxu0
      %v3503 = vadd.f32 0.0, %v3502
      %v3504 = vpop.f32.mrb[0].mxu0
      %3505 = vmatprep.mubr.bf16.mxu0 0
      %3506 = vmatmul.mubr.bf16.gmra.mrb[0].mxu0 %v3334
      %v3507 = vpop.f32.mrb[0].mxu0
      %v3508 = vadd.f32 0.0, %v3507
      %v3509 = vpop.f32.mrb[0].mxu0
      %v3510 = vpop.f32.mrb[0].mxu0
      %v3511 = vadd.f32 0.0, %v3510
      %v3512 = vpop.f32.mrb[0].mxu0
      %3513 = vmatprep.mubr.bf16.mxu0 0
      %3514 = vmatmul.mubr.bf16.gmra.mrb[0].mxu0 %v3337
      %v3515 = vpop.f32.mrb[0].mxu0
      %v3516 = vadd.f32 0.0, %v3515
      %v3517 = vpop.f32.mrb[0].mxu0
      %v3518 = vpop.f32.mrb[0].mxu0
      %v3519 = vadd.f32 0.0, %v3518
      %v3520 = vpop.f32.mrb[0].mxu0
      %3521 = vmatprep.mubr.bf16.mxu0 0
      %3522 = vmatmul.mubr.bf16.gmra.mrb[0].mxu0 %v3340
      %v3523 = vpop.f32.mrb[0].mxu0
      %v3524 = vadd.f32 0.0, %v3523
      %v3525 = vpop.f32.mrb[0].mxu0
      %v3526 = vpop.f32.mrb[0].mxu0
      %v3527 = vadd.f32 0.0, %v3526
      %v3528 = vpop.f32.mrb[0].mxu0
      %3529 = vmatprep.mubr.bf16.mxu0 0
      %3530 = vmatmul.mubr.bf16.gmra.mrb[0].mxu0 %v3343
      %v3531 = vpop.f32.mrb[0].mxu0
      %v3532 = vadd.f32 0.0, %v3531
      %v3533 = vpop.f32.mrb[0].mxu0
      %v3534 = vpop.f32.mrb[0].mxu0
      %v3535 = vadd.f32 0.0, %v3534
      %v3536 = vpop.f32.mrb[0].mxu0
      %3537 = vdwg.mxu0
      %v3538 = vadd.f32 %v2896, %v3380
      %v3539 = vadd.f32 %v2897, %v3383
      %v3540 = vadd.f32 %v2898, %v3388
      %v3541 = vadd.f32 %v2899, %v3391
      %v3542 = vadd.f32 %v2900, %v3396
      %v3543 = vadd.f32 %v2901, %v3399
      %v3544 = vadd.f32 %v2902, %v3404
      %v3545 = vadd.f32 %v2903, %v3407
      %v3546 = vadd.f32 %v2904, %v3412
      %v3547 = vadd.f32 %v2905, %v3415
      %v3548 = vadd.f32 %v2906, %v3420
      %v3549 = vadd.f32 %v2907, %v3423
      %v3550 = vadd.f32 %v2908, %v3428
      %v3551 = vadd.f32 %v2909, %v3431
      %v3552 = vadd.f32 %v2910, %v3436
      %v3553 = vadd.f32 %v2911, %v3439
      %v3554 = vadd.f32 %v2912, %v3444
      %v3555 = vadd.f32 %v2913, %v3447
      %v3556 = vadd.f32 %v2914, %v3452
      %v3557 = vadd.f32 %v2915, %v3455
      %v3558 = vadd.f32 %v2916, %v3460
      %v3559 = vadd.f32 %v2917, %v3463
      %v3560 = vadd.f32 %v2918, %v3468
      %v3561 = vadd.f32 %v2919, %v3471
      %v3562 = vadd.f32 %v2920, %v3476
      %v3563 = vadd.f32 %v2921, %v3479
      %v3564 = vadd.f32 %v2922, %v3484
      %v3565 = vadd.f32 %v2923, %v3487
      %v3566 = vadd.f32 %v2924, %v3492
      %v3567 = vadd.f32 %v2925, %v3495
      %v3568 = vadd.f32 %v2926, %v3500
      %v3569 = vadd.f32 %v2927, %v3503
      %v3570 = vadd.f32 %v2928, %v3508
      %v3571 = vadd.f32 %v2929, %v3511
      %v3572 = vadd.f32 %v2930, %v3516
      %v3573 = vadd.f32 %v2931, %v3519
      %v3574 = vadd.f32 %v2932, %v3524
      %v3575 = vadd.f32 %v2933, %v3527
      %v3576 = vadd.f32 %v2934, %v3532
      %v3577 = vadd.f32 %v2935, %v3535
      %v3578 = vld [vmem:[%s219 + $0x1c] sm:$0x8]
      %s3579 = scalar_lea.vmem %s1, 112
      %v3580 = vld [vmem:[%s3579] sm:$0xf]
      %v3581 = vld [vmem:[%s3579 + $0x4] sm:$0xf]
      %v3582 = vld [vmem:[%s3579 + $0x8] sm:$0xf]
      %v3583 = vld [vmem:[%s3579 + $0xc] sm:$0xf]
      %v3585 = vunpack.c.l.b16 %v3578
      %v3586 = vpack.c.b16 %v3024, %v3585
      %v3587 = vrot.slane %v3586, 3
      %v3588 = vrot.slane %v3065, 3
      %v3589 = vsel %vm380, %v3587, %v3588
      %v3590 = vrot.slane %v3066, 3
      %v3591 = vsel %vm380, %v3588, %v3590
      %v3592 = vrot.slane %v3067, 3
      %v3593 = vsel %vm380, %v3590, %v3592
      %v3594 = vrot.slane %v3068, 3
      %v3595 = vsel %vm380, %v3592, %v3594
      %v3596 = vrot.slane %v3069, 3
      %v3597 = vsel %vm380, %v3594, %v3596
      %v3598 = vrot.slane %v3070, 3
      %v3599 = vsel %vm380, %v3596, %v3598
      %v3600 = vrot.slane %v3071, 3
      %v3601 = vsel %vm380, %v3598, %v3600
      %v3602 = vrot.slane %v3072, 3
      %v3603 = vsel %vm380, %v3600, %v3602
      %v3604 = vrot.slane %v3073, 3
      %v3605 = vsel %vm380, %v3602, %v3604
      %v3606 = vrot.slane %v3074, 3
      %v3607 = vsel %vm380, %v3604, %v3606
      %v3608 = vrot.slane %v3075, 3
      %v3609 = vsel %vm380, %v3606, %v3608
      %v3610 = vrot.slane %v3076, 3
      %v3611 = vsel %vm380, %v3608, %v3610
      %v3612 = vrot.slane %v3077, 3
      %v3613 = vsel %vm380, %v3610, %v3612
      %v3614 = vrot.slane %v3078, 3
      %v3615 = vsel %vm380, %v3612, %v3614
      %v3616 = vrot.slane %v3079, 3
      %v3617 = vsel %vm380, %v3614, %v3616
      %v3618 = vrot.slane %v3080, 3
      %v3619 = vsel %vm380, %v3616, %v3618
      %v3620 = vrot.slane %v3081, 3
      %v3621 = vsel %vm380, %v3618, %v3620
      %v3622 = vrot.slane %v3082, 3
      %v3623 = vsel %vm380, %v3620, %v3622
      %v3624 = vrot.slane %v3083, 3
      %v3625 = vsel %vm380, %v3622, %v3624
      %v3626 = vrot.slane %v3084, 3
      %v3627 = vsel %vm380, %v3624, %v3626
      %v3632 = vunpack.c.l.b16 %v3580
      %v3633 = vunpack.c.l.b16 %v3581
      %v3634 = vunpack.c.l.b16 %v3582
      %v3635 = vunpack.c.l.b16 %v3583
      %v3636 = vpack.c.b16 %v3633, %v3632
      %v3637 = vpack.c.b16 %v3635, %v3634
      %v3641 = vsel %vm434, %v3589, 0
      %v3644 = vsel %vm434, %v3591, 0
      %v3647 = vsel %vm434, %v3593, 0
      %v3650 = vsel %vm434, %v3595, 0
      %v3653 = vsel %vm434, %v3597, 0
      %v3656 = vsel %vm434, %v3599, 0
      %v3659 = vsel %vm434, %v3601, 0
      %v3662 = vsel %vm434, %v3603, 0
      %v3665 = vsel %vm434, %v3605, 0
      %v3668 = vsel %vm434, %v3607, 0
      %v3671 = vsel %vm434, %v3609, 0
      %v3674 = vsel %vm434, %v3611, 0
      %v3677 = vsel %vm434, %v3613, 0
      %v3680 = vsel %vm434, %v3615, 0
      %v3683 = vsel %vm434, %v3617, 0
      %v3686 = vsel %vm434, %v3619, 0
      %v3689 = vsel %vm434, %v3621, 0
      %v3692 = vsel %vm434, %v3623, 0
      %v3695 = vsel %vm434, %v3625, 0
      %v3698 = vsel %vm434, %v3627, 0
      %3700 = vmatprep.subr.bf16.mxu0 0
      %3701 = vmatpush1.bf16.msra.mxu0 %v3636
      %3702 = vmatprep.subr.bf16.mxu0 0
      %3703 = vmatpush1.bf16.msra.mxu0 %v3637
      %3704 = vmatprep.subr.bf16.mxu0 0
      %3705 = vmatpush1.bf16.msra.mxu0 0
      %3706 = vmatprep.subr.bf16.mxu0 0
      %3707 = vmatpush1.bf16.msra.mxu0 0
      %3708 = vmatprep.subr.bf16.mxu0 0
      %3709 = vmatpush1.bf16.msra.mxu0 0
      %3710 = vmatprep.subr.bf16.mxu0 0
      %3711 = vmatpush1.bf16.msra.mxu0 0
      %3712 = vmatprep.subr.bf16.mxu0 0
      %3713 = vmatpush1.bf16.msra.mxu0 0
      %3714 = vmatprep.subr.bf16.mxu0 0
      %3715 = vmatpush1.bf16.msra.mxu0 0
      %3716 = vmatprep.subr.bf16.mxu0 0
      %3717 = vmatpush1.bf16.msra.mxu0 0
      %3718 = vmatprep.subr.bf16.mxu0 0
      %3719 = vmatpush1.bf16.msra.mxu0 0
      %3720 = vmatprep.subr.bf16.mxu0 0
      %3721 = vmatpush1.bf16.msra.mxu0 0
      %3722 = vmatprep.subr.bf16.mxu0 0
      %3723 = vmatpush1.bf16.msra.mxu0 0
      %3724 = vmatprep.subr.bf16.mxu0 0
      %3725 = vmatpush1.bf16.msra.mxu0 0
      %3726 = vmatprep.subr.bf16.mxu0 0
      %3727 = vmatpush1.bf16.msra.mxu0 0
      %3728 = vmatprep.subr.bf16.mxu0 0
      %3729 = vmatpush1.bf16.msra.mxu0 0
      %3730 = vmatprep.subr.bf16.mxu0 0
      %3731 = vmatpush1.bf16.msra.mxu0 0
      %3732 = vmatprep.mubr.bf16.mxu0 0
      %3733 = vmatmul.mubr.bf16.gmra.mrb[0].mxu0 %v3641
      %v3734 = vpop.f32.mrb[0].mxu0
      %v3735 = vadd.f32 0.0, %v3734
      %v3736 = vpop.f32.mrb[0].mxu0
      %v3737 = vpop.f32.mrb[0].mxu0
      %v3738 = vadd.f32 0.0, %v3737
      %v3739 = vpop.f32.mrb[0].mxu0
      %3740 = vmatprep.mubr.bf16.mxu0 0
      %3741 = vmatmul.mubr.bf16.gmra.mrb[0].mxu0 %v3644
      %v3742 = vpop.f32.mrb[0].mxu0
      %v3743 = vadd.f32 0.0, %v3742
      %v3744 = vpop.f32.mrb[0].mxu0
      %v3745 = vpop.f32.mrb[0].mxu0
      %v3746 = vadd.f32 0.0, %v3745
      %v3747 = vpop.f32.mrb[0].mxu0
      %3748 = vmatprep.mubr.bf16.mxu0 0
      %3749 = vmatmul.mubr.bf16.gmra.mrb[0].mxu0 %v3647
      %v3750 = vpop.f32.mrb[0].mxu0
      %v3751 = vadd.f32 0.0, %v3750
      %v3752 = vpop.f32.mrb[0].mxu0
      %v3753 = vpop.f32.mrb[0].mxu0
      %v3754 = vadd.f32 0.0, %v3753
      %v3755 = vpop.f32.mrb[0].mxu0
      %3756 = vmatprep.mubr.bf16.mxu0 0
      %3757 = vmatmul.mubr.bf16.gmra.mrb[0].mxu0 %v3650
      %v3758 = vpop.f32.mrb[0].mxu0
      %v3759 = vadd.f32 0.0, %v3758
      %v3760 = vpop.f32.mrb[0].mxu0
      %v3761 = vpop.f32.mrb[0].mxu0
      %v3762 = vadd.f32 0.0, %v3761
      %v3763 = vpop.f32.mrb[0].mxu0
      %3764 = vmatprep.mubr.bf16.mxu0 0
      %3765 = vmatmul.mubr.bf16.gmra.mrb[0].mxu0 %v3653
      %v3766 = vpop.f32.mrb[0].mxu0
      %v3767 = vadd.f32 0.0, %v3766
      %v3768 = vpop.f32.mrb[0].mxu0
      %v3769 = vpop.f32.mrb[0].mxu0
      %v3770 = vadd.f32 0.0, %v3769
      %v3771 = vpop.f32.mrb[0].mxu0
      %3772 = vmatprep.mubr.bf16.mxu0 0
      %3773 = vmatmul.mubr.bf16.gmra.mrb[0].mxu0 %v3656
      %v3774 = vpop.f32.mrb[0].mxu0
      %v3775 = vadd.f32 0.0, %v3774
      %v3776 = vpop.f32.mrb[0].mxu0
      %v3777 = vpop.f32.mrb[0].mxu0
      %v3778 = vadd.f32 0.0, %v3777
      %v3779 = vpop.f32.mrb[0].mxu0
      %3780 = vmatprep.mubr.bf16.mxu0 0
      %3781 = vmatmul.mubr.bf16.gmra.mrb[0].mxu0 %v3659
      %v3782 = vpop.f32.mrb[0].mxu0
      %v3783 = vadd.f32 0.0, %v3782
      %v3784 = vpop.f32.mrb[0].mxu0
      %v3785 = vpop.f32.mrb[0].mxu0
      %v3786 = vadd.f32 0.0, %v3785
      %v3787 = vpop.f32.mrb[0].mxu0
      %3788 = vmatprep.mubr.bf16.mxu0 0
      %3789 = vmatmul.mubr.bf16.gmra.mrb[0].mxu0 %v3662
      %v3790 = vpop.f32.mrb[0].mxu0
      %v3791 = vadd.f32 0.0, %v3790
      %v3792 = vpop.f32.mrb[0].mxu0
      %v3793 = vpop.f32.mrb[0].mxu0
      %v3794 = vadd.f32 0.0, %v3793
      %v3795 = vpop.f32.mrb[0].mxu0
      %3796 = vmatprep.mubr.bf16.mxu0 0
      %3797 = vmatmul.mubr.bf16.gmra.mrb[0].mxu0 %v3665
      %v3798 = vpop.f32.mrb[0].mxu0
      %v3799 = vadd.f32 0.0, %v3798
      %v3800 = vpop.f32.mrb[0].mxu0
      %v3801 = vpop.f32.mrb[0].mxu0
      %v3802 = vadd.f32 0.0, %v3801
      %v3803 = vpop.f32.mrb[0].mxu0
      %3804 = vmatprep.mubr.bf16.mxu0 0
      %3805 = vmatmul.mubr.bf16.gmra.mrb[0].mxu0 %v3668
      %v3806 = vpop.f32.mrb[0].mxu0
      %v3807 = vadd.f32 0.0, %v3806
      %v3808 = vpop.f32.mrb[0].mxu0
      %v3809 = vpop.f32.mrb[0].mxu0
      %v3810 = vadd.f32 0.0, %v3809
      %v3811 = vpop.f32.mrb[0].mxu0
      %3812 = vmatprep.mubr.bf16.mxu0 0
      %3813 = vmatmul.mubr.bf16.gmra.mrb[0].mxu0 %v3671
      %v3814 = vpop.f32.mrb[0].mxu0
      %v3815 = vadd.f32 0.0, %v3814
      %v3816 = vpop.f32.mrb[0].mxu0
      %v3817 = vpop.f32.mrb[0].mxu0
      %v3818 = vadd.f32 0.0, %v3817
      %v3819 = vpop.f32.mrb[0].mxu0
      %3820 = vmatprep.mubr.bf16.mxu0 0
      %3821 = vmatmul.mubr.bf16.gmra.mrb[0].mxu0 %v3674
      %v3822 = vpop.f32.mrb[0].mxu0
      %v3823 = vadd.f32 0.0, %v3822
      %v3824 = vpop.f32.mrb[0].mxu0
      %v3825 = vpop.f32.mrb[0].mxu0
      %v3826 = vadd.f32 0.0, %v3825
      %v3827 = vpop.f32.mrb[0].mxu0
      %3828 = vmatprep.mubr.bf16.mxu0 0
      %3829 = vmatmul.mubr.bf16.gmra.mrb[0].mxu0 %v3677
      %v3830 = vpop.f32.mrb[0].mxu0
      %v3831 = vadd.f32 0.0, %v3830
      %v3832 = vpop.f32.mrb[0].mxu0
      %v3833 = vpop.f32.mrb[0].mxu0
      %v3834 = vadd.f32 0.0, %v3833
      %v3835 = vpop.f32.mrb[0].mxu0
      %3836 = vmatprep.mubr.bf16.mxu0 0
      %3837 = vmatmul.mubr.bf16.gmra.mrb[0].mxu0 %v3680
      %v3838 = vpop.f32.mrb[0].mxu0
      %v3839 = vadd.f32 0.0, %v3838
      %v3840 = vpop.f32.mrb[0].mxu0
      %v3841 = vpop.f32.mrb[0].mxu0
      %v3842 = vadd.f32 0.0, %v3841
      %v3843 = vpop.f32.mrb[0].mxu0
      %3844 = vmatprep.mubr.bf16.mxu0 0
      %3845 = vmatmul.mubr.bf16.gmra.mrb[0].mxu0 %v3683
      %v3846 = vpop.f32.mrb[0].mxu0
      %v3847 = vadd.f32 0.0, %v3846
      %v3848 = vpop.f32.mrb[0].mxu0
      %v3849 = vpop.f32.mrb[0].mxu0
      %v3850 = vadd.f32 0.0, %v3849
      %v3851 = vpop.f32.mrb[0].mxu0
      %3852 = vmatprep.mubr.bf16.mxu0 0
      %3853 = vmatmul.mubr.bf16.gmra.mrb[0].mxu0 %v3686
      %v3854 = vpop.f32.mrb[0].mxu0
      %v3855 = vadd.f32 0.0, %v3854
      %v3856 = vpop.f32.mrb[0].mxu0
      %v3857 = vpop.f32.mrb[0].mxu0
      %v3858 = vadd.f32 0.0, %v3857
      %v3859 = vpop.f32.mrb[0].mxu0
      %3860 = vmatprep.mubr.bf16.mxu0 0
      %3861 = vmatmul.mubr.bf16.gmra.mrb[0].mxu0 %v3689
      %v3862 = vpop.f32.mrb[0].mxu0
      %v3863 = vadd.f32 0.0, %v3862
      %v3864 = vpop.f32.mrb[0].mxu0
      %v3865 = vpop.f32.mrb[0].mxu0
      %v3866 = vadd.f32 0.0, %v3865
      %v3867 = vpop.f32.mrb[0].mxu0
      %3868 = vmatprep.mubr.bf16.mxu0 0
      %3869 = vmatmul.mubr.bf16.gmra.mrb[0].mxu0 %v3692
      %v3870 = vpop.f32.mrb[0].mxu0
      %v3871 = vadd.f32 0.0, %v3870
      %v3872 = vpop.f32.mrb[0].mxu0
      %v3873 = vpop.f32.mrb[0].mxu0
      %v3874 = vadd.f32 0.0, %v3873
      %v3875 = vpop.f32.mrb[0].mxu0
      %3876 = vmatprep.mubr.bf16.mxu0 0
      %3877 = vmatmul.mubr.bf16.gmra.mrb[0].mxu0 %v3695
      %v3878 = vpop.f32.mrb[0].mxu0
      %v3879 = vadd.f32 0.0, %v3878
      %v3880 = vpop.f32.mrb[0].mxu0
      %v3881 = vpop.f32.mrb[0].mxu0
      %v3882 = vadd.f32 0.0, %v3881
      %v3883 = vpop.f32.mrb[0].mxu0
      %3884 = vmatprep.mubr.bf16.mxu0 0
      %3885 = vmatmul.mubr.bf16.gmra.mrb[0].mxu0 %v3698
      %v3886 = vpop.f32.mrb[0].mxu0
      %v3887 = vadd.f32 0.0, %v3886
      %v3888 = vpop.f32.mrb[0].mxu0
      %v3889 = vpop.f32.mrb[0].mxu0
      %v3890 = vadd.f32 0.0, %v3889
      %v3891 = vpop.f32.mrb[0].mxu0
      %3892 = vdwg.mxu0
      %v3893 = vadd.f32 %v3538, %v3735
      %v3894 = vadd.f32 %v3539, %v3738
      %v3895 = vadd.f32 %v3540, %v3743
      %v3896 = vadd.f32 %v3541, %v3746
      %v3897 = vadd.f32 %v3542, %v3751
      %v3898 = vadd.f32 %v3543, %v3754
      %v3899 = vadd.f32 %v3544, %v3759
      %v3900 = vadd.f32 %v3545, %v3762
      %v3901 = vadd.f32 %v3546, %v3767
      %v3902 = vadd.f32 %v3547, %v3770
      %v3903 = vadd.f32 %v3548, %v3775
      %v3904 = vadd.f32 %v3549, %v3778
      %v3905 = vadd.f32 %v3550, %v3783
      %v3906 = vadd.f32 %v3551, %v3786
      %v3907 = vadd.f32 %v3552, %v3791
      %v3908 = vadd.f32 %v3553, %v3794
      %v3909 = vadd.f32 %v3554, %v3799
      %v3910 = vadd.f32 %v3555, %v3802
      %v3911 = vadd.f32 %v3556, %v3807
      %v3912 = vadd.f32 %v3557, %v3810
      %v3913 = vadd.f32 %v3558, %v3815
      %v3914 = vadd.f32 %v3559, %v3818
      %v3915 = vadd.f32 %v3560, %v3823
      %v3916 = vadd.f32 %v3561, %v3826
      %v3917 = vadd.f32 %v3562, %v3831
      %v3918 = vadd.f32 %v3563, %v3834
      %v3919 = vadd.f32 %v3564, %v3839
      %v3920 = vadd.f32 %v3565, %v3842
      %v3921 = vadd.f32 %v3566, %v3847
      %v3922 = vadd.f32 %v3567, %v3850
      %v3923 = vadd.f32 %v3568, %v3855
      %v3924 = vadd.f32 %v3569, %v3858
      %v3925 = vadd.f32 %v3570, %v3863
      %v3926 = vadd.f32 %v3571, %v3866
      %v3927 = vadd.f32 %v3572, %v3871
      %v3928 = vadd.f32 %v3573, %v3874
      %v3929 = vadd.f32 %v3574, %v3879
      %v3930 = vadd.f32 %v3575, %v3882
      %v3931 = vadd.f32 %v3576, %v3887
      %v3932 = vadd.f32 %v3577, %v3890
      %v3933 = vld [vmem:[%s219 + $0xbc] sm:$0xf]
      %s3934 = scalar_lea.vmem %s1, 128
      %v3935 = vld [vmem:[%s3934] sm:$0xf]
      %v3936 = vld [vmem:[%s3934 + $0x4] sm:$0xf]
      %v3937 = vld [vmem:[%s3934 + $0x8] sm:$0xf]
      %v3938 = vld [vmem:[%s3934 + $0xc] sm:$0xf]
      %v3940 = vunpack.c.l.b16 %v3933
      %v3941 = vpack.c.b16 %v3940, %v3940
      %v3943 = vshrl.u32 %v3586, 16
      %v3945 = vrot.slane %v3943, 3
      %v3946 = vshll.u32 %v3586, 16
      %v3948 = vrot.slane %v3946, 4
      %v3949 = vor.u32 %v3945, %v3948
      %v3950 = vrot.slane %v3094, 3
      %v3951 = vrot.slane %v3097, 4
      %v3952 = vor.u32 %v3950, %v3951
      %v3953 = vsel %vm1154, %v3949, %v3952
      %v3954 = vrot.slane %v3103, 3
      %v3955 = vrot.slane %v3106, 4
      %v3956 = vor.u32 %v3954, %v3955
      %v3957 = vsel %vm1154, %v3952, %v3956
      %v3958 = vrot.slane %v3112, 3
      %v3959 = vrot.slane %v3115, 4
      %v3960 = vor.u32 %v3958, %v3959
      %v3961 = vsel %vm1154, %v3956, %v3960
      %v3962 = vrot.slane %v3121, 3
      %v3963 = vrot.slane %v3124, 4
      %v3964 = vor.u32 %v3962, %v3963
      %v3965 = vsel %vm1154, %v3960, %v3964
      %v3966 = vrot.slane %v3130, 3
      %v3967 = vrot.slane %v3133, 4
      %v3968 = vor.u32 %v3966, %v3967
      %v3969 = vsel %vm1154, %v3964, %v3968
      %v3970 = vrot.slane %v3139, 3
      %v3971 = vrot.slane %v3142, 4
      %v3972 = vor.u32 %v3970, %v3971
      %v3973 = vsel %vm1154, %v3968, %v3972
      %v3974 = vrot.slane %v3148, 3
      %v3975 = vrot.slane %v3151, 4
      %v3976 = vor.u32 %v3974, %v3975
      %v3977 = vsel %vm1154, %v3972, %v3976
      %v3978 = vrot.slane %v3157, 3
      %v3979 = vrot.slane %v3160, 4
      %v3980 = vor.u32 %v3978, %v3979
      %v3981 = vsel %vm1154, %v3976, %v3980
      %v3982 = vrot.slane %v3166, 3
      %v3983 = vrot.slane %v3169, 4
      %v3984 = vor.u32 %v3982, %v3983
      %v3985 = vsel %vm1154, %v3980, %v3984
      %v3986 = vrot.slane %v3175, 3
      %v3987 = vrot.slane %v3178, 4
      %v3988 = vor.u32 %v3986, %v3987
      %v3989 = vsel %vm1154, %v3984, %v3988
      %v3990 = vrot.slane %v3184, 3
      %v3991 = vrot.slane %v3187, 4
      %v3992 = vor.u32 %v3990, %v3991
      %v3993 = vsel %vm1154, %v3988, %v3992
      %v3994 = vrot.slane %v3193, 3
      %v3995 = vrot.slane %v3196, 4
      %v3996 = vor.u32 %v3994, %v3995
      %v3997 = vsel %vm1154, %v3992, %v3996
      %v3998 = vrot.slane %v3202, 3
      %v3999 = vrot.slane %v3205, 4
      %v4000 = vor.u32 %v3998, %v3999
      %v4001 = vsel %vm1154, %v3996, %v4000
      %v4002 = vrot.slane %v3211, 3
      %v4003 = vrot.slane %v3214, 4
      %v4004 = vor.u32 %v4002, %v4003
      %v4005 = vsel %vm1154, %v4000, %v4004
      %v4006 = vrot.slane %v3220, 3
      %v4007 = vrot.slane %v3223, 4
      %v4008 = vor.u32 %v4006, %v4007
      %v4009 = vsel %vm1154, %v4004, %v4008
      %v4010 = vrot.slane %v3229, 3
      %v4011 = vrot.slane %v3232, 4
      %v4012 = vor.u32 %v4010, %v4011
      %v4013 = vsel %vm1154, %v4008, %v4012
      %v4014 = vrot.slane %v3238, 3
      %v4015 = vrot.slane %v3241, 4
      %v4016 = vor.u32 %v4014, %v4015
      %v4017 = vsel %vm1154, %v4012, %v4016
      %v4018 = vrot.slane %v3247, 3
      %v4019 = vrot.slane %v3250, 4
      %v4020 = vor.u32 %v4018, %v4019
      %v4021 = vsel %vm1154, %v4016, %v4020
      %v4022 = vrot.slane %v3256, 3
      %v4023 = vrot.slane %v3259, 4
      %v4024 = vor.u32 %v4022, %v4023
      %v4025 = vsel %vm1154, %v4020, %v4024
      %v4027 = vshrl.u32 %v3941, 16
      %v4029 = vrot.slane %v4027, 3
      %v4030 = vshll.u32 %v3941, 16
      %v4032 = vrot.slane %v4030, 4
      %v4033 = vor.u32 %v4029, %v4032
      %v4034 = vsel %vm1154, %v4024, %v4033
      %v4039 = vunpack.c.l.b16 %v3935
      %v4040 = vunpack.c.l.b16 %v3936
      %v4041 = vunpack.c.l.b16 %v3937
      %v4042 = vunpack.c.l.b16 %v3938
      %v4043 = vpack.c.b16 %v4040, %v4039
      %v4044 = vpack.c.b16 %v4042, %v4041
      %v4048 = vsel %vm434, %v3953, 0
      %v4051 = vsel %vm434, %v3957, 0
      %v4054 = vsel %vm434, %v3961, 0
      %v4057 = vsel %vm434, %v3965, 0
      %v4060 = vsel %vm434, %v3969, 0
      %v4063 = vsel %vm434, %v3973, 0
      %v4066 = vsel %vm434, %v3977, 0
      %v4069 = vsel %vm434, %v3981, 0
      %v4072 = vsel %vm434, %v3985, 0
      %v4075 = vsel %vm434, %v3989, 0
      %v4078 = vsel %vm434, %v3993, 0
      %v4081 = vsel %vm434, %v3997, 0
      %v4084 = vsel %vm434, %v4001, 0
      %v4087 = vsel %vm434, %v4005, 0
      %v4090 = vsel %vm434, %v4009, 0
      %v4093 = vsel %vm434, %v4013, 0
      %v4096 = vsel %vm434, %v4017, 0
      %v4099 = vsel %vm434, %v4021, 0
      %v4102 = vsel %vm434, %v4025, 0
      %v4105 = vsel %vm434, %v4034, 0
      %4107 = vmatprep.subr.bf16.mxu0 0
      %4108 = vmatpush1.bf16.msra.mxu0 %v4043
      %4109 = vmatprep.subr.bf16.mxu0 0
      %4110 = vmatpush1.bf16.msra.mxu0 %v4044
      %4111 = vmatprep.subr.bf16.mxu0 0
      %4112 = vmatpush1.bf16.msra.mxu0 0
      %4113 = vmatprep.subr.bf16.mxu0 0
      %4114 = vmatpush1.bf16.msra.mxu0 0
      %4115 = vmatprep.subr.bf16.mxu0 0
      %4116 = vmatpush1.bf16.msra.mxu0 0
      %4117 = vmatprep.subr.bf16.mxu0 0
      %4118 = vmatpush1.bf16.msra.mxu0 0
      %4119 = vmatprep.subr.bf16.mxu0 0
      %4120 = vmatpush1.bf16.msra.mxu0 0
      %4121 = vmatprep.subr.bf16.mxu0 0
      %4122 = vmatpush1.bf16.msra.mxu0 0
      %4123 = vmatprep.subr.bf16.mxu0 0
      %4124 = vmatpush1.bf16.msra.mxu0 0
      %4125 = vmatprep.subr.bf16.mxu0 0
      %4126 = vmatpush1.bf16.msra.mxu0 0
      %4127 = vmatprep.subr.bf16.mxu0 0
      %4128 = vmatpush1.bf16.msra.mxu0 0
      %4129 = vmatprep.subr.bf16.mxu0 0
      %4130 = vmatpush1.bf16.msra.mxu0 0
      %4131 = vmatprep.subr.bf16.mxu0 0
      %4132 = vmatpush1.bf16.msra.mxu0 0
      %4133 = vmatprep.subr.bf16.mxu0 0
      %4134 = vmatpush1.bf16.msra.mxu0 0
      %4135 = vmatprep.subr.bf16.mxu0 0
      %4136 = vmatpush1.bf16.msra.mxu0 0
      %4137 = vmatprep.subr.bf16.mxu0 0
      %4138 = vmatpush1.bf16.msra.mxu0 0
      %4139 = vmatprep.mubr.bf16.mxu0 0
      %4140 = vmatmul.mubr.bf16.gmra.mrb[0].mxu0 %v4048
      %v4141 = vpop.f32.mrb[0].mxu0
      %v4142 = vadd.f32 0.0, %v4141
      %v4143 = vpop.f32.mrb[0].mxu0
      %v4144 = vpop.f32.mrb[0].mxu0
      %v4145 = vadd.f32 0.0, %v4144
      %v4146 = vpop.f32.mrb[0].mxu0
      %4147 = vmatprep.mubr.bf16.mxu0 0
      %4148 = vmatmul.mubr.bf16.gmra.mrb[0].mxu0 %v4051
      %v4149 = vpop.f32.mrb[0].mxu0
      %v4150 = vadd.f32 0.0, %v4149
      %v4151 = vpop.f32.mrb[0].mxu0
      %v4152 = vpop.f32.mrb[0].mxu0
      %v4153 = vadd.f32 0.0, %v4152
      %v4154 = vpop.f32.mrb[0].mxu0
      %4155 = vmatprep.mubr.bf16.mxu0 0
      %4156 = vmatmul.mubr.bf16.gmra.mrb[0].mxu0 %v4054
      %v4157 = vpop.f32.mrb[0].mxu0
      %v4158 = vadd.f32 0.0, %v4157
      %v4159 = vpop.f32.mrb[0].mxu0
      %v4160 = vpop.f32.mrb[0].mxu0
      %v4161 = vadd.f32 0.0, %v4160
      %v4162 = vpop.f32.mrb[0].mxu0
      %4163 = vmatprep.mubr.bf16.mxu0 0
      %4164 = vmatmul.mubr.bf16.gmra.mrb[0].mxu0 %v4057
      %v4165 = vpop.f32.mrb[0].mxu0
      %v4166 = vadd.f32 0.0, %v4165
      %v4167 = vpop.f32.mrb[0].mxu0
      %v4168 = vpop.f32.mrb[0].mxu0
      %v4169 = vadd.f32 0.0, %v4168
      %v4170 = vpop.f32.mrb[0].mxu0
      %4171 = vmatprep.mubr.bf16.mxu0 0
      %4172 = vmatmul.mubr.bf16.gmra.mrb[0].mxu0 %v4060
      %v4173 = vpop.f32.mrb[0].mxu0
      %v4174 = vadd.f32 0.0, %v4173
      %v4175 = vpop.f32.mrb[0].mxu0
      %v4176 = vpop.f32.mrb[0].mxu0
      %v4177 = vadd.f32 0.0, %v4176
      %v4178 = vpop.f32.mrb[0].mxu0
      %4179 = vmatprep.mubr.bf16.mxu0 0
      %4180 = vmatmul.mubr.bf16.gmra.mrb[0].mxu0 %v4063
      %v4181 = vpop.f32.mrb[0].mxu0
      %v4182 = vadd.f32 0.0, %v4181
      %v4183 = vpop.f32.mrb[0].mxu0
      %v4184 = vpop.f32.mrb[0].mxu0
      %v4185 = vadd.f32 0.0, %v4184
      %v4186 = vpop.f32.mrb[0].mxu0
      %4187 = vmatprep.mubr.bf16.mxu0 0
      %4188 = vmatmul.mubr.bf16.gmra.mrb[0].mxu0 %v4066
      %v4189 = vpop.f32.mrb[0].mxu0
      %v4190 = vadd.f32 0.0, %v4189
      %v4191 = vpop.f32.mrb[0].mxu0
      %v4192 = vpop.f32.mrb[0].mxu0
      %v4193 = vadd.f32 0.0, %v4192
      %v4194 = vpop.f32.mrb[0].mxu0
      %4195 = vmatprep.mubr.bf16.mxu0 0
      %4196 = vmatmul.mubr.bf16.gmra.mrb[0].mxu0 %v4069
      %v4197 = vpop.f32.mrb[0].mxu0
      %v4198 = vadd.f32 0.0, %v4197
      %v4199 = vpop.f32.mrb[0].mxu0
      %v4200 = vpop.f32.mrb[0].mxu0
      %v4201 = vadd.f32 0.0, %v4200
      %v4202 = vpop.f32.mrb[0].mxu0
      %4203 = vmatprep.mubr.bf16.mxu0 0
      %4204 = vmatmul.mubr.bf16.gmra.mrb[0].mxu0 %v4072
      %v4205 = vpop.f32.mrb[0].mxu0
      %v4206 = vadd.f32 0.0, %v4205
      %v4207 = vpop.f32.mrb[0].mxu0
      %v4208 = vpop.f32.mrb[0].mxu0
      %v4209 = vadd.f32 0.0, %v4208
      %v4210 = vpop.f32.mrb[0].mxu0
      %4211 = vmatprep.mubr.bf16.mxu0 0
      %4212 = vmatmul.mubr.bf16.gmra.mrb[0].mxu0 %v4075
      %v4213 = vpop.f32.mrb[0].mxu0
      %v4214 = vadd.f32 0.0, %v4213
      %v4215 = vpop.f32.mrb[0].mxu0
      %v4216 = vpop.f32.mrb[0].mxu0
      %v4217 = vadd.f32 0.0, %v4216
      %v4218 = vpop.f32.mrb[0].mxu0
      %4219 = vmatprep.mubr.bf16.mxu0 0
      %4220 = vmatmul.mubr.bf16.gmra.mrb[0].mxu0 %v4078
      %v4221 = vpop.f32.mrb[0].mxu0
      %v4222 = vadd.f32 0.0, %v4221
      %v4223 = vpop.f32.mrb[0].mxu0
      %v4224 = vpop.f32.mrb[0].mxu0
      %v4225 = vadd.f32 0.0, %v4224
      %v4226 = vpop.f32.mrb[0].mxu0
      %4227 = vmatprep.mubr.bf16.mxu0 0
      %4228 = vmatmul.mubr.bf16.gmra.mrb[0].mxu0 %v4081
      %v4229 = vpop.f32.mrb[0].mxu0
      %v4230 = vadd.f32 0.0, %v4229
      %v4231 = vpop.f32.mrb[0].mxu0
      %v4232 = vpop.f32.mrb[0].mxu0
      %v4233 = vadd.f32 0.0, %v4232
      %v4234 = vpop.f32.mrb[0].mxu0
      %4235 = vmatprep.mubr.bf16.mxu0 0
      %4236 = vmatmul.mubr.bf16.gmra.mrb[0].mxu0 %v4084
      %v4237 = vpop.f32.mrb[0].mxu0
      %v4238 = vadd.f32 0.0, %v4237
      %v4239 = vpop.f32.mrb[0].mxu0
      %v4240 = vpop.f32.mrb[0].mxu0
      %v4241 = vadd.f32 0.0, %v4240
      %v4242 = vpop.f32.mrb[0].mxu0
      %4243 = vmatprep.mubr.bf16.mxu0 0
      %4244 = vmatmul.mubr.bf16.gmra.mrb[0].mxu0 %v4087
      %v4245 = vpop.f32.mrb[0].mxu0
      %v4246 = vadd.f32 0.0, %v4245
      %v4247 = vpop.f32.mrb[0].mxu0
      %v4248 = vpop.f32.mrb[0].mxu0
      %v4249 = vadd.f32 0.0, %v4248
      %v4250 = vpop.f32.mrb[0].mxu0
      %4251 = vmatprep.mubr.bf16.mxu0 0
      %4252 = vmatmul.mubr.bf16.gmra.mrb[0].mxu0 %v4090
      %v4253 = vpop.f32.mrb[0].mxu0
      %v4254 = vadd.f32 0.0, %v4253
      %v4255 = vpop.f32.mrb[0].mxu0
      %v4256 = vpop.f32.mrb[0].mxu0
      %v4257 = vadd.f32 0.0, %v4256
      %v4258 = vpop.f32.mrb[0].mxu0
      %4259 = vmatprep.mubr.bf16.mxu0 0
      %4260 = vmatmul.mubr.bf16.gmra.mrb[0].mxu0 %v4093
      %v4261 = vpop.f32.mrb[0].mxu0
      %v4262 = vadd.f32 0.0, %v4261
      %v4263 = vpop.f32.mrb[0].mxu0
      %v4264 = vpop.f32.mrb[0].mxu0
      %v4265 = vadd.f32 0.0, %v4264
      %v4266 = vpop.f32.mrb[0].mxu0
      %4267 = vmatprep.mubr.bf16.mxu0 0
      %4268 = vmatmul.mubr.bf16.gmra.mrb[0].mxu0 %v4096
      %v4269 = vpop.f32.mrb[0].mxu0
      %v4270 = vadd.f32 0.0, %v4269
      %v4271 = vpop.f32.mrb[0].mxu0
      %v4272 = vpop.f32.mrb[0].mxu0
      %v4273 = vadd.f32 0.0, %v4272
      %v4274 = vpop.f32.mrb[0].mxu0
      %4275 = vmatprep.mubr.bf16.mxu0 0
      %4276 = vmatmul.mubr.bf16.gmra.mrb[0].mxu0 %v4099
      %v4277 = vpop.f32.mrb[0].mxu0
      %v4278 = vadd.f32 0.0, %v4277
      %v4279 = vpop.f32.mrb[0].mxu0
      %v4280 = vpop.f32.mrb[0].mxu0
      %v4281 = vadd.f32 0.0, %v4280
      %v4282 = vpop.f32.mrb[0].mxu0
      %4283 = vmatprep.mubr.bf16.mxu0 0
      %4284 = vmatmul.mubr.bf16.gmra.mrb[0].mxu0 %v4102
      %v4285 = vpop.f32.mrb[0].mxu0
      %v4286 = vadd.f32 0.0, %v4285
      %v4287 = vpop.f32.mrb[0].mxu0
      %v4288 = vpop.f32.mrb[0].mxu0
      %v4289 = vadd.f32 0.0, %v4288
      %v4290 = vpop.f32.mrb[0].mxu0
      %4291 = vmatprep.mubr.bf16.mxu0 0
      %4292 = vmatmul.mubr.bf16.gmra.mrb[0].mxu0 %v4105
      %v4293 = vpop.f32.mrb[0].mxu0
      %v4294 = vadd.f32 0.0, %v4293
      %v4295 = vpop.f32.mrb[0].mxu0
      %v4296 = vpop.f32.mrb[0].mxu0
      %v4297 = vadd.f32 0.0, %v4296
      %v4298 = vpop.f32.mrb[0].mxu0
      %4299 = vdwg.mxu0
      %v4300 = vadd.f32 %v3893, %v4142
      %v4301 = vadd.f32 %v3894, %v4145
      %v4302 = vadd.f32 %v3895, %v4150
      %v4303 = vadd.f32 %v3896, %v4153
      %v4304 = vadd.f32 %v3897, %v4158
      %v4305 = vadd.f32 %v3898, %v4161
      %v4306 = vadd.f32 %v3899, %v4166
      %v4307 = vadd.f32 %v3900, %v4169
      %v4308 = vadd.f32 %v3901, %v4174
      %v4309 = vadd.f32 %v3902, %v4177
      %v4310 = vadd.f32 %v3903, %v4182
      %v4311 = vadd.f32 %v3904, %v4185
      %v4312 = vadd.f32 %v3905, %v4190
      %v4313 = vadd.f32 %v3906, %v4193
      %v4314 = vadd.f32 %v3907, %v4198
      %v4315 = vadd.f32 %v3908, %v4201
      %v4316 = vadd.f32 %v3909, %v4206
      %v4317 = vadd.f32 %v3910, %v4209
      %v4318 = vadd.f32 %v3911, %v4214
      %v4319 = vadd.f32 %v3912, %v4217
      %v4320 = vadd.f32 %v3913, %v4222
      %v4321 = vadd.f32 %v3914, %v4225
      %v4322 = vadd.f32 %v3915, %v4230
      %v4323 = vadd.f32 %v3916, %v4233
      %v4324 = vadd.f32 %v3917, %v4238
      %v4325 = vadd.f32 %v3918, %v4241
      %v4326 = vadd.f32 %v3919, %v4246
      %v4327 = vadd.f32 %v3920, %v4249
      %v4328 = vadd.f32 %v3921, %v4254
      %v4329 = vadd.f32 %v3922, %v4257
      %v4330 = vadd.f32 %v3923, %v4262
      %v4331 = vadd.f32 %v3924, %v4265
      %v4332 = vadd.f32 %v3925, %v4270
      %v4333 = vadd.f32 %v3926, %v4273
      %v4334 = vadd.f32 %v3927, %v4278
      %v4335 = vadd.f32 %v3928, %v4281
      %v4336 = vadd.f32 %v3929, %v4286
      %v4337 = vadd.f32 %v3930, %v4289
      %v4338 = vadd.f32 %v3931, %v4294
      %v4339 = vadd.f32 %v3932, %v4297
      %v4340 = vmax.f32 %v4300, 0.0
      %v4341 = vmax.f32 %v4301, 0.0
      %v4342 = vmax.f32 %v4302, 0.0
      %v4343 = vmax.f32 %v4303, 0.0
      %v4344 = vmax.f32 %v4304, 0.0
      %v4345 = vmax.f32 %v4305, 0.0
      %v4346 = vmax.f32 %v4306, 0.0
      %v4347 = vmax.f32 %v4307, 0.0
      %v4348 = vmax.f32 %v4308, 0.0
      %v4349 = vmax.f32 %v4309, 0.0
      %v4350 = vmax.f32 %v4310, 0.0
      %v4351 = vmax.f32 %v4311, 0.0
      %v4352 = vmax.f32 %v4312, 0.0
      %v4353 = vmax.f32 %v4313, 0.0
      %v4354 = vmax.f32 %v4314, 0.0
      %v4355 = vmax.f32 %v4315, 0.0
      %v4356 = vmax.f32 %v4316, 0.0
      %v4357 = vmax.f32 %v4317, 0.0
      %v4358 = vmax.f32 %v4318, 0.0
      %v4359 = vmax.f32 %v4319, 0.0
      %v4360 = vmax.f32 %v4320, 0.0
      %v4361 = vmax.f32 %v4321, 0.0
      %v4362 = vmax.f32 %v4322, 0.0
      %v4363 = vmax.f32 %v4323, 0.0
      %v4364 = vmax.f32 %v4324, 0.0
      %v4365 = vmax.f32 %v4325, 0.0
      %v4366 = vmax.f32 %v4326, 0.0
      %v4367 = vmax.f32 %v4327, 0.0
      %v4368 = vmax.f32 %v4328, 0.0
      %v4369 = vmax.f32 %v4329, 0.0
      %v4370 = vmax.f32 %v4330, 0.0
      %v4371 = vmax.f32 %v4331, 0.0
      %v4372 = vmax.f32 %v4332, 0.0
      %v4373 = vmax.f32 %v4333, 0.0
      %v4374 = vmax.f32 %v4334, 0.0
      %v4375 = vmax.f32 %v4335, 0.0
      %v4376 = vmax.f32 %v4336, 0.0
      %v4377 = vmax.f32 %v4337, 0.0
      %v4378 = vmax.f32 %v4338, 0.0
      %v4379 = vmax.f32 %v4339, 0.0
      %v4380 = vpack.c.bf16 %v4341, %v4340
      %v4381 = vpack.c.bf16 %v4343, %v4342
      %v4382 = vpack.c.bf16 %v4345, %v4344
      %v4383 = vpack.c.bf16 %v4347, %v4346
      %v4384 = vpack.c.bf16 %v4349, %v4348
      %v4385 = vpack.c.bf16 %v4351, %v4350
      %v4386 = vpack.c.bf16 %v4353, %v4352
      %v4387 = vpack.c.bf16 %v4355, %v4354
      %v4388 = vpack.c.bf16 %v4357, %v4356
      %v4389 = vpack.c.bf16 %v4359, %v4358
      %v4390 = vpack.c.bf16 %v4361, %v4360
      %v4391 = vpack.c.bf16 %v4363, %v4362
      %v4392 = vpack.c.bf16 %v4365, %v4364
      %v4393 = vpack.c.bf16 %v4367, %v4366
      %v4394 = vpack.c.bf16 %v4369, %v4368
      %v4395 = vpack.c.bf16 %v4371, %v4370
      %v4396 = vpack.c.bf16 %v4373, %v4372
      %v4397 = vpack.c.bf16 %v4375, %v4374
      %v4398 = vpack.c.bf16 %v4377, %v4376
      %v4399 = vpack.c.bf16 %v4379, %v4378
      %4400 = vst.msk [vmem:[#allocation2] sm:$0xff] %vm434, %v4380
      %4401 = vst.msk [vmem:[#allocation2 + $0x8] sm:$0xff] %vm434, %v4381
      %4402 = vst.msk [vmem:[#allocation2 + $0x10] sm:$0xff] %vm434, %v4382
      %4403 = vst.msk [vmem:[#allocation2 + $0x18] sm:$0xff] %vm434, %v4383
      %4404 = vst.msk [vmem:[#allocation2 + $0x20] sm:$0xff] %vm434, %v4384
      %4405 = vst.msk [vmem:[#allocation2 + $0x28] sm:$0xff] %vm434, %v4385
      %4406 = vst.msk [vmem:[#allocation2 + $0x30] sm:$0xff] %vm434, %v4386
      %4407 = vst.msk [vmem:[#allocation2 + $0x38] sm:$0xff] %vm434, %v4387
      %4408 = vst.msk [vmem:[#allocation2 + $0x40] sm:$0xff] %vm434, %v4388
      %4409 = vst.msk [vmem:[#allocation2 + $0x48] sm:$0xff] %vm434, %v4389
      %4410 = vst.msk [vmem:[#allocation2 + $0x50] sm:$0xff] %vm434, %v4390
      %4411 = vst.msk [vmem:[#allocation2 + $0x58] sm:$0xff] %vm434, %v4391
      %4412 = vst.msk [vmem:[#allocation2 + $0x60] sm:$0xff] %vm434, %v4392
      %4413 = vst.msk [vmem:[#allocation2 + $0x68] sm:$0xff] %vm434, %v4393
      %4414 = vst.msk [vmem:[#allocation2 + $0x70] sm:$0xff] %vm434, %v4394
      %4415 = vst.msk [vmem:[#allocation2 + $0x78] sm:$0xff] %vm434, %v4395
      %4416 = vst.msk [vmem:[#allocation2 + $0x80] sm:$0xff] %vm434, %v4396
      %4417 = vst.msk [vmem:[#allocation2 + $0x88] sm:$0xff] %vm434, %v4397
      %4418 = vst.msk [vmem:[#allocation2 + $0x90] sm:$0xff] %vm434, %v4398
      %4419 = vst.msk [vmem:[#allocation2 + $0x98] sm:$0xff] %vm434, %v4399
      %v4420 = vld [vmem:[%s219] sm:$0xf]
      %v4421 = vld [vmem:[%s219 + $0x4] sm:$0xf]
      %v4422 = vld [vmem:[%s219 + $0x8] sm:$0xf]
      %v4423 = vld [vmem:[%s219 + $0xc] sm:$0xf]
      %v4424 = vld [vmem:[%s219 + $0x10] sm:$0xf]
      %v4425 = vld [vmem:[%s219 + $0x14] sm:$0xf]
      %v4426 = vld [vmem:[%s219 + $0x18] sm:$0xf]
      %v4427 = vld [vmem:[%s219 + $0x1c] sm:$0xf]
      %v4428 = vld [vmem:[%s219 + $0x20] sm:$0xf]
      %v4429 = vld [vmem:[%s219 + $0x24] sm:$0xf]
      %v4430 = vld [vmem:[%s219 + $0x28] sm:$0xf]
      %v4431 = vld [vmem:[%s219 + $0x2c] sm:$0xf]
      %v4432 = vld [vmem:[%s219 + $0x30] sm:$0xf]
      %v4433 = vld [vmem:[%s219 + $0x34] sm:$0xf]
      %v4434 = vld [vmem:[%s219 + $0x38] sm:$0xf]
      %v4435 = vld [vmem:[%s219 + $0x3c] sm:$0xf]
      %v4436 = vld [vmem:[%s219 + $0x40] sm:$0xf]
      %v4437 = vld [vmem:[%s219 + $0x44] sm:$0xf]
      %v4438 = vld [vmem:[%s219 + $0x48] sm:$0xf]
      %v4439 = vld [vmem:[%s219 + $0x4c] sm:$0xf]
      %v4440 = vld [vmem:[%s219 + $0x50] sm:$0xf]
      %v4441 = vld [vmem:[%s219 + $0x54] sm:$0xf]
      %v4442 = vld [vmem:[%s219 + $0x58] sm:$0xf]
      %v4443 = vld [vmem:[%s219 + $0x5c] sm:$0xf]
      %v4444 = vld [vmem:[%s219 + $0x60] sm:$0xf]
      %v4445 = vld [vmem:[%s219 + $0x64] sm:$0xf]
      %v4446 = vld [vmem:[%s219 + $0x68] sm:$0xf]
      %v4447 = vld [vmem:[%s219 + $0x6c] sm:$0xf]
      %v4448 = vld [vmem:[%s219 + $0x70] sm:$0xf]
      %v4449 = vld [vmem:[%s219 + $0x74] sm:$0xf]
      %v4450 = vld [vmem:[%s219 + $0x78] sm:$0xf]
      %v4451 = vld [vmem:[%s219 + $0x7c] sm:$0xf]
      %v4452 = vld [vmem:[%s219 + $0x80] sm:$0xf]
      %v4453 = vld [vmem:[%s219 + $0x84] sm:$0xf]
      %v4454 = vld [vmem:[%s219 + $0x88] sm:$0xf]
      %v4455 = vld [vmem:[%s219 + $0x8c] sm:$0xf]
      %v4456 = vld [vmem:[%s219 + $0x90] sm:$0xf]
      %v4457 = vld [vmem:[%s219 + $0x94] sm:$0xf]
      %v4458 = vld [vmem:[%s219 + $0x98] sm:$0xf]
      %v4459 = vld [vmem:[%s219 + $0x9c] sm:$0xf]
      %s4460 = scalar_lea.vmem %s1, 144
      %v4461 = vld [vmem:[%s4460] sm:$0xf]
      %v4462 = vld [vmem:[%s4460 + $0x4] sm:$0xf]
      %v4463 = vld [vmem:[%s4460 + $0x8] sm:$0xf]
      %v4464 = vld [vmem:[%s4460 + $0xc] sm:$0xf]
      %v4465 = vld [vmem:[%s219] sm:$0xe]
      %v4466 = vld [vmem:[%s219 + $0xa0] sm:$0x1]
      %s4467 = scalar_lea.vmem %s1, 160
      %v4468 = vld [vmem:[%s4467] sm:$0xf]
      %v4469 = vld [vmem:[%s4467 + $0x4] sm:$0xf]
      %v4470 = vld [vmem:[%s4467 + $0x8] sm:$0xf]
      %v4471 = vld [vmem:[%s4467 + $0xc] sm:$0xf]
      %v4513 = vunpack.c.l.b16 %v4465
      %v4514 = vunpack.c.l.b16 %v4421
      %v4515 = vunpack.c.l.b16 %v4422
      %v4516 = vunpack.c.l.b16 %v4423
      %v4517 = vunpack.c.l.b16 %v4424
      %v4518 = vunpack.c.l.b16 %v4425
      %v4519 = vunpack.c.l.b16 %v4426
      %v4520 = vunpack.c.l.b16 %v4427
      %v4521 = vunpack.c.l.b16 %v4428
      %v4522 = vunpack.c.l.b16 %v4429
      %v4523 = vunpack.c.l.b16 %v4430
      %v4524 = vunpack.c.l.b16 %v4431
      %v4525 = vunpack.c.l.b16 %v4432
      %v4526 = vunpack.c.l.b16 %v4433
      %v4527 = vunpack.c.l.b16 %v4434
      %v4528 = vunpack.c.l.b16 %v4435
      %v4529 = vunpack.c.l.b16 %v4436
      %v4530 = vunpack.c.l.b16 %v4437
      %v4531 = vunpack.c.l.b16 %v4438
      %v4532 = vunpack.c.l.b16 %v4439
      %v4533 = vunpack.c.l.b16 %v4440
      %v4534 = vunpack.c.l.b16 %v4441
      %v4535 = vunpack.c.l.b16 %v4442
      %v4536 = vunpack.c.l.b16 %v4443
      %v4537 = vunpack.c.l.b16 %v4444
      %v4538 = vunpack.c.l.b16 %v4445
      %v4539 = vunpack.c.l.b16 %v4446
      %v4540 = vunpack.c.l.b16 %v4447
      %v4541 = vunpack.c.l.b16 %v4448
      %v4542 = vunpack.c.l.b16 %v4449
      %v4543 = vunpack.c.l.b16 %v4450
      %v4544 = vunpack.c.l.b16 %v4451
      %v4545 = vunpack.c.l.b16 %v4452
      %v4546 = vunpack.c.l.b16 %v4453
      %v4547 = vunpack.c.l.b16 %v4454
      %v4548 = vunpack.c.l.b16 %v4455
      %v4549 = vunpack.c.l.b16 %v4456
      %v4550 = vunpack.c.l.b16 %v4457
      %v4551 = vunpack.c.l.b16 %v4458
      %v4552 = vunpack.c.l.b16 %v4459
      %v4553 = vunpack.c.l.b16 %v4466
      %v4554 = vpack.c.b16 %v4514, %v4513
      %v4555 = vpack.c.b16 %v4516, %v4515
      %v4556 = vpack.c.b16 %v4518, %v4517
      %v4557 = vpack.c.b16 %v4520, %v4519
      %v4558 = vpack.c.b16 %v4522, %v4521
      %v4559 = vpack.c.b16 %v4524, %v4523
      %v4560 = vpack.c.b16 %v4526, %v4525
      %v4561 = vpack.c.b16 %v4528, %v4527
      %v4562 = vpack.c.b16 %v4530, %v4529
      %v4563 = vpack.c.b16 %v4532, %v4531
      %v4564 = vpack.c.b16 %v4534, %v4533
      %v4565 = vpack.c.b16 %v4536, %v4535
      %v4566 = vpack.c.b16 %v4538, %v4537
      %v4567 = vpack.c.b16 %v4540, %v4539
      %v4568 = vpack.c.b16 %v4542, %v4541
      %v4569 = vpack.c.b16 %v4544, %v4543
      %v4570 = vpack.c.b16 %v4546, %v4545
      %v4571 = vpack.c.b16 %v4548, %v4547
      %v4572 = vpack.c.b16 %v4550, %v4549
      %v4573 = vpack.c.b16 %v4552, %v4551
      %v4574 = vpack.c.b16 %v4553, %v4553
      %v4575 = vrot.slane %v4554, 1
      %v4576 = vrot.slane %v4555, 1
      %v4577 = vsel %vm2181, %v4575, %v4576
      %v4578 = vrot.slane %v4556, 1
      %v4579 = vsel %vm2181, %v4576, %v4578
      %v4580 = vrot.slane %v4557, 1
      %v4581 = vsel %vm2181, %v4578, %v4580
      %v4582 = vrot.slane %v4558, 1
      %v4583 = vsel %vm2181, %v4580, %v4582
      %v4584 = vrot.slane %v4559, 1
      %v4585 = vsel %vm2181, %v4582, %v4584
      %v4586 = vrot.slane %v4560, 1
      %v4587 = vsel %vm2181, %v4584, %v4586
      %v4588 = vrot.slane %v4561, 1
      %v4589 = vsel %vm2181, %v4586, %v4588
      %v4590 = vrot.slane %v4562, 1
      %v4591 = vsel %vm2181, %v4588, %v4590
      %v4592 = vrot.slane %v4563, 1
      %v4593 = vsel %vm2181, %v4590, %v4592
      %v4594 = vrot.slane %v4564, 1
      %v4595 = vsel %vm2181, %v4592, %v4594
      %v4596 = vrot.slane %v4565, 1
      %v4597 = vsel %vm2181, %v4594, %v4596
      %v4598 = vrot.slane %v4566, 1
      %v4599 = vsel %vm2181, %v4596, %v4598
      %v4600 = vrot.slane %v4567, 1
      %v4601 = vsel %vm2181, %v4598, %v4600
      %v4602 = vrot.slane %v4568, 1
      %v4603 = vsel %vm2181, %v4600, %v4602
      %v4604 = vrot.slane %v4569, 1
      %v4605 = vsel %vm2181, %v4602, %v4604
      %v4606 = vrot.slane %v4570, 1
      %v4607 = vsel %vm2181, %v4604, %v4606
      %v4608 = vrot.slane %v4571, 1
      %v4609 = vsel %vm2181, %v4606, %v4608
      %v4610 = vrot.slane %v4572, 1
      %v4611 = vsel %vm2181, %v4608, %v4610
      %v4612 = vrot.slane %v4573, 1
      %v4613 = vsel %vm2181, %v4610, %v4612
      %v4614 = vrot.slane %v4574, 1
      %v4615 = vsel %vm2181, %v4612, %v4614
      %v4620 = vunpack.c.l.b16 %v4468
      %v4621 = vunpack.c.l.b16 %v4469
      %v4622 = vunpack.c.l.b16 %v4470
      %v4623 = vunpack.c.l.b16 %v4471
      %v4624 = vpack.c.b16 %v4621, %v4620
      %v4625 = vpack.c.b16 %v4623, %v4622
      %v4629 = vsel %vm434, %v4577, 0
      %v4632 = vsel %vm434, %v4579, 0
      %v4635 = vsel %vm434, %v4581, 0
      %v4638 = vsel %vm434, %v4583, 0
      %v4641 = vsel %vm434, %v4585, 0
      %v4644 = vsel %vm434, %v4587, 0
      %v4647 = vsel %vm434, %v4589, 0
      %v4650 = vsel %vm434, %v4591, 0
      %v4653 = vsel %vm434, %v4593, 0
      %v4656 = vsel %vm434, %v4595, 0
      %v4659 = vsel %vm434, %v4597, 0
      %v4662 = vsel %vm434, %v4599, 0
      %v4665 = vsel %vm434, %v4601, 0
      %v4668 = vsel %vm434, %v4603, 0
      %v4671 = vsel %vm434, %v4605, 0
      %v4674 = vsel %vm434, %v4607, 0
      %v4677 = vsel %vm434, %v4609, 0
      %v4680 = vsel %vm434, %v4611, 0
      %v4683 = vsel %vm434, %v4613, 0
      %v4686 = vsel %vm434, %v4615, 0
      %4688 = vmatprep.subr.bf16.mxu0 0
      %4689 = vmatpush1.bf16.msra.mxu0 %v4624
      %4690 = vmatprep.subr.bf16.mxu0 0
      %4691 = vmatpush1.bf16.msra.mxu0 %v4625
      %4692 = vmatprep.subr.bf16.mxu0 0
      %4693 = vmatpush1.bf16.msra.mxu0 0
      %4694 = vmatprep.subr.bf16.mxu0 0
      %4695 = vmatpush1.bf16.msra.mxu0 0
      %4696 = vmatprep.subr.bf16.mxu0 0
      %4697 = vmatpush1.bf16.msra.mxu0 0
      %4698 = vmatprep.subr.bf16.mxu0 0
      %4699 = vmatpush1.bf16.msra.mxu0 0
      %4700 = vmatprep.subr.bf16.mxu0 0
      %4701 = vmatpush1.bf16.msra.mxu0 0
      %4702 = vmatprep.subr.bf16.mxu0 0
      %4703 = vmatpush1.bf16.msra.mxu0 0
      %4704 = vmatprep.subr.bf16.mxu0 0
      %4705 = vmatpush1.bf16.msra.mxu0 0
      %4706 = vmatprep.subr.bf16.mxu0 0
      %4707 = vmatpush1.bf16.msra.mxu0 0
      %4708 = vmatprep.subr.bf16.mxu0 0
      %4709 = vmatpush1.bf16.msra.mxu0 0
      %4710 = vmatprep.subr.bf16.mxu0 0
      %4711 = vmatpush1.bf16.msra.mxu0 0
      %4712 = vmatprep.subr.bf16.mxu0 0
      %4713 = vmatpush1.bf16.msra.mxu0 0
      %4714 = vmatprep.subr.bf16.mxu0 0
      %4715 = vmatpush1.bf16.msra.mxu0 0
      %4716 = vmatprep.subr.bf16.mxu0 0
      %4717 = vmatpush1.bf16.msra.mxu0 0
      %4718 = vmatprep.subr.bf16.mxu0 0
      %4719 = vmatpush1.bf16.msra.mxu0 0
      %4720 = vmatprep.mubr.bf16.mxu0 0
      %4721 = vmatmul.mubr.bf16.gmra.mrb[0].mxu0 %v4629
      %v4722 = vpop.f32.mrb[0].mxu0
      %v4723 = vadd.f32 0.0, %v4722
      %v4724 = vpop.f32.mrb[0].mxu0
      %v4725 = vpop.f32.mrb[0].mxu0
      %v4726 = vadd.f32 0.0, %v4725
      %v4727 = vpop.f32.mrb[0].mxu0
      %4728 = vmatprep.mubr.bf16.mxu0 0
      %4729 = vmatmul.mubr.bf16.gmra.mrb[0].mxu0 %v4632
      %v4730 = vpop.f32.mrb[0].mxu0
      %v4731 = vadd.f32 0.0, %v4730
      %v4732 = vpop.f32.mrb[0].mxu0
      %v4733 = vpop.f32.mrb[0].mxu0
      %v4734 = vadd.f32 0.0, %v4733
      %v4735 = vpop.f32.mrb[0].mxu0
      %4736 = vmatprep.mubr.bf16.mxu0 0
      %4737 = vmatmul.mubr.bf16.gmra.mrb[0].mxu0 %v4635
      %v4738 = vpop.f32.mrb[0].mxu0
      %v4739 = vadd.f32 0.0, %v4738
      %v4740 = vpop.f32.mrb[0].mxu0
      %v4741 = vpop.f32.mrb[0].mxu0
      %v4742 = vadd.f32 0.0, %v4741
      %v4743 = vpop.f32.mrb[0].mxu0
      %4744 = vmatprep.mubr.bf16.mxu0 0
      %4745 = vmatmul.mubr.bf16.gmra.mrb[0].mxu0 %v4638
      %v4746 = vpop.f32.mrb[0].mxu0
      %v4747 = vadd.f32 0.0, %v4746
      %v4748 = vpop.f32.mrb[0].mxu0
      %v4749 = vpop.f32.mrb[0].mxu0
      %v4750 = vadd.f32 0.0, %v4749
      %v4751 = vpop.f32.mrb[0].mxu0
      %4752 = vmatprep.mubr.bf16.mxu0 0
      %4753 = vmatmul.mubr.bf16.gmra.mrb[0].mxu0 %v4641
      %v4754 = vpop.f32.mrb[0].mxu0
      %v4755 = vadd.f32 0.0, %v4754
      %v4756 = vpop.f32.mrb[0].mxu0
      %v4757 = vpop.f32.mrb[0].mxu0
      %v4758 = vadd.f32 0.0, %v4757
      %v4759 = vpop.f32.mrb[0].mxu0
      %4760 = vmatprep.mubr.bf16.mxu0 0
      %4761 = vmatmul.mubr.bf16.gmra.mrb[0].mxu0 %v4644
      %v4762 = vpop.f32.mrb[0].mxu0
      %v4763 = vadd.f32 0.0, %v4762
      %v4764 = vpop.f32.mrb[0].mxu0
      %v4765 = vpop.f32.mrb[0].mxu0
      %v4766 = vadd.f32 0.0, %v4765
      %v4767 = vpop.f32.mrb[0].mxu0
      %4768 = vmatprep.mubr.bf16.mxu0 0
      %4769 = vmatmul.mubr.bf16.gmra.mrb[0].mxu0 %v4647
      %v4770 = vpop.f32.mrb[0].mxu0
      %v4771 = vadd.f32 0.0, %v4770
      %v4772 = vpop.f32.mrb[0].mxu0
      %v4773 = vpop.f32.mrb[0].mxu0
      %v4774 = vadd.f32 0.0, %v4773
      %v4775 = vpop.f32.mrb[0].mxu0
      %4776 = vmatprep.mubr.bf16.mxu0 0
      %4777 = vmatmul.mubr.bf16.gmra.mrb[0].mxu0 %v4650
      %v4778 = vpop.f32.mrb[0].mxu0
      %v4779 = vadd.f32 0.0, %v4778
      %v4780 = vpop.f32.mrb[0].mxu0
      %v4781 = vpop.f32.mrb[0].mxu0
      %v4782 = vadd.f32 0.0, %v4781
      %v4783 = vpop.f32.mrb[0].mxu0
      %4784 = vmatprep.mubr.bf16.mxu0 0
      %4785 = vmatmul.mubr.bf16.gmra.mrb[0].mxu0 %v4653
      %v4786 = vpop.f32.mrb[0].mxu0
      %v4787 = vadd.f32 0.0, %v4786
      %v4788 = vpop.f32.mrb[0].mxu0
      %v4789 = vpop.f32.mrb[0].mxu0
      %v4790 = vadd.f32 0.0, %v4789
      %v4791 = vpop.f32.mrb[0].mxu0
      %4792 = vmatprep.mubr.bf16.mxu0 0
      %4793 = vmatmul.mubr.bf16.gmra.mrb[0].mxu0 %v4656
      %v4794 = vpop.f32.mrb[0].mxu0
      %v4795 = vadd.f32 0.0, %v4794
      %v4796 = vpop.f32.mrb[0].mxu0
      %v4797 = vpop.f32.mrb[0].mxu0
      %v4798 = vadd.f32 0.0, %v4797
      %v4799 = vpop.f32.mrb[0].mxu0
      %4800 = vmatprep.mubr.bf16.mxu0 0
      %4801 = vmatmul.mubr.bf16.gmra.mrb[0].mxu0 %v4659
      %v4802 = vpop.f32.mrb[0].mxu0
      %v4803 = vadd.f32 0.0, %v4802
      %v4804 = vpop.f32.mrb[0].mxu0
      %v4805 = vpop.f32.mrb[0].mxu0
      %v4806 = vadd.f32 0.0, %v4805
      %v4807 = vpop.f32.mrb[0].mxu0
      %4808 = vmatprep.mubr.bf16.mxu0 0
      %4809 = vmatmul.mubr.bf16.gmra.mrb[0].mxu0 %v4662
      %v4810 = vpop.f32.mrb[0].mxu0
      %v4811 = vadd.f32 0.0, %v4810
      %v4812 = vpop.f32.mrb[0].mxu0
      %v4813 = vpop.f32.mrb[0].mxu0
      %v4814 = vadd.f32 0.0, %v4813
      %v4815 = vpop.f32.mrb[0].mxu0
      %4816 = vmatprep.mubr.bf16.mxu0 0
      %4817 = vmatmul.mubr.bf16.gmra.mrb[0].mxu0 %v4665
      %v4818 = vpop.f32.mrb[0].mxu0
      %v4819 = vadd.f32 0.0, %v4818
      %v4820 = vpop.f32.mrb[0].mxu0
      %v4821 = vpop.f32.mrb[0].mxu0
      %v4822 = vadd.f32 0.0, %v4821
      %v4823 = vpop.f32.mrb[0].mxu0
      %4824 = vmatprep.mubr.bf16.mxu0 0
      %4825 = vmatmul.mubr.bf16.gmra.mrb[0].mxu0 %v4668
      %v4826 = vpop.f32.mrb[0].mxu0
      %v4827 = vadd.f32 0.0, %v4826
      %v4828 = vpop.f32.mrb[0].mxu0
      %v4829 = vpop.f32.mrb[0].mxu0
      %v4830 = vadd.f32 0.0, %v4829
      %v4831 = vpop.f32.mrb[0].mxu0
      %4832 = vmatprep.mubr.bf16.mxu0 0
      %4833 = vmatmul.mubr.bf16.gmra.mrb[0].mxu0 %v4671
      %v4834 = vpop.f32.mrb[0].mxu0
      %v4835 = vadd.f32 0.0, %v4834
      %v4836 = vpop.f32.mrb[0].mxu0
      %v4837 = vpop.f32.mrb[0].mxu0
      %v4838 = vadd.f32 0.0, %v4837
      %v4839 = vpop.f32.mrb[0].mxu0
      %4840 = vmatprep.mubr.bf16.mxu0 0
      %4841 = vmatmul.mubr.bf16.gmra.mrb[0].mxu0 %v4674
      %v4842 = vpop.f32.mrb[0].mxu0
      %v4843 = vadd.f32 0.0, %v4842
      %v4844 = vpop.f32.mrb[0].mxu0
      %v4845 = vpop.f32.mrb[0].mxu0
      %v4846 = vadd.f32 0.0, %v4845
      %v4847 = vpop.f32.mrb[0].mxu0
      %4848 = vmatprep.mubr.bf16.mxu0 0
      %4849 = vmatmul.mubr.bf16.gmra.mrb[0].mxu0 %v4677
      %v4850 = vpop.f32.mrb[0].mxu0
      %v4851 = vadd.f32 0.0, %v4850
      %v4852 = vpop.f32.mrb[0].mxu0
      %v4853 = vpop.f32.mrb[0].mxu0
      %v4854 = vadd.f32 0.0, %v4853
      %v4855 = vpop.f32.mrb[0].mxu0
      %4856 = vmatprep.mubr.bf16.mxu0 0
      %4857 = vmatmul.mubr.bf16.gmra.mrb[0].mxu0 %v4680
      %v4858 = vpop.f32.mrb[0].mxu0
      %v4859 = vadd.f32 0.0, %v4858
      %v4860 = vpop.f32.mrb[0].mxu0
      %v4861 = vpop.f32.mrb[0].mxu0
      %v4862 = vadd.f32 0.0, %v4861
      %v4863 = vpop.f32.mrb[0].mxu0
      %4864 = vmatprep.mubr.bf16.mxu0 0
      %4865 = vmatmul.mubr.bf16.gmra.mrb[0].mxu0 %v4683
      %v4866 = vpop.f32.mrb[0].mxu0
      %v4867 = vadd.f32 0.0, %v4866
      %v4868 = vpop.f32.mrb[0].mxu0
      %v4869 = vpop.f32.mrb[0].mxu0
      %v4870 = vadd.f32 0.0, %v4869
      %v4871 = vpop.f32.mrb[0].mxu0
      %4872 = vmatprep.mubr.bf16.mxu0 0
      %4873 = vmatmul.mubr.bf16.gmra.mrb[0].mxu0 %v4686
      %v4874 = vpop.f32.mrb[0].mxu0
      %v4875 = vadd.f32 0.0, %v4874
      %v4876 = vpop.f32.mrb[0].mxu0
      %v4877 = vpop.f32.mrb[0].mxu0
      %v4878 = vadd.f32 0.0, %v4877
      %v4879 = vpop.f32.mrb[0].mxu0
      %4880 = vdwg.mxu0
      %v4882 = vunpack.c.l.b16 %v4420
      %v4883 = vpack.c.b16 %v4514, %v4882
      %v4888 = vunpack.c.l.b16 %v4461
      %v4889 = vunpack.c.l.b16 %v4462
      %v4890 = vunpack.c.l.b16 %v4463
      %v4891 = vunpack.c.l.b16 %v4464
      %v4892 = vpack.c.b16 %v4889, %v4888
      %v4893 = vpack.c.b16 %v4891, %v4890
      %v4897 = vsel %vm434, %v4883, 0
      %v4900 = vsel %vm434, %v4555, 0
      %v4903 = vsel %vm434, %v4556, 0
      %v4906 = vsel %vm434, %v4557, 0
      %v4909 = vsel %vm434, %v4558, 0
      %v4912 = vsel %vm434, %v4559, 0
      %v4915 = vsel %vm434, %v4560, 0
      %v4918 = vsel %vm434, %v4561, 0
      %v4921 = vsel %vm434, %v4562, 0
      %v4924 = vsel %vm434, %v4563, 0
      %v4927 = vsel %vm434, %v4564, 0
      %v4930 = vsel %vm434, %v4565, 0
      %v4933 = vsel %vm434, %v4566, 0
      %v4936 = vsel %vm434, %v4567, 0
      %v4939 = vsel %vm434, %v4568, 0
      %v4942 = vsel %vm434, %v4569, 0
      %v4945 = vsel %vm434, %v4570, 0
      %v4948 = vsel %vm434, %v4571, 0
      %v4951 = vsel %vm434, %v4572, 0
      %v4954 = vsel %vm434, %v4573, 0
      %4956 = vmatprep.subr.bf16.mxu0 0
      %4957 = vmatpush1.bf16.msra.mxu0 %v4892
      %4958 = vmatprep.subr.bf16.mxu0 0
      %4959 = vmatpush1.bf16.msra.mxu0 %v4893
      %4960 = vmatprep.subr.bf16.mxu0 0
      %4961 = vmatpush1.bf16.msra.mxu0 0
      %4962 = vmatprep.subr.bf16.mxu0 0
      %4963 = vmatpush1.bf16.msra.mxu0 0
      %4964 = vmatprep.subr.bf16.mxu0 0
      %4965 = vmatpush1.bf16.msra.mxu0 0
      %4966 = vmatprep.subr.bf16.mxu0 0
      %4967 = vmatpush1.bf16.msra.mxu0 0
      %4968 = vmatprep.subr.bf16.mxu0 0
      %4969 = vmatpush1.bf16.msra.mxu0 0
      %4970 = vmatprep.subr.bf16.mxu0 0
      %4971 = vmatpush1.bf16.msra.mxu0 0
      %4972 = vmatprep.subr.bf16.mxu0 0
      %4973 = vmatpush1.bf16.msra.mxu0 0
      %4974 = vmatprep.subr.bf16.mxu0 0
      %4975 = vmatpush1.bf16.msra.mxu0 0
      %4976 = vmatprep.subr.bf16.mxu0 0
      %4977 = vmatpush1.bf16.msra.mxu0 0
      %4978 = vmatprep.subr.bf16.mxu0 0
      %4979 = vmatpush1.bf16.msra.mxu0 0
      %4980 = vmatprep.subr.bf16.mxu0 0
      %4981 = vmatpush1.bf16.msra.mxu0 0
      %4982 = vmatprep.subr.bf16.mxu0 0
      %4983 = vmatpush1.bf16.msra.mxu0 0
      %4984 = vmatprep.subr.bf16.mxu0 0
      %4985 = vmatpush1.bf16.msra.mxu0 0
      %4986 = vmatprep.subr.bf16.mxu0 0
      %4987 = vmatpush1.bf16.msra.mxu0 0
      %4988 = vmatprep.mubr.bf16.mxu0 0
      %4989 = vmatmul.mubr.bf16.gmra.mrb[0].mxu0 %v4897
      %v4990 = vpop.f32.mrb[0].mxu0
      %v4991 = vadd.f32 %v4723, %v4990
      %v4992 = vpop.f32.mrb[0].mxu0
      %v4993 = vpop.f32.mrb[0].mxu0
      %v4994 = vadd.f32 %v4726, %v4993
      %v4995 = vpop.f32.mrb[0].mxu0
      %4996 = vmatprep.mubr.bf16.mxu0 0
      %4997 = vmatmul.mubr.bf16.gmra.mrb[0].mxu0 %v4900
      %v4998 = vpop.f32.mrb[0].mxu0
      %v4999 = vadd.f32 %v4731, %v4998
      %v5000 = vpop.f32.mrb[0].mxu0
      %v5001 = vpop.f32.mrb[0].mxu0
      %v5002 = vadd.f32 %v4734, %v5001
      %v5003 = vpop.f32.mrb[0].mxu0
      %5004 = vmatprep.mubr.bf16.mxu0 0
      %5005 = vmatmul.mubr.bf16.gmra.mrb[0].mxu0 %v4903
      %v5006 = vpop.f32.mrb[0].mxu0
      %v5007 = vadd.f32 %v4739, %v5006
      %v5008 = vpop.f32.mrb[0].mxu0
      %v5009 = vpop.f32.mrb[0].mxu0
      %v5010 = vadd.f32 %v4742, %v5009
      %v5011 = vpop.f32.mrb[0].mxu0
      %5012 = vmatprep.mubr.bf16.mxu0 0
      %5013 = vmatmul.mubr.bf16.gmra.mrb[0].mxu0 %v4906
      %v5014 = vpop.f32.mrb[0].mxu0
      %v5015 = vadd.f32 %v4747, %v5014
      %v5016 = vpop.f32.mrb[0].mxu0
      %v5017 = vpop.f32.mrb[0].mxu0
      %v5018 = vadd.f32 %v4750, %v5017
      %v5019 = vpop.f32.mrb[0].mxu0
      %5020 = vmatprep.mubr.bf16.mxu0 0
      %5021 = vmatmul.mubr.bf16.gmra.mrb[0].mxu0 %v4909
      %v5022 = vpop.f32.mrb[0].mxu0
      %v5023 = vadd.f32 %v4755, %v5022
      %v5024 = vpop.f32.mrb[0].mxu0
      %v5025 = vpop.f32.mrb[0].mxu0
      %v5026 = vadd.f32 %v4758, %v5025
      %v5027 = vpop.f32.mrb[0].mxu0
      %5028 = vmatprep.mubr.bf16.mxu0 0
      %5029 = vmatmul.mubr.bf16.gmra.mrb[0].mxu0 %v4912
      %v5030 = vpop.f32.mrb[0].mxu0
      %v5031 = vadd.f32 %v4763, %v5030
      %v5032 = vpop.f32.mrb[0].mxu0
      %v5033 = vpop.f32.mrb[0].mxu0
      %v5034 = vadd.f32 %v4766, %v5033
      %v5035 = vpop.f32.mrb[0].mxu0
      %5036 = vmatprep.mubr.bf16.mxu0 0
      %5037 = vmatmul.mubr.bf16.gmra.mrb[0].mxu0 %v4915
      %v5038 = vpop.f32.mrb[0].mxu0
      %v5039 = vadd.f32 %v4771, %v5038
      %v5040 = vpop.f32.mrb[0].mxu0
      %v5041 = vpop.f32.mrb[0].mxu0
      %v5042 = vadd.f32 %v4774, %v5041
      %v5043 = vpop.f32.mrb[0].mxu0
      %5044 = vmatprep.mubr.bf16.mxu0 0
      %5045 = vmatmul.mubr.bf16.gmra.mrb[0].mxu0 %v4918
      %v5046 = vpop.f32.mrb[0].mxu0
      %v5047 = vadd.f32 %v4779, %v5046
      %v5048 = vpop.f32.mrb[0].mxu0
      %v5049 = vpop.f32.mrb[0].mxu0
      %v5050 = vadd.f32 %v4782, %v5049
      %v5051 = vpop.f32.mrb[0].mxu0
      %5052 = vmatprep.mubr.bf16.mxu0 0
      %5053 = vmatmul.mubr.bf16.gmra.mrb[0].mxu0 %v4921
      %v5054 = vpop.f32.mrb[0].mxu0
      %v5055 = vadd.f32 %v4787, %v5054
      %v5056 = vpop.f32.mrb[0].mxu0
      %v5057 = vpop.f32.mrb[0].mxu0
      %v5058 = vadd.f32 %v4790, %v5057
      %v5059 = vpop.f32.mrb[0].mxu0
      %5060 = vmatprep.mubr.bf16.mxu0 0
      %5061 = vmatmul.mubr.bf16.gmra.mrb[0].mxu0 %v4924
      %v5062 = vpop.f32.mrb[0].mxu0
      %v5063 = vadd.f32 %v4795, %v5062
      %v5064 = vpop.f32.mrb[0].mxu0
      %v5065 = vpop.f32.mrb[0].mxu0
      %v5066 = vadd.f32 %v4798, %v5065
      %v5067 = vpop.f32.mrb[0].mxu0
      %5068 = vmatprep.mubr.bf16.mxu0 0
      %5069 = vmatmul.mubr.bf16.gmra.mrb[0].mxu0 %v4927
      %v5070 = vpop.f32.mrb[0].mxu0
      %v5071 = vadd.f32 %v4803, %v5070
      %v5072 = vpop.f32.mrb[0].mxu0
      %v5073 = vpop.f32.mrb[0].mxu0
      %v5074 = vadd.f32 %v4806, %v5073
      %v5075 = vpop.f32.mrb[0].mxu0
      %5076 = vmatprep.mubr.bf16.mxu0 0
      %5077 = vmatmul.mubr.bf16.gmra.mrb[0].mxu0 %v4930
      %v5078 = vpop.f32.mrb[0].mxu0
      %v5079 = vadd.f32 %v4811, %v5078
      %v5080 = vpop.f32.mrb[0].mxu0
      %v5081 = vpop.f32.mrb[0].mxu0
      %v5082 = vadd.f32 %v4814, %v5081
      %v5083 = vpop.f32.mrb[0].mxu0
      %5084 = vmatprep.mubr.bf16.mxu0 0
      %5085 = vmatmul.mubr.bf16.gmra.mrb[0].mxu0 %v4933
      %v5086 = vpop.f32.mrb[0].mxu0
      %v5087 = vadd.f32 %v4819, %v5086
      %v5088 = vpop.f32.mrb[0].mxu0
      %v5089 = vpop.f32.mrb[0].mxu0
      %v5090 = vadd.f32 %v4822, %v5089
      %v5091 = vpop.f32.mrb[0].mxu0
      %5092 = vmatprep.mubr.bf16.mxu0 0
      %5093 = vmatmul.mubr.bf16.gmra.mrb[0].mxu0 %v4936
      %v5094 = vpop.f32.mrb[0].mxu0
      %v5095 = vadd.f32 %v4827, %v5094
      %v5096 = vpop.f32.mrb[0].mxu0
      %v5097 = vpop.f32.mrb[0].mxu0
      %v5098 = vadd.f32 %v4830, %v5097
      %v5099 = vpop.f32.mrb[0].mxu0
      %5100 = vmatprep.mubr.bf16.mxu0 0
      %5101 = vmatmul.mubr.bf16.gmra.mrb[0].mxu0 %v4939
      %v5102 = vpop.f32.mrb[0].mxu0
      %v5103 = vadd.f32 %v4835, %v5102
      %v5104 = vpop.f32.mrb[0].mxu0
      %v5105 = vpop.f32.mrb[0].mxu0
      %v5106 = vadd.f32 %v4838, %v5105
      %v5107 = vpop.f32.mrb[0].mxu0
      %5108 = vmatprep.mubr.bf16.mxu0 0
      %5109 = vmatmul.mubr.bf16.gmra.mrb[0].mxu0 %v4942
      %v5110 = vpop.f32.mrb[0].mxu0
      %v5111 = vadd.f32 %v4843, %v5110
      %v5112 = vpop.f32.mrb[0].mxu0
      %v5113 = vpop.f32.mrb[0].mxu0
      %v5114 = vadd.f32 %v4846, %v5113
      %v5115 = vpop.f32.mrb[0].mxu0
      %5116 = vmatprep.mubr.bf16.mxu0 0
      %5117 = vmatmul.mubr.bf16.gmra.mrb[0].mxu0 %v4945
      %v5118 = vpop.f32.mrb[0].mxu0
      %v5119 = vadd.f32 %v4851, %v5118
      %v5120 = vpop.f32.mrb[0].mxu0
      %v5121 = vpop.f32.mrb[0].mxu0
      %v5122 = vadd.f32 %v4854, %v5121
      %v5123 = vpop.f32.mrb[0].mxu0
      %5124 = vmatprep.mubr.bf16.mxu0 0
      %5125 = vmatmul.mubr.bf16.gmra.mrb[0].mxu0 %v4948
      %v5126 = vpop.f32.mrb[0].mxu0
      %v5127 = vadd.f32 %v4859, %v5126
      %v5128 = vpop.f32.mrb[0].mxu0
      %v5129 = vpop.f32.mrb[0].mxu0
      %v5130 = vadd.f32 %v4862, %v5129
      %v5131 = vpop.f32.mrb[0].mxu0
      %5132 = vmatprep.mubr.bf16.mxu0 0
      %5133 = vmatmul.mubr.bf16.gmra.mrb[0].mxu0 %v4951
      %v5134 = vpop.f32.mrb[0].mxu0
      %v5135 = vadd.f32 %v4867, %v5134
      %v5136 = vpop.f32.mrb[0].mxu0
      %v5137 = vpop.f32.mrb[0].mxu0
      %v5138 = vadd.f32 %v4870, %v5137
      %v5139 = vpop.f32.mrb[0].mxu0
      %5140 = vmatprep.mubr.bf16.mxu0 0
      %5141 = vmatmul.mubr.bf16.gmra.mrb[0].mxu0 %v4954
      %v5142 = vpop.f32.mrb[0].mxu0
      %v5143 = vadd.f32 %v4875, %v5142
      %v5144 = vpop.f32.mrb[0].mxu0
      %v5145 = vpop.f32.mrb[0].mxu0
      %v5146 = vadd.f32 %v4878, %v5145
      %v5147 = vpop.f32.mrb[0].mxu0
      %5148 = vdwg.mxu0
      %v5149 = vld [vmem:[%s219] sm:$0xc]
      %v5150 = vld [vmem:[%s219 + $0xa0] sm:$0x3]
      %s5151 = scalar_lea.vmem %s1, 176
      %v5152 = vld [vmem:[%s5151] sm:$0xf]
      %v5153 = vld [vmem:[%s5151 + $0x4] sm:$0xf]
      %v5154 = vld [vmem:[%s5151 + $0x8] sm:$0xf]
      %v5155 = vld [vmem:[%s5151 + $0xc] sm:$0xf]
      %v5158 = vunpack.c.l.b16 %v5149
      %v5159 = vunpack.c.l.b16 %v5150
      %v5160 = vpack.c.b16 %v4514, %v5158
      %v5161 = vpack.c.b16 %v5159, %v5159
      %vm5162 = vcmask 1045504
      %v5163 = vrot.slane %v5160, 2
      %v5164 = vrot.slane %v4555, 2
      %v5165 = vsel %vm5162, %v5163, %v5164
      %v5166 = vrot.slane %v4556, 2
      %v5167 = vsel %vm5162, %v5164, %v5166
      %v5168 = vrot.slane %v4557, 2
      %v5169 = vsel %vm5162, %v5166, %v5168
      %v5170 = vrot.slane %v4558, 2
      %v5171 = vsel %vm5162, %v5168, %v5170
      %v5172 = vrot.slane %v4559, 2
      %v5173 = vsel %vm5162, %v5170, %v5172
      %v5174 = vrot.slane %v4560, 2
      %v5175 = vsel %vm5162, %v5172, %v5174
      %v5176 = vrot.slane %v4561, 2
      %v5177 = vsel %vm5162, %v5174, %v5176
      %v5178 = vrot.slane %v4562, 2
      %v5179 = vsel %vm5162, %v5176, %v5178
      %v5180 = vrot.slane %v4563, 2
      %v5181 = vsel %vm5162, %v5178, %v5180
      %v5182 = vrot.slane %v4564, 2
      %v5183 = vsel %vm5162, %v5180, %v5182
      %v5184 = vrot.slane %v4565, 2
      %v5185 = vsel %vm5162, %v5182, %v5184
      %v5186 = vrot.slane %v4566, 2
      %v5187 = vsel %vm5162, %v5184, %v5186
      %v5188 = vrot.slane %v4567, 2
      %v5189 = vsel %vm5162, %v5186, %v5188
      %v5190 = vrot.slane %v4568, 2
      %v5191 = vsel %vm5162, %v5188, %v5190
      %v5192 = vrot.slane %v4569, 2
      %v5193 = vsel %vm5162, %v5190, %v5192
      %v5194 = vrot.slane %v4570, 2
      %v5195 = vsel %vm5162, %v5192, %v5194
      %v5196 = vrot.slane %v4571, 2
      %v5197 = vsel %vm5162, %v5194, %v5196
      %v5198 = vrot.slane %v4572, 2
      %v5199 = vsel %vm5162, %v5196, %v5198
      %v5200 = vrot.slane %v4573, 2
      %v5201 = vsel %vm5162, %v5198, %v5200
      %v5202 = vrot.slane %v5161, 2
      %v5203 = vsel %vm5162, %v5200, %v5202
      %v5208 = vunpack.c.l.b16 %v5152
      %v5209 = vunpack.c.l.b16 %v5153
      %v5210 = vunpack.c.l.b16 %v5154
      %v5211 = vunpack.c.l.b16 %v5155
      %v5212 = vpack.c.b16 %v5209, %v5208
      %v5213 = vpack.c.b16 %v5211, %v5210
      %v5217 = vsel %vm434, %v5165, 0
      %v5220 = vsel %vm434, %v5167, 0
      %v5223 = vsel %vm434, %v5169, 0
      %v5226 = vsel %vm434, %v5171, 0
      %v5229 = vsel %vm434, %v5173, 0
      %v5232 = vsel %vm434, %v5175, 0
      %v5235 = vsel %vm434, %v5177, 0
      %v5238 = vsel %vm434, %v5179, 0
      %v5241 = vsel %vm434, %v5181, 0
      %v5244 = vsel %vm434, %v5183, 0
      %v5247 = vsel %vm434, %v5185, 0
      %v5250 = vsel %vm434, %v5187, 0
      %v5253 = vsel %vm434, %v5189, 0
      %v5256 = vsel %vm434, %v5191, 0
      %v5259 = vsel %vm434, %v5193, 0
      %v5262 = vsel %vm434, %v5195, 0
      %v5265 = vsel %vm434, %v5197, 0
      %v5268 = vsel %vm434, %v5199, 0
      %v5271 = vsel %vm434, %v5201, 0
      %v5274 = vsel %vm434, %v5203, 0
      %5276 = vmatprep.subr.bf16.mxu0 0
      %5277 = vmatpush1.bf16.msra.mxu0 %v5212
      %5278 = vmatprep.subr.bf16.mxu0 0
      %5279 = vmatpush1.bf16.msra.mxu0 %v5213
      %5280 = vmatprep.subr.bf16.mxu0 0
      %5281 = vmatpush1.bf16.msra.mxu0 0
      %5282 = vmatprep.subr.bf16.mxu0 0
      %5283 = vmatpush1.bf16.msra.mxu0 0
      %5284 = vmatprep.subr.bf16.mxu0 0
      %5285 = vmatpush1.bf16.msra.mxu0 0
      %5286 = vmatprep.subr.bf16.mxu0 0
      %5287 = vmatpush1.bf16.msra.mxu0 0
      %5288 = vmatprep.subr.bf16.mxu0 0
      %5289 = vmatpush1.bf16.msra.mxu0 0
      %5290 = vmatprep.subr.bf16.mxu0 0
      %5291 = vmatpush1.bf16.msra.mxu0 0
      %5292 = vmatprep.subr.bf16.mxu0 0
      %5293 = vmatpush1.bf16.msra.mxu0 0
      %5294 = vmatprep.subr.bf16.mxu0 0
      %5295 = vmatpush1.bf16.msra.mxu0 0
      %5296 = vmatprep.subr.bf16.mxu0 0
      %5297 = vmatpush1.bf16.msra.mxu0 0
      %5298 = vmatprep.subr.bf16.mxu0 0
      %5299 = vmatpush1.bf16.msra.mxu0 0
      %5300 = vmatprep.subr.bf16.mxu0 0
      %5301 = vmatpush1.bf16.msra.mxu0 0
      %5302 = vmatprep.subr.bf16.mxu0 0
      %5303 = vmatpush1.bf16.msra.mxu0 0
      %5304 = vmatprep.subr.bf16.mxu0 0
      %5305 = vmatpush1.bf16.msra.mxu0 0
      %5306 = vmatprep.subr.bf16.mxu0 0
      %5307 = vmatpush1.bf16.msra.mxu0 0
      %5308 = vmatprep.mubr.bf16.mxu0 0
      %5309 = vmatmul.mubr.bf16.gmra.mrb[0].mxu0 %v5217
      %v5310 = vpop.f32.mrb[0].mxu0
      %v5311 = vadd.f32 0.0, %v5310
      %v5312 = vpop.f32.mrb[0].mxu0
      %v5313 = vpop.f32.mrb[0].mxu0
      %v5314 = vadd.f32 0.0, %v5313
      %v5315 = vpop.f32.mrb[0].mxu0
      %5316 = vmatprep.mubr.bf16.mxu0 0
      %5317 = vmatmul.mubr.bf16.gmra.mrb[0].mxu0 %v5220
      %v5318 = vpop.f32.mrb[0].mxu0
      %v5319 = vadd.f32 0.0, %v5318
      %v5320 = vpop.f32.mrb[0].mxu0
      %v5321 = vpop.f32.mrb[0].mxu0
      %v5322 = vadd.f32 0.0, %v5321
      %v5323 = vpop.f32.mrb[0].mxu0
      %5324 = vmatprep.mubr.bf16.mxu0 0
      %5325 = vmatmul.mubr.bf16.gmra.mrb[0].mxu0 %v5223
      %v5326 = vpop.f32.mrb[0].mxu0
      %v5327 = vadd.f32 0.0, %v5326
      %v5328 = vpop.f32.mrb[0].mxu0
      %v5329 = vpop.f32.mrb[0].mxu0
      %v5330 = vadd.f32 0.0, %v5329
      %v5331 = vpop.f32.mrb[0].mxu0
      %5332 = vmatprep.mubr.bf16.mxu0 0
      %5333 = vmatmul.mubr.bf16.gmra.mrb[0].mxu0 %v5226
      %v5334 = vpop.f32.mrb[0].mxu0
      %v5335 = vadd.f32 0.0, %v5334
      %v5336 = vpop.f32.mrb[0].mxu0
      %v5337 = vpop.f32.mrb[0].mxu0
      %v5338 = vadd.f32 0.0, %v5337
      %v5339 = vpop.f32.mrb[0].mxu0
      %5340 = vmatprep.mubr.bf16.mxu0 0
      %5341 = vmatmul.mubr.bf16.gmra.mrb[0].mxu0 %v5229
      %v5342 = vpop.f32.mrb[0].mxu0
      %v5343 = vadd.f32 0.0, %v5342
      %v5344 = vpop.f32.mrb[0].mxu0
      %v5345 = vpop.f32.mrb[0].mxu0
      %v5346 = vadd.f32 0.0, %v5345
      %v5347 = vpop.f32.mrb[0].mxu0
      %5348 = vmatprep.mubr.bf16.mxu0 0
      %5349 = vmatmul.mubr.bf16.gmra.mrb[0].mxu0 %v5232
      %v5350 = vpop.f32.mrb[0].mxu0
      %v5351 = vadd.f32 0.0, %v5350
      %v5352 = vpop.f32.mrb[0].mxu0
      %v5353 = vpop.f32.mrb[0].mxu0
      %v5354 = vadd.f32 0.0, %v5353
      %v5355 = vpop.f32.mrb[0].mxu0
      %5356 = vmatprep.mubr.bf16.mxu0 0
      %5357 = vmatmul.mubr.bf16.gmra.mrb[0].mxu0 %v5235
      %v5358 = vpop.f32.mrb[0].mxu0
      %v5359 = vadd.f32 0.0, %v5358
      %v5360 = vpop.f32.mrb[0].mxu0
      %v5361 = vpop.f32.mrb[0].mxu0
      %v5362 = vadd.f32 0.0, %v5361
      %v5363 = vpop.f32.mrb[0].mxu0
      %5364 = vmatprep.mubr.bf16.mxu0 0
      %5365 = vmatmul.mubr.bf16.gmra.mrb[0].mxu0 %v5238
      %v5366 = vpop.f32.mrb[0].mxu0
      %v5367 = vadd.f32 0.0, %v5366
      %v5368 = vpop.f32.mrb[0].mxu0
      %v5369 = vpop.f32.mrb[0].mxu0
      %v5370 = vadd.f32 0.0, %v5369
      %v5371 = vpop.f32.mrb[0].mxu0
      %5372 = vmatprep.mubr.bf16.mxu0 0
      %5373 = vmatmul.mubr.bf16.gmra.mrb[0].mxu0 %v5241
      %v5374 = vpop.f32.mrb[0].mxu0
      %v5375 = vadd.f32 0.0, %v5374
      %v5376 = vpop.f32.mrb[0].mxu0
      %v5377 = vpop.f32.mrb[0].mxu0
      %v5378 = vadd.f32 0.0, %v5377
      %v5379 = vpop.f32.mrb[0].mxu0
      %5380 = vmatprep.mubr.bf16.mxu0 0
      %5381 = vmatmul.mubr.bf16.gmra.mrb[0].mxu0 %v5244
      %v5382 = vpop.f32.mrb[0].mxu0
      %v5383 = vadd.f32 0.0, %v5382
      %v5384 = vpop.f32.mrb[0].mxu0
      %v5385 = vpop.f32.mrb[0].mxu0
      %v5386 = vadd.f32 0.0, %v5385
      %v5387 = vpop.f32.mrb[0].mxu0
      %5388 = vmatprep.mubr.bf16.mxu0 0
      %5389 = vmatmul.mubr.bf16.gmra.mrb[0].mxu0 %v5247
      %v5390 = vpop.f32.mrb[0].mxu0
      %v5391 = vadd.f32 0.0, %v5390
      %v5392 = vpop.f32.mrb[0].mxu0
      %v5393 = vpop.f32.mrb[0].mxu0
      %v5394 = vadd.f32 0.0, %v5393
      %v5395 = vpop.f32.mrb[0].mxu0
      %5396 = vmatprep.mubr.bf16.mxu0 0
      %5397 = vmatmul.mubr.bf16.gmra.mrb[0].mxu0 %v5250
      %v5398 = vpop.f32.mrb[0].mxu0
      %v5399 = vadd.f32 0.0, %v5398
      %v5400 = vpop.f32.mrb[0].mxu0
      %v5401 = vpop.f32.mrb[0].mxu0
      %v5402 = vadd.f32 0.0, %v5401
      %v5403 = vpop.f32.mrb[0].mxu0
      %5404 = vmatprep.mubr.bf16.mxu0 0
      %5405 = vmatmul.mubr.bf16.gmra.mrb[0].mxu0 %v5253
      %v5406 = vpop.f32.mrb[0].mxu0
      %v5407 = vadd.f32 0.0, %v5406
      %v5408 = vpop.f32.mrb[0].mxu0
      %v5409 = vpop.f32.mrb[0].mxu0
      %v5410 = vadd.f32 0.0, %v5409
      %v5411 = vpop.f32.mrb[0].mxu0
      %5412 = vmatprep.mubr.bf16.mxu0 0
      %5413 = vmatmul.mubr.bf16.gmra.mrb[0].mxu0 %v5256
      %v5414 = vpop.f32.mrb[0].mxu0
      %v5415 = vadd.f32 0.0, %v5414
      %v5416 = vpop.f32.mrb[0].mxu0
      %v5417 = vpop.f32.mrb[0].mxu0
      %v5418 = vadd.f32 0.0, %v5417
      %v5419 = vpop.f32.mrb[0].mxu0
      %5420 = vmatprep.mubr.bf16.mxu0 0
      %5421 = vmatmul.mubr.bf16.gmra.mrb[0].mxu0 %v5259
      %v5422 = vpop.f32.mrb[0].mxu0
      %v5423 = vadd.f32 0.0, %v5422
      %v5424 = vpop.f32.mrb[0].mxu0
      %v5425 = vpop.f32.mrb[0].mxu0
      %v5426 = vadd.f32 0.0, %v5425
      %v5427 = vpop.f32.mrb[0].mxu0
      %5428 = vmatprep.mubr.bf16.mxu0 0
      %5429 = vmatmul.mubr.bf16.gmra.mrb[0].mxu0 %v5262
      %v5430 = vpop.f32.mrb[0].mxu0
      %v5431 = vadd.f32 0.0, %v5430
      %v5432 = vpop.f32.mrb[0].mxu0
      %v5433 = vpop.f32.mrb[0].mxu0
      %v5434 = vadd.f32 0.0, %v5433
      %v5435 = vpop.f32.mrb[0].mxu0
      %5436 = vmatprep.mubr.bf16.mxu0 0
      %5437 = vmatmul.mubr.bf16.gmra.mrb[0].mxu0 %v5265
      %v5438 = vpop.f32.mrb[0].mxu0
      %v5439 = vadd.f32 0.0, %v5438
      %v5440 = vpop.f32.mrb[0].mxu0
      %v5441 = vpop.f32.mrb[0].mxu0
      %v5442 = vadd.f32 0.0, %v5441
      %v5443 = vpop.f32.mrb[0].mxu0
      %5444 = vmatprep.mubr.bf16.mxu0 0
      %5445 = vmatmul.mubr.bf16.gmra.mrb[0].mxu0 %v5268
      %v5446 = vpop.f32.mrb[0].mxu0
      %v5447 = vadd.f32 0.0, %v5446
      %v5448 = vpop.f32.mrb[0].mxu0
      %v5449 = vpop.f32.mrb[0].mxu0
      %v5450 = vadd.f32 0.0, %v5449
      %v5451 = vpop.f32.mrb[0].mxu0
      %5452 = vmatprep.mubr.bf16.mxu0 0
      %5453 = vmatmul.mubr.bf16.gmra.mrb[0].mxu0 %v5271
      %v5454 = vpop.f32.mrb[0].mxu0
      %v5455 = vadd.f32 0.0, %v5454
      %v5456 = vpop.f32.mrb[0].mxu0
      %v5457 = vpop.f32.mrb[0].mxu0
      %v5458 = vadd.f32 0.0, %v5457
      %v5459 = vpop.f32.mrb[0].mxu0
      %5460 = vmatprep.mubr.bf16.mxu0 0
      %5461 = vmatmul.mubr.bf16.gmra.mrb[0].mxu0 %v5274
      %v5462 = vpop.f32.mrb[0].mxu0
      %v5463 = vadd.f32 0.0, %v5462
      %v5464 = vpop.f32.mrb[0].mxu0
      %v5465 = vpop.f32.mrb[0].mxu0
      %v5466 = vadd.f32 0.0, %v5465
      %v5467 = vpop.f32.mrb[0].mxu0
      %5468 = vdwg.mxu0
      %v5469 = vadd.f32 %v4991, %v5311
      %v5470 = vadd.f32 %v4994, %v5314
      %v5471 = vadd.f32 %v4999, %v5319
      %v5472 = vadd.f32 %v5002, %v5322
      %v5473 = vadd.f32 %v5007, %v5327
      %v5474 = vadd.f32 %v5010, %v5330
      %v5475 = vadd.f32 %v5015, %v5335
      %v5476 = vadd.f32 %v5018, %v5338
      %v5477 = vadd.f32 %v5023, %v5343
      %v5478 = vadd.f32 %v5026, %v5346
      %v5479 = vadd.f32 %v5031, %v5351
      %v5480 = vadd.f32 %v5034, %v5354
      %v5481 = vadd.f32 %v5039, %v5359
      %v5482 = vadd.f32 %v5042, %v5362
      %v5483 = vadd.f32 %v5047, %v5367
      %v5484 = vadd.f32 %v5050, %v5370
      %v5485 = vadd.f32 %v5055, %v5375
      %v5486 = vadd.f32 %v5058, %v5378
      %v5487 = vadd.f32 %v5063, %v5383
      %v5488 = vadd.f32 %v5066, %v5386
      %v5489 = vadd.f32 %v5071, %v5391
      %v5490 = vadd.f32 %v5074, %v5394
      %v5491 = vadd.f32 %v5079, %v5399
      %v5492 = vadd.f32 %v5082, %v5402
      %v5493 = vadd.f32 %v5087, %v5407
      %v5494 = vadd.f32 %v5090, %v5410
      %v5495 = vadd.f32 %v5095, %v5415
      %v5496 = vadd.f32 %v5098, %v5418
      %v5497 = vadd.f32 %v5103, %v5423
      %v5498 = vadd.f32 %v5106, %v5426
      %v5499 = vadd.f32 %v5111, %v5431
      %v5500 = vadd.f32 %v5114, %v5434
      %v5501 = vadd.f32 %v5119, %v5439
      %v5502 = vadd.f32 %v5122, %v5442
      %v5503 = vadd.f32 %v5127, %v5447
      %v5504 = vadd.f32 %v5130, %v5450
      %v5505 = vadd.f32 %v5135, %v5455
      %v5506 = vadd.f32 %v5138, %v5458
      %v5507 = vadd.f32 %v5143, %v5463
      %v5508 = vadd.f32 %v5146, %v5466
      %v5509 = vld [vmem:[%s219 + $0x14] sm:$0xf]
      %v5510 = vld [vmem:[%s219 + $0x18] sm:$0xf]
      %v5511 = vld [vmem:[%s219 + $0x1c] sm:$0xf]
      %v5512 = vld [vmem:[%s219 + $0x20] sm:$0xf]
      %v5513 = vld [vmem:[%s219 + $0x24] sm:$0xf]
      %v5514 = vld [vmem:[%s219 + $0x28] sm:$0xf]
      %v5515 = vld [vmem:[%s219 + $0x2c] sm:$0xf]
      %v5516 = vld [vmem:[%s219 + $0x30] sm:$0xf]
      %v5517 = vld [vmem:[%s219 + $0x34] sm:$0xf]
      %v5518 = vld [vmem:[%s219 + $0x38] sm:$0xf]
      %v5519 = vld [vmem:[%s219 + $0x3c] sm:$0xf]
      %v5520 = vld [vmem:[%s219 + $0x40] sm:$0xf]
      %v5521 = vld [vmem:[%s219 + $0x44] sm:$0xf]
      %v5522 = vld [vmem:[%s219 + $0x48] sm:$0xf]
      %v5523 = vld [vmem:[%s219 + $0x4c] sm:$0xf]
      %v5524 = vld [vmem:[%s219 + $0x50] sm:$0xf]
      %v5525 = vld [vmem:[%s219 + $0x54] sm:$0xf]
      %v5526 = vld [vmem:[%s219 + $0x58] sm:$0xf]
      %v5527 = vld [vmem:[%s219 + $0x5c] sm:$0xf]
      %v5528 = vld [vmem:[%s219 + $0x60] sm:$0xf]
      %v5529 = vld [vmem:[%s219 + $0x64] sm:$0xf]
      %v5530 = vld [vmem:[%s219 + $0x68] sm:$0xf]
      %v5531 = vld [vmem:[%s219 + $0x6c] sm:$0xf]
      %v5532 = vld [vmem:[%s219 + $0x70] sm:$0xf]
      %v5533 = vld [vmem:[%s219 + $0x74] sm:$0xf]
      %v5534 = vld [vmem:[%s219 + $0x78] sm:$0xf]
      %v5535 = vld [vmem:[%s219 + $0x7c] sm:$0xf]
      %v5536 = vld [vmem:[%s219 + $0x80] sm:$0xf]
      %v5537 = vld [vmem:[%s219 + $0x84] sm:$0xf]
      %v5538 = vld [vmem:[%s219 + $0x88] sm:$0xf]
      %v5539 = vld [vmem:[%s219 + $0x8c] sm:$0xf]
      %v5540 = vld [vmem:[%s219 + $0x90] sm:$0xf]
      %v5541 = vld [vmem:[%s219 + $0x94] sm:$0xf]
      %v5542 = vld [vmem:[%s219 + $0x98] sm:$0xf]
      %v5543 = vld [vmem:[%s219 + $0x9c] sm:$0xf]
      %v5544 = vld [vmem:[%s219 + $0xa0] sm:$0xf]
      %v5545 = vld [vmem:[%s219 + $0xa4] sm:$0xf]
      %v5546 = vld [vmem:[%s219 + $0xa8] sm:$0xf]
      %v5547 = vld [vmem:[%s219 + $0xac] sm:$0xf]
      %v5548 = vld [vmem:[%s219 + $0xb0] sm:$0xf]
      %s5549 = scalar_lea.vmem %s1, 192
      %v5550 = vld [vmem:[%s5549] sm:$0xf]
      %v5551 = vld [vmem:[%s5549 + $0x4] sm:$0xf]
      %v5552 = vld [vmem:[%s5549 + $0x8] sm:$0xf]
      %v5553 = vld [vmem:[%s5549 + $0xc] sm:$0xf]
      %v5594 = vunpack.c.l.b16 %v5509
      %v5595 = vunpack.c.l.b16 %v5510
      %v5596 = vunpack.c.l.b16 %v5511
      %v5597 = vunpack.c.l.b16 %v5512
      %v5598 = vunpack.c.l.b16 %v5513
      %v5599 = vunpack.c.l.b16 %v5514
      %v5600 = vunpack.c.l.b16 %v5515
      %v5601 = vunpack.c.l.b16 %v5516
      %v5602 = vunpack.c.l.b16 %v5517
      %v5603 = vunpack.c.l.b16 %v5518
      %v5604 = vunpack.c.l.b16 %v5519
      %v5605 = vunpack.c.l.b16 %v5520
      %v5606 = vunpack.c.l.b16 %v5521
      %v5607 = vunpack.c.l.b16 %v5522
      %v5608 = vunpack.c.l.b16 %v5523
      %v5609 = vunpack.c.l.b16 %v5524
      %v5610 = vunpack.c.l.b16 %v5525
      %v5611 = vunpack.c.l.b16 %v5526
      %v5612 = vunpack.c.l.b16 %v5527
      %v5613 = vunpack.c.l.b16 %v5528
      %v5614 = vunpack.c.l.b16 %v5529
      %v5615 = vunpack.c.l.b16 %v5530
      %v5616 = vunpack.c.l.b16 %v5531
      %v5617 = vunpack.c.l.b16 %v5532
      %v5618 = vunpack.c.l.b16 %v5533
      %v5619 = vunpack.c.l.b16 %v5534
      %v5620 = vunpack.c.l.b16 %v5535
      %v5621 = vunpack.c.l.b16 %v5536
      %v5622 = vunpack.c.l.b16 %v5537
      %v5623 = vunpack.c.l.b16 %v5538
      %v5624 = vunpack.c.l.b16 %v5539
      %v5625 = vunpack.c.l.b16 %v5540
      %v5626 = vunpack.c.l.b16 %v5541
      %v5627 = vunpack.c.l.b16 %v5542
      %v5628 = vunpack.c.l.b16 %v5543
      %v5629 = vunpack.c.l.b16 %v5544
      %v5630 = vunpack.c.l.b16 %v5545
      %v5631 = vunpack.c.l.b16 %v5546
      %v5632 = vunpack.c.l.b16 %v5547
      %v5633 = vunpack.c.l.b16 %v5548
      %v5634 = vpack.c.b16 %v5595, %v5594
      %v5635 = vpack.c.b16 %v5597, %v5596
      %v5636 = vpack.c.b16 %v5599, %v5598
      %v5637 = vpack.c.b16 %v5601, %v5600
      %v5638 = vpack.c.b16 %v5603, %v5602
      %v5639 = vpack.c.b16 %v5605, %v5604
      %v5640 = vpack.c.b16 %v5607, %v5606
      %v5641 = vpack.c.b16 %v5609, %v5608
      %v5642 = vpack.c.b16 %v5611, %v5610
      %v5643 = vpack.c.b16 %v5613, %v5612
      %v5644 = vpack.c.b16 %v5615, %v5614
      %v5645 = vpack.c.b16 %v5617, %v5616
      %v5646 = vpack.c.b16 %v5619, %v5618
      %v5647 = vpack.c.b16 %v5621, %v5620
      %v5648 = vpack.c.b16 %v5623, %v5622
      %v5649 = vpack.c.b16 %v5625, %v5624
      %v5650 = vpack.c.b16 %v5627, %v5626
      %v5651 = vpack.c.b16 %v5629, %v5628
      %v5652 = vpack.c.b16 %v5631, %v5630
      %v5653 = vpack.c.b16 %v5633, %v5632
      %v5658 = vunpack.c.l.b16 %v5550
      %v5659 = vunpack.c.l.b16 %v5551
      %v5660 = vunpack.c.l.b16 %v5552
      %v5661 = vunpack.c.l.b16 %v5553
      %v5662 = vpack.c.b16 %v5659, %v5658
      %v5663 = vpack.c.b16 %v5661, %v5660
      %v5667 = vsel %vm434, %v5634, 0
      %v5670 = vsel %vm434, %v5635, 0
      %v5673 = vsel %vm434, %v5636, 0
      %v5676 = vsel %vm434, %v5637, 0
      %v5679 = vsel %vm434, %v5638, 0
      %v5682 = vsel %vm434, %v5639, 0
      %v5685 = vsel %vm434, %v5640, 0
      %v5688 = vsel %vm434, %v5641, 0
      %v5691 = vsel %vm434, %v5642, 0
      %v5694 = vsel %vm434, %v5643, 0
      %v5697 = vsel %vm434, %v5644, 0
      %v5700 = vsel %vm434, %v5645, 0
      %v5703 = vsel %vm434, %v5646, 0
      %v5706 = vsel %vm434, %v5647, 0
      %v5709 = vsel %vm434, %v5648, 0
      %v5712 = vsel %vm434, %v5649, 0
      %v5715 = vsel %vm434, %v5650, 0
      %v5718 = vsel %vm434, %v5651, 0
      %v5721 = vsel %vm434, %v5652, 0
      %v5724 = vsel %vm434, %v5653, 0
      %5726 = vmatprep.subr.bf16.mxu0 0
      %5727 = vmatpush1.bf16.msra.mxu0 %v5662
      %5728 = vmatprep.subr.bf16.mxu0 0
      %5729 = vmatpush1.bf16.msra.mxu0 %v5663
      %5730 = vmatprep.subr.bf16.mxu0 0
      %5731 = vmatpush1.bf16.msra.mxu0 0
      %5732 = vmatprep.subr.bf16.mxu0 0
      %5733 = vmatpush1.bf16.msra.mxu0 0
      %5734 = vmatprep.subr.bf16.mxu0 0
      %5735 = vmatpush1.bf16.msra.mxu0 0
      %5736 = vmatprep.subr.bf16.mxu0 0
      %5737 = vmatpush1.bf16.msra.mxu0 0
      %5738 = vmatprep.subr.bf16.mxu0 0
      %5739 = vmatpush1.bf16.msra.mxu0 0
      %5740 = vmatprep.subr.bf16.mxu0 0
      %5741 = vmatpush1.bf16.msra.mxu0 0
      %5742 = vmatprep.subr.bf16.mxu0 0
      %5743 = vmatpush1.bf16.msra.mxu0 0
      %5744 = vmatprep.subr.bf16.mxu0 0
      %5745 = vmatpush1.bf16.msra.mxu0 0
      %5746 = vmatprep.subr.bf16.mxu0 0
      %5747 = vmatpush1.bf16.msra.mxu0 0
      %5748 = vmatprep.subr.bf16.mxu0 0
      %5749 = vmatpush1.bf16.msra.mxu0 0
      %5750 = vmatprep.subr.bf16.mxu0 0
      %5751 = vmatpush1.bf16.msra.mxu0 0
      %5752 = vmatprep.subr.bf16.mxu0 0
      %5753 = vmatpush1.bf16.msra.mxu0 0
      %5754 = vmatprep.subr.bf16.mxu0 0
      %5755 = vmatpush1.bf16.msra.mxu0 0
      %5756 = vmatprep.subr.bf16.mxu0 0
      %5757 = vmatpush1.bf16.msra.mxu0 0
      %5758 = vmatprep.mubr.bf16.mxu0 0
      %5759 = vmatmul.mubr.bf16.gmra.mrb[0].mxu0 %v5667
      %v5760 = vpop.f32.mrb[0].mxu0
      %v5761 = vadd.f32 0.0, %v5760
      %v5762 = vpop.f32.mrb[0].mxu0
      %v5763 = vpop.f32.mrb[0].mxu0
      %v5764 = vadd.f32 0.0, %v5763
      %v5765 = vpop.f32.mrb[0].mxu0
      %5766 = vmatprep.mubr.bf16.mxu0 0
      %5767 = vmatmul.mubr.bf16.gmra.mrb[0].mxu0 %v5670
      %v5768 = vpop.f32.mrb[0].mxu0
      %v5769 = vadd.f32 0.0, %v5768
      %v5770 = vpop.f32.mrb[0].mxu0
      %v5771 = vpop.f32.mrb[0].mxu0
      %v5772 = vadd.f32 0.0, %v5771
      %v5773 = vpop.f32.mrb[0].mxu0
      %5774 = vmatprep.mubr.bf16.mxu0 0
      %5775 = vmatmul.mubr.bf16.gmra.mrb[0].mxu0 %v5673
      %v5776 = vpop.f32.mrb[0].mxu0
      %v5777 = vadd.f32 0.0, %v5776
      %v5778 = vpop.f32.mrb[0].mxu0
      %v5779 = vpop.f32.mrb[0].mxu0
      %v5780 = vadd.f32 0.0, %v5779
      %v5781 = vpop.f32.mrb[0].mxu0
      %5782 = vmatprep.mubr.bf16.mxu0 0
      %5783 = vmatmul.mubr.bf16.gmra.mrb[0].mxu0 %v5676
      %v5784 = vpop.f32.mrb[0].mxu0
      %v5785 = vadd.f32 0.0, %v5784
      %v5786 = vpop.f32.mrb[0].mxu0
      %v5787 = vpop.f32.mrb[0].mxu0
      %v5788 = vadd.f32 0.0, %v5787
      %v5789 = vpop.f32.mrb[0].mxu0
      %5790 = vmatprep.mubr.bf16.mxu0 0
      %5791 = vmatmul.mubr.bf16.gmra.mrb[0].mxu0 %v5679
      %v5792 = vpop.f32.mrb[0].mxu0
      %v5793 = vadd.f32 0.0, %v5792
      %v5794 = vpop.f32.mrb[0].mxu0
      %v5795 = vpop.f32.mrb[0].mxu0
      %v5796 = vadd.f32 0.0, %v5795
      %v5797 = vpop.f32.mrb[0].mxu0
      %5798 = vmatprep.mubr.bf16.mxu0 0
      %5799 = vmatmul.mubr.bf16.gmra.mrb[0].mxu0 %v5682
      %v5800 = vpop.f32.mrb[0].mxu0
      %v5801 = vadd.f32 0.0, %v5800
      %v5802 = vpop.f32.mrb[0].mxu0
      %v5803 = vpop.f32.mrb[0].mxu0
      %v5804 = vadd.f32 0.0, %v5803
      %v5805 = vpop.f32.mrb[0].mxu0
      %5806 = vmatprep.mubr.bf16.mxu0 0
      %5807 = vmatmul.mubr.bf16.gmra.mrb[0].mxu0 %v5685
      %v5808 = vpop.f32.mrb[0].mxu0
      %v5809 = vadd.f32 0.0, %v5808
      %v5810 = vpop.f32.mrb[0].mxu0
      %v5811 = vpop.f32.mrb[0].mxu0
      %v5812 = vadd.f32 0.0, %v5811
      %v5813 = vpop.f32.mrb[0].mxu0
      %5814 = vmatprep.mubr.bf16.mxu0 0
      %5815 = vmatmul.mubr.bf16.gmra.mrb[0].mxu0 %v5688
      %v5816 = vpop.f32.mrb[0].mxu0
      %v5817 = vadd.f32 0.0, %v5816
      %v5818 = vpop.f32.mrb[0].mxu0
      %v5819 = vpop.f32.mrb[0].mxu0
      %v5820 = vadd.f32 0.0, %v5819
      %v5821 = vpop.f32.mrb[0].mxu0
      %5822 = vmatprep.mubr.bf16.mxu0 0
      %5823 = vmatmul.mubr.bf16.gmra.mrb[0].mxu0 %v5691
      %v5824 = vpop.f32.mrb[0].mxu0
      %v5825 = vadd.f32 0.0, %v5824
      %v5826 = vpop.f32.mrb[0].mxu0
      %v5827 = vpop.f32.mrb[0].mxu0
      %v5828 = vadd.f32 0.0, %v5827
      %v5829 = vpop.f32.mrb[0].mxu0
      %5830 = vmatprep.mubr.bf16.mxu0 0
      %5831 = vmatmul.mubr.bf16.gmra.mrb[0].mxu0 %v5694
      %v5832 = vpop.f32.mrb[0].mxu0
      %v5833 = vadd.f32 0.0, %v5832
      %v5834 = vpop.f32.mrb[0].mxu0
      %v5835 = vpop.f32.mrb[0].mxu0
      %v5836 = vadd.f32 0.0, %v5835
      %v5837 = vpop.f32.mrb[0].mxu0
      %5838 = vmatprep.mubr.bf16.mxu0 0
      %5839 = vmatmul.mubr.bf16.gmra.mrb[0].mxu0 %v5697
      %v5840 = vpop.f32.mrb[0].mxu0
      %v5841 = vadd.f32 0.0, %v5840
      %v5842 = vpop.f32.mrb[0].mxu0
      %v5843 = vpop.f32.mrb[0].mxu0
      %v5844 = vadd.f32 0.0, %v5843
      %v5845 = vpop.f32.mrb[0].mxu0
      %5846 = vmatprep.mubr.bf16.mxu0 0
      %5847 = vmatmul.mubr.bf16.gmra.mrb[0].mxu0 %v5700
      %v5848 = vpop.f32.mrb[0].mxu0
      %v5849 = vadd.f32 0.0, %v5848
      %v5850 = vpop.f32.mrb[0].mxu0
      %v5851 = vpop.f32.mrb[0].mxu0
      %v5852 = vadd.f32 0.0, %v5851
      %v5853 = vpop.f32.mrb[0].mxu0
      %5854 = vmatprep.mubr.bf16.mxu0 0
      %5855 = vmatmul.mubr.bf16.gmra.mrb[0].mxu0 %v5703
      %v5856 = vpop.f32.mrb[0].mxu0
      %v5857 = vadd.f32 0.0, %v5856
      %v5858 = vpop.f32.mrb[0].mxu0
      %v5859 = vpop.f32.mrb[0].mxu0
      %v5860 = vadd.f32 0.0, %v5859
      %v5861 = vpop.f32.mrb[0].mxu0
      %5862 = vmatprep.mubr.bf16.mxu0 0
      %5863 = vmatmul.mubr.bf16.gmra.mrb[0].mxu0 %v5706
      %v5864 = vpop.f32.mrb[0].mxu0
      %v5865 = vadd.f32 0.0, %v5864
      %v5866 = vpop.f32.mrb[0].mxu0
      %v5867 = vpop.f32.mrb[0].mxu0
      %v5868 = vadd.f32 0.0, %v5867
      %v5869 = vpop.f32.mrb[0].mxu0
      %5870 = vmatprep.mubr.bf16.mxu0 0
      %5871 = vmatmul.mubr.bf16.gmra.mrb[0].mxu0 %v5709
      %v5872 = vpop.f32.mrb[0].mxu0
      %v5873 = vadd.f32 0.0, %v5872
      %v5874 = vpop.f32.mrb[0].mxu0
      %v5875 = vpop.f32.mrb[0].mxu0
      %v5876 = vadd.f32 0.0, %v5875
      %v5877 = vpop.f32.mrb[0].mxu0
      %5878 = vmatprep.mubr.bf16.mxu0 0
      %5879 = vmatmul.mubr.bf16.gmra.mrb[0].mxu0 %v5712
      %v5880 = vpop.f32.mrb[0].mxu0
      %v5881 = vadd.f32 0.0, %v5880
      %v5882 = vpop.f32.mrb[0].mxu0
      %v5883 = vpop.f32.mrb[0].mxu0
      %v5884 = vadd.f32 0.0, %v5883
      %v5885 = vpop.f32.mrb[0].mxu0
      %5886 = vmatprep.mubr.bf16.mxu0 0
      %5887 = vmatmul.mubr.bf16.gmra.mrb[0].mxu0 %v5715
      %v5888 = vpop.f32.mrb[0].mxu0
      %v5889 = vadd.f32 0.0, %v5888
      %v5890 = vpop.f32.mrb[0].mxu0
      %v5891 = vpop.f32.mrb[0].mxu0
      %v5892 = vadd.f32 0.0, %v5891
      %v5893 = vpop.f32.mrb[0].mxu0
      %5894 = vmatprep.mubr.bf16.mxu0 0
      %5895 = vmatmul.mubr.bf16.gmra.mrb[0].mxu0 %v5718
      %v5896 = vpop.f32.mrb[0].mxu0
      %v5897 = vadd.f32 0.0, %v5896
      %v5898 = vpop.f32.mrb[0].mxu0
      %v5899 = vpop.f32.mrb[0].mxu0
      %v5900 = vadd.f32 0.0, %v5899
      %v5901 = vpop.f32.mrb[0].mxu0
      %5902 = vmatprep.mubr.bf16.mxu0 0
      %5903 = vmatmul.mubr.bf16.gmra.mrb[0].mxu0 %v5721
      %v5904 = vpop.f32.mrb[0].mxu0
      %v5905 = vadd.f32 0.0, %v5904
      %v5906 = vpop.f32.mrb[0].mxu0
      %v5907 = vpop.f32.mrb[0].mxu0
      %v5908 = vadd.f32 0.0, %v5907
      %v5909 = vpop.f32.mrb[0].mxu0
      %5910 = vmatprep.mubr.bf16.mxu0 0
      %5911 = vmatmul.mubr.bf16.gmra.mrb[0].mxu0 %v5724
      %v5912 = vpop.f32.mrb[0].mxu0
      %v5913 = vadd.f32 0.0, %v5912
      %v5914 = vpop.f32.mrb[0].mxu0
      %v5915 = vpop.f32.mrb[0].mxu0
      %v5916 = vadd.f32 0.0, %v5915
      %v5917 = vpop.f32.mrb[0].mxu0
      %5918 = vdwg.mxu0
      %v5919 = vadd.f32 %v5469, %v5761
      %v5920 = vadd.f32 %v5470, %v5764
      %v5921 = vadd.f32 %v5471, %v5769
      %v5922 = vadd.f32 %v5472, %v5772
      %v5923 = vadd.f32 %v5473, %v5777
      %v5924 = vadd.f32 %v5474, %v5780
      %v5925 = vadd.f32 %v5475, %v5785
      %v5926 = vadd.f32 %v5476, %v5788
      %v5927 = vadd.f32 %v5477, %v5793
      %v5928 = vadd.f32 %v5478, %v5796
      %v5929 = vadd.f32 %v5479, %v5801
      %v5930 = vadd.f32 %v5480, %v5804
      %v5931 = vadd.f32 %v5481, %v5809
      %v5932 = vadd.f32 %v5482, %v5812
      %v5933 = vadd.f32 %v5483, %v5817
      %v5934 = vadd.f32 %v5484, %v5820
      %v5935 = vadd.f32 %v5485, %v5825
      %v5936 = vadd.f32 %v5486, %v5828
      %v5937 = vadd.f32 %v5487, %v5833
      %v5938 = vadd.f32 %v5488, %v5836
      %v5939 = vadd.f32 %v5489, %v5841
      %v5940 = vadd.f32 %v5490, %v5844
      %v5941 = vadd.f32 %v5491, %v5849
      %v5942 = vadd.f32 %v5492, %v5852
      %v5943 = vadd.f32 %v5493, %v5857
      %v5944 = vadd.f32 %v5494, %v5860
      %v5945 = vadd.f32 %v5495, %v5865
      %v5946 = vadd.f32 %v5496, %v5868
      %v5947 = vadd.f32 %v5497, %v5873
      %v5948 = vadd.f32 %v5498, %v5876
      %v5949 = vadd.f32 %v5499, %v5881
      %v5950 = vadd.f32 %v5500, %v5884
      %v5951 = vadd.f32 %v5501, %v5889
      %v5952 = vadd.f32 %v5502, %v5892
      %v5953 = vadd.f32 %v5503, %v5897
      %v5954 = vadd.f32 %v5504, %v5900
      %v5955 = vadd.f32 %v5505, %v5905
      %v5956 = vadd.f32 %v5506, %v5908
      %v5957 = vadd.f32 %v5507, %v5913
      %v5958 = vadd.f32 %v5508, %v5916
      %v5959 = vld [vmem:[%s219 + $0x14] sm:$0xe]
      %v5960 = vld [vmem:[%s219 + $0x18] sm:$0xf]
      %v5961 = vld [vmem:[%s219 + $0x1c] sm:$0xf]
      %v5962 = vld [vmem:[%s219 + $0x20] sm:$0xf]
      %v5963 = vld [vmem:[%s219 + $0x24] sm:$0xf]
      %v5964 = vld [vmem:[%s219 + $0x28] sm:$0xf]
      %v5965 = vld [vmem:[%s219 + $0x2c] sm:$0xf]
      %v5966 = vld [vmem:[%s219 + $0x30] sm:$0xf]
      %v5967 = vld [vmem:[%s219 + $0x34] sm:$0xf]
      %v5968 = vld [vmem:[%s219 + $0x38] sm:$0xf]
      %v5969 = vld [vmem:[%s219 + $0x3c] sm:$0xf]
      %v5970 = vld [vmem:[%s219 + $0x40] sm:$0xf]
      %v5971 = vld [vmem:[%s219 + $0x44] sm:$0xf]
      %v5972 = vld [vmem:[%s219 + $0x48] sm:$0xf]
      %v5973 = vld [vmem:[%s219 + $0x4c] sm:$0xf]
      %v5974 = vld [vmem:[%s219 + $0x50] sm:$0xf]
      %v5975 = vld [vmem:[%s219 + $0x54] sm:$0xf]
      %v5976 = vld [vmem:[%s219 + $0x58] sm:$0xf]
      %v5977 = vld [vmem:[%s219 + $0x5c] sm:$0xf]
      %v5978 = vld [vmem:[%s219 + $0x60] sm:$0xf]
      %v5979 = vld [vmem:[%s219 + $0x64] sm:$0xf]
      %v5980 = vld [vmem:[%s219 + $0x68] sm:$0xf]
      %v5981 = vld [vmem:[%s219 + $0x6c] sm:$0xf]
      %v5982 = vld [vmem:[%s219 + $0x70] sm:$0xf]
      %v5983 = vld [vmem:[%s219 + $0x74] sm:$0xf]
      %v5984 = vld [vmem:[%s219 + $0x78] sm:$0xf]
      %v5985 = vld [vmem:[%s219 + $0x7c] sm:$0xf]
      %v5986 = vld [vmem:[%s219 + $0x80] sm:$0xf]
      %v5987 = vld [vmem:[%s219 + $0x84] sm:$0xf]
      %v5988 = vld [vmem:[%s219 + $0x88] sm:$0xf]
      %v5989 = vld [vmem:[%s219 + $0x8c] sm:$0xf]
      %v5990 = vld [vmem:[%s219 + $0x90] sm:$0xf]
      %v5991 = vld [vmem:[%s219 + $0x94] sm:$0xf]
      %v5992 = vld [vmem:[%s219 + $0x98] sm:$0xf]
      %v5993 = vld [vmem:[%s219 + $0x9c] sm:$0xf]
      %v5994 = vld [vmem:[%s219 + $0xa0] sm:$0xf]
      %v5995 = vld [vmem:[%s219 + $0xa4] sm:$0xf]
      %v5996 = vld [vmem:[%s219 + $0xa8] sm:$0xf]
      %v5997 = vld [vmem:[%s219 + $0xac] sm:$0xf]
      %v5998 = vld [vmem:[%s219 + $0xb0] sm:$0xf]
      %v5999 = vld [vmem:[%s219 + $0xb4] sm:$0x1]
      %s6000 = scalar_lea.vmem %s1, 208
      %v6001 = vld [vmem:[%s6000] sm:$0xf]
      %v6002 = vld [vmem:[%s6000 + $0x4] sm:$0xf]
      %v6003 = vld [vmem:[%s6000 + $0x8] sm:$0xf]
      %v6004 = vld [vmem:[%s6000 + $0xc] sm:$0xf]
      %v6046 = vunpack.c.l.b16 %v5959
      %v6047 = vunpack.c.l.b16 %v5960
      %v6048 = vunpack.c.l.b16 %v5961
      %v6049 = vunpack.c.l.b16 %v5962
      %v6050 = vunpack.c.l.b16 %v5963
      %v6051 = vunpack.c.l.b16 %v5964
      %v6052 = vunpack.c.l.b16 %v5965
      %v6053 = vunpack.c.l.b16 %v5966
      %v6054 = vunpack.c.l.b16 %v5967
      %v6055 = vunpack.c.l.b16 %v5968
      %v6056 = vunpack.c.l.b16 %v5969
      %v6057 = vunpack.c.l.b16 %v5970
      %v6058 = vunpack.c.l.b16 %v5971
      %v6059 = vunpack.c.l.b16 %v5972
      %v6060 = vunpack.c.l.b16 %v5973
      %v6061 = vunpack.c.l.b16 %v5974
      %v6062 = vunpack.c.l.b16 %v5975
      %v6063 = vunpack.c.l.b16 %v5976
      %v6064 = vunpack.c.l.b16 %v5977
      %v6065 = vunpack.c.l.b16 %v5978
      %v6066 = vunpack.c.l.b16 %v5979
      %v6067 = vunpack.c.l.b16 %v5980
      %v6068 = vunpack.c.l.b16 %v5981
      %v6069 = vunpack.c.l.b16 %v5982
      %v6070 = vunpack.c.l.b16 %v5983
      %v6071 = vunpack.c.l.b16 %v5984
      %v6072 = vunpack.c.l.b16 %v5985
      %v6073 = vunpack.c.l.b16 %v5986
      %v6074 = vunpack.c.l.b16 %v5987
      %v6075 = vunpack.c.l.b16 %v5988
      %v6076 = vunpack.c.l.b16 %v5989
      %v6077 = vunpack.c.l.b16 %v5990
      %v6078 = vunpack.c.l.b16 %v5991
      %v6079 = vunpack.c.l.b16 %v5992
      %v6080 = vunpack.c.l.b16 %v5993
      %v6081 = vunpack.c.l.b16 %v5994
      %v6082 = vunpack.c.l.b16 %v5995
      %v6083 = vunpack.c.l.b16 %v5996
      %v6084 = vunpack.c.l.b16 %v5997
      %v6085 = vunpack.c.l.b16 %v5998
      %v6086 = vunpack.c.l.b16 %v5999
      %v6087 = vpack.c.b16 %v6047, %v6046
      %v6088 = vpack.c.b16 %v6049, %v6048
      %v6089 = vpack.c.b16 %v6051, %v6050
      %v6090 = vpack.c.b16 %v6053, %v6052
      %v6091 = vpack.c.b16 %v6055, %v6054
      %v6092 = vpack.c.b16 %v6057, %v6056
      %v6093 = vpack.c.b16 %v6059, %v6058
      %v6094 = vpack.c.b16 %v6061, %v6060
      %v6095 = vpack.c.b16 %v6063, %v6062
      %v6096 = vpack.c.b16 %v6065, %v6064
      %v6097 = vpack.c.b16 %v6067, %v6066
      %v6098 = vpack.c.b16 %v6069, %v6068
      %v6099 = vpack.c.b16 %v6071, %v6070
      %v6100 = vpack.c.b16 %v6073, %v6072
      %v6101 = vpack.c.b16 %v6075, %v6074
      %v6102 = vpack.c.b16 %v6077, %v6076
      %v6103 = vpack.c.b16 %v6079, %v6078
      %v6104 = vpack.c.b16 %v6081, %v6080
      %v6105 = vpack.c.b16 %v6083, %v6082
      %v6106 = vpack.c.b16 %v6085, %v6084
      %v6107 = vpack.c.b16 %v6086, %v6086
      %v6108 = vrot.slane %v6087, 1
      %v6109 = vrot.slane %v6088, 1
      %v6110 = vsel %vm2181, %v6108, %v6109
      %v6111 = vrot.slane %v6089, 1
      %v6112 = vsel %vm2181, %v6109, %v6111
      %v6113 = vrot.slane %v6090, 1
      %v6114 = vsel %vm2181, %v6111, %v6113
      %v6115 = vrot.slane %v6091, 1
      %v6116 = vsel %vm2181, %v6113, %v6115
      %v6117 = vrot.slane %v6092, 1
      %v6118 = vsel %vm2181, %v6115, %v6117
      %v6119 = vrot.slane %v6093, 1
      %v6120 = vsel %vm2181, %v6117, %v6119
      %v6121 = vrot.slane %v6094, 1
      %v6122 = vsel %vm2181, %v6119, %v6121
      %v6123 = vrot.slane %v6095, 1
      %v6124 = vsel %vm2181, %v6121, %v6123
      %v6125 = vrot.slane %v6096, 1
      %v6126 = vsel %vm2181, %v6123, %v6125
      %v6127 = vrot.slane %v6097, 1
      %v6128 = vsel %vm2181, %v6125, %v6127
      %v6129 = vrot.slane %v6098, 1
      %v6130 = vsel %vm2181, %v6127, %v6129
      %v6131 = vrot.slane %v6099, 1
      %v6132 = vsel %vm2181, %v6129, %v6131
      %v6133 = vrot.slane %v6100, 1
      %v6134 = vsel %vm2181, %v6131, %v6133
      %v6135 = vrot.slane %v6101, 1
      %v6136 = vsel %vm2181, %v6133, %v6135
      %v6137 = vrot.slane %v6102, 1
      %v6138 = vsel %vm2181, %v6135, %v6137
      %v6139 = vrot.slane %v6103, 1
      %v6140 = vsel %vm2181, %v6137, %v6139
      %v6141 = vrot.slane %v6104, 1
      %v6142 = vsel %vm2181, %v6139, %v6141
      %v6143 = vrot.slane %v6105, 1
      %v6144 = vsel %vm2181, %v6141, %v6143
      %v6145 = vrot.slane %v6106, 1
      %v6146 = vsel %vm2181, %v6143, %v6145
      %v6147 = vrot.slane %v6107, 1
      %v6148 = vsel %vm2181, %v6145, %v6147
      %v6153 = vunpack.c.l.b16 %v6001
      %v6154 = vunpack.c.l.b16 %v6002
      %v6155 = vunpack.c.l.b16 %v6003
      %v6156 = vunpack.c.l.b16 %v6004
      %v6157 = vpack.c.b16 %v6154, %v6153
      %v6158 = vpack.c.b16 %v6156, %v6155
      %v6162 = vsel %vm434, %v6110, 0
      %v6165 = vsel %vm434, %v6112, 0
      %v6168 = vsel %vm434, %v6114, 0
      %v6171 = vsel %vm434, %v6116, 0
      %v6174 = vsel %vm434, %v6118, 0
      %v6177 = vsel %vm434, %v6120, 0
      %v6180 = vsel %vm434, %v6122, 0
      %v6183 = vsel %vm434, %v6124, 0
      %v6186 = vsel %vm434, %v6126, 0
      %v6189 = vsel %vm434, %v6128, 0
      %v6192 = vsel %vm434, %v6130, 0
      %v6195 = vsel %vm434, %v6132, 0
      %v6198 = vsel %vm434, %v6134, 0
      %v6201 = vsel %vm434, %v6136, 0
      %v6204 = vsel %vm434, %v6138, 0
      %v6207 = vsel %vm434, %v6140, 0
      %v6210 = vsel %vm434, %v6142, 0
      %v6213 = vsel %vm434, %v6144, 0
      %v6216 = vsel %vm434, %v6146, 0
      %v6219 = vsel %vm434, %v6148, 0
      %6221 = vmatprep.subr.bf16.mxu0 0
      %6222 = vmatpush1.bf16.msra.mxu0 %v6157
      %6223 = vmatprep.subr.bf16.mxu0 0
      %6224 = vmatpush1.bf16.msra.mxu0 %v6158
      %6225 = vmatprep.subr.bf16.mxu0 0
      %6226 = vmatpush1.bf16.msra.mxu0 0
      %6227 = vmatprep.subr.bf16.mxu0 0
      %6228 = vmatpush1.bf16.msra.mxu0 0
      %6229 = vmatprep.subr.bf16.mxu0 0
      %6230 = vmatpush1.bf16.msra.mxu0 0
      %6231 = vmatprep.subr.bf16.mxu0 0
      %6232 = vmatpush1.bf16.msra.mxu0 0
      %6233 = vmatprep.subr.bf16.mxu0 0
      %6234 = vmatpush1.bf16.msra.mxu0 0
      %6235 = vmatprep.subr.bf16.mxu0 0
      %6236 = vmatpush1.bf16.msra.mxu0 0
      %6237 = vmatprep.subr.bf16.mxu0 0
      %6238 = vmatpush1.bf16.msra.mxu0 0
      %6239 = vmatprep.subr.bf16.mxu0 0
      %6240 = vmatpush1.bf16.msra.mxu0 0
      %6241 = vmatprep.subr.bf16.mxu0 0
      %6242 = vmatpush1.bf16.msra.mxu0 0
      %6243 = vmatprep.subr.bf16.mxu0 0
      %6244 = vmatpush1.bf16.msra.mxu0 0
      %6245 = vmatprep.subr.bf16.mxu0 0
      %6246 = vmatpush1.bf16.msra.mxu0 0
      %6247 = vmatprep.subr.bf16.mxu0 0
      %6248 = vmatpush1.bf16.msra.mxu0 0
      %6249 = vmatprep.subr.bf16.mxu0 0
      %6250 = vmatpush1.bf16.msra.mxu0 0
      %6251 = vmatprep.subr.bf16.mxu0 0
      %6252 = vmatpush1.bf16.msra.mxu0 0
      %6253 = vmatprep.mubr.bf16.mxu0 0
      %6254 = vmatmul.mubr.bf16.gmra.mrb[0].mxu0 %v6162
      %v6255 = vpop.f32.mrb[0].mxu0
      %v6256 = vadd.f32 0.0, %v6255
      %v6257 = vpop.f32.mrb[0].mxu0
      %v6258 = vpop.f32.mrb[0].mxu0
      %v6259 = vadd.f32 0.0, %v6258
      %v6260 = vpop.f32.mrb[0].mxu0
      %6261 = vmatprep.mubr.bf16.mxu0 0
      %6262 = vmatmul.mubr.bf16.gmra.mrb[0].mxu0 %v6165
      %v6263 = vpop.f32.mrb[0].mxu0
      %v6264 = vadd.f32 0.0, %v6263
      %v6265 = vpop.f32.mrb[0].mxu0
      %v6266 = vpop.f32.mrb[0].mxu0
      %v6267 = vadd.f32 0.0, %v6266
      %v6268 = vpop.f32.mrb[0].mxu0
      %6269 = vmatprep.mubr.bf16.mxu0 0
      %6270 = vmatmul.mubr.bf16.gmra.mrb[0].mxu0 %v6168
      %v6271 = vpop.f32.mrb[0].mxu0
      %v6272 = vadd.f32 0.0, %v6271
      %v6273 = vpop.f32.mrb[0].mxu0
      %v6274 = vpop.f32.mrb[0].mxu0
      %v6275 = vadd.f32 0.0, %v6274
      %v6276 = vpop.f32.mrb[0].mxu0
      %6277 = vmatprep.mubr.bf16.mxu0 0
      %6278 = vmatmul.mubr.bf16.gmra.mrb[0].mxu0 %v6171
      %v6279 = vpop.f32.mrb[0].mxu0
      %v6280 = vadd.f32 0.0, %v6279
      %v6281 = vpop.f32.mrb[0].mxu0
      %v6282 = vpop.f32.mrb[0].mxu0
      %v6283 = vadd.f32 0.0, %v6282
      %v6284 = vpop.f32.mrb[0].mxu0
      %6285 = vmatprep.mubr.bf16.mxu0 0
      %6286 = vmatmul.mubr.bf16.gmra.mrb[0].mxu0 %v6174
      %v6287 = vpop.f32.mrb[0].mxu0
      %v6288 = vadd.f32 0.0, %v6287
      %v6289 = vpop.f32.mrb[0].mxu0
      %v6290 = vpop.f32.mrb[0].mxu0
      %v6291 = vadd.f32 0.0, %v6290
      %v6292 = vpop.f32.mrb[0].mxu0
      %6293 = vmatprep.mubr.bf16.mxu0 0
      %6294 = vmatmul.mubr.bf16.gmra.mrb[0].mxu0 %v6177
      %v6295 = vpop.f32.mrb[0].mxu0
      %v6296 = vadd.f32 0.0, %v6295
      %v6297 = vpop.f32.mrb[0].mxu0
      %v6298 = vpop.f32.mrb[0].mxu0
      %v6299 = vadd.f32 0.0, %v6298
      %v6300 = vpop.f32.mrb[0].mxu0
      %6301 = vmatprep.mubr.bf16.mxu0 0
      %6302 = vmatmul.mubr.bf16.gmra.mrb[0].mxu0 %v6180
      %v6303 = vpop.f32.mrb[0].mxu0
      %v6304 = vadd.f32 0.0, %v6303
      %v6305 = vpop.f32.mrb[0].mxu0
      %v6306 = vpop.f32.mrb[0].mxu0
      %v6307 = vadd.f32 0.0, %v6306
      %v6308 = vpop.f32.mrb[0].mxu0
      %6309 = vmatprep.mubr.bf16.mxu0 0
      %6310 = vmatmul.mubr.bf16.gmra.mrb[0].mxu0 %v6183
      %v6311 = vpop.f32.mrb[0].mxu0
      %v6312 = vadd.f32 0.0, %v6311
      %v6313 = vpop.f32.mrb[0].mxu0
      %v6314 = vpop.f32.mrb[0].mxu0
      %v6315 = vadd.f32 0.0, %v6314
      %v6316 = vpop.f32.mrb[0].mxu0
      %6317 = vmatprep.mubr.bf16.mxu0 0
      %6318 = vmatmul.mubr.bf16.gmra.mrb[0].mxu0 %v6186
      %v6319 = vpop.f32.mrb[0].mxu0
      %v6320 = vadd.f32 0.0, %v6319
      %v6321 = vpop.f32.mrb[0].mxu0
      %v6322 = vpop.f32.mrb[0].mxu0
      %v6323 = vadd.f32 0.0, %v6322
      %v6324 = vpop.f32.mrb[0].mxu0
      %6325 = vmatprep.mubr.bf16.mxu0 0
      %6326 = vmatmul.mubr.bf16.gmra.mrb[0].mxu0 %v6189
      %v6327 = vpop.f32.mrb[0].mxu0
      %v6328 = vadd.f32 0.0, %v6327
      %v6329 = vpop.f32.mrb[0].mxu0
      %v6330 = vpop.f32.mrb[0].mxu0
      %v6331 = vadd.f32 0.0, %v6330
      %v6332 = vpop.f32.mrb[0].mxu0
      %6333 = vmatprep.mubr.bf16.mxu0 0
      %6334 = vmatmul.mubr.bf16.gmra.mrb[0].mxu0 %v6192
      %v6335 = vpop.f32.mrb[0].mxu0
      %v6336 = vadd.f32 0.0, %v6335
      %v6337 = vpop.f32.mrb[0].mxu0
      %v6338 = vpop.f32.mrb[0].mxu0
      %v6339 = vadd.f32 0.0, %v6338
      %v6340 = vpop.f32.mrb[0].mxu0
      %6341 = vmatprep.mubr.bf16.mxu0 0
      %6342 = vmatmul.mubr.bf16.gmra.mrb[0].mxu0 %v6195
      %v6343 = vpop.f32.mrb[0].mxu0
      %v6344 = vadd.f32 0.0, %v6343
      %v6345 = vpop.f32.mrb[0].mxu0
      %v6346 = vpop.f32.mrb[0].mxu0
      %v6347 = vadd.f32 0.0, %v6346
      %v6348 = vpop.f32.mrb[0].mxu0
      %6349 = vmatprep.mubr.bf16.mxu0 0
      %6350 = vmatmul.mubr.bf16.gmra.mrb[0].mxu0 %v6198
      %v6351 = vpop.f32.mrb[0].mxu0
      %v6352 = vadd.f32 0.0, %v6351
      %v6353 = vpop.f32.mrb[0].mxu0
      %v6354 = vpop.f32.mrb[0].mxu0
      %v6355 = vadd.f32 0.0, %v6354
      %v6356 = vpop.f32.mrb[0].mxu0
      %6357 = vmatprep.mubr.bf16.mxu0 0
      %6358 = vmatmul.mubr.bf16.gmra.mrb[0].mxu0 %v6201
      %v6359 = vpop.f32.mrb[0].mxu0
      %v6360 = vadd.f32 0.0, %v6359
      %v6361 = vpop.f32.mrb[0].mxu0
      %v6362 = vpop.f32.mrb[0].mxu0
      %v6363 = vadd.f32 0.0, %v6362
      %v6364 = vpop.f32.mrb[0].mxu0
      %6365 = vmatprep.mubr.bf16.mxu0 0
      %6366 = vmatmul.mubr.bf16.gmra.mrb[0].mxu0 %v6204
      %v6367 = vpop.f32.mrb[0].mxu0
      %v6368 = vadd.f32 0.0, %v6367
      %v6369 = vpop.f32.mrb[0].mxu0
      %v6370 = vpop.f32.mrb[0].mxu0
      %v6371 = vadd.f32 0.0, %v6370
      %v6372 = vpop.f32.mrb[0].mxu0
      %6373 = vmatprep.mubr.bf16.mxu0 0
      %6374 = vmatmul.mubr.bf16.gmra.mrb[0].mxu0 %v6207
      %v6375 = vpop.f32.mrb[0].mxu0
      %v6376 = vadd.f32 0.0, %v6375
      %v6377 = vpop.f32.mrb[0].mxu0
      %v6378 = vpop.f32.mrb[0].mxu0
      %v6379 = vadd.f32 0.0, %v6378
      %v6380 = vpop.f32.mrb[0].mxu0
      %6381 = vmatprep.mubr.bf16.mxu0 0
      %6382 = vmatmul.mubr.bf16.gmra.mrb[0].mxu0 %v6210
      %v6383 = vpop.f32.mrb[0].mxu0
      %v6384 = vadd.f32 0.0, %v6383
      %v6385 = vpop.f32.mrb[0].mxu0
      %v6386 = vpop.f32.mrb[0].mxu0
      %v6387 = vadd.f32 0.0, %v6386
      %v6388 = vpop.f32.mrb[0].mxu0
      %6389 = vmatprep.mubr.bf16.mxu0 0
      %6390 = vmatmul.mubr.bf16.gmra.mrb[0].mxu0 %v6213
      %v6391 = vpop.f32.mrb[0].mxu0
      %v6392 = vadd.f32 0.0, %v6391
      %v6393 = vpop.f32.mrb[0].mxu0
      %v6394 = vpop.f32.mrb[0].mxu0
      %v6395 = vadd.f32 0.0, %v6394
      %v6396 = vpop.f32.mrb[0].mxu0
      %6397 = vmatprep.mubr.bf16.mxu0 0
      %6398 = vmatmul.mubr.bf16.gmra.mrb[0].mxu0 %v6216
      %v6399 = vpop.f32.mrb[0].mxu0
      %v6400 = vadd.f32 0.0, %v6399
      %v6401 = vpop.f32.mrb[0].mxu0
      %v6402 = vpop.f32.mrb[0].mxu0
      %v6403 = vadd.f32 0.0, %v6402
      %v6404 = vpop.f32.mrb[0].mxu0
      %6405 = vmatprep.mubr.bf16.mxu0 0
      %6406 = vmatmul.mubr.bf16.gmra.mrb[0].mxu0 %v6219
      %v6407 = vpop.f32.mrb[0].mxu0
      %v6408 = vadd.f32 0.0, %v6407
      %v6409 = vpop.f32.mrb[0].mxu0
      %v6410 = vpop.f32.mrb[0].mxu0
      %v6411 = vadd.f32 0.0, %v6410
      %v6412 = vpop.f32.mrb[0].mxu0
      %6413 = vdwg.mxu0
      %v6414 = vadd.f32 %v5919, %v6256
      %v6415 = vadd.f32 %v5920, %v6259
      %v6416 = vadd.f32 %v5921, %v6264
      %v6417 = vadd.f32 %v5922, %v6267
      %v6418 = vadd.f32 %v5923, %v6272
      %v6419 = vadd.f32 %v5924, %v6275
      %v6420 = vadd.f32 %v5925, %v6280
      %v6421 = vadd.f32 %v5926, %v6283
      %v6422 = vadd.f32 %v5927, %v6288
      %v6423 = vadd.f32 %v5928, %v6291
      %v6424 = vadd.f32 %v5929, %v6296
      %v6425 = vadd.f32 %v5930, %v6299
      %v6426 = vadd.f32 %v5931, %v6304
      %v6427 = vadd.f32 %v5932, %v6307
      %v6428 = vadd.f32 %v5933, %v6312
      %v6429 = vadd.f32 %v5934, %v6315
      %v6430 = vadd.f32 %v5935, %v6320
      %v6431 = vadd.f32 %v5936, %v6323
      %v6432 = vadd.f32 %v5937, %v6328
      %v6433 = vadd.f32 %v5938, %v6331
      %v6434 = vadd.f32 %v5939, %v6336
      %v6435 = vadd.f32 %v5940, %v6339
      %v6436 = vadd.f32 %v5941, %v6344
      %v6437 = vadd.f32 %v5942, %v6347
      %v6438 = vadd.f32 %v5943, %v6352
      %v6439 = vadd.f32 %v5944, %v6355
      %v6440 = vadd.f32 %v5945, %v6360
      %v6441 = vadd.f32 %v5946, %v6363
      %v6442 = vadd.f32 %v5947, %v6368
      %v6443 = vadd.f32 %v5948, %v6371
      %v6444 = vadd.f32 %v5949, %v6376
      %v6445 = vadd.f32 %v5950, %v6379
      %v6446 = vadd.f32 %v5951, %v6384
      %v6447 = vadd.f32 %v5952, %v6387
      %v6448 = vadd.f32 %v5953, %v6392
      %v6449 = vadd.f32 %v5954, %v6395
      %v6450 = vadd.f32 %v5955, %v6400
      %v6451 = vadd.f32 %v5956, %v6403
      %v6452 = vadd.f32 %v5957, %v6408
      %v6453 = vadd.f32 %v5958, %v6411
      %v6454 = vld [vmem:[%s219 + $0x14] sm:$0xc]
      %v6455 = vld [vmem:[%s219 + $0xb4] sm:$0x3]
      %s6456 = scalar_lea.vmem %s1, 224
      %v6457 = vld [vmem:[%s6456] sm:$0xf]
      %v6458 = vld [vmem:[%s6456 + $0x4] sm:$0xf]
      %v6459 = vld [vmem:[%s6456 + $0x8] sm:$0xf]
      %v6460 = vld [vmem:[%s6456 + $0xc] sm:$0xf]
      %v6463 = vunpack.c.l.b16 %v6454
      %v6464 = vunpack.c.l.b16 %v6455
      %v6465 = vpack.c.b16 %v6047, %v6463
      %v6466 = vpack.c.b16 %v6464, %v6464
      %v6467 = vrot.slane %v6465, 2
      %v6468 = vrot.slane %v6088, 2
      %v6469 = vsel %vm5162, %v6467, %v6468
      %v6470 = vrot.slane %v6089, 2
      %v6471 = vsel %vm5162, %v6468, %v6470
      %v6472 = vrot.slane %v6090, 2
      %v6473 = vsel %vm5162, %v6470, %v6472
      %v6474 = vrot.slane %v6091, 2
      %v6475 = vsel %vm5162, %v6472, %v6474
      %v6476 = vrot.slane %v6092, 2
      %v6477 = vsel %vm5162, %v6474, %v6476
      %v6478 = vrot.slane %v6093, 2
      %v6479 = vsel %vm5162, %v6476, %v6478
      %v6480 = vrot.slane %v6094, 2
      %v6481 = vsel %vm5162, %v6478, %v6480
      %v6482 = vrot.slane %v6095, 2
      %v6483 = vsel %vm5162, %v6480, %v6482
      %v6484 = vrot.slane %v6096, 2
      %v6485 = vsel %vm5162, %v6482, %v6484
      %v6486 = vrot.slane %v6097, 2
      %v6487 = vsel %vm5162, %v6484, %v6486
      %v6488 = vrot.slane %v6098, 2
      %v6489 = vsel %vm5162, %v6486, %v6488
      %v6490 = vrot.slane %v6099, 2
      %v6491 = vsel %vm5162, %v6488, %v6490
      %v6492 = vrot.slane %v6100, 2
      %v6493 = vsel %vm5162, %v6490, %v6492
      %v6494 = vrot.slane %v6101, 2
      %v6495 = vsel %vm5162, %v6492, %v6494
      %v6496 = vrot.slane %v6102, 2
      %v6497 = vsel %vm5162, %v6494, %v6496
      %v6498 = vrot.slane %v6103, 2
      %v6499 = vsel %vm5162, %v6496, %v6498
      %v6500 = vrot.slane %v6104, 2
      %v6501 = vsel %vm5162, %v6498, %v6500
      %v6502 = vrot.slane %v6105, 2
      %v6503 = vsel %vm5162, %v6500, %v6502
      %v6504 = vrot.slane %v6106, 2
      %v6505 = vsel %vm5162, %v6502, %v6504
      %v6506 = vrot.slane %v6466, 2
      %v6507 = vsel %vm5162, %v6504, %v6506
      %v6512 = vunpack.c.l.b16 %v6457
      %v6513 = vunpack.c.l.b16 %v6458
      %v6514 = vunpack.c.l.b16 %v6459
      %v6515 = vunpack.c.l.b16 %v6460
      %v6516 = vpack.c.b16 %v6513, %v6512
      %v6517 = vpack.c.b16 %v6515, %v6514
      %v6521 = vsel %vm434, %v6469, 0
      %v6524 = vsel %vm434, %v6471, 0
      %v6527 = vsel %vm434, %v6473, 0
      %v6530 = vsel %vm434, %v6475, 0
      %v6533 = vsel %vm434, %v6477, 0
      %v6536 = vsel %vm434, %v6479, 0
      %v6539 = vsel %vm434, %v6481, 0
      %v6542 = vsel %vm434, %v6483, 0
      %v6545 = vsel %vm434, %v6485, 0
      %v6548 = vsel %vm434, %v6487, 0
      %v6551 = vsel %vm434, %v6489, 0
      %v6554 = vsel %vm434, %v6491, 0
      %v6557 = vsel %vm434, %v6493, 0
      %v6560 = vsel %vm434, %v6495, 0
      %v6563 = vsel %vm434, %v6497, 0
      %v6566 = vsel %vm434, %v6499, 0
      %v6569 = vsel %vm434, %v6501, 0
      %v6572 = vsel %vm434, %v6503, 0
      %v6575 = vsel %vm434, %v6505, 0
      %v6578 = vsel %vm434, %v6507, 0
      %6580 = vmatprep.subr.bf16.mxu0 0
      %6581 = vmatpush1.bf16.msra.mxu0 %v6516
      %6582 = vmatprep.subr.bf16.mxu0 0
      %6583 = vmatpush1.bf16.msra.mxu0 %v6517
      %6584 = vmatprep.subr.bf16.mxu0 0
      %6585 = vmatpush1.bf16.msra.mxu0 0
      %6586 = vmatprep.subr.bf16.mxu0 0
      %6587 = vmatpush1.bf16.msra.mxu0 0
      %6588 = vmatprep.subr.bf16.mxu0 0
      %6589 = vmatpush1.bf16.msra.mxu0 0
      %6590 = vmatprep.subr.bf16.mxu0 0
      %6591 = vmatpush1.bf16.msra.mxu0 0
      %6592 = vmatprep.subr.bf16.mxu0 0
      %6593 = vmatpush1.bf16.msra.mxu0 0
      %6594 = vmatprep.subr.bf16.mxu0 0
      %6595 = vmatpush1.bf16.msra.mxu0 0
      %6596 = vmatprep.subr.bf16.mxu0 0
      %6597 = vmatpush1.bf16.msra.mxu0 0
      %6598 = vmatprep.subr.bf16.mxu0 0
      %6599 = vmatpush1.bf16.msra.mxu0 0
      %6600 = vmatprep.subr.bf16.mxu0 0
      %6601 = vmatpush1.bf16.msra.mxu0 0
      %6602 = vmatprep.subr.bf16.mxu0 0
      %6603 = vmatpush1.bf16.msra.mxu0 0
      %6604 = vmatprep.subr.bf16.mxu0 0
      %6605 = vmatpush1.bf16.msra.mxu0 0
      %6606 = vmatprep.subr.bf16.mxu0 0
      %6607 = vmatpush1.bf16.msra.mxu0 0
      %6608 = vmatprep.subr.bf16.mxu0 0
      %6609 = vmatpush1.bf16.msra.mxu0 0
      %6610 = vmatprep.subr.bf16.mxu0 0
      %6611 = vmatpush1.bf16.msra.mxu0 0
      %6612 = vmatprep.mubr.bf16.mxu0 0
      %6613 = vmatmul.mubr.bf16.gmra.mrb[0].mxu0 %v6521
      %v6614 = vpop.f32.mrb[0].mxu0
      %v6615 = vadd.f32 0.0, %v6614
      %v6616 = vpop.f32.mrb[0].mxu0
      %v6617 = vpop.f32.mrb[0].mxu0
      %v6618 = vadd.f32 0.0, %v6617
      %v6619 = vpop.f32.mrb[0].mxu0
      %6620 = vmatprep.mubr.bf16.mxu0 0
      %6621 = vmatmul.mubr.bf16.gmra.mrb[0].mxu0 %v6524
      %v6622 = vpop.f32.mrb[0].mxu0
      %v6623 = vadd.f32 0.0, %v6622
      %v6624 = vpop.f32.mrb[0].mxu0
      %v6625 = vpop.f32.mrb[0].mxu0
      %v6626 = vadd.f32 0.0, %v6625
      %v6627 = vpop.f32.mrb[0].mxu0
      %6628 = vmatprep.mubr.bf16.mxu0 0
      %6629 = vmatmul.mubr.bf16.gmra.mrb[0].mxu0 %v6527
      %v6630 = vpop.f32.mrb[0].mxu0
      %v6631 = vadd.f32 0.0, %v6630
      %v6632 = vpop.f32.mrb[0].mxu0
      %v6633 = vpop.f32.mrb[0].mxu0
      %v6634 = vadd.f32 0.0, %v6633
      %v6635 = vpop.f32.mrb[0].mxu0
      %6636 = vmatprep.mubr.bf16.mxu0 0
      %6637 = vmatmul.mubr.bf16.gmra.mrb[0].mxu0 %v6530
      %v6638 = vpop.f32.mrb[0].mxu0
      %v6639 = vadd.f32 0.0, %v6638
      %v6640 = vpop.f32.mrb[0].mxu0
      %v6641 = vpop.f32.mrb[0].mxu0
      %v6642 = vadd.f32 0.0, %v6641
      %v6643 = vpop.f32.mrb[0].mxu0
      %6644 = vmatprep.mubr.bf16.mxu0 0
      %6645 = vmatmul.mubr.bf16.gmra.mrb[0].mxu0 %v6533
      %v6646 = vpop.f32.mrb[0].mxu0
      %v6647 = vadd.f32 0.0, %v6646
      %v6648 = vpop.f32.mrb[0].mxu0
      %v6649 = vpop.f32.mrb[0].mxu0
      %v6650 = vadd.f32 0.0, %v6649
      %v6651 = vpop.f32.mrb[0].mxu0
      %6652 = vmatprep.mubr.bf16.mxu0 0
      %6653 = vmatmul.mubr.bf16.gmra.mrb[0].mxu0 %v6536
      %v6654 = vpop.f32.mrb[0].mxu0
      %v6655 = vadd.f32 0.0, %v6654
      %v6656 = vpop.f32.mrb[0].mxu0
      %v6657 = vpop.f32.mrb[0].mxu0
      %v6658 = vadd.f32 0.0, %v6657
      %v6659 = vpop.f32.mrb[0].mxu0
      %6660 = vmatprep.mubr.bf16.mxu0 0
      %6661 = vmatmul.mubr.bf16.gmra.mrb[0].mxu0 %v6539
      %v6662 = vpop.f32.mrb[0].mxu0
      %v6663 = vadd.f32 0.0, %v6662
      %v6664 = vpop.f32.mrb[0].mxu0
      %v6665 = vpop.f32.mrb[0].mxu0
      %v6666 = vadd.f32 0.0, %v6665
      %v6667 = vpop.f32.mrb[0].mxu0
      %6668 = vmatprep.mubr.bf16.mxu0 0
      %6669 = vmatmul.mubr.bf16.gmra.mrb[0].mxu0 %v6542
      %v6670 = vpop.f32.mrb[0].mxu0
      %v6671 = vadd.f32 0.0, %v6670
      %v6672 = vpop.f32.mrb[0].mxu0
      %v6673 = vpop.f32.mrb[0].mxu0
      %v6674 = vadd.f32 0.0, %v6673
      %v6675 = vpop.f32.mrb[0].mxu0
      %6676 = vmatprep.mubr.bf16.mxu0 0
      %6677 = vmatmul.mubr.bf16.gmra.mrb[0].mxu0 %v6545
      %v6678 = vpop.f32.mrb[0].mxu0
      %v6679 = vadd.f32 0.0, %v6678
      %v6680 = vpop.f32.mrb[0].mxu0
      %v6681 = vpop.f32.mrb[0].mxu0
      %v6682 = vadd.f32 0.0, %v6681
      %v6683 = vpop.f32.mrb[0].mxu0
      %6684 = vmatprep.mubr.bf16.mxu0 0
      %6685 = vmatmul.mubr.bf16.gmra.mrb[0].mxu0 %v6548
      %v6686 = vpop.f32.mrb[0].mxu0
      %v6687 = vadd.f32 0.0, %v6686
      %v6688 = vpop.f32.mrb[0].mxu0
      %v6689 = vpop.f32.mrb[0].mxu0
      %v6690 = vadd.f32 0.0, %v6689
      %v6691 = vpop.f32.mrb[0].mxu0
      %6692 = vmatprep.mubr.bf16.mxu0 0
      %6693 = vmatmul.mubr.bf16.gmra.mrb[0].mxu0 %v6551
      %v6694 = vpop.f32.mrb[0].mxu0
      %v6695 = vadd.f32 0.0, %v6694
      %v6696 = vpop.f32.mrb[0].mxu0
      %v6697 = vpop.f32.mrb[0].mxu0
      %v6698 = vadd.f32 0.0, %v6697
      %v6699 = vpop.f32.mrb[0].mxu0
      %6700 = vmatprep.mubr.bf16.mxu0 0
      %6701 = vmatmul.mubr.bf16.gmra.mrb[0].mxu0 %v6554
      %v6702 = vpop.f32.mrb[0].mxu0
      %v6703 = vadd.f32 0.0, %v6702
      %v6704 = vpop.f32.mrb[0].mxu0
      %v6705 = vpop.f32.mrb[0].mxu0
      %v6706 = vadd.f32 0.0, %v6705
      %v6707 = vpop.f32.mrb[0].mxu0
      %6708 = vmatprep.mubr.bf16.mxu0 0
      %6709 = vmatmul.mubr.bf16.gmra.mrb[0].mxu0 %v6557
      %v6710 = vpop.f32.mrb[0].mxu0
      %v6711 = vadd.f32 0.0, %v6710
      %v6712 = vpop.f32.mrb[0].mxu0
      %v6713 = vpop.f32.mrb[0].mxu0
      %v6714 = vadd.f32 0.0, %v6713
      %v6715 = vpop.f32.mrb[0].mxu0
      %6716 = vmatprep.mubr.bf16.mxu0 0
      %6717 = vmatmul.mubr.bf16.gmra.mrb[0].mxu0 %v6560
      %v6718 = vpop.f32.mrb[0].mxu0
      %v6719 = vadd.f32 0.0, %v6718
      %v6720 = vpop.f32.mrb[0].mxu0
      %v6721 = vpop.f32.mrb[0].mxu0
      %v6722 = vadd.f32 0.0, %v6721
      %v6723 = vpop.f32.mrb[0].mxu0
      %6724 = vmatprep.mubr.bf16.mxu0 0
      %6725 = vmatmul.mubr.bf16.gmra.mrb[0].mxu0 %v6563
      %v6726 = vpop.f32.mrb[0].mxu0
      %v6727 = vadd.f32 0.0, %v6726
      %v6728 = vpop.f32.mrb[0].mxu0
      %v6729 = vpop.f32.mrb[0].mxu0
      %v6730 = vadd.f32 0.0, %v6729
      %v6731 = vpop.f32.mrb[0].mxu0
      %6732 = vmatprep.mubr.bf16.mxu0 0
      %6733 = vmatmul.mubr.bf16.gmra.mrb[0].mxu0 %v6566
      %v6734 = vpop.f32.mrb[0].mxu0
      %v6735 = vadd.f32 0.0, %v6734
      %v6736 = vpop.f32.mrb[0].mxu0
      %v6737 = vpop.f32.mrb[0].mxu0
      %v6738 = vadd.f32 0.0, %v6737
      %v6739 = vpop.f32.mrb[0].mxu0
      %6740 = vmatprep.mubr.bf16.mxu0 0
      %6741 = vmatmul.mubr.bf16.gmra.mrb[0].mxu0 %v6569
      %v6742 = vpop.f32.mrb[0].mxu0
      %v6743 = vadd.f32 0.0, %v6742
      %v6744 = vpop.f32.mrb[0].mxu0
      %v6745 = vpop.f32.mrb[0].mxu0
      %v6746 = vadd.f32 0.0, %v6745
      %v6747 = vpop.f32.mrb[0].mxu0
      %6748 = vmatprep.mubr.bf16.mxu0 0
      %6749 = vmatmul.mubr.bf16.gmra.mrb[0].mxu0 %v6572
      %v6750 = vpop.f32.mrb[0].mxu0
      %v6751 = vadd.f32 0.0, %v6750
      %v6752 = vpop.f32.mrb[0].mxu0
      %v6753 = vpop.f32.mrb[0].mxu0
      %v6754 = vadd.f32 0.0, %v6753
      %v6755 = vpop.f32.mrb[0].mxu0
      %6756 = vmatprep.mubr.bf16.mxu0 0
      %6757 = vmatmul.mubr.bf16.gmra.mrb[0].mxu0 %v6575
      %v6758 = vpop.f32.mrb[0].mxu0
      %v6759 = vadd.f32 0.0, %v6758
      %v6760 = vpop.f32.mrb[0].mxu0
      %v6761 = vpop.f32.mrb[0].mxu0
      %v6762 = vadd.f32 0.0, %v6761
      %v6763 = vpop.f32.mrb[0].mxu0
      %6764 = vmatprep.mubr.bf16.mxu0 0
      %6765 = vmatmul.mubr.bf16.gmra.mrb[0].mxu0 %v6578
      %v6766 = vpop.f32.mrb[0].mxu0
      %v6767 = vadd.f32 0.0, %v6766
      %v6768 = vpop.f32.mrb[0].mxu0
      %v6769 = vpop.f32.mrb[0].mxu0
      %v6770 = vadd.f32 0.0, %v6769
      %v6771 = vpop.f32.mrb[0].mxu0
      %6772 = vdwg.mxu0
      %v6773 = vadd.f32 %v6414, %v6615
      %v6774 = vadd.f32 %v6415, %v6618
      %v6775 = vadd.f32 %v6416, %v6623
      %v6776 = vadd.f32 %v6417, %v6626
      %v6777 = vadd.f32 %v6418, %v6631
      %v6778 = vadd.f32 %v6419, %v6634
      %v6779 = vadd.f32 %v6420, %v6639
      %v6780 = vadd.f32 %v6421, %v6642
      %v6781 = vadd.f32 %v6422, %v6647
      %v6782 = vadd.f32 %v6423, %v6650
      %v6783 = vadd.f32 %v6424, %v6655
      %v6784 = vadd.f32 %v6425, %v6658
      %v6785 = vadd.f32 %v6426, %v6663
      %v6786 = vadd.f32 %v6427, %v6666
      %v6787 = vadd.f32 %v6428, %v6671
      %v6788 = vadd.f32 %v6429, %v6674
      %v6789 = vadd.f32 %v6430, %v6679
      %v6790 = vadd.f32 %v6431, %v6682
      %v6791 = vadd.f32 %v6432, %v6687
      %v6792 = vadd.f32 %v6433, %v6690
      %v6793 = vadd.f32 %v6434, %v6695
      %v6794 = vadd.f32 %v6435, %v6698
      %v6795 = vadd.f32 %v6436, %v6703
      %v6796 = vadd.f32 %v6437, %v6706
      %v6797 = vadd.f32 %v6438, %v6711
      %v6798 = vadd.f32 %v6439, %v6714
      %v6799 = vadd.f32 %v6440, %v6719
      %v6800 = vadd.f32 %v6441, %v6722
      %v6801 = vadd.f32 %v6442, %v6727
      %v6802 = vadd.f32 %v6443, %v6730
      %v6803 = vadd.f32 %v6444, %v6735
      %v6804 = vadd.f32 %v6445, %v6738
      %v6805 = vadd.f32 %v6446, %v6743
      %v6806 = vadd.f32 %v6447, %v6746
      %v6807 = vadd.f32 %v6448, %v6751
      %v6808 = vadd.f32 %v6449, %v6754
      %v6809 = vadd.f32 %v6450, %v6759
      %v6810 = vadd.f32 %v6451, %v6762
      %v6811 = vadd.f32 %v6452, %v6767
      %v6812 = vadd.f32 %v6453, %v6770
      %v6813 = vld [vmem:[%s219 + $0x28] sm:$0xf]
      %v6814 = vld [vmem:[%s219 + $0x2c] sm:$0xf]
      %v6815 = vld [vmem:[%s219 + $0x30] sm:$0xf]
      %v6816 = vld [vmem:[%s219 + $0x34] sm:$0xf]
      %v6817 = vld [vmem:[%s219 + $0x38] sm:$0xf]
      %v6818 = vld [vmem:[%s219 + $0x3c] sm:$0xf]
      %v6819 = vld [vmem:[%s219 + $0x40] sm:$0xf]
      %v6820 = vld [vmem:[%s219 + $0x44] sm:$0xf]
      %v6821 = vld [vmem:[%s219 + $0x48] sm:$0xf]
      %v6822 = vld [vmem:[%s219 + $0x4c] sm:$0xf]
      %v6823 = vld [vmem:[%s219 + $0x50] sm:$0xf]
      %v6824 = vld [vmem:[%s219 + $0x54] sm:$0xf]
      %v6825 = vld [vmem:[%s219 + $0x58] sm:$0xf]
      %v6826 = vld [vmem:[%s219 + $0x5c] sm:$0xf]
      %v6827 = vld [vmem:[%s219 + $0x60] sm:$0xf]
      %v6828 = vld [vmem:[%s219 + $0x64] sm:$0xf]
      %v6829 = vld [vmem:[%s219 + $0x68] sm:$0xf]
      %v6830 = vld [vmem:[%s219 + $0x6c] sm:$0xf]
      %v6831 = vld [vmem:[%s219 + $0x70] sm:$0xf]
      %v6832 = vld [vmem:[%s219 + $0x74] sm:$0xf]
      %v6833 = vld [vmem:[%s219 + $0x78] sm:$0xf]
      %v6834 = vld [vmem:[%s219 + $0x7c] sm:$0xf]
      %v6835 = vld [vmem:[%s219 + $0x80] sm:$0xf]
      %v6836 = vld [vmem:[%s219 + $0x84] sm:$0xf]
      %v6837 = vld [vmem:[%s219 + $0x88] sm:$0xf]
      %v6838 = vld [vmem:[%s219 + $0x8c] sm:$0xf]
      %v6839 = vld [vmem:[%s219 + $0x90] sm:$0xf]
      %v6840 = vld [vmem:[%s219 + $0x94] sm:$0xf]
      %v6841 = vld [vmem:[%s219 + $0x98] sm:$0xf]
      %v6842 = vld [vmem:[%s219 + $0x9c] sm:$0xf]
      %v6843 = vld [vmem:[%s219 + $0xa0] sm:$0xf]
      %v6844 = vld [vmem:[%s219 + $0xa4] sm:$0xf]
      %v6845 = vld [vmem:[%s219 + $0xa8] sm:$0xf]
      %v6846 = vld [vmem:[%s219 + $0xac] sm:$0xf]
      %v6847 = vld [vmem:[%s219 + $0xb0] sm:$0xf]
      %v6848 = vld [vmem:[%s219 + $0xb4] sm:$0xf]
      %v6849 = vld [vmem:[%s219 + $0xb8] sm:$0xf]
      %v6850 = vld [vmem:[%s219 + $0xbc] sm:$0xf]
      %v6851 = vld [vmem:[%s219 + $0xc0] sm:$0xf]
      %v6852 = vld [vmem:[%s219 + $0xc4] sm:$0xf]
      %s6853 = scalar_lea.vmem %s1, 240
      %v6854 = vld [vmem:[%s6853] sm:$0xf]
      %v6855 = vld [vmem:[%s6853 + $0x4] sm:$0xf]
      %v6856 = vld [vmem:[%s6853 + $0x8] sm:$0xf]
      %v6857 = vld [vmem:[%s6853 + $0xc] sm:$0xf]
      %v6898 = vunpack.c.l.b16 %v6813
      %v6899 = vunpack.c.l.b16 %v6814
      %v6900 = vunpack.c.l.b16 %v6815
      %v6901 = vunpack.c.l.b16 %v6816
      %v6902 = vunpack.c.l.b16 %v6817
      %v6903 = vunpack.c.l.b16 %v6818
      %v6904 = vunpack.c.l.b16 %v6819
      %v6905 = vunpack.c.l.b16 %v6820
      %v6906 = vunpack.c.l.b16 %v6821
      %v6907 = vunpack.c.l.b16 %v6822
      %v6908 = vunpack.c.l.b16 %v6823
      %v6909 = vunpack.c.l.b16 %v6824
      %v6910 = vunpack.c.l.b16 %v6825
      %v6911 = vunpack.c.l.b16 %v6826
      %v6912 = vunpack.c.l.b16 %v6827
      %v6913 = vunpack.c.l.b16 %v6828
      %v6914 = vunpack.c.l.b16 %v6829
      %v6915 = vunpack.c.l.b16 %v6830
      %v6916 = vunpack.c.l.b16 %v6831
      %v6917 = vunpack.c.l.b16 %v6832
      %v6918 = vunpack.c.l.b16 %v6833
      %v6919 = vunpack.c.l.b16 %v6834
      %v6920 = vunpack.c.l.b16 %v6835
      %v6921 = vunpack.c.l.b16 %v6836
      %v6922 = vunpack.c.l.b16 %v6837
      %v6923 = vunpack.c.l.b16 %v6838
      %v6924 = vunpack.c.l.b16 %v6839
      %v6925 = vunpack.c.l.b16 %v6840
      %v6926 = vunpack.c.l.b16 %v6841
      %v6927 = vunpack.c.l.b16 %v6842
      %v6928 = vunpack.c.l.b16 %v6843
      %v6929 = vunpack.c.l.b16 %v6844
      %v6930 = vunpack.c.l.b16 %v6845
      %v6931 = vunpack.c.l.b16 %v6846
      %v6932 = vunpack.c.l.b16 %v6847
      %v6933 = vunpack.c.l.b16 %v6848
      %v6934 = vunpack.c.l.b16 %v6849
      %v6935 = vunpack.c.l.b16 %v6850
      %v6936 = vunpack.c.l.b16 %v6851
      %v6937 = vunpack.c.l.b16 %v6852
      %v6938 = vpack.c.b16 %v6899, %v6898
      %v6939 = vpack.c.b16 %v6901, %v6900
      %v6940 = vpack.c.b16 %v6903, %v6902
      %v6941 = vpack.c.b16 %v6905, %v6904
      %v6942 = vpack.c.b16 %v6907, %v6906
      %v6943 = vpack.c.b16 %v6909, %v6908
      %v6944 = vpack.c.b16 %v6911, %v6910
      %v6945 = vpack.c.b16 %v6913, %v6912
      %v6946 = vpack.c.b16 %v6915, %v6914
      %v6947 = vpack.c.b16 %v6917, %v6916
      %v6948 = vpack.c.b16 %v6919, %v6918
      %v6949 = vpack.c.b16 %v6921, %v6920
      %v6950 = vpack.c.b16 %v6923, %v6922
      %v6951 = vpack.c.b16 %v6925, %v6924
      %v6952 = vpack.c.b16 %v6927, %v6926
      %v6953 = vpack.c.b16 %v6929, %v6928
      %v6954 = vpack.c.b16 %v6931, %v6930
      %v6955 = vpack.c.b16 %v6933, %v6932
      %v6956 = vpack.c.b16 %v6935, %v6934
      %v6957 = vpack.c.b16 %v6937, %v6936
      %v6962 = vunpack.c.l.b16 %v6854
      %v6963 = vunpack.c.l.b16 %v6855
      %v6964 = vunpack.c.l.b16 %v6856
      %v6965 = vunpack.c.l.b16 %v6857
      %v6966 = vpack.c.b16 %v6963, %v6962
      %v6967 = vpack.c.b16 %v6965, %v6964
      %v6971 = vsel %vm434, %v6938, 0
      %v6974 = vsel %vm434, %v6939, 0
      %v6977 = vsel %vm434, %v6940, 0
      %v6980 = vsel %vm434, %v6941, 0
      %v6983 = vsel %vm434, %v6942, 0
      %v6986 = vsel %vm434, %v6943, 0
      %v6989 = vsel %vm434, %v6944, 0
      %v6992 = vsel %vm434, %v6945, 0
      %v6995 = vsel %vm434, %v6946, 0
      %v6998 = vsel %vm434, %v6947, 0
      %v7001 = vsel %vm434, %v6948, 0
      %v7004 = vsel %vm434, %v6949, 0
      %v7007 = vsel %vm434, %v6950, 0
      %v7010 = vsel %vm434, %v6951, 0
      %v7013 = vsel %vm434, %v6952, 0
      %v7016 = vsel %vm434, %v6953, 0
      %v7019 = vsel %vm434, %v6954, 0
      %v7022 = vsel %vm434, %v6955, 0
      %v7025 = vsel %vm434, %v6956, 0
      %v7028 = vsel %vm434, %v6957, 0
      %7030 = vmatprep.subr.bf16.mxu0 0
      %7031 = vmatpush1.bf16.msra.mxu0 %v6966
      %7032 = vmatprep.subr.bf16.mxu0 0
      %7033 = vmatpush1.bf16.msra.mxu0 %v6967
      %7034 = vmatprep.subr.bf16.mxu0 0
      %7035 = vmatpush1.bf16.msra.mxu0 0
      %7036 = vmatprep.subr.bf16.mxu0 0
      %7037 = vmatpush1.bf16.msra.mxu0 0
      %7038 = vmatprep.subr.bf16.mxu0 0
      %7039 = vmatpush1.bf16.msra.mxu0 0
      %7040 = vmatprep.subr.bf16.mxu0 0
      %7041 = vmatpush1.bf16.msra.mxu0 0
      %7042 = vmatprep.subr.bf16.mxu0 0
      %7043 = vmatpush1.bf16.msra.mxu0 0
      %7044 = vmatprep.subr.bf16.mxu0 0
      %7045 = vmatpush1.bf16.msra.mxu0 0
      %7046 = vmatprep.subr.bf16.mxu0 0
      %7047 = vmatpush1.bf16.msra.mxu0 0
      %7048 = vmatprep.subr.bf16.mxu0 0
      %7049 = vmatpush1.bf16.msra.mxu0 0
      %7050 = vmatprep.subr.bf16.mxu0 0
      %7051 = vmatpush1.bf16.msra.mxu0 0
      %7052 = vmatprep.subr.bf16.mxu0 0
      %7053 = vmatpush1.bf16.msra.mxu0 0
      %7054 = vmatprep.subr.bf16.mxu0 0
      %7055 = vmatpush1.bf16.msra.mxu0 0
      %7056 = vmatprep.subr.bf16.mxu0 0
      %7057 = vmatpush1.bf16.msra.mxu0 0
      %7058 = vmatprep.subr.bf16.mxu0 0
      %7059 = vmatpush1.bf16.msra.mxu0 0
      %7060 = vmatprep.subr.bf16.mxu0 0
      %7061 = vmatpush1.bf16.msra.mxu0 0
      %7062 = vmatprep.mubr.bf16.mxu0 0
      %7063 = vmatmul.mubr.bf16.gmra.mrb[0].mxu0 %v6971
      %v7064 = vpop.f32.mrb[0].mxu0
      %v7065 = vadd.f32 0.0, %v7064
      %v7066 = vpop.f32.mrb[0].mxu0
      %v7067 = vpop.f32.mrb[0].mxu0
      %v7068 = vadd.f32 0.0, %v7067
      %v7069 = vpop.f32.mrb[0].mxu0
      %7070 = vmatprep.mubr.bf16.mxu0 0
      %7071 = vmatmul.mubr.bf16.gmra.mrb[0].mxu0 %v6974
      %v7072 = vpop.f32.mrb[0].mxu0
      %v7073 = vadd.f32 0.0, %v7072
      %v7074 = vpop.f32.mrb[0].mxu0
      %v7075 = vpop.f32.mrb[0].mxu0
      %v7076 = vadd.f32 0.0, %v7075
      %v7077 = vpop.f32.mrb[0].mxu0
      %7078 = vmatprep.mubr.bf16.mxu0 0
      %7079 = vmatmul.mubr.bf16.gmra.mrb[0].mxu0 %v6977
      %v7080 = vpop.f32.mrb[0].mxu0
      %v7081 = vadd.f32 0.0, %v7080
      %v7082 = vpop.f32.mrb[0].mxu0
      %v7083 = vpop.f32.mrb[0].mxu0
      %v7084 = vadd.f32 0.0, %v7083
      %v7085 = vpop.f32.mrb[0].mxu0
      %7086 = vmatprep.mubr.bf16.mxu0 0
      %7087 = vmatmul.mubr.bf16.gmra.mrb[0].mxu0 %v6980
      %v7088 = vpop.f32.mrb[0].mxu0
      %v7089 = vadd.f32 0.0, %v7088
      %v7090 = vpop.f32.mrb[0].mxu0
      %v7091 = vpop.f32.mrb[0].mxu0
      %v7092 = vadd.f32 0.0, %v7091
      %v7093 = vpop.f32.mrb[0].mxu0
      %7094 = vmatprep.mubr.bf16.mxu0 0
      %7095 = vmatmul.mubr.bf16.gmra.mrb[0].mxu0 %v6983
      %v7096 = vpop.f32.mrb[0].mxu0
      %v7097 = vadd.f32 0.0, %v7096
      %v7098 = vpop.f32.mrb[0].mxu0
      %v7099 = vpop.f32.mrb[0].mxu0
      %v7100 = vadd.f32 0.0, %v7099
      %v7101 = vpop.f32.mrb[0].mxu0
      %7102 = vmatprep.mubr.bf16.mxu0 0
      %7103 = vmatmul.mubr.bf16.gmra.mrb[0].mxu0 %v6986
      %v7104 = vpop.f32.mrb[0].mxu0
      %v7105 = vadd.f32 0.0, %v7104
      %v7106 = vpop.f32.mrb[0].mxu0
      %v7107 = vpop.f32.mrb[0].mxu0
      %v7108 = vadd.f32 0.0, %v7107
      %v7109 = vpop.f32.mrb[0].mxu0
      %7110 = vmatprep.mubr.bf16.mxu0 0
      %7111 = vmatmul.mubr.bf16.gmra.mrb[0].mxu0 %v6989
      %v7112 = vpop.f32.mrb[0].mxu0
      %v7113 = vadd.f32 0.0, %v7112
      %v7114 = vpop.f32.mrb[0].mxu0
      %v7115 = vpop.f32.mrb[0].mxu0
      %v7116 = vadd.f32 0.0, %v7115
      %v7117 = vpop.f32.mrb[0].mxu0
      %7118 = vmatprep.mubr.bf16.mxu0 0
      %7119 = vmatmul.mubr.bf16.gmra.mrb[0].mxu0 %v6992
      %v7120 = vpop.f32.mrb[0].mxu0
      %v7121 = vadd.f32 0.0, %v7120
      %v7122 = vpop.f32.mrb[0].mxu0
      %v7123 = vpop.f32.mrb[0].mxu0
      %v7124 = vadd.f32 0.0, %v7123
      %v7125 = vpop.f32.mrb[0].mxu0
      %7126 = vmatprep.mubr.bf16.mxu0 0
      %7127 = vmatmul.mubr.bf16.gmra.mrb[0].mxu0 %v6995
      %v7128 = vpop.f32.mrb[0].mxu0
      %v7129 = vadd.f32 0.0, %v7128
      %v7130 = vpop.f32.mrb[0].mxu0
      %v7131 = vpop.f32.mrb[0].mxu0
      %v7132 = vadd.f32 0.0, %v7131
      %v7133 = vpop.f32.mrb[0].mxu0
      %7134 = vmatprep.mubr.bf16.mxu0 0
      %7135 = vmatmul.mubr.bf16.gmra.mrb[0].mxu0 %v6998
      %v7136 = vpop.f32.mrb[0].mxu0
      %v7137 = vadd.f32 0.0, %v7136
      %v7138 = vpop.f32.mrb[0].mxu0
      %v7139 = vpop.f32.mrb[0].mxu0
      %v7140 = vadd.f32 0.0, %v7139
      %v7141 = vpop.f32.mrb[0].mxu0
      %7142 = vmatprep.mubr.bf16.mxu0 0
      %7143 = vmatmul.mubr.bf16.gmra.mrb[0].mxu0 %v7001
      %v7144 = vpop.f32.mrb[0].mxu0
      %v7145 = vadd.f32 0.0, %v7144
      %v7146 = vpop.f32.mrb[0].mxu0
      %v7147 = vpop.f32.mrb[0].mxu0
      %v7148 = vadd.f32 0.0, %v7147
      %v7149 = vpop.f32.mrb[0].mxu0
      %7150 = vmatprep.mubr.bf16.mxu0 0
      %7151 = vmatmul.mubr.bf16.gmra.mrb[0].mxu0 %v7004
      %v7152 = vpop.f32.mrb[0].mxu0
      %v7153 = vadd.f32 0.0, %v7152
      %v7154 = vpop.f32.mrb[0].mxu0
      %v7155 = vpop.f32.mrb[0].mxu0
      %v7156 = vadd.f32 0.0, %v7155
      %v7157 = vpop.f32.mrb[0].mxu0
      %7158 = vmatprep.mubr.bf16.mxu0 0
      %7159 = vmatmul.mubr.bf16.gmra.mrb[0].mxu0 %v7007
      %v7160 = vpop.f32.mrb[0].mxu0
      %v7161 = vadd.f32 0.0, %v7160
      %v7162 = vpop.f32.mrb[0].mxu0
      %v7163 = vpop.f32.mrb[0].mxu0
      %v7164 = vadd.f32 0.0, %v7163
      %v7165 = vpop.f32.mrb[0].mxu0
      %7166 = vmatprep.mubr.bf16.mxu0 0
      %7167 = vmatmul.mubr.bf16.gmra.mrb[0].mxu0 %v7010
      %v7168 = vpop.f32.mrb[0].mxu0
      %v7169 = vadd.f32 0.0, %v7168
      %v7170 = vpop.f32.mrb[0].mxu0
      %v7171 = vpop.f32.mrb[0].mxu0
      %v7172 = vadd.f32 0.0, %v7171
      %v7173 = vpop.f32.mrb[0].mxu0
      %7174 = vmatprep.mubr.bf16.mxu0 0
      %7175 = vmatmul.mubr.bf16.gmra.mrb[0].mxu0 %v7013
      %v7176 = vpop.f32.mrb[0].mxu0
      %v7177 = vadd.f32 0.0, %v7176
      %v7178 = vpop.f32.mrb[0].mxu0
      %v7179 = vpop.f32.mrb[0].mxu0
      %v7180 = vadd.f32 0.0, %v7179
      %v7181 = vpop.f32.mrb[0].mxu0
      %7182 = vmatprep.mubr.bf16.mxu0 0
      %7183 = vmatmul.mubr.bf16.gmra.mrb[0].mxu0 %v7016
      %v7184 = vpop.f32.mrb[0].mxu0
      %v7185 = vadd.f32 0.0, %v7184
      %v7186 = vpop.f32.mrb[0].mxu0
      %v7187 = vpop.f32.mrb[0].mxu0
      %v7188 = vadd.f32 0.0, %v7187
      %v7189 = vpop.f32.mrb[0].mxu0
      %7190 = vmatprep.mubr.bf16.mxu0 0
      %7191 = vmatmul.mubr.bf16.gmra.mrb[0].mxu0 %v7019
      %v7192 = vpop.f32.mrb[0].mxu0
      %v7193 = vadd.f32 0.0, %v7192
      %v7194 = vpop.f32.mrb[0].mxu0
      %v7195 = vpop.f32.mrb[0].mxu0
      %v7196 = vadd.f32 0.0, %v7195
      %v7197 = vpop.f32.mrb[0].mxu0
      %7198 = vmatprep.mubr.bf16.mxu0 0
      %7199 = vmatmul.mubr.bf16.gmra.mrb[0].mxu0 %v7022
      %v7200 = vpop.f32.mrb[0].mxu0
      %v7201 = vadd.f32 0.0, %v7200
      %v7202 = vpop.f32.mrb[0].mxu0
      %v7203 = vpop.f32.mrb[0].mxu0
      %v7204 = vadd.f32 0.0, %v7203
      %v7205 = vpop.f32.mrb[0].mxu0
      %7206 = vmatprep.mubr.bf16.mxu0 0
      %7207 = vmatmul.mubr.bf16.gmra.mrb[0].mxu0 %v7025
      %v7208 = vpop.f32.mrb[0].mxu0
      %v7209 = vadd.f32 0.0, %v7208
      %v7210 = vpop.f32.mrb[0].mxu0
      %v7211 = vpop.f32.mrb[0].mxu0
      %v7212 = vadd.f32 0.0, %v7211
      %v7213 = vpop.f32.mrb[0].mxu0
      %7214 = vmatprep.mubr.bf16.mxu0 0
      %7215 = vmatmul.mubr.bf16.gmra.mrb[0].mxu0 %v7028
      %v7216 = vpop.f32.mrb[0].mxu0
      %v7217 = vadd.f32 0.0, %v7216
      %v7218 = vpop.f32.mrb[0].mxu0
      %v7219 = vpop.f32.mrb[0].mxu0
      %v7220 = vadd.f32 0.0, %v7219
      %v7221 = vpop.f32.mrb[0].mxu0
      %7222 = vdwg.mxu0
      %v7223 = vadd.f32 %v6773, %v7065
      %v7224 = vadd.f32 %v6774, %v7068
      %v7225 = vadd.f32 %v6775, %v7073
      %v7226 = vadd.f32 %v6776, %v7076
      %v7227 = vadd.f32 %v6777, %v7081
      %v7228 = vadd.f32 %v6778, %v7084
      %v7229 = vadd.f32 %v6779, %v7089
      %v7230 = vadd.f32 %v6780, %v7092
      %v7231 = vadd.f32 %v6781, %v7097
      %v7232 = vadd.f32 %v6782, %v7100
      %v7233 = vadd.f32 %v6783, %v7105
      %v7234 = vadd.f32 %v6784, %v7108
      %v7235 = vadd.f32 %v6785, %v7113
      %v7236 = vadd.f32 %v6786, %v7116
      %v7237 = vadd.f32 %v6787, %v7121
      %v7238 = vadd.f32 %v6788, %v7124
      %v7239 = vadd.f32 %v6789, %v7129
      %v7240 = vadd.f32 %v6790, %v7132
      %v7241 = vadd.f32 %v6791, %v7137
      %v7242 = vadd.f32 %v6792, %v7140
      %v7243 = vadd.f32 %v6793, %v7145
      %v7244 = vadd.f32 %v6794, %v7148
      %v7245 = vadd.f32 %v6795, %v7153
      %v7246 = vadd.f32 %v6796, %v7156
      %v7247 = vadd.f32 %v6797, %v7161
      %v7248 = vadd.f32 %v6798, %v7164
      %v7249 = vadd.f32 %v6799, %v7169
      %v7250 = vadd.f32 %v6800, %v7172
      %v7251 = vadd.f32 %v6801, %v7177
      %v7252 = vadd.f32 %v6802, %v7180
      %v7253 = vadd.f32 %v6803, %v7185
      %v7254 = vadd.f32 %v6804, %v7188
      %v7255 = vadd.f32 %v6805, %v7193
      %v7256 = vadd.f32 %v6806, %v7196
      %v7257 = vadd.f32 %v6807, %v7201
      %v7258 = vadd.f32 %v6808, %v7204
      %v7259 = vadd.f32 %v6809, %v7209
      %v7260 = vadd.f32 %v6810, %v7212
      %v7261 = vadd.f32 %v6811, %v7217
      %v7262 = vadd.f32 %v6812, %v7220
      %v7263 = vld [vmem:[%s219 + $0x28] sm:$0xe]
      %v7264 = vld [vmem:[%s219 + $0x2c] sm:$0xf]
      %v7265 = vld [vmem:[%s219 + $0x30] sm:$0xf]
      %v7266 = vld [vmem:[%s219 + $0x34] sm:$0xf]
      %v7267 = vld [vmem:[%s219 + $0x38] sm:$0xf]
      %v7268 = vld [vmem:[%s219 + $0x3c] sm:$0xf]
      %v7269 = vld [vmem:[%s219 + $0x40] sm:$0xf]
      %v7270 = vld [vmem:[%s219 + $0x44] sm:$0xf]
      %v7271 = vld [vmem:[%s219 + $0x48] sm:$0xf]
      %v7272 = vld [vmem:[%s219 + $0x4c] sm:$0xf]
      %v7273 = vld [vmem:[%s219 + $0x50] sm:$0xf]
      %v7274 = vld [vmem:[%s219 + $0x54] sm:$0xf]
      %v7275 = vld [vmem:[%s219 + $0x58] sm:$0xf]
      %v7276 = vld [vmem:[%s219 + $0x5c] sm:$0xf]
      %v7277 = vld [vmem:[%s219 + $0x60] sm:$0xf]
      %v7278 = vld [vmem:[%s219 + $0x64] sm:$0xf]
      %v7279 = vld [vmem:[%s219 + $0x68] sm:$0xf]
      %v7280 = vld [vmem:[%s219 + $0x6c] sm:$0xf]
      %v7281 = vld [vmem:[%s219 + $0x70] sm:$0xf]
      %v7282 = vld [vmem:[%s219 + $0x74] sm:$0xf]
      %v7283 = vld [vmem:[%s219 + $0x78] sm:$0xf]
      %v7284 = vld [vmem:[%s219 + $0x7c] sm:$0xf]
      %v7285 = vld [vmem:[%s219 + $0x80] sm:$0xf]
      %v7286 = vld [vmem:[%s219 + $0x84] sm:$0xf]
      %v7287 = vld [vmem:[%s219 + $0x88] sm:$0xf]
      %v7288 = vld [vmem:[%s219 + $0x8c] sm:$0xf]
      %v7289 = vld [vmem:[%s219 + $0x90] sm:$0xf]
      %v7290 = vld [vmem:[%s219 + $0x94] sm:$0xf]
      %v7291 = vld [vmem:[%s219 + $0x98] sm:$0xf]
      %v7292 = vld [vmem:[%s219 + $0x9c] sm:$0xf]
      %v7293 = vld [vmem:[%s219 + $0xa0] sm:$0xf]
      %v7294 = vld [vmem:[%s219 + $0xa4] sm:$0xf]
      %v7295 = vld [vmem:[%s219 + $0xa8] sm:$0xf]
      %v7296 = vld [vmem:[%s219 + $0xac] sm:$0xf]
      %v7297 = vld [vmem:[%s219 + $0xb0] sm:$0xf]
      %v7298 = vld [vmem:[%s219 + $0xb4] sm:$0xf]
      %v7299 = vld [vmem:[%s219 + $0xb8] sm:$0xf]
      %v7300 = vld [vmem:[%s219 + $0xbc] sm:$0xf]
      %v7301 = vld [vmem:[%s219 + $0xc0] sm:$0xf]
      %v7302 = vld [vmem:[%s219 + $0xc4] sm:$0xf]
      %v7303 = vld [vmem:[%s219 + $0xc8] sm:$0x1]
      %s7304 = scalar_lea.vmem %s1, 256
      %v7305 = vld [vmem:[%s7304] sm:$0xf]
      %v7306 = vld [vmem:[%s7304 + $0x4] sm:$0xf]
      %v7307 = vld [vmem:[%s7304 + $0x8] sm:$0xf]
      %v7308 = vld [vmem:[%s7304 + $0xc] sm:$0xf]
      %v7350 = vunpack.c.l.b16 %v7263
      %v7351 = vunpack.c.l.b16 %v7264
      %v7352 = vunpack.c.l.b16 %v7265
      %v7353 = vunpack.c.l.b16 %v7266
      %v7354 = vunpack.c.l.b16 %v7267
      %v7355 = vunpack.c.l.b16 %v7268
      %v7356 = vunpack.c.l.b16 %v7269
      %v7357 = vunpack.c.l.b16 %v7270
      %v7358 = vunpack.c.l.b16 %v7271
      %v7359 = vunpack.c.l.b16 %v7272
      %v7360 = vunpack.c.l.b16 %v7273
      %v7361 = vunpack.c.l.b16 %v7274
      %v7362 = vunpack.c.l.b16 %v7275
      %v7363 = vunpack.c.l.b16 %v7276
      %v7364 = vunpack.c.l.b16 %v7277
      %v7365 = vunpack.c.l.b16 %v7278
      %v7366 = vunpack.c.l.b16 %v7279
      %v7367 = vunpack.c.l.b16 %v7280
      %v7368 = vunpack.c.l.b16 %v7281
      %v7369 = vunpack.c.l.b16 %v7282
      %v7370 = vunpack.c.l.b16 %v7283
      %v7371 = vunpack.c.l.b16 %v7284
      %v7372 = vunpack.c.l.b16 %v7285
      %v7373 = vunpack.c.l.b16 %v7286
      %v7374 = vunpack.c.l.b16 %v7287
      %v7375 = vunpack.c.l.b16 %v7288
      %v7376 = vunpack.c.l.b16 %v7289
      %v7377 = vunpack.c.l.b16 %v7290
      %v7378 = vunpack.c.l.b16 %v7291
      %v7379 = vunpack.c.l.b16 %v7292
      %v7380 = vunpack.c.l.b16 %v7293
      %v7381 = vunpack.c.l.b16 %v7294
      %v7382 = vunpack.c.l.b16 %v7295
      %v7383 = vunpack.c.l.b16 %v7296
      %v7384 = vunpack.c.l.b16 %v7297
      %v7385 = vunpack.c.l.b16 %v7298
      %v7386 = vunpack.c.l.b16 %v7299
      %v7387 = vunpack.c.l.b16 %v7300
      %v7388 = vunpack.c.l.b16 %v7301
      %v7389 = vunpack.c.l.b16 %v7302
      %v7390 = vunpack.c.l.b16 %v7303
      %v7391 = vpack.c.b16 %v7351, %v7350
      %v7392 = vpack.c.b16 %v7353, %v7352
      %v7393 = vpack.c.b16 %v7355, %v7354
      %v7394 = vpack.c.b16 %v7357, %v7356
      %v7395 = vpack.c.b16 %v7359, %v7358
      %v7396 = vpack.c.b16 %v7361, %v7360
      %v7397 = vpack.c.b16 %v7363, %v7362
      %v7398 = vpack.c.b16 %v7365, %v7364
      %v7399 = vpack.c.b16 %v7367, %v7366
      %v7400 = vpack.c.b16 %v7369, %v7368
      %v7401 = vpack.c.b16 %v7371, %v7370
      %v7402 = vpack.c.b16 %v7373, %v7372
      %v7403 = vpack.c.b16 %v7375, %v7374
      %v7404 = vpack.c.b16 %v7377, %v7376
      %v7405 = vpack.c.b16 %v7379, %v7378
      %v7406 = vpack.c.b16 %v7381, %v7380
      %v7407 = vpack.c.b16 %v7383, %v7382
      %v7408 = vpack.c.b16 %v7385, %v7384
      %v7409 = vpack.c.b16 %v7387, %v7386
      %v7410 = vpack.c.b16 %v7389, %v7388
      %v7411 = vpack.c.b16 %v7390, %v7390
      %v7412 = vrot.slane %v7391, 1
      %v7413 = vrot.slane %v7392, 1
      %v7414 = vsel %vm2181, %v7412, %v7413
      %v7415 = vrot.slane %v7393, 1
      %v7416 = vsel %vm2181, %v7413, %v7415
      %v7417 = vrot.slane %v7394, 1
      %v7418 = vsel %vm2181, %v7415, %v7417
      %v7419 = vrot.slane %v7395, 1
      %v7420 = vsel %vm2181, %v7417, %v7419
      %v7421 = vrot.slane %v7396, 1
      %v7422 = vsel %vm2181, %v7419, %v7421
      %v7423 = vrot.slane %v7397, 1
      %v7424 = vsel %vm2181, %v7421, %v7423
      %v7425 = vrot.slane %v7398, 1
      %v7426 = vsel %vm2181, %v7423, %v7425
      %v7427 = vrot.slane %v7399, 1
      %v7428 = vsel %vm2181, %v7425, %v7427
      %v7429 = vrot.slane %v7400, 1
      %v7430 = vsel %vm2181, %v7427, %v7429
      %v7431 = vrot.slane %v7401, 1
      %v7432 = vsel %vm2181, %v7429, %v7431
      %v7433 = vrot.slane %v7402, 1
      %v7434 = vsel %vm2181, %v7431, %v7433
      %v7435 = vrot.slane %v7403, 1
      %v7436 = vsel %vm2181, %v7433, %v7435
      %v7437 = vrot.slane %v7404, 1
      %v7438 = vsel %vm2181, %v7435, %v7437
      %v7439 = vrot.slane %v7405, 1
      %v7440 = vsel %vm2181, %v7437, %v7439
      %v7441 = vrot.slane %v7406, 1
      %v7442 = vsel %vm2181, %v7439, %v7441
      %v7443 = vrot.slane %v7407, 1
      %v7444 = vsel %vm2181, %v7441, %v7443
      %v7445 = vrot.slane %v7408, 1
      %v7446 = vsel %vm2181, %v7443, %v7445
      %v7447 = vrot.slane %v7409, 1
      %v7448 = vsel %vm2181, %v7445, %v7447
      %v7449 = vrot.slane %v7410, 1
      %v7450 = vsel %vm2181, %v7447, %v7449
      %v7451 = vrot.slane %v7411, 1
      %v7452 = vsel %vm2181, %v7449, %v7451
      %v7457 = vunpack.c.l.b16 %v7305
      %v7458 = vunpack.c.l.b16 %v7306
      %v7459 = vunpack.c.l.b16 %v7307
      %v7460 = vunpack.c.l.b16 %v7308
      %v7461 = vpack.c.b16 %v7458, %v7457
      %v7462 = vpack.c.b16 %v7460, %v7459
      %v7466 = vsel %vm434, %v7414, 0
      %v7469 = vsel %vm434, %v7416, 0
      %v7472 = vsel %vm434, %v7418, 0
      %v7475 = vsel %vm434, %v7420, 0
      %v7478 = vsel %vm434, %v7422, 0
      %v7481 = vsel %vm434, %v7424, 0
      %v7484 = vsel %vm434, %v7426, 0
      %v7487 = vsel %vm434, %v7428, 0
      %v7490 = vsel %vm434, %v7430, 0
      %v7493 = vsel %vm434, %v7432, 0
      %v7496 = vsel %vm434, %v7434, 0
      %v7499 = vsel %vm434, %v7436, 0
      %v7502 = vsel %vm434, %v7438, 0
      %v7505 = vsel %vm434, %v7440, 0
      %v7508 = vsel %vm434, %v7442, 0
      %v7511 = vsel %vm434, %v7444, 0
      %v7514 = vsel %vm434, %v7446, 0
      %v7517 = vsel %vm434, %v7448, 0
      %v7520 = vsel %vm434, %v7450, 0
      %v7523 = vsel %vm434, %v7452, 0
      %7525 = vmatprep.subr.bf16.mxu0 0
      %7526 = vmatpush1.bf16.msra.mxu0 %v7461
      %7527 = vmatprep.subr.bf16.mxu0 0
      %7528 = vmatpush1.bf16.msra.mxu0 %v7462
      %7529 = vmatprep.subr.bf16.mxu0 0
      %7530 = vmatpush1.bf16.msra.mxu0 0
      %7531 = vmatprep.subr.bf16.mxu0 0
      %7532 = vmatpush1.bf16.msra.mxu0 0
      %7533 = vmatprep.subr.bf16.mxu0 0
      %7534 = vmatpush1.bf16.msra.mxu0 0
      %7535 = vmatprep.subr.bf16.mxu0 0
      %7536 = vmatpush1.bf16.msra.mxu0 0
      %7537 = vmatprep.subr.bf16.mxu0 0
      %7538 = vmatpush1.bf16.msra.mxu0 0
      %7539 = vmatprep.subr.bf16.mxu0 0
      %7540 = vmatpush1.bf16.msra.mxu0 0
      %7541 = vmatprep.subr.bf16.mxu0 0
      %7542 = vmatpush1.bf16.msra.mxu0 0
      %7543 = vmatprep.subr.bf16.mxu0 0
      %7544 = vmatpush1.bf16.msra.mxu0 0
      %7545 = vmatprep.subr.bf16.mxu0 0
      %7546 = vmatpush1.bf16.msra.mxu0 0
      %7547 = vmatprep.subr.bf16.mxu0 0
      %7548 = vmatpush1.bf16.msra.mxu0 0
      %7549 = vmatprep.subr.bf16.mxu0 0
      %7550 = vmatpush1.bf16.msra.mxu0 0
      %7551 = vmatprep.subr.bf16.mxu0 0
      %7552 = vmatpush1.bf16.msra.mxu0 0
      %7553 = vmatprep.subr.bf16.mxu0 0
      %7554 = vmatpush1.bf16.msra.mxu0 0
      %7555 = vmatprep.subr.bf16.mxu0 0
      %7556 = vmatpush1.bf16.msra.mxu0 0
      %7557 = vmatprep.mubr.bf16.mxu0 0
      %7558 = vmatmul.mubr.bf16.gmra.mrb[0].mxu0 %v7466
      %v7559 = vpop.f32.mrb[0].mxu0
      %v7560 = vadd.f32 0.0, %v7559
      %v7561 = vpop.f32.mrb[0].mxu0
      %v7562 = vpop.f32.mrb[0].mxu0
      %v7563 = vadd.f32 0.0, %v7562
      %v7564 = vpop.f32.mrb[0].mxu0
      %7565 = vmatprep.mubr.bf16.mxu0 0
      %7566 = vmatmul.mubr.bf16.gmra.mrb[0].mxu0 %v7469
      %v7567 = vpop.f32.mrb[0].mxu0
      %v7568 = vadd.f32 0.0, %v7567
      %v7569 = vpop.f32.mrb[0].mxu0
      %v7570 = vpop.f32.mrb[0].mxu0
      %v7571 = vadd.f32 0.0, %v7570
      %v7572 = vpop.f32.mrb[0].mxu0
      %7573 = vmatprep.mubr.bf16.mxu0 0
      %7574 = vmatmul.mubr.bf16.gmra.mrb[0].mxu0 %v7472
      %v7575 = vpop.f32.mrb[0].mxu0
      %v7576 = vadd.f32 0.0, %v7575
      %v7577 = vpop.f32.mrb[0].mxu0
      %v7578 = vpop.f32.mrb[0].mxu0
      %v7579 = vadd.f32 0.0, %v7578
      %v7580 = vpop.f32.mrb[0].mxu0
      %7581 = vmatprep.mubr.bf16.mxu0 0
      %7582 = vmatmul.mubr.bf16.gmra.mrb[0].mxu0 %v7475
      %v7583 = vpop.f32.mrb[0].mxu0
      %v7584 = vadd.f32 0.0, %v7583
      %v7585 = vpop.f32.mrb[0].mxu0
      %v7586 = vpop.f32.mrb[0].mxu0
      %v7587 = vadd.f32 0.0, %v7586
      %v7588 = vpop.f32.mrb[0].mxu0
      %7589 = vmatprep.mubr.bf16.mxu0 0
      %7590 = vmatmul.mubr.bf16.gmra.mrb[0].mxu0 %v7478
      %v7591 = vpop.f32.mrb[0].mxu0
      %v7592 = vadd.f32 0.0, %v7591
      %v7593 = vpop.f32.mrb[0].mxu0
      %v7594 = vpop.f32.mrb[0].mxu0
      %v7595 = vadd.f32 0.0, %v7594
      %v7596 = vpop.f32.mrb[0].mxu0
      %7597 = vmatprep.mubr.bf16.mxu0 0
      %7598 = vmatmul.mubr.bf16.gmra.mrb[0].mxu0 %v7481
      %v7599 = vpop.f32.mrb[0].mxu0
      %v7600 = vadd.f32 0.0, %v7599
      %v7601 = vpop.f32.mrb[0].mxu0
      %v7602 = vpop.f32.mrb[0].mxu0
      %v7603 = vadd.f32 0.0, %v7602
      %v7604 = vpop.f32.mrb[0].mxu0
      %7605 = vmatprep.mubr.bf16.mxu0 0
      %7606 = vmatmul.mubr.bf16.gmra.mrb[0].mxu0 %v7484
      %v7607 = vpop.f32.mrb[0].mxu0
      %v7608 = vadd.f32 0.0, %v7607
      %v7609 = vpop.f32.mrb[0].mxu0
      %v7610 = vpop.f32.mrb[0].mxu0
      %v7611 = vadd.f32 0.0, %v7610
      %v7612 = vpop.f32.mrb[0].mxu0
      %7613 = vmatprep.mubr.bf16.mxu0 0
      %7614 = vmatmul.mubr.bf16.gmra.mrb[0].mxu0 %v7487
      %v7615 = vpop.f32.mrb[0].mxu0
      %v7616 = vadd.f32 0.0, %v7615
      %v7617 = vpop.f32.mrb[0].mxu0
      %v7618 = vpop.f32.mrb[0].mxu0
      %v7619 = vadd.f32 0.0, %v7618
      %v7620 = vpop.f32.mrb[0].mxu0
      %7621 = vmatprep.mubr.bf16.mxu0 0
      %7622 = vmatmul.mubr.bf16.gmra.mrb[0].mxu0 %v7490
      %v7623 = vpop.f32.mrb[0].mxu0
      %v7624 = vadd.f32 0.0, %v7623
      %v7625 = vpop.f32.mrb[0].mxu0
      %v7626 = vpop.f32.mrb[0].mxu0
      %v7627 = vadd.f32 0.0, %v7626
      %v7628 = vpop.f32.mrb[0].mxu0
      %7629 = vmatprep.mubr.bf16.mxu0 0
      %7630 = vmatmul.mubr.bf16.gmra.mrb[0].mxu0 %v7493
      %v7631 = vpop.f32.mrb[0].mxu0
      %v7632 = vadd.f32 0.0, %v7631
      %v7633 = vpop.f32.mrb[0].mxu0
      %v7634 = vpop.f32.mrb[0].mxu0
      %v7635 = vadd.f32 0.0, %v7634
      %v7636 = vpop.f32.mrb[0].mxu0
      %7637 = vmatprep.mubr.bf16.mxu0 0
      %7638 = vmatmul.mubr.bf16.gmra.mrb[0].mxu0 %v7496
      %v7639 = vpop.f32.mrb[0].mxu0
      %v7640 = vadd.f32 0.0, %v7639
      %v7641 = vpop.f32.mrb[0].mxu0
      %v7642 = vpop.f32.mrb[0].mxu0
      %v7643 = vadd.f32 0.0, %v7642
      %v7644 = vpop.f32.mrb[0].mxu0
      %7645 = vmatprep.mubr.bf16.mxu0 0
      %7646 = vmatmul.mubr.bf16.gmra.mrb[0].mxu0 %v7499
      %v7647 = vpop.f32.mrb[0].mxu0
      %v7648 = vadd.f32 0.0, %v7647
      %v7649 = vpop.f32.mrb[0].mxu0
      %v7650 = vpop.f32.mrb[0].mxu0
      %v7651 = vadd.f32 0.0, %v7650
      %v7652 = vpop.f32.mrb[0].mxu0
      %7653 = vmatprep.mubr.bf16.mxu0 0
      %7654 = vmatmul.mubr.bf16.gmra.mrb[0].mxu0 %v7502
      %v7655 = vpop.f32.mrb[0].mxu0
      %v7656 = vadd.f32 0.0, %v7655
      %v7657 = vpop.f32.mrb[0].mxu0
      %v7658 = vpop.f32.mrb[0].mxu0
      %v7659 = vadd.f32 0.0, %v7658
      %v7660 = vpop.f32.mrb[0].mxu0
      %7661 = vmatprep.mubr.bf16.mxu0 0
      %7662 = vmatmul.mubr.bf16.gmra.mrb[0].mxu0 %v7505
      %v7663 = vpop.f32.mrb[0].mxu0
      %v7664 = vadd.f32 0.0, %v7663
      %v7665 = vpop.f32.mrb[0].mxu0
      %v7666 = vpop.f32.mrb[0].mxu0
      %v7667 = vadd.f32 0.0, %v7666
      %v7668 = vpop.f32.mrb[0].mxu0
      %7669 = vmatprep.mubr.bf16.mxu0 0
      %7670 = vmatmul.mubr.bf16.gmra.mrb[0].mxu0 %v7508
      %v7671 = vpop.f32.mrb[0].mxu0
      %v7672 = vadd.f32 0.0, %v7671
      %v7673 = vpop.f32.mrb[0].mxu0
      %v7674 = vpop.f32.mrb[0].mxu0
      %v7675 = vadd.f32 0.0, %v7674
      %v7676 = vpop.f32.mrb[0].mxu0
      %7677 = vmatprep.mubr.bf16.mxu0 0
      %7678 = vmatmul.mubr.bf16.gmra.mrb[0].mxu0 %v7511
      %v7679 = vpop.f32.mrb[0].mxu0
      %v7680 = vadd.f32 0.0, %v7679
      %v7681 = vpop.f32.mrb[0].mxu0
      %v7682 = vpop.f32.mrb[0].mxu0
      %v7683 = vadd.f32 0.0, %v7682
      %v7684 = vpop.f32.mrb[0].mxu0
      %7685 = vmatprep.mubr.bf16.mxu0 0
      %7686 = vmatmul.mubr.bf16.gmra.mrb[0].mxu0 %v7514
      %v7687 = vpop.f32.mrb[0].mxu0
      %v7688 = vadd.f32 0.0, %v7687
      %v7689 = vpop.f32.mrb[0].mxu0
      %v7690 = vpop.f32.mrb[0].mxu0
      %v7691 = vadd.f32 0.0, %v7690
      %v7692 = vpop.f32.mrb[0].mxu0
      %7693 = vmatprep.mubr.bf16.mxu0 0
      %7694 = vmatmul.mubr.bf16.gmra.mrb[0].mxu0 %v7517
      %v7695 = vpop.f32.mrb[0].mxu0
      %v7696 = vadd.f32 0.0, %v7695
      %v7697 = vpop.f32.mrb[0].mxu0
      %v7698 = vpop.f32.mrb[0].mxu0
      %v7699 = vadd.f32 0.0, %v7698
      %v7700 = vpop.f32.mrb[0].mxu0
      %7701 = vmatprep.mubr.bf16.mxu0 0
      %7702 = vmatmul.mubr.bf16.gmra.mrb[0].mxu0 %v7520
      %v7703 = vpop.f32.mrb[0].mxu0
      %v7704 = vadd.f32 0.0, %v7703
      %v7705 = vpop.f32.mrb[0].mxu0
      %v7706 = vpop.f32.mrb[0].mxu0
      %v7707 = vadd.f32 0.0, %v7706
      %v7708 = vpop.f32.mrb[0].mxu0
      %7709 = vmatprep.mubr.bf16.mxu0 0
      %7710 = vmatmul.mubr.bf16.gmra.mrb[0].mxu0 %v7523
      %v7711 = vpop.f32.mrb[0].mxu0
      %v7712 = vadd.f32 0.0, %v7711
      %v7713 = vpop.f32.mrb[0].mxu0
      %v7714 = vpop.f32.mrb[0].mxu0
      %v7715 = vadd.f32 0.0, %v7714
      %v7716 = vpop.f32.mrb[0].mxu0
      %7717 = vdwg.mxu0
      %v7718 = vadd.f32 %v7223, %v7560
      %v7719 = vadd.f32 %v7224, %v7563
      %v7720 = vadd.f32 %v7225, %v7568
      %v7721 = vadd.f32 %v7226, %v7571
      %v7722 = vadd.f32 %v7227, %v7576
      %v7723 = vadd.f32 %v7228, %v7579
      %v7724 = vadd.f32 %v7229, %v7584
      %v7725 = vadd.f32 %v7230, %v7587
      %v7726 = vadd.f32 %v7231, %v7592
      %v7727 = vadd.f32 %v7232, %v7595
      %v7728 = vadd.f32 %v7233, %v7600
      %v7729 = vadd.f32 %v7234, %v7603
      %v7730 = vadd.f32 %v7235, %v7608
      %v7731 = vadd.f32 %v7236, %v7611
      %v7732 = vadd.f32 %v7237, %v7616
      %v7733 = vadd.f32 %v7238, %v7619
      %v7734 = vadd.f32 %v7239, %v7624
      %v7735 = vadd.f32 %v7240, %v7627
      %v7736 = vadd.f32 %v7241, %v7632
      %v7737 = vadd.f32 %v7242, %v7635
      %v7738 = vadd.f32 %v7243, %v7640
      %v7739 = vadd.f32 %v7244, %v7643
      %v7740 = vadd.f32 %v7245, %v7648
      %v7741 = vadd.f32 %v7246, %v7651
      %v7742 = vadd.f32 %v7247, %v7656
      %v7743 = vadd.f32 %v7248, %v7659
      %v7744 = vadd.f32 %v7249, %v7664
      %v7745 = vadd.f32 %v7250, %v7667
      %v7746 = vadd.f32 %v7251, %v7672
      %v7747 = vadd.f32 %v7252, %v7675
      %v7748 = vadd.f32 %v7253, %v7680
      %v7749 = vadd.f32 %v7254, %v7683
      %v7750 = vadd.f32 %v7255, %v7688
      %v7751 = vadd.f32 %v7256, %v7691
      %v7752 = vadd.f32 %v7257, %v7696
      %v7753 = vadd.f32 %v7258, %v7699
      %v7754 = vadd.f32 %v7259, %v7704
      %v7755 = vadd.f32 %v7260, %v7707
      %v7756 = vadd.f32 %v7261, %v7712
      %v7757 = vadd.f32 %v7262, %v7715
      %v7758 = vld [vmem:[%s219 + $0x28] sm:$0xc]
      %v7759 = vld [vmem:[%s219 + $0xc8] sm:$0x3]
      %s7760 = scalar_lea.vmem %s1, 272
      %v7761 = vld [vmem:[%s7760] sm:$0xf]
      %v7762 = vld [vmem:[%s7760 + $0x4] sm:$0xf]
      %v7763 = vld [vmem:[%s7760 + $0x8] sm:$0xf]
      %v7764 = vld [vmem:[%s7760 + $0xc] sm:$0xf]
      %v7767 = vunpack.c.l.b16 %v7758
      %v7768 = vunpack.c.l.b16 %v7759
      %v7769 = vpack.c.b16 %v7351, %v7767
      %v7770 = vpack.c.b16 %v7768, %v7768
      %v7771 = vrot.slane %v7769, 2
      %v7772 = vrot.slane %v7392, 2
      %v7773 = vsel %vm5162, %v7771, %v7772
      %v7774 = vrot.slane %v7393, 2
      %v7775 = vsel %vm5162, %v7772, %v7774
      %v7776 = vrot.slane %v7394, 2
      %v7777 = vsel %vm5162, %v7774, %v7776
      %v7778 = vrot.slane %v7395, 2
      %v7779 = vsel %vm5162, %v7776, %v7778
      %v7780 = vrot.slane %v7396, 2
      %v7781 = vsel %vm5162, %v7778, %v7780
      %v7782 = vrot.slane %v7397, 2
      %v7783 = vsel %vm5162, %v7780, %v7782
      %v7784 = vrot.slane %v7398, 2
      %v7785 = vsel %vm5162, %v7782, %v7784
      %v7786 = vrot.slane %v7399, 2
      %v7787 = vsel %vm5162, %v7784, %v7786
      %v7788 = vrot.slane %v7400, 2
      %v7789 = vsel %vm5162, %v7786, %v7788
      %v7790 = vrot.slane %v7401, 2
      %v7791 = vsel %vm5162, %v7788, %v7790
      %v7792 = vrot.slane %v7402, 2
      %v7793 = vsel %vm5162, %v7790, %v7792
      %v7794 = vrot.slane %v7403, 2
      %v7795 = vsel %vm5162, %v7792, %v7794
      %v7796 = vrot.slane %v7404, 2
      %v7797 = vsel %vm5162, %v7794, %v7796
      %v7798 = vrot.slane %v7405, 2
      %v7799 = vsel %vm5162, %v7796, %v7798
      %v7800 = vrot.slane %v7406, 2
      %v7801 = vsel %vm5162, %v7798, %v7800
      %v7802 = vrot.slane %v7407, 2
      %v7803 = vsel %vm5162, %v7800, %v7802
      %v7804 = vrot.slane %v7408, 2
      %v7805 = vsel %vm5162, %v7802, %v7804
      %v7806 = vrot.slane %v7409, 2
      %v7807 = vsel %vm5162, %v7804, %v7806
      %v7808 = vrot.slane %v7410, 2
      %v7809 = vsel %vm5162, %v7806, %v7808
      %v7810 = vrot.slane %v7770, 2
      %v7811 = vsel %vm5162, %v7808, %v7810
      %v7816 = vunpack.c.l.b16 %v7761
      %v7817 = vunpack.c.l.b16 %v7762
      %v7818 = vunpack.c.l.b16 %v7763
      %v7819 = vunpack.c.l.b16 %v7764
      %v7820 = vpack.c.b16 %v7817, %v7816
      %v7821 = vpack.c.b16 %v7819, %v7818
      %v7825 = vsel %vm434, %v7773, 0
      %v7828 = vsel %vm434, %v7775, 0
      %v7831 = vsel %vm434, %v7777, 0
      %v7834 = vsel %vm434, %v7779, 0
      %v7837 = vsel %vm434, %v7781, 0
      %v7840 = vsel %vm434, %v7783, 0
      %v7843 = vsel %vm434, %v7785, 0
      %v7846 = vsel %vm434, %v7787, 0
      %v7849 = vsel %vm434, %v7789, 0
      %v7852 = vsel %vm434, %v7791, 0
      %v7855 = vsel %vm434, %v7793, 0
      %v7858 = vsel %vm434, %v7795, 0
      %v7861 = vsel %vm434, %v7797, 0
      %v7864 = vsel %vm434, %v7799, 0
      %v7867 = vsel %vm434, %v7801, 0
      %v7870 = vsel %vm434, %v7803, 0
      %v7873 = vsel %vm434, %v7805, 0
      %v7876 = vsel %vm434, %v7807, 0
      %v7879 = vsel %vm434, %v7809, 0
      %v7882 = vsel %vm434, %v7811, 0
      %7884 = vmatprep.subr.bf16.mxu0 0
      %7885 = vmatpush1.bf16.msra.mxu0 %v7820
      %7886 = vmatprep.subr.bf16.mxu0 0
      %7887 = vmatpush1.bf16.msra.mxu0 %v7821
      %7888 = vmatprep.subr.bf16.mxu0 0
      %7889 = vmatpush1.bf16.msra.mxu0 0
      %7890 = vmatprep.subr.bf16.mxu0 0
      %7891 = vmatpush1.bf16.msra.mxu0 0
      %7892 = vmatprep.subr.bf16.mxu0 0
      %7893 = vmatpush1.bf16.msra.mxu0 0
      %7894 = vmatprep.subr.bf16.mxu0 0
      %7895 = vmatpush1.bf16.msra.mxu0 0
      %7896 = vmatprep.subr.bf16.mxu0 0
      %7897 = vmatpush1.bf16.msra.mxu0 0
      %7898 = vmatprep.subr.bf16.mxu0 0
      %7899 = vmatpush1.bf16.msra.mxu0 0
      %7900 = vmatprep.subr.bf16.mxu0 0
      %7901 = vmatpush1.bf16.msra.mxu0 0
      %7902 = vmatprep.subr.bf16.mxu0 0
      %7903 = vmatpush1.bf16.msra.mxu0 0
      %7904 = vmatprep.subr.bf16.mxu0 0
      %7905 = vmatpush1.bf16.msra.mxu0 0
      %7906 = vmatprep.subr.bf16.mxu0 0
      %7907 = vmatpush1.bf16.msra.mxu0 0
      %7908 = vmatprep.subr.bf16.mxu0 0
      %7909 = vmatpush1.bf16.msra.mxu0 0
      %7910 = vmatprep.subr.bf16.mxu0 0
      %7911 = vmatpush1.bf16.msra.mxu0 0
      %7912 = vmatprep.subr.bf16.mxu0 0
      %7913 = vmatpush1.bf16.msra.mxu0 0
      %7914 = vmatprep.subr.bf16.mxu0 0
      %7915 = vmatpush1.bf16.msra.mxu0 0
      %7916 = vmatprep.mubr.bf16.mxu0 0
      %7917 = vmatmul.mubr.bf16.gmra.mrb[0].mxu0 %v7825
      %v7918 = vpop.f32.mrb[0].mxu0
      %v7919 = vadd.f32 0.0, %v7918
      %v7920 = vpop.f32.mrb[0].mxu0
      %v7921 = vpop.f32.mrb[0].mxu0
      %v7922 = vadd.f32 0.0, %v7921
      %v7923 = vpop.f32.mrb[0].mxu0
      %7924 = vmatprep.mubr.bf16.mxu0 0
      %7925 = vmatmul.mubr.bf16.gmra.mrb[0].mxu0 %v7828
      %v7926 = vpop.f32.mrb[0].mxu0
      %v7927 = vadd.f32 0.0, %v7926
      %v7928 = vpop.f32.mrb[0].mxu0
      %v7929 = vpop.f32.mrb[0].mxu0
      %v7930 = vadd.f32 0.0, %v7929
      %v7931 = vpop.f32.mrb[0].mxu0
      %7932 = vmatprep.mubr.bf16.mxu0 0
      %7933 = vmatmul.mubr.bf16.gmra.mrb[0].mxu0 %v7831
      %v7934 = vpop.f32.mrb[0].mxu0
      %v7935 = vadd.f32 0.0, %v7934
      %v7936 = vpop.f32.mrb[0].mxu0
      %v7937 = vpop.f32.mrb[0].mxu0
      %v7938 = vadd.f32 0.0, %v7937
      %v7939 = vpop.f32.mrb[0].mxu0
      %7940 = vmatprep.mubr.bf16.mxu0 0
      %7941 = vmatmul.mubr.bf16.gmra.mrb[0].mxu0 %v7834
      %v7942 = vpop.f32.mrb[0].mxu0
      %v7943 = vadd.f32 0.0, %v7942
      %v7944 = vpop.f32.mrb[0].mxu0
      %v7945 = vpop.f32.mrb[0].mxu0
      %v7946 = vadd.f32 0.0, %v7945
      %v7947 = vpop.f32.mrb[0].mxu0
      %7948 = vmatprep.mubr.bf16.mxu0 0
      %7949 = vmatmul.mubr.bf16.gmra.mrb[0].mxu0 %v7837
      %v7950 = vpop.f32.mrb[0].mxu0
      %v7951 = vadd.f32 0.0, %v7950
      %v7952 = vpop.f32.mrb[0].mxu0
      %v7953 = vpop.f32.mrb[0].mxu0
      %v7954 = vadd.f32 0.0, %v7953
      %v7955 = vpop.f32.mrb[0].mxu0
      %7956 = vmatprep.mubr.bf16.mxu0 0
      %7957 = vmatmul.mubr.bf16.gmra.mrb[0].mxu0 %v7840
      %v7958 = vpop.f32.mrb[0].mxu0
      %v7959 = vadd.f32 0.0, %v7958
      %v7960 = vpop.f32.mrb[0].mxu0
      %v7961 = vpop.f32.mrb[0].mxu0
      %v7962 = vadd.f32 0.0, %v7961
      %v7963 = vpop.f32.mrb[0].mxu0
      %7964 = vmatprep.mubr.bf16.mxu0 0
      %7965 = vmatmul.mubr.bf16.gmra.mrb[0].mxu0 %v7843
      %v7966 = vpop.f32.mrb[0].mxu0
      %v7967 = vadd.f32 0.0, %v7966
      %v7968 = vpop.f32.mrb[0].mxu0
      %v7969 = vpop.f32.mrb[0].mxu0
      %v7970 = vadd.f32 0.0, %v7969
      %v7971 = vpop.f32.mrb[0].mxu0
      %7972 = vmatprep.mubr.bf16.mxu0 0
      %7973 = vmatmul.mubr.bf16.gmra.mrb[0].mxu0 %v7846
      %v7974 = vpop.f32.mrb[0].mxu0
      %v7975 = vadd.f32 0.0, %v7974
      %v7976 = vpop.f32.mrb[0].mxu0
      %v7977 = vpop.f32.mrb[0].mxu0
      %v7978 = vadd.f32 0.0, %v7977
      %v7979 = vpop.f32.mrb[0].mxu0
      %7980 = vmatprep.mubr.bf16.mxu0 0
      %7981 = vmatmul.mubr.bf16.gmra.mrb[0].mxu0 %v7849
      %v7982 = vpop.f32.mrb[0].mxu0
      %v7983 = vadd.f32 0.0, %v7982
      %v7984 = vpop.f32.mrb[0].mxu0
      %v7985 = vpop.f32.mrb[0].mxu0
      %v7986 = vadd.f32 0.0, %v7985
      %v7987 = vpop.f32.mrb[0].mxu0
      %7988 = vmatprep.mubr.bf16.mxu0 0
      %7989 = vmatmul.mubr.bf16.gmra.mrb[0].mxu0 %v7852
      %v7990 = vpop.f32.mrb[0].mxu0
      %v7991 = vadd.f32 0.0, %v7990
      %v7992 = vpop.f32.mrb[0].mxu0
      %v7993 = vpop.f32.mrb[0].mxu0
      %v7994 = vadd.f32 0.0, %v7993
      %v7995 = vpop.f32.mrb[0].mxu0
      %7996 = vmatprep.mubr.bf16.mxu0 0
      %7997 = vmatmul.mubr.bf16.gmra.mrb[0].mxu0 %v7855
      %v7998 = vpop.f32.mrb[0].mxu0
      %v7999 = vadd.f32 0.0, %v7998
      %v8000 = vpop.f32.mrb[0].mxu0
      %v8001 = vpop.f32.mrb[0].mxu0
      %v8002 = vadd.f32 0.0, %v8001
      %v8003 = vpop.f32.mrb[0].mxu0
      %8004 = vmatprep.mubr.bf16.mxu0 0
      %8005 = vmatmul.mubr.bf16.gmra.mrb[0].mxu0 %v7858
      %v8006 = vpop.f32.mrb[0].mxu0
      %v8007 = vadd.f32 0.0, %v8006
      %v8008 = vpop.f32.mrb[0].mxu0
      %v8009 = vpop.f32.mrb[0].mxu0
      %v8010 = vadd.f32 0.0, %v8009
      %v8011 = vpop.f32.mrb[0].mxu0
      %8012 = vmatprep.mubr.bf16.mxu0 0
      %8013 = vmatmul.mubr.bf16.gmra.mrb[0].mxu0 %v7861
      %v8014 = vpop.f32.mrb[0].mxu0
      %v8015 = vadd.f32 0.0, %v8014
      %v8016 = vpop.f32.mrb[0].mxu0
      %v8017 = vpop.f32.mrb[0].mxu0
      %v8018 = vadd.f32 0.0, %v8017
      %v8019 = vpop.f32.mrb[0].mxu0
      %8020 = vmatprep.mubr.bf16.mxu0 0
      %8021 = vmatmul.mubr.bf16.gmra.mrb[0].mxu0 %v7864
      %v8022 = vpop.f32.mrb[0].mxu0
      %v8023 = vadd.f32 0.0, %v8022
      %v8024 = vpop.f32.mrb[0].mxu0
      %v8025 = vpop.f32.mrb[0].mxu0
      %v8026 = vadd.f32 0.0, %v8025
      %v8027 = vpop.f32.mrb[0].mxu0
      %8028 = vmatprep.mubr.bf16.mxu0 0
      %8029 = vmatmul.mubr.bf16.gmra.mrb[0].mxu0 %v7867
      %v8030 = vpop.f32.mrb[0].mxu0
      %v8031 = vadd.f32 0.0, %v8030
      %v8032 = vpop.f32.mrb[0].mxu0
      %v8033 = vpop.f32.mrb[0].mxu0
      %v8034 = vadd.f32 0.0, %v8033
      %v8035 = vpop.f32.mrb[0].mxu0
      %8036 = vmatprep.mubr.bf16.mxu0 0
      %8037 = vmatmul.mubr.bf16.gmra.mrb[0].mxu0 %v7870
      %v8038 = vpop.f32.mrb[0].mxu0
      %v8039 = vadd.f32 0.0, %v8038
      %v8040 = vpop.f32.mrb[0].mxu0
      %v8041 = vpop.f32.mrb[0].mxu0
      %v8042 = vadd.f32 0.0, %v8041
      %v8043 = vpop.f32.mrb[0].mxu0
      %8044 = vmatprep.mubr.bf16.mxu0 0
      %8045 = vmatmul.mubr.bf16.gmra.mrb[0].mxu0 %v7873
      %v8046 = vpop.f32.mrb[0].mxu0
      %v8047 = vadd.f32 0.0, %v8046
      %v8048 = vpop.f32.mrb[0].mxu0
      %v8049 = vpop.f32.mrb[0].mxu0
      %v8050 = vadd.f32 0.0, %v8049
      %v8051 = vpop.f32.mrb[0].mxu0
      %8052 = vmatprep.mubr.bf16.mxu0 0
      %8053 = vmatmul.mubr.bf16.gmra.mrb[0].mxu0 %v7876
      %v8054 = vpop.f32.mrb[0].mxu0
      %v8055 = vadd.f32 0.0, %v8054
      %v8056 = vpop.f32.mrb[0].mxu0
      %v8057 = vpop.f32.mrb[0].mxu0
      %v8058 = vadd.f32 0.0, %v8057
      %v8059 = vpop.f32.mrb[0].mxu0
      %8060 = vmatprep.mubr.bf16.mxu0 0
      %8061 = vmatmul.mubr.bf16.gmra.mrb[0].mxu0 %v7879
      %v8062 = vpop.f32.mrb[0].mxu0
      %v8063 = vadd.f32 0.0, %v8062
      %v8064 = vpop.f32.mrb[0].mxu0
      %v8065 = vpop.f32.mrb[0].mxu0
      %v8066 = vadd.f32 0.0, %v8065
      %v8067 = vpop.f32.mrb[0].mxu0
      %8068 = vmatprep.mubr.bf16.mxu0 0
      %8069 = vmatmul.mubr.bf16.gmra.mrb[0].mxu0 %v7882
      %v8070 = vpop.f32.mrb[0].mxu0
      %v8071 = vadd.f32 0.0, %v8070
      %v8072 = vpop.f32.mrb[0].mxu0
      %v8073 = vpop.f32.mrb[0].mxu0
      %v8074 = vadd.f32 0.0, %v8073
      %v8075 = vpop.f32.mrb[0].mxu0
      %8076 = vdwg.mxu0
      %v8077 = vadd.f32 %v7718, %v7919
      %v8078 = vadd.f32 %v7719, %v7922
      %v8079 = vadd.f32 %v7720, %v7927
      %v8080 = vadd.f32 %v7721, %v7930
      %v8081 = vadd.f32 %v7722, %v7935
      %v8082 = vadd.f32 %v7723, %v7938
      %v8083 = vadd.f32 %v7724, %v7943
      %v8084 = vadd.f32 %v7725, %v7946
      %v8085 = vadd.f32 %v7726, %v7951
      %v8086 = vadd.f32 %v7727, %v7954
      %v8087 = vadd.f32 %v7728, %v7959
      %v8088 = vadd.f32 %v7729, %v7962
      %v8089 = vadd.f32 %v7730, %v7967
      %v8090 = vadd.f32 %v7731, %v7970
      %v8091 = vadd.f32 %v7732, %v7975
      %v8092 = vadd.f32 %v7733, %v7978
      %v8093 = vadd.f32 %v7734, %v7983
      %v8094 = vadd.f32 %v7735, %v7986
      %v8095 = vadd.f32 %v7736, %v7991
      %v8096 = vadd.f32 %v7737, %v7994
      %v8097 = vadd.f32 %v7738, %v7999
      %v8098 = vadd.f32 %v7739, %v8002
      %v8099 = vadd.f32 %v7740, %v8007
      %v8100 = vadd.f32 %v7741, %v8010
      %v8101 = vadd.f32 %v7742, %v8015
      %v8102 = vadd.f32 %v7743, %v8018
      %v8103 = vadd.f32 %v7744, %v8023
      %v8104 = vadd.f32 %v7745, %v8026
      %v8105 = vadd.f32 %v7746, %v8031
      %v8106 = vadd.f32 %v7747, %v8034
      %v8107 = vadd.f32 %v7748, %v8039
      %v8108 = vadd.f32 %v7749, %v8042
      %v8109 = vadd.f32 %v7750, %v8047
      %v8110 = vadd.f32 %v7751, %v8050
      %v8111 = vadd.f32 %v7752, %v8055
      %v8112 = vadd.f32 %v7753, %v8058
      %v8113 = vadd.f32 %v7754, %v8063
      %v8114 = vadd.f32 %v7755, %v8066
      %v8115 = vadd.f32 %v7756, %v8071
      %v8116 = vadd.f32 %v7757, %v8074
      %v8117 = vmax.f32 %v8077, 0.0
      %v8118 = vmax.f32 %v8078, 0.0
      %v8119 = vmax.f32 %v8079, 0.0
      %v8120 = vmax.f32 %v8080, 0.0
      %v8121 = vmax.f32 %v8081, 0.0
      %v8122 = vmax.f32 %v8082, 0.0
      %v8123 = vmax.f32 %v8083, 0.0
      %v8124 = vmax.f32 %v8084, 0.0
      %v8125 = vmax.f32 %v8085, 0.0
      %v8126 = vmax.f32 %v8086, 0.0
      %v8127 = vmax.f32 %v8087, 0.0
      %v8128 = vmax.f32 %v8088, 0.0
      %v8129 = vmax.f32 %v8089, 0.0
      %v8130 = vmax.f32 %v8090, 0.0
      %v8131 = vmax.f32 %v8091, 0.0
      %v8132 = vmax.f32 %v8092, 0.0
      %v8133 = vmax.f32 %v8093, 0.0
      %v8134 = vmax.f32 %v8094, 0.0
      %v8135 = vmax.f32 %v8095, 0.0
      %v8136 = vmax.f32 %v8096, 0.0
      %v8137 = vmax.f32 %v8097, 0.0
      %v8138 = vmax.f32 %v8098, 0.0
      %v8139 = vmax.f32 %v8099, 0.0
      %v8140 = vmax.f32 %v8100, 0.0
      %v8141 = vmax.f32 %v8101, 0.0
      %v8142 = vmax.f32 %v8102, 0.0
      %v8143 = vmax.f32 %v8103, 0.0
      %v8144 = vmax.f32 %v8104, 0.0
      %v8145 = vmax.f32 %v8105, 0.0
      %v8146 = vmax.f32 %v8106, 0.0
      %v8147 = vmax.f32 %v8107, 0.0
      %v8148 = vmax.f32 %v8108, 0.0
      %v8149 = vmax.f32 %v8109, 0.0
      %v8150 = vmax.f32 %v8110, 0.0
      %v8151 = vmax.f32 %v8111, 0.0
      %v8152 = vmax.f32 %v8112, 0.0
      %v8153 = vmax.f32 %v8113, 0.0
      %v8154 = vmax.f32 %v8114, 0.0
      %v8155 = vmax.f32 %v8115, 0.0
      %v8156 = vmax.f32 %v8116, 0.0
      %v8157 = vpack.c.bf16 %v8118, %v8117
      %v8158 = vpack.c.bf16 %v8120, %v8119
      %v8159 = vpack.c.bf16 %v8122, %v8121
      %v8160 = vpack.c.bf16 %v8124, %v8123
      %v8161 = vpack.c.bf16 %v8126, %v8125
      %v8162 = vpack.c.bf16 %v8128, %v8127
      %v8163 = vpack.c.bf16 %v8130, %v8129
      %v8164 = vpack.c.bf16 %v8132, %v8131
      %v8165 = vpack.c.bf16 %v8134, %v8133
      %v8166 = vpack.c.bf16 %v8136, %v8135
      %v8167 = vpack.c.bf16 %v8138, %v8137
      %v8168 = vpack.c.bf16 %v8140, %v8139
      %v8169 = vpack.c.bf16 %v8142, %v8141
      %v8170 = vpack.c.bf16 %v8144, %v8143
      %v8171 = vpack.c.bf16 %v8146, %v8145
      %v8172 = vpack.c.bf16 %v8148, %v8147
      %v8173 = vpack.c.bf16 %v8150, %v8149
      %v8174 = vpack.c.bf16 %v8152, %v8151
      %v8175 = vpack.c.bf16 %v8154, %v8153
      %v8176 = vpack.c.bf16 %v8156, %v8155
      %8177 = vst.msk [vmem:[#allocation2 + $0xa0] sm:$0xff] %vm434, %v8157
      %8178 = vst.msk [vmem:[#allocation2 + $0xa8] sm:$0xff] %vm434, %v8158
      %8179 = vst.msk [vmem:[#allocation2 + $0xb0] sm:$0xff] %vm434, %v8159
      %8180 = vst.msk [vmem:[#allocation2 + $0xb8] sm:$0xff] %vm434, %v8160
      %8181 = vst.msk [vmem:[#allocation2 + $0xc0] sm:$0xff] %vm434, %v8161
      %8182 = vst.msk [vmem:[#allocation2 + $0xc8] sm:$0xff] %vm434, %v8162
      %8183 = vst.msk [vmem:[#allocation2 + $0xd0] sm:$0xff] %vm434, %v8163
      %8184 = vst.msk [vmem:[#allocation2 + $0xd8] sm:$0xff] %vm434, %v8164
      %8185 = vst.msk [vmem:[#allocation2 + $0xe0] sm:$0xff] %vm434, %v8165
      %8186 = vst.msk [vmem:[#allocation2 + $0xe8] sm:$0xff] %vm434, %v8166
      %8187 = vst.msk [vmem:[#allocation2 + $0xf0] sm:$0xff] %vm434, %v8167
      %8188 = vst.msk [vmem:[#allocation2 + $0xf8] sm:$0xff] %vm434, %v8168
      %8189 = vst.msk [vmem:[#allocation2 + $0x100] sm:$0xff] %vm434, %v8169
      %8190 = vst.msk [vmem:[#allocation2 + $0x108] sm:$0xff] %vm434, %v8170
      %8191 = vst.msk [vmem:[#allocation2 + $0x110] sm:$0xff] %vm434, %v8171
      %8192 = vst.msk [vmem:[#allocation2 + $0x118] sm:$0xff] %vm434, %v8172
      %8193 = vst.msk [vmem:[#allocation2 + $0x120] sm:$0xff] %vm434, %v8173
      %8194 = vst.msk [vmem:[#allocation2 + $0x128] sm:$0xff] %vm434, %v8174
      %8195 = vst.msk [vmem:[#allocation2 + $0x130] sm:$0xff] %vm434, %v8175
      %8196 = vst.msk [vmem:[#allocation2 + $0x138] sm:$0xff] %vm434, %v8176
      %v8197 = vld [vmem:[%s4] sm:$0x1f]
      %v8198 = vld [vmem:[#allocation2] sm:$0xff]
      %v8199 = vld [vmem:[#allocation2 + $0x8] sm:$0xff]
      %v8200 = vld [vmem:[#allocation2 + $0x10] sm:$0xff]
      %v8201 = vld [vmem:[#allocation2 + $0x18] sm:$0xff]
      %v8202 = vld [vmem:[#allocation2 + $0x20] sm:$0xff]
      %v8203 = vld [vmem:[#allocation2 + $0x28] sm:$0xff]
      %v8204 = vld [vmem:[#allocation2 + $0x30] sm:$0xff]
      %v8205 = vld [vmem:[#allocation2 + $0x38] sm:$0xff]
      %v8206 = vld [vmem:[#allocation2 + $0x40] sm:$0xff]
      %v8207 = vld [vmem:[#allocation2 + $0x48] sm:$0xff]
      %v8208 = vld [vmem:[#allocation2 + $0x50] sm:$0xff]
      %v8209 = vld [vmem:[#allocation2 + $0x58] sm:$0xff]
      %v8210 = vld [vmem:[#allocation2 + $0x60] sm:$0xff]
      %v8211 = vld [vmem:[#allocation2 + $0x68] sm:$0xff]
      %v8212 = vld [vmem:[#allocation2 + $0x70] sm:$0xff]
      %v8213 = vld [vmem:[#allocation2 + $0x78] sm:$0xff]
      %v8214 = vld [vmem:[#allocation2 + $0x80] sm:$0xff]
      %v8215 = vld [vmem:[#allocation2 + $0x88] sm:$0xff]
      %v8216 = vld [vmem:[#allocation2 + $0x90] sm:$0xff]
      %v8217 = vld [vmem:[#allocation2 + $0x98] sm:$0xff]
      %v8218 = vld [vmem:[#allocation2 + $0xa0] sm:$0xff]
      %v8219 = vld [vmem:[#allocation2 + $0xa8] sm:$0xff]
      %v8220 = vld [vmem:[#allocation2 + $0xb0] sm:$0xff]
      %v8221 = vld [vmem:[#allocation2 + $0xb8] sm:$0xff]
      %v8222 = vld [vmem:[#allocation2 + $0xc0] sm:$0xff]
      %v8223 = vld [vmem:[#allocation2 + $0xc8] sm:$0xff]
      %v8224 = vld [vmem:[#allocation2 + $0xd0] sm:$0xff]
      %v8225 = vld [vmem:[#allocation2 + $0xd8] sm:$0xff]
      %v8226 = vld [vmem:[#allocation2 + $0xe0] sm:$0xff]
      %v8227 = vld [vmem:[#allocation2 + $0xe8] sm:$0xff]
      %v8228 = vld [vmem:[#allocation2 + $0xf0] sm:$0xff]
      %v8229 = vld [vmem:[#allocation2 + $0xf8] sm:$0xff]
      %v8230 = vld [vmem:[#allocation2 + $0x100] sm:$0xff]
      %v8231 = vld [vmem:[#allocation2 + $0x108] sm:$0xff]
      %v8232 = vld [vmem:[#allocation2 + $0x110] sm:$0xff]
      %v8233 = vld [vmem:[#allocation2 + $0x118] sm:$0xff]
      %v8234 = vld [vmem:[#allocation2 + $0x120] sm:$0xff]
      %v8235 = vld [vmem:[#allocation2 + $0x128] sm:$0xff]
      %v8236 = vld [vmem:[#allocation2 + $0x130] sm:$0xff]
      %v8237 = vld [vmem:[#allocation2 + $0x138] sm:$0xff]
      %v8239 = vcombine.high %v8197, %v8197
      %v8241 = vunpack.c.l.s4 1966171168
      %v8242 = vunpack.c.0.s8 %v8241
      %v8243 = vlaneseq
      %v8244 = vshrl.u32 %v8243, 7
      %v8245 = vsub.s32 %v8242, %v8244
      %v8246 = vrot.slane %v8197, %v8245
      %v8248 = vunpack.c.l.s4 1966171168
      %v8249 = vunpack.c.0.s8 %v8248
      %v8250 = vlaneseq
      %v8251 = vshrl.u32 %v8250, 7
      %v8252 = vsub.s32 %v8249, %v8251
      %v8253 = vrot.slane %v8239, %v8252
      %v8254 = vcombine.high %v8246, %v8246
      %v8256 = vunpack.c.l.s4 1966171168
      %v8257 = vunpack.c.0.s8 %v8256
      %v8258 = vlaneseq
      %v8259 = vshrl.u32 %v8258, 7
      %v8260 = vsub.s32 %v8257, %v8259
      %v8261 = vrot.slane %v8246, %v8260
      %v8263 = vunpack.c.l.s4 1966171168
      %v8264 = vunpack.c.0.s8 %v8263
      %v8265 = vlaneseq
      %v8266 = vshrl.u32 %v8265, 7
      %v8267 = vsub.s32 %v8264, %v8266
      %v8268 = vrot.slane %v8253, %v8267
      %v8270 = vunpack.c.l.s4 1966171168
      %v8271 = vunpack.c.0.s8 %v8270
      %v8272 = vlaneseq
      %v8273 = vshrl.u32 %v8272, 7
      %v8274 = vsub.s32 %v8271, %v8273
      %v8275 = vrot.slane %v8254, %v8274
      %v8276 = vcombine.high %v8261, %v8261
      %v8277 = vcombine.high %v8275, %v8275
      %8283 = vmatprep.subr.bf16.mxu0 0
      %8284 = vmatpush1.bf16.msra.mxu0 %v8198
      %8285 = vmatprep.subr.bf16.mxu0 0
      %8286 = vmatpush1.bf16.msra.mxu0 %v8199
      %8287 = vmatprep.subr.bf16.mxu0 0
      %8288 = vmatpush1.bf16.msra.mxu0 %v8200
      %8289 = vmatprep.subr.bf16.mxu0 0
      %8290 = vmatpush1.bf16.msra.mxu0 %v8201
      %8291 = vmatprep.subr.bf16.mxu0 0
      %8292 = vmatpush1.bf16.msra.mxu0 %v8202
      %8293 = vmatprep.subr.bf16.mxu0 0
      %8294 = vmatpush1.bf16.msra.mxu0 %v8203
      %8295 = vmatprep.subr.bf16.mxu0 0
      %8296 = vmatpush1.bf16.msra.mxu0 %v8204
      %8297 = vmatprep.subr.bf16.mxu0 0
      %8298 = vmatpush1.bf16.msra.mxu0 %v8205
      %8299 = vmatprep.subr.bf16.mxu0 0
      %8300 = vmatpush1.bf16.msra.mxu0 %v8206
      %8301 = vmatprep.subr.bf16.mxu0 0
      %8302 = vmatpush1.bf16.msra.mxu0 %v8207
      %8303 = vmatprep.subr.bf16.mxu0 0
      %8304 = vmatpush1.bf16.msra.mxu0 %v8208
      %8305 = vmatprep.subr.bf16.mxu0 0
      %8306 = vmatpush1.bf16.msra.mxu0 %v8209
      %8307 = vmatprep.subr.bf16.mxu0 0
      %8308 = vmatpush1.bf16.msra.mxu0 %v8210
      %8309 = vmatprep.subr.bf16.mxu0 0
      %8310 = vmatpush1.bf16.msra.mxu0 %v8211
      %8311 = vmatprep.subr.bf16.mxu0 0
      %8312 = vmatpush1.bf16.msra.mxu0 %v8212
      %8313 = vmatprep.subr.bf16.mxu0 0
      %8314 = vmatpush1.bf16.msra.mxu0 %v8213
      %8315 = vmatprep.mubr.bf16.mxu0 %v8275
      %8316 = vmatmul.mubr.bf16.gmra.mrb[0].mxu0 %v8261
      %v8317 = vpop.f32.mrb[0].mxu0
      %v8318 = vadd.f32 0.0, %v8317
      %v8319 = vpop.f32.mrb[0].mxu0
      %v8320 = vpop.f32.mrb[0].mxu0
      %v8321 = vpop.f32.mrb[0].mxu0
      %8322 = vdwg.mxu0
      %8323 = vmatprep.subr.bf16.mxu0 0
      %8324 = vmatpush1.bf16.msra.mxu0 %v8214
      %8325 = vmatprep.subr.bf16.mxu0 0
      %8326 = vmatpush1.bf16.msra.mxu0 %v8215
      %8327 = vmatprep.subr.bf16.mxu0 0
      %8328 = vmatpush1.bf16.msra.mxu0 %v8216
      %8329 = vmatprep.subr.bf16.mxu0 0
      %8330 = vmatpush1.bf16.msra.mxu0 %v8217
      %8331 = vmatprep.subr.bf16.mxu0 0
      %8332 = vmatpush1.bf16.msra.mxu0 %v8218
      %8333 = vmatprep.subr.bf16.mxu0 0
      %8334 = vmatpush1.bf16.msra.mxu0 %v8219
      %8335 = vmatprep.subr.bf16.mxu0 0
      %8336 = vmatpush1.bf16.msra.mxu0 %v8220
      %8337 = vmatprep.subr.bf16.mxu0 0
      %8338 = vmatpush1.bf16.msra.mxu0 %v8221
      %8339 = vmatprep.subr.bf16.mxu0 0
      %8340 = vmatpush1.bf16.msra.mxu0 %v8222
      %8341 = vmatprep.subr.bf16.mxu0 0
      %8342 = vmatpush1.bf16.msra.mxu0 %v8223
      %8343 = vmatprep.subr.bf16.mxu0 0
      %8344 = vmatpush1.bf16.msra.mxu0 %v8224
      %8345 = vmatprep.subr.bf16.mxu0 0
      %8346 = vmatpush1.bf16.msra.mxu0 %v8225
      %8347 = vmatprep.subr.bf16.mxu0 0
      %8348 = vmatpush1.bf16.msra.mxu0 %v8226
      %8349 = vmatprep.subr.bf16.mxu0 0
      %8350 = vmatpush1.bf16.msra.mxu0 %v8227
      %8351 = vmatprep.subr.bf16.mxu0 0
      %8352 = vmatpush1.bf16.msra.mxu0 %v8228
      %8353 = vmatprep.subr.bf16.mxu0 0
      %8354 = vmatpush1.bf16.msra.mxu0 %v8229
      %8355 = vmatprep.mubr.bf16.mxu0 %v8277
      %8356 = vmatmul.mubr.bf16.gmra.mrb[0].mxu0 %v8276
      %v8357 = vpop.f32.mrb[0].mxu0
      %v8358 = vadd.f32 %v8318, %v8357
      %v8359 = vpop.f32.mrb[0].mxu0
      %v8360 = vpop.f32.mrb[0].mxu0
      %v8361 = vpop.f32.mrb[0].mxu0
      %8362 = vdwg.mxu0
      %8363 = vmatprep.subr.bf16.mxu0 0
      %8364 = vmatpush1.bf16.msra.mxu0 %v8230
      %8365 = vmatprep.subr.bf16.mxu0 0
      %8366 = vmatpush1.bf16.msra.mxu0 %v8231
      %8367 = vmatprep.subr.bf16.mxu0 0
      %8368 = vmatpush1.bf16.msra.mxu0 %v8232
      %8369 = vmatprep.subr.bf16.mxu0 0
      %8370 = vmatpush1.bf16.msra.mxu0 %v8233
      %8371 = vmatprep.subr.bf16.mxu0 0
      %8372 = vmatpush1.bf16.msra.mxu0 %v8234
      %8373 = vmatprep.subr.bf16.mxu0 0
      %8374 = vmatpush1.bf16.msra.mxu0 %v8235
      %8375 = vmatprep.subr.bf16.mxu0 0
      %8376 = vmatpush1.bf16.msra.mxu0 %v8236
      %8377 = vmatprep.subr.bf16.mxu0 0
      %8378 = vmatpush1.bf16.msra.mxu0 %v8237
      %8379 = vmatprep.subr.bf16.mxu0 0
      %8380 = vmatpush1.bf16.msra.mxu0 0
      %8381 = vmatprep.subr.bf16.mxu0 0
      %8382 = vmatpush1.bf16.msra.mxu0 0
      %8383 = vmatprep.subr.bf16.mxu0 0
      %8384 = vmatpush1.bf16.msra.mxu0 0
      %8385 = vmatprep.subr.bf16.mxu0 0
      %8386 = vmatpush1.bf16.msra.mxu0 0
      %8387 = vmatprep.subr.bf16.mxu0 0
      %8388 = vmatpush1.bf16.msra.mxu0 0
      %8389 = vmatprep.subr.bf16.mxu0 0
      %8390 = vmatpush1.bf16.msra.mxu0 0
      %8391 = vmatprep.subr.bf16.mxu0 0
      %8392 = vmatpush1.bf16.msra.mxu0 0
      %8393 = vmatprep.subr.bf16.mxu0 0
      %8394 = vmatpush1.bf16.msra.mxu0 0
      %8395 = vmatprep.mubr.bf16.mxu0 0
      %8396 = vmatmul.mubr.bf16.gmra.mrb[0].mxu0 %v8268
      %v8397 = vpop.f32.mrb[0].mxu0
      %v8398 = vadd.f32 %v8358, %v8397
      %v8399 = vpop.f32.mrb[0].mxu0
      %v8400 = vpop.f32.mrb[0].mxu0
      %v8401 = vpop.f32.mrb[0].mxu0
      %8402 = vdwg.mxu0
      %v8403 = vld [vmem:[%s2] sm:$0xff]
      %v8404 = vld [vmem:[%s2 + $0x8] sm:$0xff]
      %v8405 = vld [vmem:[%s2 + $0x10] sm:$0xff]
      %v8406 = vld [vmem:[%s2 + $0x18] sm:$0xff]
      %v8408 = vsel %vm434, %v8398, 0
      %8410 = vmatprep.subr.mxu0 0.0
      %8411 = vmatpush1.msra.mxu0 %v8403
      %8412 = vmatprep.subr.mxu0 0.0
      %8413 = vmatpush1.msra.mxu0 %v8404
      %8414 = vmatprep.subr.mxu0 0.0
      %8415 = vmatpush1.msra.mxu0 %v8405
      %8416 = vmatprep.subr.mxu0 0.0
      %8417 = vmatpush1.msra.mxu0 %v8406
      %8418 = vmatprep.subr.mxu0 0.0
      %8419 = vmatpush1.msra.mxu0 0.0
      %8420 = vmatprep.subr.mxu0 0.0
      %8421 = vmatpush1.msra.mxu0 0.0
      %8422 = vmatprep.subr.mxu0 0.0
      %8423 = vmatpush1.msra.mxu0 0.0
      %8424 = vmatprep.subr.mxu0 0.0
      %8425 = vmatpush1.msra.mxu0 0.0
      %8426 = vmatprep.subr.mxu0 0.0
      %8427 = vmatpush1.msra.mxu0 0.0
      %8428 = vmatprep.subr.mxu0 0.0
      %8429 = vmatpush1.msra.mxu0 0.0
      %8430 = vmatprep.subr.mxu0 0.0
      %8431 = vmatpush1.msra.mxu0 0.0
      %8432 = vmatprep.subr.mxu0 0.0
      %8433 = vmatpush1.msra.mxu0 0.0
      %8434 = vmatprep.subr.mxu0 0.0
      %8435 = vmatpush1.msra.mxu0 0.0
      %8436 = vmatprep.subr.mxu0 0.0
      %8437 = vmatpush1.msra.mxu0 0.0
      %8438 = vmatprep.subr.mxu0 0.0
      %8439 = vmatpush1.msra.mxu0 0.0
      %8440 = vmatprep.subr.mxu0 0.0
      %8441 = vmatpush1.msra.mxu0 0.0
      %8442 = vmatprep.subr.mxu0 0.0
      %8443 = vmatpush1.msra.mxu0 0.0
      %8444 = vmatprep.subr.mxu0 0.0
      %8445 = vmatpush1.msra.mxu0 0.0
      %8446 = vmatprep.subr.mxu0 0.0
      %8447 = vmatpush1.msra.mxu0 0.0
      %8448 = vmatprep.subr.mxu0 0.0
      %8449 = vmatpush1.msra.mxu0 0.0
      %8450 = vmatprep.subr.mxu0 0.0
      %8451 = vmatpush1.msra.mxu0 0.0
      %8452 = vmatprep.subr.mxu0 0.0
      %8453 = vmatpush1.msra.mxu0 0.0
      %8454 = vmatprep.subr.mxu0 0.0
      %8455 = vmatpush1.msra.mxu0 0.0
      %8456 = vmatprep.subr.mxu0 0.0
      %8457 = vmatpush1.msra.mxu0 0.0
      %8458 = vmatprep.subr.mxu0 0.0
      %8459 = vmatpush1.msra.mxu0 0.0
      %8460 = vmatprep.subr.mxu0 0.0
      %8461 = vmatpush1.msra.mxu0 0.0
      %8462 = vmatprep.subr.mxu0 0.0
      %8463 = vmatpush1.msra.mxu0 0.0
      %8464 = vmatprep.subr.mxu0 0.0
      %8465 = vmatpush1.msra.mxu0 0.0
      %8466 = vmatprep.subr.mxu0 0.0
      %8467 = vmatpush1.msra.mxu0 0.0
      %8468 = vmatprep.subr.mxu0 0.0
      %8469 = vmatpush1.msra.mxu0 0.0
      %8470 = vmatprep.subr.mxu0 0.0
      %8471 = vmatpush1.msra.mxu0 0.0
      %8472 = vmatprep.subr.mxu0 0.0
      %8473 = vmatpush1.msra.mxu0 0.0
      %8474 = vmatprep.mubr.f32.mxu0 0.0
      %8475 = vmatmul.mubr.f32.gmra.mrb[0].mxu0 %v8408
      %v8476 = vpop.f32.mrb[0].mxu0
      %v8477 = vadd.f32 0.0, %v8476
      %v8478 = vpop.f32.mrb[0].mxu0
      %8479 = vdwg.mxu0
      %v8480 = vmax.f32 %v8477, 0.0
      %v8481 = vld [vmem:[%s3] sm:$0xff]
      %v8482 = vld [vmem:[%s3 + $0x8] sm:$0xff]
      %v8483 = vld [vmem:[%s3 + $0x10] sm:$0xff]
      %v8484 = vld [vmem:[%s3 + $0x18] sm:$0xff]
      %v8486 = vsel %vm434, %v8480, 0
      %8488 = vmatprep.subr.mxu0 0.0
      %8489 = vmatpush1.msra.mxu0 %v8481
      %8490 = vmatprep.subr.mxu0 0.0
      %8491 = vmatpush1.msra.mxu0 %v8482
      %8492 = vmatprep.subr.mxu0 0.0
      %8493 = vmatpush1.msra.mxu0 %v8483
      %8494 = vmatprep.subr.mxu0 0.0
      %8495 = vmatpush1.msra.mxu0 %v8484
      %8496 = vmatprep.subr.mxu0 0.0
      %8497 = vmatpush1.msra.mxu0 0.0
      %8498 = vmatprep.subr.mxu0 0.0
      %8499 = vmatpush1.msra.mxu0 0.0
      %8500 = vmatprep.subr.mxu0 0.0
      %8501 = vmatpush1.msra.mxu0 0.0
      %8502 = vmatprep.subr.mxu0 0.0
      %8503 = vmatpush1.msra.mxu0 0.0
      %8504 = vmatprep.subr.mxu0 0.0
      %8505 = vmatpush1.msra.mxu0 0.0
      %8506 = vmatprep.subr.mxu0 0.0
      %8507 = vmatpush1.msra.mxu0 0.0
      %8508 = vmatprep.subr.mxu0 0.0
      %8509 = vmatpush1.msra.mxu0 0.0
      %8510 = vmatprep.subr.mxu0 0.0
      %8511 = vmatpush1.msra.mxu0 0.0
      %8512 = vmatprep.subr.mxu0 0.0
      %8513 = vmatpush1.msra.mxu0 0.0
      %8514 = vmatprep.subr.mxu0 0.0
      %8515 = vmatpush1.msra.mxu0 0.0
      %8516 = vmatprep.subr.mxu0 0.0
      %8517 = vmatpush1.msra.mxu0 0.0
      %8518 = vmatprep.subr.mxu0 0.0
      %8519 = vmatpush1.msra.mxu0 0.0
      %8520 = vmatprep.subr.mxu0 0.0
      %8521 = vmatpush1.msra.mxu0 0.0
      %8522 = vmatprep.subr.mxu0 0.0
      %8523 = vmatpush1.msra.mxu0 0.0
      %8524 = vmatprep.subr.mxu0 0.0
      %8525 = vmatpush1.msra.mxu0 0.0
      %8526 = vmatprep.subr.mxu0 0.0
      %8527 = vmatpush1.msra.mxu0 0.0
      %8528 = vmatprep.subr.mxu0 0.0
      %8529 = vmatpush1.msra.mxu0 0.0
      %8530 = vmatprep.subr.mxu0 0.0
      %8531 = vmatpush1.msra.mxu0 0.0
      %8532 = vmatprep.subr.mxu0 0.0
      %8533 = vmatpush1.msra.mxu0 0.0
      %8534 = vmatprep.subr.mxu0 0.0
      %8535 = vmatpush1.msra.mxu0 0.0
      %8536 = vmatprep.subr.mxu0 0.0
      %8537 = vmatpush1.msra.mxu0 0.0
      %8538 = vmatprep.subr.mxu0 0.0
      %8539 = vmatpush1.msra.mxu0 0.0
      %8540 = vmatprep.subr.mxu0 0.0
      %8541 = vmatpush1.msra.mxu0 0.0
      %8542 = vmatprep.subr.mxu0 0.0
      %8543 = vmatpush1.msra.mxu0 0.0
      %8544 = vmatprep.subr.mxu0 0.0
      %8545 = vmatpush1.msra.mxu0 0.0
      %8546 = vmatprep.subr.mxu0 0.0
      %8547 = vmatpush1.msra.mxu0 0.0
      %8548 = vmatprep.subr.mxu0 0.0
      %8549 = vmatpush1.msra.mxu0 0.0
      %8550 = vmatprep.subr.mxu0 0.0
      %8551 = vmatpush1.msra.mxu0 0.0
      %8552 = vmatprep.mubr.f32.mxu0 0.0
      %8553 = vmatmul.mubr.f32.gmra.mrb[0].mxu0 %v8486
      %v8554 = vpop.f32.mrb[0].mxu0
      %v8555 = vadd.f32 0.0, %v8554
      %v8556 = vpop.f32.mrb[0].mxu0
      %8557 = vdwg.mxu0
      %8559 = vrot.lane.b32.xlu0 %v8555, 96
      %v8560 = vpop.permute.xlu0 %8559
      %v8562 = vmax.f32 %v8555, %v8560
      %v8563 = vsub.f32 %v8555, %v8562
      %v8564 = vmul.f32 %v8563, 1.442695
      %v8565 = vpow.pop %v8564
      %8567 = vrot.lane.b32.xlu0 %v8562, 32
      %v8568 = vpop.permute.xlu0 %8567
      %v8570 = vsub.f32 %v8555, %v8568
      %v8571 = vmul.f32 %v8570, 1.442695
      %v8572 = vpow.pop %v8571
      %8574 = vrot.lane.b32.xlu0 %v8572, 96
      %v8575 = vpop.permute.xlu0 %8574
      %v8577 = vadd.f32 %v8565, %v8575
      %v8578 = vrcp.pop %v8577
      %v8579 = vmul.f32 %v8565, %v8578
      %8581 = vrot.lane.b32.xlu0 %v8578, 32
      %v8582 = vpop.permute.xlu0 %8581
      %v8584 = vmul.f32 %v8572, %v8582
      %v8585 = vld [vmem:[#allocation2] sm:$0xff]
      %v8586 = vld [vmem:[#allocation2 + $0x8] sm:$0xff]
      %v8587 = vld [vmem:[#allocation2 + $0x10] sm:$0xff]
      %v8588 = vld [vmem:[#allocation2 + $0x18] sm:$0xff]
      %v8589 = vld [vmem:[#allocation2 + $0x20] sm:$0xff]
      %v8590 = vld [vmem:[#allocation2 + $0x28] sm:$0xff]
      %v8591 = vld [vmem:[#allocation2 + $0x30] sm:$0xff]
      %v8592 = vld [vmem:[#allocation2 + $0x38] sm:$0xff]
      %v8593 = vld [vmem:[#allocation2 + $0x40] sm:$0xff]
      %v8594 = vld [vmem:[#allocation2 + $0x48] sm:$0xff]
      %v8595 = vld [vmem:[#allocation2 + $0x50] sm:$0xff]
      %v8596 = vld [vmem:[#allocation2 + $0x58] sm:$0xff]
      %v8597 = vld [vmem:[#allocation2 + $0x60] sm:$0xff]
      %v8598 = vld [vmem:[#allocation2 + $0x68] sm:$0xff]
      %v8599 = vld [vmem:[#allocation2 + $0x70] sm:$0xff]
      %v8600 = vld [vmem:[#allocation2 + $0x78] sm:$0xff]
      %v8601 = vld [vmem:[#allocation2 + $0x80] sm:$0xff]
      %v8602 = vld [vmem:[#allocation2 + $0x88] sm:$0xff]
      %v8603 = vld [vmem:[#allocation2 + $0x90] sm:$0xff]
      %v8604 = vld [vmem:[#allocation2 + $0x98] sm:$0xff]
      %v8605 = vunpack.c.l.bf16 %v8585
      %v8606 = vunpack.c.h.bf16 %v8585
      %v8607 = vunpack.c.l.bf16 %v8586
      %v8608 = vunpack.c.h.bf16 %v8586
      %v8609 = vunpack.c.l.bf16 %v8587
      %v8610 = vunpack.c.h.bf16 %v8587
      %v8611 = vunpack.c.l.bf16 %v8588
      %v8612 = vunpack.c.h.bf16 %v8588
      %v8613 = vunpack.c.l.bf16 %v8589
      %v8614 = vunpack.c.h.bf16 %v8589
      %v8615 = vunpack.c.l.bf16 %v8590
      %v8616 = vunpack.c.h.bf16 %v8590
      %v8617 = vunpack.c.l.bf16 %v8591
      %v8618 = vunpack.c.h.bf16 %v8591
      %v8619 = vunpack.c.l.bf16 %v8592
      %v8620 = vunpack.c.h.bf16 %v8592
      %v8621 = vunpack.c.l.bf16 %v8593
      %v8622 = vunpack.c.h.bf16 %v8593
      %v8623 = vunpack.c.l.bf16 %v8594
      %v8624 = vunpack.c.h.bf16 %v8594
      %v8625 = vunpack.c.l.bf16 %v8595
      %v8626 = vunpack.c.h.bf16 %v8595
      %v8627 = vunpack.c.l.bf16 %v8596
      %v8628 = vunpack.c.h.bf16 %v8596
      %v8629 = vunpack.c.l.bf16 %v8597
      %v8630 = vunpack.c.h.bf16 %v8597
      %v8631 = vunpack.c.l.bf16 %v8598
      %v8632 = vunpack.c.h.bf16 %v8598
      %v8633 = vunpack.c.l.bf16 %v8599
      %v8634 = vunpack.c.h.bf16 %v8599
      %v8635 = vunpack.c.l.bf16 %v8600
      %v8636 = vunpack.c.h.bf16 %v8600
      %v8637 = vunpack.c.l.bf16 %v8601
      %v8638 = vunpack.c.h.bf16 %v8601
      %v8639 = vunpack.c.l.bf16 %v8602
      %v8640 = vunpack.c.h.bf16 %v8602
      %v8641 = vunpack.c.l.bf16 %v8603
      %v8642 = vunpack.c.h.bf16 %v8603
      %v8643 = vunpack.c.l.bf16 %v8604
      %v8644 = vunpack.c.h.bf16 %v8604
      %v8645 = vlaneseq
      %v8646 = vshrl.u32 %v8645, 7
      %v8647 = vsub.s32 0, %v8646
      %v8648 = vrot.slane %v8579, %v8647
      %v8649 = vmul.f32 %v8605, %v8648
      %v8650 = vmul.f32 %v8606, %v8648
      %v8651 = vmul.f32 %v8607, %v8648
      %v8652 = vmul.f32 %v8608, %v8648
      %v8653 = vmul.f32 %v8609, %v8648
      %v8654 = vmul.f32 %v8610, %v8648
      %v8655 = vmul.f32 %v8611, %v8648
      %v8656 = vmul.f32 %v8612, %v8648
      %v8657 = vmul.f32 %v8613, %v8648
      %v8658 = vmul.f32 %v8614, %v8648
      %v8659 = vmul.f32 %v8615, %v8648
      %v8660 = vmul.f32 %v8616, %v8648
      %v8661 = vmul.f32 %v8617, %v8648
      %v8662 = vmul.f32 %v8618, %v8648
      %v8663 = vmul.f32 %v8619, %v8648
      %v8664 = vmul.f32 %v8620, %v8648
      %v8665 = vmul.f32 %v8621, %v8648
      %v8666 = vmul.f32 %v8622, %v8648
      %v8667 = vmul.f32 %v8623, %v8648
      %v8668 = vmul.f32 %v8624, %v8648
      %v8669 = vmul.f32 %v8625, %v8648
      %v8670 = vmul.f32 %v8626, %v8648
      %v8671 = vmul.f32 %v8627, %v8648
      %v8672 = vmul.f32 %v8628, %v8648
      %v8673 = vmul.f32 %v8629, %v8648
      %v8674 = vmul.f32 %v8630, %v8648
      %v8675 = vmul.f32 %v8631, %v8648
      %v8676 = vmul.f32 %v8632, %v8648
      %v8677 = vmul.f32 %v8633, %v8648
      %v8678 = vmul.f32 %v8634, %v8648
      %v8679 = vmul.f32 %v8635, %v8648
      %v8680 = vmul.f32 %v8636, %v8648
      %v8681 = vmul.f32 %v8637, %v8648
      %v8682 = vmul.f32 %v8638, %v8648
      %v8683 = vmul.f32 %v8639, %v8648
      %v8684 = vmul.f32 %v8640, %v8648
      %v8685 = vmul.f32 %v8641, %v8648
      %v8686 = vmul.f32 %v8642, %v8648
      %v8687 = vmul.f32 %v8643, %v8648
      %v8688 = vmul.f32 %v8644, %v8648
      %v8689 = vld [vmem:[#allocation2 + $0xa0] sm:$0xff]
      %v8690 = vld [vmem:[#allocation2 + $0xa8] sm:$0xff]
      %v8691 = vld [vmem:[#allocation2 + $0xb0] sm:$0xff]
      %v8692 = vld [vmem:[#allocation2 + $0xb8] sm:$0xff]
      %v8693 = vld [vmem:[#allocation2 + $0xc0] sm:$0xff]
      %v8694 = vld [vmem:[#allocation2 + $0xc8] sm:$0xff]
      %v8695 = vld [vmem:[#allocation2 + $0xd0] sm:$0xff]
      %v8696 = vld [vmem:[#allocation2 + $0xd8] sm:$0xff]
      %v8697 = vld [vmem:[#allocation2 + $0xe0] sm:$0xff]
      %v8698 = vld [vmem:[#allocation2 + $0xe8] sm:$0xff]
      %v8699 = vld [vmem:[#allocation2 + $0xf0] sm:$0xff]
      %v8700 = vld [vmem:[#allocation2 + $0xf8] sm:$0xff]
      %v8701 = vld [vmem:[#allocation2 + $0x100] sm:$0xff]
      %v8702 = vld [vmem:[#allocation2 + $0x108] sm:$0xff]
      %v8703 = vld [vmem:[#allocation2 + $0x110] sm:$0xff]
      %v8704 = vld [vmem:[#allocation2 + $0x118] sm:$0xff]
      %v8705 = vld [vmem:[#allocation2 + $0x120] sm:$0xff]
      %v8706 = vld [vmem:[#allocation2 + $0x128] sm:$0xff]
      %v8707 = vld [vmem:[#allocation2 + $0x130] sm:$0xff]
      %v8708 = vld [vmem:[#allocation2 + $0x138] sm:$0xff]
      %v8709 = vunpack.c.l.bf16 %v8689
      %v8710 = vunpack.c.h.bf16 %v8689
      %v8711 = vunpack.c.l.bf16 %v8690
      %v8712 = vunpack.c.h.bf16 %v8690
      %v8713 = vunpack.c.l.bf16 %v8691
      %v8714 = vunpack.c.h.bf16 %v8691
      %v8715 = vunpack.c.l.bf16 %v8692
      %v8716 = vunpack.c.h.bf16 %v8692
      %v8717 = vunpack.c.l.bf16 %v8693
      %v8718 = vunpack.c.h.bf16 %v8693
      %v8719 = vunpack.c.l.bf16 %v8694
      %v8720 = vunpack.c.h.bf16 %v8694
      %v8721 = vunpack.c.l.bf16 %v8695
      %v8722 = vunpack.c.h.bf16 %v8695
      %v8723 = vunpack.c.l.bf16 %v8696
      %v8724 = vunpack.c.h.bf16 %v8696
      %v8725 = vunpack.c.l.bf16 %v8697
      %v8726 = vunpack.c.h.bf16 %v8697
      %v8727 = vunpack.c.l.bf16 %v8698
      %v8728 = vunpack.c.h.bf16 %v8698
      %v8729 = vunpack.c.l.bf16 %v8699
      %v8730 = vunpack.c.h.bf16 %v8699
      %v8731 = vunpack.c.l.bf16 %v8700
      %v8732 = vunpack.c.h.bf16 %v8700
      %v8733 = vunpack.c.l.bf16 %v8701
      %v8734 = vunpack.c.h.bf16 %v8701
      %v8735 = vunpack.c.l.bf16 %v8702
      %v8736 = vunpack.c.h.bf16 %v8702
      %v8737 = vunpack.c.l.bf16 %v8703
      %v8738 = vunpack.c.h.bf16 %v8703
      %v8739 = vunpack.c.l.bf16 %v8704
      %v8740 = vunpack.c.h.bf16 %v8704
      %v8741 = vunpack.c.l.bf16 %v8705
      %v8742 = vunpack.c.h.bf16 %v8705
      %v8743 = vunpack.c.l.bf16 %v8706
      %v8744 = vunpack.c.h.bf16 %v8706
      %v8745 = vunpack.c.l.bf16 %v8707
      %v8746 = vunpack.c.h.bf16 %v8707
      %v8747 = vunpack.c.l.bf16 %v8708
      %v8748 = vunpack.c.h.bf16 %v8708
      %v8749 = vlaneseq
      %v8750 = vshrl.u32 %v8749, 7
      %v8751 = vsub.s32 0, %v8750
      %v8752 = vrot.slane %v8584, %v8751
      %8754 = vrot.lane.b32.xlu0 %v8752, 96
      %v8755 = vpop.permute.xlu0 %8754
      %v8757 = vmul.f32 %v8709, %v8755
      %v8758 = vmul.f32 %v8710, %v8755
      %v8759 = vmul.f32 %v8711, %v8755
      %v8760 = vmul.f32 %v8712, %v8755
      %v8761 = vmul.f32 %v8713, %v8755
      %v8762 = vmul.f32 %v8714, %v8755
      %v8763 = vmul.f32 %v8715, %v8755
      %v8764 = vmul.f32 %v8716, %v8755
      %v8765 = vmul.f32 %v8717, %v8755
      %v8766 = vmul.f32 %v8718, %v8755
      %v8767 = vmul.f32 %v8719, %v8755
      %v8768 = vmul.f32 %v8720, %v8755
      %v8769 = vmul.f32 %v8721, %v8755
      %v8770 = vmul.f32 %v8722, %v8755
      %v8771 = vmul.f32 %v8723, %v8755
      %v8772 = vmul.f32 %v8724, %v8755
      %v8773 = vmul.f32 %v8725, %v8755
      %v8774 = vmul.f32 %v8726, %v8755
      %v8775 = vmul.f32 %v8727, %v8755
      %v8776 = vmul.f32 %v8728, %v8755
      %v8777 = vmul.f32 %v8729, %v8755
      %v8778 = vmul.f32 %v8730, %v8755
      %v8779 = vmul.f32 %v8731, %v8755
      %v8780 = vmul.f32 %v8732, %v8755
      %v8781 = vmul.f32 %v8733, %v8755
      %v8782 = vmul.f32 %v8734, %v8755
      %v8783 = vmul.f32 %v8735, %v8755
      %v8784 = vmul.f32 %v8736, %v8755
      %v8785 = vmul.f32 %v8737, %v8755
      %v8786 = vmul.f32 %v8738, %v8755
      %v8787 = vmul.f32 %v8739, %v8755
      %v8788 = vmul.f32 %v8740, %v8755
      %v8789 = vmul.f32 %v8741, %v8755
      %v8790 = vmul.f32 %v8742, %v8755
      %v8791 = vmul.f32 %v8743, %v8755
      %v8792 = vmul.f32 %v8744, %v8755
      %v8793 = vmul.f32 %v8745, %v8755
      %v8794 = vmul.f32 %v8746, %v8755
      %v8795 = vmul.f32 %v8747, %v8755
      %v8796 = vmul.f32 %v8748, %v8755
      %v8797 = vadd.f32 %v8649, %v8757
      %v8798 = vadd.f32 %v8650, %v8758
      %v8799 = vadd.f32 %v8651, %v8759
      %v8800 = vadd.f32 %v8652, %v8760
      %v8801 = vadd.f32 %v8653, %v8761
      %v8802 = vadd.f32 %v8654, %v8762
      %v8803 = vadd.f32 %v8655, %v8763
      %v8804 = vadd.f32 %v8656, %v8764
      %v8805 = vadd.f32 %v8657, %v8765
      %v8806 = vadd.f32 %v8658, %v8766
      %v8807 = vadd.f32 %v8659, %v8767
      %v8808 = vadd.f32 %v8660, %v8768
      %v8809 = vadd.f32 %v8661, %v8769
      %v8810 = vadd.f32 %v8662, %v8770
      %v8811 = vadd.f32 %v8663, %v8771
      %v8812 = vadd.f32 %v8664, %v8772
      %v8813 = vadd.f32 %v8665, %v8773
      %v8814 = vadd.f32 %v8666, %v8774
      %v8815 = vadd.f32 %v8667, %v8775
      %v8816 = vadd.f32 %v8668, %v8776
      %v8817 = vadd.f32 %v8669, %v8777
      %v8818 = vadd.f32 %v8670, %v8778
      %v8819 = vadd.f32 %v8671, %v8779
      %v8820 = vadd.f32 %v8672, %v8780
      %v8821 = vadd.f32 %v8673, %v8781
      %v8822 = vadd.f32 %v8674, %v8782
      %v8823 = vadd.f32 %v8675, %v8783
      %v8824 = vadd.f32 %v8676, %v8784
      %v8825 = vadd.f32 %v8677, %v8785
      %v8826 = vadd.f32 %v8678, %v8786
      %v8827 = vadd.f32 %v8679, %v8787
      %v8828 = vadd.f32 %v8680, %v8788
      %v8829 = vadd.f32 %v8681, %v8789
      %v8830 = vadd.f32 %v8682, %v8790
      %v8831 = vadd.f32 %v8683, %v8791
      %v8832 = vadd.f32 %v8684, %v8792
      %v8833 = vadd.f32 %v8685, %v8793
      %v8834 = vadd.f32 %v8686, %v8794
      %v8835 = vadd.f32 %v8687, %v8795
      %v8836 = vadd.f32 %v8688, %v8796
      %v8837 = vpack.c.bf16 %v8798, %v8797
      %v8838 = vpack.c.bf16 %v8800, %v8799
      %v8839 = vpack.c.bf16 %v8802, %v8801
      %v8840 = vpack.c.bf16 %v8804, %v8803
      %v8841 = vpack.c.bf16 %v8806, %v8805
      %v8842 = vpack.c.bf16 %v8808, %v8807
      %v8843 = vpack.c.bf16 %v8810, %v8809
      %v8844 = vpack.c.bf16 %v8812, %v8811
      %v8845 = vpack.c.bf16 %v8814, %v8813
      %v8846 = vpack.c.bf16 %v8816, %v8815
      %v8847 = vpack.c.bf16 %v8818, %v8817
      %v8848 = vpack.c.bf16 %v8820, %v8819
      %v8849 = vpack.c.bf16 %v8822, %v8821
      %v8850 = vpack.c.bf16 %v8824, %v8823
      %v8851 = vpack.c.bf16 %v8826, %v8825
      %v8852 = vpack.c.bf16 %v8828, %v8827
      %v8853 = vpack.c.bf16 %v8830, %v8829
      %v8854 = vpack.c.bf16 %v8832, %v8831
      %v8855 = vpack.c.bf16 %v8834, %v8833
      %v8856 = vpack.c.bf16 %v8836, %v8835
      %v8877 = vunpack.c.l.b16 %v8837
      %v8878 = vunpack.c.h.b16 %v8837
      %v8879 = vunpack.c.l.b16 %v8838
      %v8880 = vunpack.c.h.b16 %v8838
      %v8881 = vunpack.c.l.b16 %v8839
      %v8882 = vunpack.c.h.b16 %v8839
      %v8883 = vunpack.c.l.b16 %v8840
      %v8884 = vunpack.c.h.b16 %v8840
      %v8885 = vunpack.c.l.b16 %v8841
      %v8886 = vunpack.c.h.b16 %v8841
      %v8887 = vunpack.c.l.b16 %v8842
      %v8888 = vunpack.c.h.b16 %v8842
      %v8889 = vunpack.c.l.b16 %v8843
      %v8890 = vunpack.c.h.b16 %v8843
      %v8891 = vunpack.c.l.b16 %v8844
      %v8892 = vunpack.c.h.b16 %v8844
      %v8893 = vunpack.c.l.b16 %v8845
      %v8894 = vunpack.c.h.b16 %v8845
      %v8895 = vunpack.c.l.b16 %v8846
      %v8896 = vunpack.c.h.b16 %v8846
      %v8897 = vunpack.c.l.b16 %v8847
      %v8898 = vunpack.c.h.b16 %v8847
      %v8899 = vunpack.c.l.b16 %v8848
      %v8900 = vunpack.c.h.b16 %v8848
      %v8901 = vunpack.c.l.b16 %v8849
      %v8902 = vunpack.c.h.b16 %v8849
      %v8903 = vunpack.c.l.b16 %v8850
      %v8904 = vunpack.c.h.b16 %v8850
      %v8905 = vunpack.c.l.b16 %v8851
      %v8906 = vunpack.c.h.b16 %v8851
      %v8907 = vunpack.c.l.b16 %v8852
      %v8908 = vunpack.c.h.b16 %v8852
      %v8909 = vunpack.c.l.b16 %v8853
      %v8910 = vunpack.c.h.b16 %v8853
      %v8911 = vunpack.c.l.b16 %v8854
      %v8912 = vunpack.c.h.b16 %v8854
      %v8913 = vunpack.c.l.b16 %v8855
      %v8914 = vunpack.c.h.b16 %v8855
      %v8915 = vunpack.c.l.b16 %v8856
      %v8916 = vunpack.c.h.b16 %v8856
      %v8917 = vpack.c.b16 %v8877, %v8877
      %v8918 = vpack.c.b16 %v8878, %v8878
      %v8919 = vpack.c.b16 %v8879, %v8879
      %v8920 = vpack.c.b16 %v8880, %v8880
      %v8921 = vpack.c.b16 %v8881, %v8881
      %v8922 = vpack.c.b16 %v8882, %v8882
      %v8923 = vpack.c.b16 %v8883, %v8883
      %v8924 = vpack.c.b16 %v8884, %v8884
      %v8925 = vpack.c.b16 %v8885, %v8885
      %v8926 = vpack.c.b16 %v8886, %v8886
      %v8927 = vpack.c.b16 %v8887, %v8887
      %v8928 = vpack.c.b16 %v8888, %v8888
      %v8929 = vpack.c.b16 %v8889, %v8889
      %v8930 = vpack.c.b16 %v8890, %v8890
      %v8931 = vpack.c.b16 %v8891, %v8891
      %v8932 = vpack.c.b16 %v8892, %v8892
      %v8933 = vpack.c.b16 %v8893, %v8893
      %v8934 = vpack.c.b16 %v8894, %v8894
      %v8935 = vpack.c.b16 %v8895, %v8895
      %v8936 = vpack.c.b16 %v8896, %v8896
      %v8937 = vpack.c.b16 %v8897, %v8897
      %v8938 = vpack.c.b16 %v8898, %v8898
      %v8939 = vpack.c.b16 %v8899, %v8899
      %v8940 = vpack.c.b16 %v8900, %v8900
      %v8941 = vpack.c.b16 %v8901, %v8901
      %v8942 = vpack.c.b16 %v8902, %v8902
      %v8943 = vpack.c.b16 %v8903, %v8903
      %v8944 = vpack.c.b16 %v8904, %v8904
      %v8945 = vpack.c.b16 %v8905, %v8905
      %v8946 = vpack.c.b16 %v8906, %v8906
      %v8947 = vpack.c.b16 %v8907, %v8907
      %v8948 = vpack.c.b16 %v8908, %v8908
      %v8949 = vpack.c.b16 %v8909, %v8909
      %v8950 = vpack.c.b16 %v8910, %v8910
      %v8951 = vpack.c.b16 %v8911, %v8911
      %v8952 = vpack.c.b16 %v8912, %v8912
      %v8953 = vpack.c.b16 %v8913, %v8913
      %v8954 = vpack.c.b16 %v8914, %v8914
      %v8955 = vpack.c.b16 %v8915, %v8915
      %v8956 = vpack.c.b16 %v8916, %v8916
      %vm8997 = vcmask 257024
      %8998 = vst.msk [vmem:[%s224] sm:$0xf] %vm8997, %v8917
      %8999 = vst.msk [vmem:[%s224 + $0x4] sm:$0xf] %vm8997, %v8918
      %9000 = vst.msk [vmem:[%s224 + $0x8] sm:$0xf] %vm8997, %v8919
      %9001 = vst.msk [vmem:[%s224 + $0xc] sm:$0xf] %vm8997, %v8920
      %9002 = vst.msk [vmem:[%s224 + $0x10] sm:$0xf] %vm8997, %v8921
      %9003 = vst.msk [vmem:[%s224 + $0x14] sm:$0xf] %vm8997, %v8922
      %9004 = vst.msk [vmem:[%s224 + $0x18] sm:$0xf] %vm8997, %v8923
      %9005 = vst.msk [vmem:[%s224 + $0x1c] sm:$0xf] %vm8997, %v8924
      %9006 = vst.msk [vmem:[%s224 + $0x20] sm:$0xf] %vm8997, %v8925
      %9007 = vst.msk [vmem:[%s224 + $0x24] sm:$0xf] %vm8997, %v8926
      %9008 = vst.msk [vmem:[%s224 + $0x28] sm:$0xf] %vm8997, %v8927
      %9009 = vst.msk [vmem:[%s224 + $0x2c] sm:$0xf] %vm8997, %v8928
      %9010 = vst.msk [vmem:[%s224 + $0x30] sm:$0xf] %vm8997, %v8929
      %9011 = vst.msk [vmem:[%s224 + $0x34] sm:$0xf] %vm8997, %v8930
      %9012 = vst.msk [vmem:[%s224 + $0x38] sm:$0xf] %vm8997, %v8931
      %9013 = vst.msk [vmem:[%s224 + $0x3c] sm:$0xf] %vm8997, %v8932
      %9014 = vst.msk [vmem:[%s224 + $0x40] sm:$0xf] %vm8997, %v8933
      %9015 = vst.msk [vmem:[%s224 + $0x44] sm:$0xf] %vm8997, %v8934
      %9016 = vst.msk [vmem:[%s224 + $0x48] sm:$0xf] %vm8997, %v8935
      %9017 = vst.msk [vmem:[%s224 + $0x4c] sm:$0xf] %vm8997, %v8936
      %9018 = vst.msk [vmem:[%s224 + $0x50] sm:$0xf] %vm8997, %v8937
      %9019 = vst.msk [vmem:[%s224 + $0x54] sm:$0xf] %vm8997, %v8938
      %9020 = vst.msk [vmem:[%s224 + $0x58] sm:$0xf] %vm8997, %v8939
      %9021 = vst.msk [vmem:[%s224 + $0x5c] sm:$0xf] %vm8997, %v8940
      %9022 = vst.msk [vmem:[%s224 + $0x60] sm:$0xf] %vm8997, %v8941
      %9023 = vst.msk [vmem:[%s224 + $0x64] sm:$0xf] %vm8997, %v8942
      %9024 = vst.msk [vmem:[%s224 + $0x68] sm:$0xf] %vm8997, %v8943
      %9025 = vst.msk [vmem:[%s224 + $0x6c] sm:$0xf] %vm8997, %v8944
      %9026 = vst.msk [vmem:[%s224 + $0x70] sm:$0xf] %vm8997, %v8945
      %9027 = vst.msk [vmem:[%s224 + $0x74] sm:$0xf] %vm8997, %v8946
      %9028 = vst.msk [vmem:[%s224 + $0x78] sm:$0xf] %vm8997, %v8947
      %9029 = vst.msk [vmem:[%s224 + $0x7c] sm:$0xf] %vm8997, %v8948
      %9030 = vst.msk [vmem:[%s224 + $0x80] sm:$0xf] %vm8997, %v8949
      %9031 = vst.msk [vmem:[%s224 + $0x84] sm:$0xf] %vm8997, %v8950
      %9032 = vst.msk [vmem:[%s224 + $0x88] sm:$0xf] %vm8997, %v8951
      %9033 = vst.msk [vmem:[%s224 + $0x8c] sm:$0xf] %vm8997, %v8952
      %9034 = vst.msk [vmem:[%s224 + $0x90] sm:$0xf] %vm8997, %v8953
      %9035 = vst.msk [vmem:[%s224 + $0x94] sm:$0xf] %vm8997, %v8954
      %9036 = vst.msk [vmem:[%s224 + $0x98] sm:$0xf] %vm8997, %v8955
      %9037 = vst.msk [vmem:[%s224 + $0x9c] sm:$0xf] %vm8997, %v8956
      %p9038 = scmp.lt.s32.totalorder %s16, 1
      %s9039 = scalar_select %p9038, %s16, 1
      %s9040 = smul.addr %s9039, 40
      %s9041 = smul.addr %s9040, 4
      %s9042 = scalar_lea.vmem %s5, %s9041
      // Predicated region
      $region41: #{sk_conv_block.1} parent=39 // pred_check
        %p9043 = pneg %p144
      $region42: #{sk_conv_block.1} parent=39 // pred_check_branch
        %9045 = sbr.rel (%p9043) target = $region44
      $region43: #{sk_conv_block.1} parent=39 // pred_region
        _
      $region44: #{sk_conv_block.1} parent=39 // pred_fallthru
        _
    $region40: #{sk_conv_block.1} parent=5 // pred_fallthru
      _
    %p9046 = scmp.le.s32.totalorder 2, %s11
    // Predicated region
    $region45: #{sk_conv_block.1} parent=5 // pred_check
      %p9047 = pneg %p9046
    $region46: #{sk_conv_block.1} parent=5 // pred_check_branch
      %9049 = sbr.rel (%p9047) target = $region48
    $region47: #{sk_conv_block.1} parent=5 // pred_region
      %s9050 = ssub.s32 %s11, 2
      // Predicated region
      $region49: #{sk_conv_block.1} parent=47 // pred_check
        %p9051 = pneg %p150
      $region50: #{sk_conv_block.1} parent=47 // pred_check_branch
        %9053 = sbr.rel (%p9051) target = $region52
      $region51: #{sk_conv_block.1} parent=47 // pred_region
        %p9054 = scmp.lt.s32.totalorder %s17, 1
        %s9055 = scalar_select %p9054, %s17, 1
        %s9056 = smul.addr %s9055, 40
        %s9057 = smul.addr %s9056, 4
        %s9058 = scalar_lea.vmem %s5, %s9057
      $region52: #{sk_conv_block.1} parent=47 // pred_fallthru
        _
    $region48: #{sk_conv_block.1} parent=5 // pred_fallthru
      _
  $region6: #{sk_conv_block.1} parent=0 // loop_footer
    %s15 = sadd.s32 1, %s11
  $region7: #{sk_conv_block.1} parent=0 // loop_footer_branch
    %10 = sbr.rel target = $region3
  $region8: #{sk_conv_block.1} parent=0 // loop_exit
    _

</llo_original>
